<compile_context>
chip_gen: v6e
topology: v6e:2x2x1
jax: 0.10.0
libtpu: 0.0.40
codegen_flags: <defaults>
</compile_context>

<pallas_src>
import functools

import jax
import jax.numpy as jnp
from jax.experimental import pallas as pl
from jax.experimental.pallas import tpu as pltpu

LEAKY_SLOPE = 0.1
BN_EPS = 1e-5
TM_MAX = 256      # GEMM row tile (multiple of 8)
TN_MAX = 256      # GEMM col tile (multiple of 128)
TK_MAX = 2048     # split K (VMEM accumulator path) only beyond this
LANE = 128


def _round_up(x, m):
    return x + (-x) % m


def _pad_k(k_dim):
    """Padded K: full-K block (legal for any size) below TK_MAX, else TK tiles."""
    if k_dim <= TK_MAX:
        return _round_up(k_dim, 16)        # bf16 sublane packing
    return _round_up(k_dim, TK_MAX)


# ---------------------------------------------------------------------------
# Pallas kernels
# ---------------------------------------------------------------------------
def _gemm_bias_act_kernel(a_ref, b_ref, t_ref, o_ref, *, act):
    """Fused im2col-GEMM (bf16 x bf16 -> f32) + folded-BN bias (+ LeakyReLU)."""
    acc = jnp.dot(a_ref[...], b_ref[...], preferred_element_type=jnp.float32)
    y = acc + t_ref[...]
    if act:
        y = jnp.where(y > 0, y, y * LEAKY_SLOPE)
    o_ref[...] = y.astype(o_ref.dtype)


def _gemm_bias_act_ksplit_kernel(a_ref, b_ref, t_ref, o_ref, acc_ref, *, act, nk):
    """Same as above with a K grid axis and a VMEM f32 accumulator."""
    k = pl.program_id(2)

    @pl.when(k == 0)
    def _():
        acc_ref[...] = jnp.zeros_like(acc_ref)

    acc_ref[...] += jnp.dot(a_ref[...], b_ref[...],
                            preferred_element_type=jnp.float32)

    @pl.when(k == nk - 1)
    def _():
        y = acc_ref[...] + t_ref[...]
        if act:
            y = jnp.where(y > 0, y, y * LEAKY_SLOPE)
        o_ref[...] = y.astype(o_ref.dtype)


def _decode_kernel(p_ref, o_ref, *, D, A, W, H, stride, anchors):
    """Lane-dense YOLO decode on the flattened (B, H, W, A, D) prediction.

    Attribute / anchor / grid indices are derived in-kernel from iota, so the
    only HBM traffic is the prediction itself + the output.  Div/mod is done
    in f32 (exact for these small magnitudes) to stay on plain VPU ops.
    """
    p = p_ref[...]
    r = jax.lax.broadcasted_iota(jnp.int32, p.shape, 0).astype(jnp.float32)
    c = jax.lax.broadcasted_iota(jnp.int32, p.shape, 1).astype(jnp.float32)
    flat = r * jnp.float32(p.shape[1]) + c

    def fdivmod(x, m):
        q = jnp.floor(x / m)
        return q, x - q * m

    q, d = fdivmod(flat, D)      # attribute index
    q, a = fdivmod(q, A)         # anchor index
    q, gx = fdivmod(q, W)        # grid x
    _, gy = fdivmod(q, H)        # grid y

    sig = jax.nn.sigmoid(p)
    is_w = d == 2.0
    is_h = d == 3.0
    ex = jnp.exp(jnp.where(is_w | is_h, p, 0.0))   # exp only where needed

    aw = jnp.full(p.shape, anchors[-1][0], jnp.float32)
    ah = jnp.full(p.shape, anchors[-1][1], jnp.float32)
    for i in range(len(anchors) - 2, -1, -1):
        aw = jnp.where(a == float(i), anchors[i][0], aw)
        ah = jnp.where(a == float(i), anchors[i][1], ah)

    o_ref[...] = jnp.where(d == 0.0, (sig + gx) * stride,
                  jnp.where(d == 1.0, (sig + gy) * stride,
                   jnp.where(is_w, ex * aw,
                    jnp.where(is_h, ex * ah, sig))))


# ---------------------------------------------------------------------------
# Kernel wrappers
# ---------------------------------------------------------------------------
def _fused_gemm(a_p, wm, shift, act, out_dtype, tm):
    """a_p: (Mp, Kp) bf16 patches; wm: (Kp, Np) bf16; shift: (1, Np) f32."""
    Mp, Kp = a_p.shape
    _, Np = wm.shape
    tn = TN_MAX if Np % TN_MAX == 0 else LANE
    gm, gn = Mp // tm, Np // tn

    cost = pl.CostEstimate(
        flops=2 * Mp * Kp * Np,
        transcendentals=0,
        bytes_accessed=(a_p.size * 2 + wm.size * 2 + shift.size * 4
                        + Mp * Np * jnp.dtype(out_dtype).itemsize))
    cparams = pltpu.CompilerParams(
        dimension_semantics=("parallel", "parallel"),
        vmem_limit_bytes=32 * 1024 * 1024)

    if Kp <= TK_MAX:
        return pl.pallas_call(
            functools.partial(_gemm_bias_act_kernel, act=act),
            out_shape=jax.ShapeDtypeStruct((Mp, Np), out_dtype),
            grid=(gm, gn),
            in_specs=[
                pl.BlockSpec((tm, Kp), lambda i, j: (i, 0)),
                pl.BlockSpec((Kp, tn), lambda i, j: (0, j)),
                pl.BlockSpec((1, tn), lambda i, j: (0, j)),
            ],
            out_specs=pl.BlockSpec((tm, tn), lambda i, j: (i, j)),
            compiler_params=cparams,
            cost_estimate=cost,
        )(a_p, wm, shift)

    # K-split path (real-width safety; unused at these scaled-down sizes).
    tk = TK_MAX
    nk = Kp // tk
    cparams = pltpu.CompilerParams(
        dimension_semantics=("parallel", "parallel", "arbitrary"),
        vmem_limit_bytes=32 * 1024 * 1024)
    return pl.pallas_call(
        functools.partial(_gemm_bias_act_ksplit_kernel, act=act, nk=nk),
        out_shape=jax.ShapeDtypeStruct((Mp, Np), out_dtype),
        grid=(gm, gn, nk),
        in_specs=[
            pl.BlockSpec((tm, tk), lambda i, j, k: (i, k)),
            pl.BlockSpec((tk, tn), lambda i, j, k: (k, j)),
            pl.BlockSpec((1, tn), lambda i, j, k: (0, j)),
        ],
        out_specs=pl.BlockSpec((tm, tn), lambda i, j, k: (i, j)),
        scratch_shapes=[pltpu.VMEM((tm, tn), jnp.float32)],
        compiler_params=cparams,
        cost_estimate=cost,
    )(a_p, wm, shift)


def _im2col(x, k, stride, pad, k_pad):
    """x: (B,H,W,C) -> (B*Ho*Wo, k_pad) with feature order (dy, dx, c).

    The zero K-padding is folded into the concatenate (no extra pad copy)."""
    B, H, W, C = x.shape
    xp = jnp.pad(x, ((0, 0), (pad, pad), (pad, pad), (0, 0))) if pad else x
    Ho = (H + 2 * pad - k) // stride + 1
    Wo = (W + 2 * pad - k) // stride + 1
    cols = []
    for dy in range(k):
        for dx in range(k):
            cols.append(xp[:, dy:dy + stride * Ho:stride,
                             dx:dx + stride * Wo:stride, :])
    K = k * k * C
    if k_pad > K:
        cols.append(jnp.zeros((B, Ho, Wo, k_pad - K), x.dtype))
    patches = jnp.concatenate(cols, axis=-1)
    return patches.reshape(B * Ho * Wo, k_pad), Ho, Wo


def _conv2d(x, prep, *, k, stride, act, out_dtype):
    B = x.shape[0]
    Kp, _ = prep["wm"].shape
    assert Kp >= k * k * x.shape[-1]
    patches, Ho, Wo = _im2col(x, k, stride, k // 2, Kp)
    M = B * Ho * Wo
    tm = min(TM_MAX, _round_up(M, 8))
    Mp = _round_up(M, tm)
    if Mp != M:
        patches = jnp.pad(patches, ((0, Mp - M), (0, 0)))
    out = _fused_gemm(patches, prep["wm"], prep["shift"], act, out_dtype, tm)
    return out[:M, :prep["cout"]].reshape(B, Ho, Wo, prep["cout"])


def _cbl(x, prep, k, stride):
    return _conv2d(x, prep, k=k, stride=stride, act=True, out_dtype=jnp.bfloat16)


def _pred_conv(x, prep):
    return _conv2d(x, prep, k=1, stride=1, act=False, out_dtype=jnp.float32)


def _upsample2x(x):
    return jnp.repeat(jnp.repeat(x, 2, axis=1), 2, axis=2)


def _decode_scale(raw, anchors_scale, stride, num_classes):
    B, H, W, _ = raw.shape
    A = len(anchors_scale)
    D = 5 + num_classes
    L = B * H * W * A * D
    R = pl.cdiv(L, LANE)
    flat = raw.reshape(-1)
    if R * LANE != L:
        flat = jnp.pad(flat, (0, R * LANE - L))
    out = pl.pallas_call(
        functools.partial(
            _decode_kernel, D=D, A=A, W=W, H=H, stride=float(stride),
            anchors=tuple((float(aw), float(ah)) for aw, ah in anchors_scale)),
        out_shape=jax.ShapeDtypeStruct((R, LANE), jnp.float32),
    )(flat.reshape(R, LANE))
    out = out.reshape(-1)[:L].reshape(B, H, W, A, D)
    # anchor-major ordering (same semantics as before)
    return out.transpose(0, 3, 1, 2, 4).reshape(B, A * H * W, D)


# ---------------------------------------------------------------------------
# Parameter initialization (deterministic, synthetic) + one-time preparation
# ---------------------------------------------------------------------------
class _KeyGen:
    def __init__(self, seed):
        self._key = jax.random.PRNGKey(seed)

    def __call__(self):
        self._key, k = jax.random.split(self._key)
        return k


def _init_cbl(kg, cin, cout, k):
    return dict(
        w=0.05 * jax.random.normal(kg(), (cout, cin, k, k), jnp.float32),
        gamma=1.0 + 0.01 * jax.random.normal(kg(), (cout,), jnp.float32),
        beta=0.01 * jax.random.normal(kg(), (cout,), jnp.float32),
        mean=0.01 * jax.random.normal(kg(), (cout,), jnp.float32),
        var=1.0 + 0.1 * jnp.abs(jax.random.normal(kg(), (cout,), jnp.float32)),
    )


def _init_pred(kg, cin, cout):
    return dict(
        w=0.05 * jax.random.normal(kg(), (cout, cin, 1, 1), jnp.float32),
        b=0.01 * jax.random.normal(kg(), (cout,), jnp.float32),
    )


REPEATS = (1, 2, 8, 8, 4)
CHANNELS = (4, 8, 16, 32, 64, 128)   # scaled-down Darknet53 widths


def init_params(seed, num_classes, num_anchors):
    kg = _KeyGen(seed)
    C = CHANNELS
    P = {"stem": _init_cbl(kg, 3, C[0], 3)}
    for si, rep in enumerate(REPEATS):
        cin, cout = C[si], C[si + 1]
        P[f"down{si}"] = _init_cbl(kg, cin, cout, 3)
        P[f"res{si}"] = [
            (_init_cbl(kg, cout, cout // 2, 1), _init_cbl(kg, cout // 2, cout, 3))
            for _ in range(rep)
        ]

    def convset(cin, cmid):
        return [_init_cbl(kg, cin, cmid, 1),
                _init_cbl(kg, cmid, 2 * cmid, 3),
                _init_cbl(kg, 2 * cmid, cmid, 1),
                _init_cbl(kg, cmid, 2 * cmid, 3),
                _init_cbl(kg, 2 * cmid, cmid, 1)]

    P["set_s"] = convset(C[5], C[4])            # 128 -> 64
    P["up_s"] = _init_cbl(kg, C[4], C[3], 1)    # 64 -> 32
    P["set_m"] = convset(C[3] + C[4], C[3])     # 96 -> 32
    P["up_m"] = _init_cbl(kg, C[3], C[2], 1)    # 32 -> 16
    P["set_l"] = convset(C[2] + C[3], C[2])     # 48 -> 16

    D = 5 + num_classes
    last = num_anchors * D
    P["head_l"] = dict(conv=_init_cbl(kg, C[2], C[3], 3), pred=_init_pred(kg, C[3], last))
    P["head_m"] = dict(conv=_init_cbl(kg, C[3], C[4], 3), pred=_init_pred(kg, C[4], last))
    P["head_s"] = dict(conv=_init_cbl(kg, C[4], C[5], 3), pred=_init_pred(kg, C[5], last))
    return P


def _prep_conv(w, scale, shift):
    """Fold scale into w, transpose to (k*k*cin, cout), pad lanes, cast bf16."""
    cout, cin, kh, kw = w.shape
    wf = w * scale[:, None, None, None]
    wm = jnp.transpose(wf, (2, 3, 1, 0)).reshape(kh * kw * cin, cout)
    K = kh * kw * cin
    Kp = _pad_k(K)
    Np = _round_up(cout, LANE)
    wm = jnp.pad(wm, ((0, Kp - K), (0, Np - cout))).astype(jnp.bfloat16)
    sh = jnp.pad(shift.reshape(1, cout),
                 ((0, 0), (0, Np - cout))).astype(jnp.float32)
    return dict(wm=wm, shift=sh, cout=cout)


def prepare_params(P):
    """One-time BN folding + weight transpose/pad/cast (removed from forward)."""
    def cbl(p):
        scale = p["gamma"] / jnp.sqrt(p["var"] + BN_EPS)
        shift = p["beta"] - p["mean"] * scale
        return _prep_conv(p["w"], scale, shift)

    def pred(p):
        cout = p["w"].shape[0]
        return _prep_conv(p["w"], jnp.ones((cout,), jnp.float32), p["b"])

    Q = {"stem": cbl(P["stem"])}
    for si, _ in enumerate(REPEATS):
        Q[f"down{si}"] = cbl(P[f"down{si}"])
        Q[f"res{si}"] = [(cbl(p1), cbl(p2)) for p1, p2 in P[f"res{si}"]]
    for name in ("set_s", "set_m", "set_l"):
        Q[name] = [cbl(p) for p in P[name]]
    for name in ("up_s", "up_m"):
        Q[name] = cbl(P[name])
    for name in ("head_l", "head_m", "head_s"):
        Q[name] = dict(conv=cbl(P[name]["conv"]), pred=pred(P[name]["pred"]))
    return Q


# ---------------------------------------------------------------------------
# Forward pass: backbone -> FPN -> head (decode)
# ---------------------------------------------------------------------------
def _conv_set(x, plist):
    for p, k in zip(plist, (1, 3, 1, 3, 1)):
        x = _cbl(x, p, k, 1)
    return x


def yolov3_forward(x_nchw, params, anchors, num_classes):
    x = jnp.transpose(x_nchw, (0, 2, 3, 1)).astype(jnp.bfloat16)   # NCHW -> NHWC
    P = params
    # --- Darknet53 backbone -------------------------------------------------
    y = _cbl(x, P["stem"], 3, 1)
    feats = []
    for si, _ in enumerate(REPEATS):
        y = _cbl(y, P[f"down{si}"], 3, 2)
        for p1, p2 in P[f"res{si}"]:
            r = y
            y = _cbl(y, p1, 1, 1)
            y = _cbl(y, p2, 3, 1)
            y = y + r
        if si >= 2:
            feats.append(y)
    x1, x2, x3 = feats                                 # strides 8, 16, 32
    # --- FPN ------------------------------------------------------------------
    f_s = _conv_set(x3, P["set_s"])
    b = _upsample2x(_cbl(f_s, P["up_s"], 1, 1))
    f_m = _conv_set(jnp.concatenate([b, x2], axis=-1), P["set_m"])
    b = _upsample2x(_cbl(f_m, P["up_m"], 1, 1))
    f_l = _conv_set(jnp.concatenate([b, x1], axis=-1), P["set_l"])
    # --- Head + decode --------------------------------------------------------
    preds = []
    for f, name, anc, stride in ((f_l, "head_l", anchors[0], 8),
                                 (f_m, "head_m", anchors[1], 16),
                                 (f_s, "head_s", anchors[2], 32)):
        h = _cbl(f, P[name]["conv"], 3, 1)
        raw = _pred_conv(h, P[name]["pred"])
        preds.append(_decode_scale(raw, anc, stride, num_classes))
    return jnp.concatenate(preds, axis=1)              # (B, sum_anchors, 5+C)


# ---------------------------------------------------------------------------
if __name__ == "__main__":
    input_size = 64
    num_classes = 3
    base_anchors = [
        [(10, 13), (16, 30), (33, 23)],        # stride 8
        [(30, 61), (62, 45), (59, 119)],       # stride 16
        [(116, 90), (156, 198), (373, 326)],   # stride 32
    ]
    s = input_size / 416.0
    anchors = [[(w * s, h * s) for (w, h) in sc] for sc in base_anchors]

    raw_params = init_params(0, num_classes, num_anchors=len(anchors[0]))
    prep = prepare_params(raw_params)                   # one-time weight prep

    key = jax.random.PRNGKey(0)
    x = jax.random.normal(key, (2, 3, input_size, input_size), jnp.float32)

    fwd = jax.jit(functools.partial(yolov3_forward, params=prep,
                                    anchors=anchors, num_classes=num_classes))
    preds = jax.block_until_ready(fwd(x))

    A, D = len(anchors[0]), 5 + num_classes
    total = A * sum((input_size // st) ** 2 for st in (8, 16, 32))
    assert preds.shape == (2, total, D), preds.shape
    assert bool(jnp.all(jnp.isfinite(preds)))
    print("KERNEL_OK")
</pallas_src>

<mosaic_0001>
module attributes {stable_mosaic.version = 11 : i64} {
  func.func @_gemm_bias_act_kernel(%arg0: i32, %arg1: i32, %arg2: memref<256x32xbf16, #tpu.memory_space<vmem>>, %arg3: memref<32x128xbf16, #tpu.memory_space<vmem>>, %arg4: memref<1x128xf32, #tpu.memory_space<vmem>>, %arg5: memref<256x128xbf16, #tpu.memory_space<vmem>>) attributes {dimension_semantics = [#tpu.dimension_semantics<parallel>, #tpu.dimension_semantics<parallel>], iteration_bounds = array<i64: 32, 1>, scalar_prefetch = 0 : i64, scratch_operands = 0 : i64, tpu.core_type = #tpu.core_type<tc>, window_params = [{transform_indices = @transform_0, window_bounds = array<i64: 256, 32>}, {transform_indices = @transform_1, window_bounds = array<i64: 32, 128>}, {transform_indices = @transform_2, window_bounds = array<i64: 1, 128>}, {transform_indices = @transform_3, window_bounds = array<i64: 256, 128>}]} {
    %c0 = arith.constant 0 : index
    %c0_0 = arith.constant 0 : index
    %0 = vector.load %arg2[%c0, %c0_0] : memref<256x32xbf16, #tpu.memory_space<vmem>>, vector<256x32xbf16>
    %c0_1 = arith.constant 0 : index
    %c0_2 = arith.constant 0 : index
    %1 = vector.load %arg3[%c0_1, %c0_2] : memref<32x128xbf16, #tpu.memory_space<vmem>>, vector<32x128xbf16>
    %cst = arith.constant dense<0.000000e+00> : vector<256x128xf32>
    %2 = tpu.matmul %0, %1, %cst {dimension_numbers = #tpu.dot_dimension_numbers<[1], [0], [0], [1], [0, 0, 1, 1], [], []>} : vector<256x32xbf16>, vector<32x128xbf16>, vector<256x128xf32> -> vector<256x128xf32>
    %c0_3 = arith.constant 0 : index
    %c0_4 = arith.constant 0 : index
    %3 = vector.load %arg4[%c0_3, %c0_4] : memref<1x128xf32, #tpu.memory_space<vmem>>, vector<1x128xf32>
    %4 = vector.broadcast %3 : vector<1x128xf32> to vector<256x128xf32>
    %5 = arith.addf %2, %4 : vector<256x128xf32>
    %cst_5 = arith.constant 0.000000e+00 : f32
    %6 = vector.broadcast %cst_5 : f32 to vector<256x128xf32>
    %7 = arith.cmpf ogt, %5, %6 : vector<256x128xf32>
    %cst_6 = arith.constant 1.000000e-01 : f32
    %8 = vector.broadcast %cst_6 : f32 to vector<256x128xf32>
    %9 = arith.mulf %5, %8 : vector<256x128xf32>
    %10 = arith.select %7, %5, %9 : vector<256x128xi1>, vector<256x128xf32>
    %11 = arith.truncf %10 : vector<256x128xf32> to vector<256x128xbf16>
    %c0_7 = arith.constant 0 : index
    %c0_8 = arith.constant 0 : index
    %12 = vector.load %arg5[%c0_7, %c0_8] : memref<256x128xbf16, #tpu.memory_space<vmem>>, vector<256x128xbf16>
    tpu.vector_store %arg5[%c0_7, %c0_8], %11 {strides = array<i32>} : memref<256x128xbf16, #tpu.memory_space<vmem>>, vector<256x128xbf16>,
    return
  }
  func.func @transform_0(%arg0: i32, %arg1: i32) -> (i32, i32) {
    %c0_i32 = arith.constant 0 : i32
    %c0_i32_0 = arith.constant 0 : i32
    return %arg0, %c0_i32 : i32, i32
  }
  func.func @transform_1(%arg0: i32, %arg1: i32) -> (i32, i32) {
    %c0_i32 = arith.constant 0 : i32
    %c0_i32_0 = arith.constant 0 : i32
    return %c0_i32, %arg1 : i32, i32
  }
  func.func @transform_2(%arg0: i32, %arg1: i32) -> (i32, i32) {
    %c0_i32 = arith.constant 0 : i32
    %c0_i32_0 = arith.constant 0 : i32
    return %c0_i32, %arg1 : i32, i32
  }
  func.func @transform_3(%arg0: i32, %arg1: i32) -> (i32, i32) {
    %c0_i32 = arith.constant 0 : i32
    return %arg0, %arg1 : i32, i32
  }
}

module attributes {stable_mosaic.version = 11 : i64} {
  func.func @_gemm_bias_act_kernel(%arg0: i32, %arg1: i32, %arg2: memref<256x48xbf16, #tpu.memory_space<vmem>>, %arg3: memref<48x128xbf16, #tpu.memory_space<vmem>>, %arg4: memref<1x128xf32, #tpu.memory_space<vmem>>, %arg5: memref<256x128xbf16, #tpu.memory_space<vmem>>) attributes {dimension_semantics = [#tpu.dimension_semantics<parallel>, #tpu.dimension_semantics<parallel>], iteration_bounds = array<i64: 8, 1>, scalar_prefetch = 0 : i64, scratch_operands = 0 : i64, tpu.core_type = #tpu.core_type<tc>, window_params = [{transform_indices = @transform_0, window_bounds = array<i64: 256, 48>}, {transform_indices = @transform_1, window_bounds = array<i64: 48, 128>}, {transform_indices = @transform_2, window_bounds = array<i64: 1, 128>}, {transform_indices = @transform_3, window_bounds = array<i64: 256, 128>}]} {
    %c0 = arith.constant 0 : index
    %c0_0 = arith.constant 0 : index
    %0 = vector.load %arg2[%c0, %c0_0] : memref<256x48xbf16, #tpu.memory_space<vmem>>, vector<256x48xbf16>
    %c0_1 = arith.constant 0 : index
    %c0_2 = arith.constant 0 : index
    %1 = vector.load %arg3[%c0_1, %c0_2] : memref<48x128xbf16, #tpu.memory_space<vmem>>, vector<48x128xbf16>
    %cst = arith.constant dense<0.000000e+00> : vector<256x128xf32>
    %2 = tpu.matmul %0, %1, %cst {dimension_numbers = #tpu.dot_dimension_numbers<[1], [0], [0], [1], [0, 0, 1, 1], [], []>} : vector<256x48xbf16>, vector<48x128xbf16>, vector<256x128xf32> -> vector<256x128xf32>
    %c0_3 = arith.constant 0 : index
    %c0_4 = arith.constant 0 : index
    %3 = vector.load %arg4[%c0_3, %c0_4] : memref<1x128xf32, #tpu.memory_space<vmem>>, vector<1x128xf32>
    %4 = vector.broadcast %3 : vector<1x128xf32> to vector<256x128xf32>
    %5 = arith.addf %2, %4 : vector<256x128xf32>
    %cst_5 = arith.constant 0.000000e+00 : f32
    %6 = vector.broadcast %cst_5 : f32 to vector<256x128xf32>
    %7 = arith.cmpf ogt, %5, %6 : vector<256x128xf32>
    %cst_6 = arith.constant 1.000000e-01 : f32
    %8 = vector.broadcast %cst_6 : f32 to vector<256x128xf32>
    %9 = arith.mulf %5, %8 : vector<256x128xf32>
    %10 = arith.select %7, %5, %9 : vector<256x128xi1>, vector<256x128xf32>
    %11 = arith.truncf %10 : vector<256x128xf32> to vector<256x128xbf16>
    %c0_7 = arith.constant 0 : index
    %c0_8 = arith.constant 0 : index
    %12 = vector.load %arg5[%c0_7, %c0_8] : memref<256x128xbf16, #tpu.memory_space<vmem>>, vector<256x128xbf16>
    tpu.vector_store %arg5[%c0_7, %c0_8], %11 {strides = array<i32>} : memref<256x128xbf16, #tpu.memory_space<vmem>>, vector<256x128xbf16>,
    return
  }
  func.func @transform_0(%arg0: i32, %arg1: i32) -> (i32, i32) {
    %c0_i32 = arith.constant 0 : i32
    %c0_i32_0 = arith.constant 0 : i32
    return %arg0, %c0_i32 : i32, i32
  }
  func.func @transform_1(%arg0: i32, %arg1: i32) -> (i32, i32) {
    %c0_i32 = arith.constant 0 : i32
    %c0_i32_0 = arith.constant 0 : i32
    return %c0_i32, %arg1 : i32, i32
  }
  func.func @transform_2(%arg0: i32, %arg1: i32) -> (i32, i32) {
    %c0_i32 = arith.constant 0 : i32
    %c0_i32_0 = arith.constant 0 : i32
    return %c0_i32, %arg1 : i32, i32
  }
  func.func @transform_3(%arg0: i32, %arg1: i32) -> (i32, i32) {
    %c0_i32 = arith.constant 0 : i32
    return %arg0, %arg1 : i32, i32
  }
}

module attributes {stable_mosaic.version = 11 : i64} {
  func.func @_gemm_bias_act_kernel(%arg0: i32, %arg1: i32, %arg2: memref<256x16xbf16, #tpu.memory_space<vmem>>, %arg3: memref<16x128xbf16, #tpu.memory_space<vmem>>, %arg4: memref<1x128xf32, #tpu.memory_space<vmem>>, %arg5: memref<256x128xbf16, #tpu.memory_space<vmem>>) attributes {dimension_semantics = [#tpu.dimension_semantics<parallel>, #tpu.dimension_semantics<parallel>], iteration_bounds = array<i64: 8, 1>, scalar_prefetch = 0 : i64, scratch_operands = 0 : i64, tpu.core_type = #tpu.core_type<tc>, window_params = [{transform_indices = @transform_0, window_bounds = array<i64: 256, 16>}, {transform_indices = @transform_1, window_bounds = array<i64: 16, 128>}, {transform_indices = @transform_2, window_bounds = array<i64: 1, 128>}, {transform_indices = @transform_3, window_bounds = array<i64: 256, 128>}]} {
    %c0 = arith.constant 0 : index
    %c0_0 = arith.constant 0 : index
    %0 = vector.load %arg2[%c0, %c0_0] : memref<256x16xbf16, #tpu.memory_space<vmem>>, vector<256x16xbf16>
    %c0_1 = arith.constant 0 : index
    %c0_2 = arith.constant 0 : index
    %1 = vector.load %arg3[%c0_1, %c0_2] : memref<16x128xbf16, #tpu.memory_space<vmem>>, vector<16x128xbf16>
    %cst = arith.constant dense<0.000000e+00> : vector<256x128xf32>
    %2 = tpu.matmul %0, %1, %cst {dimension_numbers = #tpu.dot_dimension_numbers<[1], [0], [0], [1], [0, 0, 1, 1], [], []>} : vector<256x16xbf16>, vector<16x128xbf16>, vector<256x128xf32> -> vector<256x128xf32>
    %c0_3 = arith.constant 0 : index
    %c0_4 = arith.constant 0 : index
    %3 = vector.load %arg4[%c0_3, %c0_4] : memref<1x128xf32, #tpu.memory_space<vmem>>, vector<1x128xf32>
    %4 = vector.broadcast %3 : vector<1x128xf32> to vector<256x128xf32>
    %5 = arith.addf %2, %4 : vector<256x128xf32>
    %cst_5 = arith.constant 0.000000e+00 : f32
    %6 = vector.broadcast %cst_5 : f32 to vector<256x128xf32>
    %7 = arith.cmpf ogt, %5, %6 : vector<256x128xf32>
    %cst_6 = arith.constant 1.000000e-01 : f32
    %8 = vector.broadcast %cst_6 : f32 to vector<256x128xf32>
    %9 = arith.mulf %5, %8 : vector<256x128xf32>
    %10 = arith.select %7, %5, %9 : vector<256x128xi1>, vector<256x128xf32>
    %11 = arith.truncf %10 : vector<256x128xf32> to vector<256x128xbf16>
    %c0_7 = arith.constant 0 : index
    %c0_8 = arith.constant 0 : index
    %12 = vector.load %arg5[%c0_7, %c0_8] : memref<256x128xbf16, #tpu.memory_space<vmem>>, vector<256x128xbf16>
    tpu.vector_store %arg5[%c0_7, %c0_8], %11 {strides = array<i32>} : memref<256x128xbf16, #tpu.memory_space<vmem>>, vector<256x128xbf16>,
    return
  }
  func.func @transform_0(%arg0: i32, %arg1: i32) -> (i32, i32) {
    %c0_i32 = arith.constant 0 : i32
    %c0_i32_0 = arith.constant 0 : i32
    return %arg0, %c0_i32 : i32, i32
  }
  func.func @transform_1(%arg0: i32, %arg1: i32) -> (i32, i32) {
    %c0_i32 = arith.constant 0 : i32
    %c0_i32_0 = arith.constant 0 : i32
    return %c0_i32, %arg1 : i32, i32
  }
  func.func @transform_2(%arg0: i32, %arg1: i32) -> (i32, i32) {
    %c0_i32 = arith.constant 0 : i32
    %c0_i32_0 = arith.constant 0 : i32
    return %c0_i32, %arg1 : i32, i32
  }
  func.func @transform_3(%arg0: i32, %arg1: i32) -> (i32, i32) {
    %c0_i32 = arith.constant 0 : i32
    return %arg0, %arg1 : i32, i32
  }
}

module attributes {stable_mosaic.version = 11 : i64} {
  func.func @_gemm_bias_act_kernel(%arg0: i32, %arg1: i32, %arg2: memref<256x80xbf16, #tpu.memory_space<vmem>>, %arg3: memref<80x128xbf16, #tpu.memory_space<vmem>>, %arg4: memref<1x128xf32, #tpu.memory_space<vmem>>, %arg5: memref<256x128xbf16, #tpu.memory_space<vmem>>) attributes {dimension_semantics = [#tpu.dimension_semantics<parallel>, #tpu.dimension_semantics<parallel>], iteration_bounds = array<i64: 2, 1>, scalar_prefetch = 0 : i64, scratch_operands = 0 : i64, tpu.core_type = #tpu.core_type<tc>, window_params = [{transform_indices = @transform_0, window_bounds = array<i64: 256, 80>}, {transform_indices = @transform_1, window_bounds = array<i64: 80, 128>}, {transform_indices = @transform_2, window_bounds = array<i64: 1, 128>}, {transform_indices = @transform_3, window_bounds = array<i64: 256, 128>}]} {
    %c0 = arith.constant 0 : index
    %c0_0 = arith.constant 0 : index
    %0 = vector.load %arg2[%c0, %c0_0] : memref<256x80xbf16, #tpu.memory_space<vmem>>, vector<256x80xbf16>
    %c0_1 = arith.constant 0 : index
    %c0_2 = arith.constant 0 : index
    %1 = vector.load %arg3[%c0_1, %c0_2] : memref<80x128xbf16, #tpu.memory_space<vmem>>, vector<80x128xbf16>
    %cst = arith.constant dense<0.000000e+00> : vector<256x128xf32>
    %2 = tpu.matmul %0, %1, %cst {dimension_numbers = #tpu.dot_dimension_numbers<[1], [0], [0], [1], [0, 0, 1, 1], [], []>} : vector<256x80xbf16>, vector<80x128xbf16>, vector<256x128xf32> -> vector<256x128xf32>
    %c0_3 = arith.constant 0 : index
    %c0_4 = arith.constant 0 : index
    %3 = vector.load %arg4[%c0_3, %c0_4] : memref<1x128xf32, #tpu.memory_space<vmem>>, vector<1x128xf32>
    %4 = vector.broadcast %3 : vector<1x128xf32> to vector<256x128xf32>
    %5 = arith.addf %2, %4 : vector<256x128xf32>
    %cst_5 = arith.constant 0.000000e+00 : f32
    %6 = vector.broadcast %cst_5 : f32 to vector<256x128xf32>
    %7 = arith.cmpf ogt, %5, %6 : vector<256x128xf32>
    %cst_6 = arith.constant 1.000000e-01 : f32
    %8 = vector.broadcast %cst_6 : f32 to vector<256x128xf32>
    %9 = arith.mulf %5, %8 : vector<256x128xf32>
    %10 = arith.select %7, %5, %9 : vector<256x128xi1>, vector<256x128xf32>
    %11 = arith.truncf %10 : vector<256x128xf32> to vector<256x128xbf16>
    %c0_7 = arith.constant 0 : index
    %c0_8 = arith.constant 0 : index
    %12 = vector.load %arg5[%c0_7, %c0_8] : memref<256x128xbf16, #tpu.memory_space<vmem>>, vector<256x128xbf16>
    tpu.vector_store %arg5[%c0_7, %c0_8], %11 {strides = array<i32>} : memref<256x128xbf16, #tpu.memory_space<vmem>>, vector<256x128xbf16>,
    return
  }
  func.func @transform_0(%arg0: i32, %arg1: i32) -> (i32, i32) {
    %c0_i32 = arith.constant 0 : i32
    %c0_i32_0 = arith.constant 0 : i32
    return %arg0, %c0_i32 : i32, i32
  }
  func.func @transform_1(%arg0: i32, %arg1: i32) -> (i32, i32) {
    %c0_i32 = arith.constant 0 : i32
    %c0_i32_0 = arith.constant 0 : i32
    return %c0_i32, %arg1 : i32, i32
  }
  func.func @transform_2(%arg0: i32, %arg1: i32) -> (i32, i32) {
    %c0_i32 = arith.constant 0 : i32
    %c0_i32_0 = arith.constant 0 : i32
    return %c0_i32, %arg1 : i32, i32
  }
  func.func @transform_3(%arg0: i32, %arg1: i32) -> (i32, i32) {
    %c0_i32 = arith.constant 0 : i32
    return %arg0, %arg1 : i32, i32
  }
}

module attributes {stable_mosaic.version = 11 : i64} {
  func.func @_gemm_bias_act_kernel(%arg0: i32, %arg1: i32, %arg2: memref<256x16xbf16, #tpu.memory_space<vmem>>, %arg3: memref<16x128xbf16, #tpu.memory_space<vmem>>, %arg4: memref<1x128xf32, #tpu.memory_space<vmem>>, %arg5: memref<256x128xbf16, #tpu.memory_space<vmem>>) attributes {dimension_semantics = [#tpu.dimension_semantics<parallel>, #tpu.dimension_semantics<parallel>], iteration_bounds = array<i64: 2, 1>, scalar_prefetch = 0 : i64, scratch_operands = 0 : i64, tpu.core_type = #tpu.core_type<tc>, window_params = [{transform_indices = @transform_0, window_bounds = array<i64: 256, 16>}, {transform_indices = @transform_1, window_bounds = array<i64: 16, 128>}, {transform_indices = @transform_2, window_bounds = array<i64: 1, 128>}, {transform_indices = @transform_3, window_bounds = array<i64: 256, 128>}]} {
    %c0 = arith.constant 0 : index
    %c0_0 = arith.constant 0 : index
    %0 = vector.load %arg2[%c0, %c0_0] : memref<256x16xbf16, #tpu.memory_space<vmem>>, vector<256x16xbf16>
    %c0_1 = arith.constant 0 : index
    %c0_2 = arith.constant 0 : index
    %1 = vector.load %arg3[%c0_1, %c0_2] : memref<16x128xbf16, #tpu.memory_space<vmem>>, vector<16x128xbf16>
    %cst = arith.constant dense<0.000000e+00> : vector<256x128xf32>
    %2 = tpu.matmul %0, %1, %cst {dimension_numbers = #tpu.dot_dimension_numbers<[1], [0], [0], [1], [0, 0, 1, 1], [], []>} : vector<256x16xbf16>, vector<16x128xbf16>, vector<256x128xf32> -> vector<256x128xf32>
    %c0_3 = arith.constant 0 : index
    %c0_4 = arith.constant 0 : index
    %3 = vector.load %arg4[%c0_3, %c0_4] : memref<1x128xf32, #tpu.memory_space<vmem>>, vector<1x128xf32>
    %4 = vector.broadcast %3 : vector<1x128xf32> to vector<256x128xf32>
    %5 = arith.addf %2, %4 : vector<256x128xf32>
    %cst_5 = arith.constant 0.000000e+00 : f32
    %6 = vector.broadcast %cst_5 : f32 to vector<256x128xf32>
    %7 = arith.cmpf ogt, %5, %6 : vector<256x128xf32>
    %cst_6 = arith.constant 1.000000e-01 : f32
    %8 = vector.broadcast %cst_6 : f32 to vector<256x128xf32>
    %9 = arith.mulf %5, %8 : vector<256x128xf32>
    %10 = arith.select %7, %5, %9 : vector<256x128xi1>, vector<256x128xf32>
    %11 = arith.truncf %10 : vector<256x128xf32> to vector<256x128xbf16>
    %c0_7 = arith.constant 0 : index
    %c0_8 = arith.constant 0 : index
    %12 = vector.load %arg5[%c0_7, %c0_8] : memref<256x128xbf16, #tpu.memory_space<vmem>>, vector<256x128xbf16>
    tpu.vector_store %arg5[%c0_7, %c0_8], %11 {strides = array<i32>} : memref<256x128xbf16, #tpu.memory_space<vmem>>, vector<256x128xbf16>,
    return
  }
  func.func @transform_0(%arg0: i32, %arg1: i32) -> (i32, i32) {
    %c0_i32 = arith.constant 0 : i32
    %c0_i32_0 = arith.constant 0 : i32
    return %arg0, %c0_i32 : i32, i32
  }
  func.func @transform_1(%arg0: i32, %arg1: i32) -> (i32, i32) {
    %c0_i32 = arith.constant 0 : i32
    %c0_i32_0 = arith.constant 0 : i32
    return %c0_i32, %arg1 : i32, i32
  }
  func.func @transform_2(%arg0: i32, %arg1: i32) -> (i32, i32) {
    %c0_i32 = arith.constant 0 : i32
    %c0_i32_0 = arith.constant 0 : i32
    return %c0_i32, %arg1 : i32, i32
  }
  func.func @transform_3(%arg0: i32, %arg1: i32) -> (i32, i32) {
    %c0_i32 = arith.constant 0 : i32
    return %arg0, %arg1 : i32, i32
  }
}

module attributes {stable_mosaic.version = 11 : i64} {
  func.func @_gemm_bias_act_kernel(%arg0: i32, %arg1: i32, %arg2: memref<128x144xbf16, #tpu.memory_space<vmem>>, %arg3: memref<144x128xbf16, #tpu.memory_space<vmem>>, %arg4: memref<1x128xf32, #tpu.memory_space<vmem>>, %arg5: memref<128x128xbf16, #tpu.memory_space<vmem>>) attributes {dimension_semantics = [#tpu.dimension_semantics<parallel>, #tpu.dimension_semantics<parallel>], iteration_bounds = array<i64: 1, 1>, scalar_prefetch = 0 : i64, scratch_operands = 0 : i64, tpu.core_type = #tpu.core_type<tc>, window_params = [{transform_indices = @transform_0, window_bounds = array<i64: 128, 144>}, {transform_indices = @transform_1, window_bounds = array<i64: 144, 128>}, {transform_indices = @transform_2, window_bounds = array<i64: 1, 128>}, {transform_indices = @transform_3, window_bounds = array<i64: 128, 128>}]} {
    %c0 = arith.constant 0 : index
    %c0_0 = arith.constant 0 : index
    %0 = vector.load %arg2[%c0, %c0_0] : memref<128x144xbf16, #tpu.memory_space<vmem>>, vector<128x144xbf16>
    %c0_1 = arith.constant 0 : index
    %c0_2 = arith.constant 0 : index
    %1 = vector.load %arg3[%c0_1, %c0_2] : memref<144x128xbf16, #tpu.memory_space<vmem>>, vector<144x128xbf16>
    %cst = arith.constant dense<0.000000e+00> : vector<128x128xf32>
    %2 = tpu.matmul %0, %1, %cst {dimension_numbers = #tpu.dot_dimension_numbers<[1], [0], [0], [1], [0, 0, 1, 1], [], []>} : vector<128x144xbf16>, vector<144x128xbf16>, vector<128x128xf32> -> vector<128x128xf32>
    %c0_3 = arith.constant 0 : index
    %c0_4 = arith.constant 0 : index
    %3 = vector.load %arg4[%c0_3, %c0_4] : memref<1x128xf32, #tpu.memory_space<vmem>>, vector<1x128xf32>
    %4 = vector.broadcast %3 : vector<1x128xf32> to vector<128x128xf32>
    %5 = arith.addf %2, %4 : vector<128x128xf32>
    %cst_5 = arith.constant 0.000000e+00 : f32
    %6 = vector.broadcast %cst_5 : f32 to vector<128x128xf32>
    %7 = arith.cmpf ogt, %5, %6 : vector<128x128xf32>
    %cst_6 = arith.constant 1.000000e-01 : f32
    %8 = vector.broadcast %cst_6 : f32 to vector<128x128xf32>
    %9 = arith.mulf %5, %8 : vector<128x128xf32>
    %10 = arith.select %7, %5, %9 : vector<128x128xi1>, vector<128x128xf32>
    %11 = arith.truncf %10 : vector<128x128xf32> to vector<128x128xbf16>
    %c0_7 = arith.constant 0 : index
    %c0_8 = arith.constant 0 : index
    %12 = vector.load %arg5[%c0_7, %c0_8] : memref<128x128xbf16, #tpu.memory_space<vmem>>, vector<128x128xbf16>
    tpu.vector_store %arg5[%c0_7, %c0_8], %11 {strides = array<i32>} : memref<128x128xbf16, #tpu.memory_space<vmem>>, vector<128x128xbf16>,
    return
  }
  func.func @transform_0(%arg0: i32, %arg1: i32) -> (i32, i32) {
    %c0_i32 = arith.constant 0 : i32
    %c0_i32_0 = arith.constant 0 : i32
    return %arg0, %c0_i32 : i32, i32
  }
  func.func @transform_1(%arg0: i32, %arg1: i32) -> (i32, i32) {
    %c0_i32 = arith.constant 0 : i32
    %c0_i32_0 = arith.constant 0 : i32
    return %c0_i32, %arg1 : i32, i32
  }
  func.func @transform_2(%arg0: i32, %arg1: i32) -> (i32, i32) {
    %c0_i32 = arith.constant 0 : i32
    %c0_i32_0 = arith.constant 0 : i32
    return %c0_i32, %arg1 : i32, i32
  }
  func.func @transform_3(%arg0: i32, %arg1: i32) -> (i32, i32) {
    %c0_i32 = arith.constant 0 : i32
    return %arg0, %arg1 : i32, i32
  }
}

module attributes {stable_mosaic.version = 11 : i64} {
  func.func @_gemm_bias_act_kernel(%arg0: i32, %arg1: i32, %arg2: memref<128x32xbf16, #tpu.memory_space<vmem>>, %arg3: memref<32x128xbf16, #tpu.memory_space<vmem>>, %arg4: memref<1x128xf32, #tpu.memory_space<vmem>>, %arg5: memref<128x128xbf16, #tpu.memory_space<vmem>>) attributes {dimension_semantics = [#tpu.dimension_semantics<parallel>, #tpu.dimension_semantics<parallel>], iteration_bounds = array<i64: 1, 1>, scalar_prefetch = 0 : i64, scratch_operands = 0 : i64, tpu.core_type = #tpu.core_type<tc>, window_params = [{transform_indices = @transform_0, window_bounds = array<i64: 128, 32>}, {transform_indices = @transform_1, window_bounds = array<i64: 32, 128>}, {transform_indices = @transform_2, window_bounds = array<i64: 1, 128>}, {transform_indices = @transform_3, window_bounds = array<i64: 128, 128>}]} {
    %c0 = arith.constant 0 : index
    %c0_0 = arith.constant 0 : index
    %0 = vector.load %arg2[%c0, %c0_0] : memref<128x32xbf16, #tpu.memory_space<vmem>>, vector<128x32xbf16>
    %c0_1 = arith.constant 0 : index
    %c0_2 = arith.constant 0 : index
    %1 = vector.load %arg3[%c0_1, %c0_2] : memref<32x128xbf16, #tpu.memory_space<vmem>>, vector<32x128xbf16>
    %cst = arith.constant dense<0.000000e+00> : vector<128x128xf32>
    %2 = tpu.matmul %0, %1, %cst {dimension_numbers = #tpu.dot_dimension_numbers<[1], [0], [0], [1], [0, 0, 1, 1], [], []>} : vector<128x32xbf16>, vector<32x128xbf16>, vector<128x128xf32> -> vector<128x128xf32>
    %c0_3 = arith.constant 0 : index
    %c0_4 = arith.constant 0 : index
    %3 = vector.load %arg4[%c0_3, %c0_4] : memref<1x128xf32, #tpu.memory_space<vmem>>, vector<1x128xf32>
    %4 = vector.broadcast %3 : vector<1x128xf32> to vector<128x128xf32>
    %5 = arith.addf %2, %4 : vector<128x128xf32>
    %cst_5 = arith.constant 0.000000e+00 : f32
    %6 = vector.broadcast %cst_5 : f32 to vector<128x128xf32>
    %7 = arith.cmpf ogt, %5, %6 : vector<128x128xf32>
    %cst_6 = arith.constant 1.000000e-01 : f32
    %8 = vector.broadcast %cst_6 : f32 to vector<128x128xf32>
    %9 = arith.mulf %5, %8 : vector<128x128xf32>
    %10 = arith.select %7, %5, %9 : vector<128x128xi1>, vector<128x128xf32>
    %11 = arith.truncf %10 : vector<128x128xf32> to vector<128x128xbf16>
    %c0_7 = arith.constant 0 : index
    %c0_8 = arith.constant 0 : index
    %12 = vector.load %arg5[%c0_7, %c0_8] : memref<128x128xbf16, #tpu.memory_space<vmem>>, vector<128x128xbf16>
    tpu.vector_store %arg5[%c0_7, %c0_8], %11 {strides = array<i32>} : memref<128x128xbf16, #tpu.memory_space<vmem>>, vector<128x128xbf16>,
    return
  }
  func.func @transform_0(%arg0: i32, %arg1: i32) -> (i32, i32) {
    %c0_i32 = arith.constant 0 : i32
    %c0_i32_0 = arith.constant 0 : i32
    return %arg0, %c0_i32 : i32, i32
  }
  func.func @transform_1(%arg0: i32, %arg1: i32) -> (i32, i32) {
    %c0_i32 = arith.constant 0 : i32
    %c0_i32_0 = arith.constant 0 : i32
    return %c0_i32, %arg1 : i32, i32
  }
  func.func @transform_2(%arg0: i32, %arg1: i32) -> (i32, i32) {
    %c0_i32 = arith.constant 0 : i32
    %c0_i32_0 = arith.constant 0 : i32
    return %c0_i32, %arg1 : i32, i32
  }
  func.func @transform_3(%arg0: i32, %arg1: i32) -> (i32, i32) {
    %c0_i32 = arith.constant 0 : i32
    return %arg0, %arg1 : i32, i32
  }
}

module attributes {stable_mosaic.version = 11 : i64} {
  func.func @_gemm_bias_act_kernel(%arg0: i32, %arg1: i32, %arg2: memref<32x288xbf16, #tpu.memory_space<vmem>>, %arg3: memref<288x128xbf16, #tpu.memory_space<vmem>>, %arg4: memref<1x128xf32, #tpu.memory_space<vmem>>, %arg5: memref<32x128xbf16, #tpu.memory_space<vmem>>) attributes {dimension_semantics = [#tpu.dimension_semantics<parallel>, #tpu.dimension_semantics<parallel>], iteration_bounds = array<i64: 1, 1>, scalar_prefetch = 0 : i64, scratch_operands = 0 : i64, tpu.core_type = #tpu.core_type<tc>, window_params = [{transform_indices = @transform_0, window_bounds = array<i64: 32, 288>}, {transform_indices = @transform_1, window_bounds = array<i64: 288, 128>}, {transform_indices = @transform_2, window_bounds = array<i64: 1, 128>}, {transform_indices = @transform_3, window_bounds = array<i64: 32, 128>}]} {
    %c0 = arith.constant 0 : index
    %c0_0 = arith.constant 0 : index
    %0 = vector.load %arg2[%c0, %c0_0] : memref<32x288xbf16, #tpu.memory_space<vmem>>, vector<32x288xbf16>
    %c0_1 = arith.constant 0 : index
    %c0_2 = arith.constant 0 : index
    %1 = vector.load %arg3[%c0_1, %c0_2] : memref<288x128xbf16, #tpu.memory_space<vmem>>, vector<288x128xbf16>
    %cst = arith.constant dense<0.000000e+00> : vector<32x128xf32>
    %2 = tpu.matmul %0, %1, %cst {dimension_numbers = #tpu.dot_dimension_numbers<[1], [0], [0], [1], [0, 0, 1, 1], [], []>} : vector<32x288xbf16>, vector<288x128xbf16>, vector<32x128xf32> -> vector<32x128xf32>
    %c0_3 = arith.constant 0 : index
    %c0_4 = arith.constant 0 : index
    %3 = vector.load %arg4[%c0_3, %c0_4] : memref<1x128xf32, #tpu.memory_space<vmem>>, vector<1x128xf32>
    %4 = vector.broadcast %3 : vector<1x128xf32> to vector<32x128xf32>
    %5 = arith.addf %2, %4 : vector<32x128xf32>
    %cst_5 = arith.constant 0.000000e+00 : f32
    %6 = vector.broadcast %cst_5 : f32 to vector<32x128xf32>
    %7 = arith.cmpf ogt, %5, %6 : vector<32x128xf32>
    %cst_6 = arith.constant 1.000000e-01 : f32
    %8 = vector.broadcast %cst_6 : f32 to vector<32x128xf32>
    %9 = arith.mulf %5, %8 : vector<32x128xf32>
    %10 = arith.select %7, %5, %9 : vector<32x128xi1>, vector<32x128xf32>
    %11 = arith.truncf %10 : vector<32x128xf32> to vector<32x128xbf16>
    %c0_7 = arith.constant 0 : index
    %c0_8 = arith.constant 0 : index
    %12 = vector.load %arg5[%c0_7, %c0_8] : memref<32x128xbf16, #tpu.memory_space<vmem>>, vector<32x128xbf16>
    tpu.vector_store %arg5[%c0_7, %c0_8], %11 {strides = array<i32>} : memref<32x128xbf16, #tpu.memory_space<vmem>>, vector<32x128xbf16>,
    return
  }
  func.func @transform_0(%arg0: i32, %arg1: i32) -> (i32, i32) {
    %c0_i32 = arith.constant 0 : i32
    %c0_i32_0 = arith.constant 0 : i32
    return %arg0, %c0_i32 : i32, i32
  }
  func.func @transform_1(%arg0: i32, %arg1: i32) -> (i32, i32) {
    %c0_i32 = arith.constant 0 : i32
    %c0_i32_0 = arith.constant 0 : i32
    return %c0_i32, %arg1 : i32, i32
  }
  func.func @transform_2(%arg0: i32, %arg1: i32) -> (i32, i32) {
    %c0_i32 = arith.constant 0 : i32
    %c0_i32_0 = arith.constant 0 : i32
    return %c0_i32, %arg1 : i32, i32
  }
  func.func @transform_3(%arg0: i32, %arg1: i32) -> (i32, i32) {
    %c0_i32 = arith.constant 0 : i32
    return %arg0, %arg1 : i32, i32
  }
}

module attributes {stable_mosaic.version = 11 : i64} {
  func.func @_gemm_bias_act_kernel(%arg0: i32, %arg1: i32, %arg2: memref<32x64xbf16, #tpu.memory_space<vmem>>, %arg3: memref<64x128xbf16, #tpu.memory_space<vmem>>, %arg4: memref<1x128xf32, #tpu.memory_space<vmem>>, %arg5: memref<32x128xbf16, #tpu.memory_space<vmem>>) attributes {dimension_semantics = [#tpu.dimension_semantics<parallel>, #tpu.dimension_semantics<parallel>], iteration_bounds = array<i64: 1, 1>, scalar_prefetch = 0 : i64, scratch_operands = 0 : i64, tpu.core_type = #tpu.core_type<tc>, window_params = [{transform_indices = @transform_0, window_bounds = array<i64: 32, 64>}, {transform_indices = @transform_1, window_bounds = array<i64: 64, 128>}, {transform_indices = @transform_2, window_bounds = array<i64: 1, 128>}, {transform_indices = @transform_3, window_bounds = array<i64: 32, 128>}]} {
    %c0 = arith.constant 0 : index
    %c0_0 = arith.constant 0 : index
    %0 = vector.load %arg2[%c0, %c0_0] : memref<32x64xbf16, #tpu.memory_space<vmem>>, vector<32x64xbf16>
    %c0_1 = arith.constant 0 : index
    %c0_2 = arith.constant 0 : index
    %1 = vector.load %arg3[%c0_1, %c0_2] : memref<64x128xbf16, #tpu.memory_space<vmem>>, vector<64x128xbf16>
    %cst = arith.constant dense<0.000000e+00> : vector<32x128xf32>
    %2 = tpu.matmul %0, %1, %cst {dimension_numbers = #tpu.dot_dimension_numbers<[1], [0], [0], [1], [0, 0, 1, 1], [], []>} : vector<32x64xbf16>, vector<64x128xbf16>, vector<32x128xf32> -> vector<32x128xf32>
    %c0_3 = arith.constant 0 : index
    %c0_4 = arith.constant 0 : index
    %3 = vector.load %arg4[%c0_3, %c0_4] : memref<1x128xf32, #tpu.memory_space<vmem>>, vector<1x128xf32>
    %4 = vector.broadcast %3 : vector<1x128xf32> to vector<32x128xf32>
    %5 = arith.addf %2, %4 : vector<32x128xf32>
    %cst_5 = arith.constant 0.000000e+00 : f32
    %6 = vector.broadcast %cst_5 : f32 to vector<32x128xf32>
    %7 = arith.cmpf ogt, %5, %6 : vector<32x128xf32>
    %cst_6 = arith.constant 1.000000e-01 : f32
    %8 = vector.broadcast %cst_6 : f32 to vector<32x128xf32>
    %9 = arith.mulf %5, %8 : vector<32x128xf32>
    %10 = arith.select %7, %5, %9 : vector<32x128xi1>, vector<32x128xf32>
    %11 = arith.truncf %10 : vector<32x128xf32> to vector<32x128xbf16>
    %c0_7 = arith.constant 0 : index
    %c0_8 = arith.constant 0 : index
    %12 = vector.load %arg5[%c0_7, %c0_8] : memref<32x128xbf16, #tpu.memory_space<vmem>>, vector<32x128xbf16>
    tpu.vector_store %arg5[%c0_7, %c0_8], %11 {strides = array<i32>} : memref<32x128xbf16, #tpu.memory_space<vmem>>, vector<32x128xbf16>,
    return
  }
  func.func @transform_0(%arg0: i32, %arg1: i32) -> (i32, i32) {
    %c0_i32 = arith.constant 0 : i32
    %c0_i32_0 = arith.constant 0 : i32
    return %arg0, %c0_i32 : i32, i32
  }
  func.func @transform_1(%arg0: i32, %arg1: i32) -> (i32, i32) {
    %c0_i32 = arith.constant 0 : i32
    %c0_i32_0 = arith.constant 0 : i32
    return %c0_i32, %arg1 : i32, i32
  }
  func.func @transform_2(%arg0: i32, %arg1: i32) -> (i32, i32) {
    %c0_i32 = arith.constant 0 : i32
    %c0_i32_0 = arith.constant 0 : i32
    return %c0_i32, %arg1 : i32, i32
  }
  func.func @transform_3(%arg0: i32, %arg1: i32) -> (i32, i32) {
    %c0_i32 = arith.constant 0 : i32
    return %arg0, %arg1 : i32, i32
  }
}

module attributes {stable_mosaic.version = 11 : i64} {
  func.func @_gemm_bias_act_kernel(%arg0: i32, %arg1: i32, %arg2: memref<32x288xbf16, #tpu.memory_space<vmem>>, %arg3: memref<288x128xbf16, #tpu.memory_space<vmem>>, %arg4: memref<1x128xf32, #tpu.memory_space<vmem>>, %arg5: memref<32x128xbf16, #tpu.memory_space<vmem>>) attributes {dimension_semantics = [#tpu.dimension_semantics<parallel>, #tpu.dimension_semantics<parallel>], iteration_bounds = array<i64: 1, 1>, scalar_prefetch = 0 : i64, scratch_operands = 0 : i64, tpu.core_type = #tpu.core_type<tc>, window_params = [{transform_indices = @transform_0, window_bounds = array<i64: 32, 288>}, {transform_indices = @transform_1, window_bounds = array<i64: 288, 128>}, {transform_indices = @transform_2, window_bounds = array<i64: 1, 128>}, {transform_indices = @transform_3, window_bounds = array<i64: 32, 128>}]} {
    %c0 = arith.constant 0 : index
    %c0_0 = arith.constant 0 : index
    %0 = vector.load %arg2[%c0, %c0_0] : memref<32x288xbf16, #tpu.memory_space<vmem>>, vector<32x288xbf16>
    %c0_1 = arith.constant 0 : index
    %c0_2 = arith.constant 0 : index
    %1 = vector.load %arg3[%c0_1, %c0_2] : memref<288x128xbf16, #tpu.memory_space<vmem>>, vector<288x128xbf16>
    %cst = arith.constant dense<0.000000e+00> : vector<32x128xf32>
    %2 = tpu.matmul %0, %1, %cst {dimension_numbers = #tpu.dot_dimension_numbers<[1], [0], [0], [1], [0, 0, 1, 1], [], []>} : vector<32x288xbf16>, vector<288x128xbf16>, vector<32x128xf32> -> vector<32x128xf32>
    %c0_3 = arith.constant 0 : index
    %c0_4 = arith.constant 0 : index
    %3 = vector.load %arg4[%c0_3, %c0_4] : memref<1x128xf32, #tpu.memory_space<vmem>>, vector<1x128xf32>
    %4 = vector.broadcast %3 : vector<1x128xf32> to vector<32x128xf32>
    %5 = arith.addf %2, %4 : vector<32x128xf32>
    %cst_5 = arith.constant 0.000000e+00 : f32
    %6 = vector.broadcast %cst_5 : f32 to vector<32x128xf32>
    %7 = arith.cmpf ogt, %5, %6 : vector<32x128xf32>
    %cst_6 = arith.constant 1.000000e-01 : f32
    %8 = vector.broadcast %cst_6 : f32 to vector<32x128xf32>
    %9 = arith.mulf %5, %8 : vector<32x128xf32>
    %10 = arith.select %7, %5, %9 : vector<32x128xi1>, vector<32x128xf32>
    %11 = arith.truncf %10 : vector<32x128xf32> to vector<32x128xbf16>
    %c0_7 = arith.constant 0 : index
    %c0_8 = arith.constant 0 : index
    %12 = vector.load %arg5[%c0_7, %c0_8] : memref<32x128xbf16, #tpu.memory_space<vmem>>, vector<32x128xbf16>
    tpu.vector_store %arg5[%c0_7, %c0_8], %11 {strides = array<i32>} : memref<32x128xbf16, #tpu.memory_space<vmem>>, vector<32x128xbf16>,
    return
  }
  func.func @transform_0(%arg0: i32, %arg1: i32) -> (i32, i32) {
    %c0_i32 = arith.constant 0 : i32
    %c0_i32_0 = arith.constant 0 : i32
    return %arg0, %c0_i32 : i32, i32
  }
  func.func @transform_1(%arg0: i32, %arg1: i32) -> (i32, i32) {
    %c0_i32 = arith.constant 0 : i32
    %c0_i32_0 = arith.constant 0 : i32
    return %c0_i32, %arg1 : i32, i32
  }
  func.func @transform_2(%arg0: i32, %arg1: i32) -> (i32, i32) {
    %c0_i32 = arith.constant 0 : i32
    %c0_i32_0 = arith.constant 0 : i32
    return %c0_i32, %arg1 : i32, i32
  }
  func.func @transform_3(%arg0: i32, %arg1: i32) -> (i32, i32) {
    %c0_i32 = arith.constant 0 : i32
    return %arg0, %arg1 : i32, i32
  }
}

module attributes {stable_mosaic.version = 11 : i64} {
  func.func @_gemm_bias_act_kernel(%arg0: i32, %arg1: i32, %arg2: memref<32x64xbf16, #tpu.memory_space<vmem>>, %arg3: memref<64x128xbf16, #tpu.memory_space<vmem>>, %arg4: memref<1x128xf32, #tpu.memory_space<vmem>>, %arg5: memref<32x128xbf16, #tpu.memory_space<vmem>>) attributes {dimension_semantics = [#tpu.dimension_semantics<parallel>, #tpu.dimension_semantics<parallel>], iteration_bounds = array<i64: 1, 1>, scalar_prefetch = 0 : i64, scratch_operands = 0 : i64, tpu.core_type = #tpu.core_type<tc>, window_params = [{transform_indices = @transform_0, window_bounds = array<i64: 32, 64>}, {transform_indices = @transform_1, window_bounds = array<i64: 64, 128>}, {transform_indices = @transform_2, window_bounds = array<i64: 1, 128>}, {transform_indices = @transform_3, window_bounds = array<i64: 32, 128>}]} {
    %c0 = arith.constant 0 : index
    %c0_0 = arith.constant 0 : index
    %0 = vector.load %arg2[%c0, %c0_0] : memref<32x64xbf16, #tpu.memory_space<vmem>>, vector<32x64xbf16>
    %c0_1 = arith.constant 0 : index
    %c0_2 = arith.constant 0 : index
    %1 = vector.load %arg3[%c0_1, %c0_2] : memref<64x128xbf16, #tpu.memory_space<vmem>>, vector<64x128xbf16>
    %cst = arith.constant dense<0.000000e+00> : vector<32x128xf32>
    %2 = tpu.matmul %0, %1, %cst {dimension_numbers = #tpu.dot_dimension_numbers<[1], [0], [0], [1], [0, 0, 1, 1], [], []>} : vector<32x64xbf16>, vector<64x128xbf16>, vector<32x128xf32> -> vector<32x128xf32>
    %c0_3 = arith.constant 0 : index
    %c0_4 = arith.constant 0 : index
    %3 = vector.load %arg4[%c0_3, %c0_4] : memref<1x128xf32, #tpu.memory_space<vmem>>, vector<1x128xf32>
    %4 = vector.broadcast %3 : vector<1x128xf32> to vector<32x128xf32>
    %5 = arith.addf %2, %4 : vector<32x128xf32>
    %cst_5 = arith.constant 0.000000e+00 : f32
    %6 = vector.broadcast %cst_5 : f32 to vector<32x128xf32>
    %7 = arith.cmpf ogt, %5, %6 : vector<32x128xf32>
    %cst_6 = arith.constant 1.000000e-01 : f32
    %8 = vector.broadcast %cst_6 : f32 to vector<32x128xf32>
    %9 = arith.mulf %5, %8 : vector<32x128xf32>
    %10 = arith.select %7, %5, %9 : vector<32x128xi1>, vector<32x128xf32>
    %11 = arith.truncf %10 : vector<32x128xf32> to vector<32x128xbf16>
    %c0_7 = arith.constant 0 : index
    %c0_8 = arith.constant 0 : index
    %12 = vector.load %arg5[%c0_7, %c0_8] : memref<32x128xbf16, #tpu.memory_space<vmem>>, vector<32x128xbf16>
    tpu.vector_store %arg5[%c0_7, %c0_8], %11 {strides = array<i32>} : memref<32x128xbf16, #tpu.memory_space<vmem>>, vector<32x128xbf16>,
    return
  }
  func.func @transform_0(%arg0: i32, %arg1: i32) -> (i32, i32) {
    %c0_i32 = arith.constant 0 : i32
    %c0_i32_0 = arith.constant 0 : i32
    return %arg0, %c0_i32 : i32, i32
  }
  func.func @transform_1(%arg0: i32, %arg1: i32) -> (i32, i32) {
    %c0_i32 = arith.constant 0 : i32
    %c0_i32_0 = arith.constant 0 : i32
    return %c0_i32, %arg1 : i32, i32
  }
  func.func @transform_2(%arg0: i32, %arg1: i32) -> (i32, i32) {
    %c0_i32 = arith.constant 0 : i32
    %c0_i32_0 = arith.constant 0 : i32
    return %c0_i32, %arg1 : i32, i32
  }
  func.func @transform_3(%arg0: i32, %arg1: i32) -> (i32, i32) {
    %c0_i32 = arith.constant 0 : i32
    return %arg0, %arg1 : i32, i32
  }
}

module attributes {stable_mosaic.version = 11 : i64} {
  func.func @_gemm_bias_act_kernel(%arg0: i32, %arg1: i32, %arg2: memref<8x576xbf16, #tpu.memory_space<vmem>>, %arg3: memref<576x128xbf16, #tpu.memory_space<vmem>>, %arg4: memref<1x128xf32, #tpu.memory_space<vmem>>, %arg5: memref<8x128xbf16, #tpu.memory_space<vmem>>) attributes {dimension_semantics = [#tpu.dimension_semantics<parallel>, #tpu.dimension_semantics<parallel>], iteration_bounds = array<i64: 1, 1>, scalar_prefetch = 0 : i64, scratch_operands = 0 : i64, tpu.core_type = #tpu.core_type<tc>, window_params = [{transform_indices = @transform_0, window_bounds = array<i64: 8, 576>}, {transform_indices = @transform_1, window_bounds = array<i64: 576, 128>}, {transform_indices = @transform_2, window_bounds = array<i64: 1, 128>}, {transform_indices = @transform_3, window_bounds = array<i64: 8, 128>}]} {
    %c0 = arith.constant 0 : index
    %c0_0 = arith.constant 0 : index
    %0 = vector.load %arg2[%c0, %c0_0] : memref<8x576xbf16, #tpu.memory_space<vmem>>, vector<8x576xbf16>
    %c0_1 = arith.constant 0 : index
    %c0_2 = arith.constant 0 : index
    %1 = vector.load %arg3[%c0_1, %c0_2] : memref<576x128xbf16, #tpu.memory_space<vmem>>, vector<576x128xbf16>
    %cst = arith.constant dense<0.000000e+00> : vector<8x128xf32>
    %2 = tpu.matmul %0, %1, %cst {dimension_numbers = #tpu.dot_dimension_numbers<[1], [0], [0], [1], [0, 0, 1, 1], [], []>} : vector<8x576xbf16>, vector<576x128xbf16>, vector<8x128xf32> -> vector<8x128xf32>
    %c0_3 = arith.constant 0 : index
    %c0_4 = arith.constant 0 : index
    %3 = vector.load %arg4[%c0_3, %c0_4] : memref<1x128xf32, #tpu.memory_space<vmem>>, vector<1x128xf32>
    %4 = vector.broadcast %3 : vector<1x128xf32> to vector<8x128xf32>
    %5 = arith.addf %2, %4 : vector<8x128xf32>
    %cst_5 = arith.constant 0.000000e+00 : f32
    %6 = vector.broadcast %cst_5 : f32 to vector<8x128xf32>
    %7 = arith.cmpf ogt, %5, %6 : vector<8x128xf32>
    %cst_6 = arith.constant 1.000000e-01 : f32
    %8 = vector.broadcast %cst_6 : f32 to vector<8x128xf32>
    %9 = arith.mulf %5, %8 : vector<8x128xf32>
    %10 = arith.select %7, %5, %9 : vector<8x128xi1>, vector<8x128xf32>
    %11 = arith.truncf %10 : vector<8x128xf32> to vector<8x128xbf16>
    %c0_7 = arith.constant 0 : index
    %c0_8 = arith.constant 0 : index
    %12 = vector.load %arg5[%c0_7, %c0_8] : memref<8x128xbf16, #tpu.memory_space<vmem>>, vector<8x128xbf16>
    tpu.vector_store %arg5[%c0_7, %c0_8], %11 {strides = array<i32>} : memref<8x128xbf16, #tpu.memory_space<vmem>>, vector<8x128xbf16>,
    return
  }
  func.func @transform_0(%arg0: i32, %arg1: i32) -> (i32, i32) {
    %c0_i32 = arith.constant 0 : i32
    %c0_i32_0 = arith.constant 0 : i32
    return %arg0, %c0_i32 : i32, i32
  }
  func.func @transform_1(%arg0: i32, %arg1: i32) -> (i32, i32) {
    %c0_i32 = arith.constant 0 : i32
    %c0_i32_0 = arith.constant 0 : i32
    return %c0_i32, %arg1 : i32, i32
  }
  func.func @transform_2(%arg0: i32, %arg1: i32) -> (i32, i32) {
    %c0_i32 = arith.constant 0 : i32
    %c0_i32_0 = arith.constant 0 : i32
    return %c0_i32, %arg1 : i32, i32
  }
  func.func @transform_3(%arg0: i32, %arg1: i32) -> (i32, i32) {
    %c0_i32 = arith.constant 0 : i32
    return %arg0, %arg1 : i32, i32
  }
}

module attributes {stable_mosaic.version = 11 : i64} {
  func.func @_gemm_bias_act_kernel(%arg0: i32, %arg1: i32, %arg2: memref<8x128xbf16, #tpu.memory_space<vmem>>, %arg3: memref<128x128xbf16, #tpu.memory_space<vmem>>, %arg4: memref<1x128xf32, #tpu.memory_space<vmem>>, %arg5: memref<8x128xbf16, #tpu.memory_space<vmem>>) attributes {dimension_semantics = [#tpu.dimension_semantics<parallel>, #tpu.dimension_semantics<parallel>], iteration_bounds = array<i64: 1, 1>, scalar_prefetch = 0 : i64, scratch_operands = 0 : i64, tpu.core_type = #tpu.core_type<tc>, window_params = [{transform_indices = @transform_0, window_bounds = array<i64: 8, 128>}, {transform_indices = @transform_1, window_bounds = array<i64: 128, 128>}, {transform_indices = @transform_2, window_bounds = array<i64: 1, 128>}, {transform_indices = @transform_3, window_bounds = array<i64: 8, 128>}]} {
    %c0 = arith.constant 0 : index
    %c0_0 = arith.constant 0 : index
    %0 = vector.load %arg2[%c0, %c0_0] : memref<8x128xbf16, #tpu.memory_space<vmem>>, vector<8x128xbf16>
    %c0_1 = arith.constant 0 : index
    %c0_2 = arith.constant 0 : index
    %1 = vector.load %arg3[%c0_1, %c0_2] : memref<128x128xbf16, #tpu.memory_space<vmem>>, vector<128x128xbf16>
    %cst = arith.constant dense<0.000000e+00> : vector<8x128xf32>
    %2 = tpu.matmul %0, %1, %cst {dimension_numbers = #tpu.dot_dimension_numbers<[1], [0], [0], [1], [0, 0, 1, 1], [], []>} : vector<8x128xbf16>, vector<128x128xbf16>, vector<8x128xf32> -> vector<8x128xf32>
    %c0_3 = arith.constant 0 : index
    %c0_4 = arith.constant 0 : index
    %3 = vector.load %arg4[%c0_3, %c0_4] : memref<1x128xf32, #tpu.memory_space<vmem>>, vector<1x128xf32>
    %4 = vector.broadcast %3 : vector<1x128xf32> to vector<8x128xf32>
    %5 = arith.addf %2, %4 : vector<8x128xf32>
    %cst_5 = arith.constant 0.000000e+00 : f32
    %6 = vector.broadcast %cst_5 : f32 to vector<8x128xf32>
    %7 = arith.cmpf ogt, %5, %6 : vector<8x128xf32>
    %cst_6 = arith.constant 1.000000e-01 : f32
    %8 = vector.broadcast %cst_6 : f32 to vector<8x128xf32>
    %9 = arith.mulf %5, %8 : vector<8x128xf32>
    %10 = arith.select %7, %5, %9 : vector<8x128xi1>, vector<8x128xf32>
    %11 = arith.truncf %10 : vector<8x128xf32> to vector<8x128xbf16>
    %c0_7 = arith.constant 0 : index
    %c0_8 = arith.constant 0 : index
    %12 = vector.load %arg5[%c0_7, %c0_8] : memref<8x128xbf16, #tpu.memory_space<vmem>>, vector<8x128xbf16>
    tpu.vector_store %arg5[%c0_7, %c0_8], %11 {strides = array<i32>} : memref<8x128xbf16, #tpu.memory_space<vmem>>, vector<8x128xbf16>,
    return
  }
  func.func @transform_0(%arg0: i32, %arg1: i32) -> (i32, i32) {
    %c0_i32 = arith.constant 0 : i32
    %c0_i32_0 = arith.constant 0 : i32
    return %arg0, %c0_i32 : i32, i32
  }
  func.func @transform_1(%arg0: i32, %arg1: i32) -> (i32, i32) {
    %c0_i32 = arith.constant 0 : i32
    %c0_i32_0 = arith.constant 0 : i32
    return %c0_i32, %arg1 : i32, i32
  }
  func.func @transform_2(%arg0: i32, %arg1: i32) -> (i32, i32) {
    %c0_i32 = arith.constant 0 : i32
    %c0_i32_0 = arith.constant 0 : i32
    return %c0_i32, %arg1 : i32, i32
  }
  func.func @transform_3(%arg0: i32, %arg1: i32) -> (i32, i32) {
    %c0_i32 = arith.constant 0 : i32
    return %arg0, %arg1 : i32, i32
  }
}

module attributes {stable_mosaic.version = 11 : i64} {
  func.func @_gemm_bias_act_kernel(%arg0: i32, %arg1: i32, %arg2: memref<8x128xbf16, #tpu.memory_space<vmem>>, %arg3: memref<128x128xbf16, #tpu.memory_space<vmem>>, %arg4: memref<1x128xf32, #tpu.memory_space<vmem>>, %arg5: memref<8x128xbf16, #tpu.memory_space<vmem>>) attributes {dimension_semantics = [#tpu.dimension_semantics<parallel>, #tpu.dimension_semantics<parallel>], iteration_bounds = array<i64: 1, 1>, scalar_prefetch = 0 : i64, scratch_operands = 0 : i64, tpu.core_type = #tpu.core_type<tc>, window_params = [{transform_indices = @transform_0, window_bounds = array<i64: 8, 128>}, {transform_indices = @transform_1, window_bounds = array<i64: 128, 128>}, {transform_indices = @transform_2, window_bounds = array<i64: 1, 128>}, {transform_indices = @transform_3, window_bounds = array<i64: 8, 128>}]} {
    %c0 = arith.constant 0 : index
    %c0_0 = arith.constant 0 : index
    %0 = vector.load %arg2[%c0, %c0_0] : memref<8x128xbf16, #tpu.memory_space<vmem>>, vector<8x128xbf16>
    %c0_1 = arith.constant 0 : index
    %c0_2 = arith.constant 0 : index
    %1 = vector.load %arg3[%c0_1, %c0_2] : memref<128x128xbf16, #tpu.memory_space<vmem>>, vector<128x128xbf16>
    %cst = arith.constant dense<0.000000e+00> : vector<8x128xf32>
    %2 = tpu.matmul %0, %1, %cst {dimension_numbers = #tpu.dot_dimension_numbers<[1], [0], [0], [1], [0, 0, 1, 1], [], []>} : vector<8x128xbf16>, vector<128x128xbf16>, vector<8x128xf32> -> vector<8x128xf32>
    %c0_3 = arith.constant 0 : index
    %c0_4 = arith.constant 0 : index
    %3 = vector.load %arg4[%c0_3, %c0_4] : memref<1x128xf32, #tpu.memory_space<vmem>>, vector<1x128xf32>
    %4 = vector.broadcast %3 : vector<1x128xf32> to vector<8x128xf32>
    %5 = arith.addf %2, %4 : vector<8x128xf32>
    %cst_5 = arith.constant 0.000000e+00 : f32
    %6 = vector.broadcast %cst_5 : f32 to vector<8x128xf32>
    %7 = arith.cmpf ogt, %5, %6 : vector<8x128xf32>
    %cst_6 = arith.constant 1.000000e-01 : f32
    %8 = vector.broadcast %cst_6 : f32 to vector<8x128xf32>
    %9 = arith.mulf %5, %8 : vector<8x128xf32>
    %10 = arith.select %7, %5, %9 : vector<8x128xi1>, vector<8x128xf32>
    %11 = arith.truncf %10 : vector<8x128xf32> to vector<8x128xbf16>
    %c0_7 = arith.constant 0 : index
    %c0_8 = arith.constant 0 : index
    %12 = vector.load %arg5[%c0_7, %c0_8] : memref<8x128xbf16, #tpu.memory_space<vmem>>, vector<8x128xbf16>
    tpu.vector_store %arg5[%c0_7, %c0_8], %11 {strides = array<i32>} : memref<8x128xbf16, #tpu.memory_space<vmem>>, vector<8x128xbf16>,
    return
  }
  func.func @transform_0(%arg0: i32, %arg1: i32) -> (i32, i32) {
    %c0_i32 = arith.constant 0 : i32
    %c0_i32_0 = arith.constant 0 : i32
    return %arg0, %c0_i32 : i32, i32
  }
  func.func @transform_1(%arg0: i32, %arg1: i32) -> (i32, i32) {
    %c0_i32 = arith.constant 0 : i32
    %c0_i32_0 = arith.constant 0 : i32
    return %c0_i32, %arg1 : i32, i32
  }
  func.func @transform_2(%arg0: i32, %arg1: i32) -> (i32, i32) {
    %c0_i32 = arith.constant 0 : i32
    %c0_i32_0 = arith.constant 0 : i32
    return %c0_i32, %arg1 : i32, i32
  }
  func.func @transform_3(%arg0: i32, %arg1: i32) -> (i32, i32) {
    %c0_i32 = arith.constant 0 : i32
    return %arg0, %arg1 : i32, i32
  }
}

module attributes {stable_mosaic.version = 11 : i64} {
  func.func @_gemm_bias_act_kernel(%arg0: i32, %arg1: i32, %arg2: memref<8x64xbf16, #tpu.memory_space<vmem>>, %arg3: memref<64x128xbf16, #tpu.memory_space<vmem>>, %arg4: memref<1x128xf32, #tpu.memory_space<vmem>>, %arg5: memref<8x128xbf16, #tpu.memory_space<vmem>>) attributes {dimension_semantics = [#tpu.dimension_semantics<parallel>, #tpu.dimension_semantics<parallel>], iteration_bounds = array<i64: 1, 1>, scalar_prefetch = 0 : i64, scratch_operands = 0 : i64, tpu.core_type = #tpu.core_type<tc>, window_params = [{transform_indices = @transform_0, window_bounds = array<i64: 8, 64>}, {transform_indices = @transform_1, window_bounds = array<i64: 64, 128>}, {transform_indices = @transform_2, window_bounds = array<i64: 1, 128>}, {transform_indices = @transform_3, window_bounds = array<i64: 8, 128>}]} {
    %c0 = arith.constant 0 : index
    %c0_0 = arith.constant 0 : index
    %0 = vector.load %arg2[%c0, %c0_0] : memref<8x64xbf16, #tpu.memory_space<vmem>>, vector<8x64xbf16>
    %c0_1 = arith.constant 0 : index
    %c0_2 = arith.constant 0 : index
    %1 = vector.load %arg3[%c0_1, %c0_2] : memref<64x128xbf16, #tpu.memory_space<vmem>>, vector<64x128xbf16>
    %cst = arith.constant dense<0.000000e+00> : vector<8x128xf32>
    %2 = tpu.matmul %0, %1, %cst {dimension_numbers = #tpu.dot_dimension_numbers<[1], [0], [0], [1], [0, 0, 1, 1], [], []>} : vector<8x64xbf16>, vector<64x128xbf16>, vector<8x128xf32> -> vector<8x128xf32>
    %c0_3 = arith.constant 0 : index
    %c0_4 = arith.constant 0 : index
    %3 = vector.load %arg4[%c0_3, %c0_4] : memref<1x128xf32, #tpu.memory_space<vmem>>, vector<1x128xf32>
    %4 = vector.broadcast %3 : vector<1x128xf32> to vector<8x128xf32>
    %5 = arith.addf %2, %4 : vector<8x128xf32>
    %cst_5 = arith.constant 0.000000e+00 : f32
    %6 = vector.broadcast %cst_5 : f32 to vector<8x128xf32>
    %7 = arith.cmpf ogt, %5, %6 : vector<8x128xf32>
    %cst_6 = arith.constant 1.000000e-01 : f32
    %8 = vector.broadcast %cst_6 : f32 to vector<8x128xf32>
    %9 = arith.mulf %5, %8 : vector<8x128xf32>
    %10 = arith.select %7, %5, %9 : vector<8x128xi1>, vector<8x128xf32>
    %11 = arith.truncf %10 : vector<8x128xf32> to vector<8x128xbf16>
    %c0_7 = arith.constant 0 : index
    %c0_8 = arith.constant 0 : index
    %12 = vector.load %arg5[%c0_7, %c0_8] : memref<8x128xbf16, #tpu.memory_space<vmem>>, vector<8x128xbf16>
    tpu.vector_store %arg5[%c0_7, %c0_8], %11 {strides = array<i32>} : memref<8x128xbf16, #tpu.memory_space<vmem>>, vector<8x128xbf16>,
    return
  }
  func.func @transform_0(%arg0: i32, %arg1: i32) -> (i32, i32) {
    %c0_i32 = arith.constant 0 : i32
    %c0_i32_0 = arith.constant 0 : i32
    return %arg0, %c0_i32 : i32, i32
  }
  func.func @transform_1(%arg0: i32, %arg1: i32) -> (i32, i32) {
    %c0_i32 = arith.constant 0 : i32
    %c0_i32_0 = arith.constant 0 : i32
    return %c0_i32, %arg1 : i32, i32
  }
  func.func @transform_2(%arg0: i32, %arg1: i32) -> (i32, i32) {
    %c0_i32 = arith.constant 0 : i32
    %c0_i32_0 = arith.constant 0 : i32
    return %c0_i32, %arg1 : i32, i32
  }
  func.func @transform_3(%arg0: i32, %arg1: i32) -> (i32, i32) {
    %c0_i32 = arith.constant 0 : i32
    return %arg0, %arg1 : i32, i32
  }
}

module attributes {stable_mosaic.version = 11 : i64} {
  func.func @_gemm_bias_act_kernel(%arg0: i32, %arg1: i32, %arg2: memref<32x96xbf16, #tpu.memory_space<vmem>>, %arg3: memref<96x128xbf16, #tpu.memory_space<vmem>>, %arg4: memref<1x128xf32, #tpu.memory_space<vmem>>, %arg5: memref<32x128xbf16, #tpu.memory_space<vmem>>) attributes {dimension_semantics = [#tpu.dimension_semantics<parallel>, #tpu.dimension_semantics<parallel>], iteration_bounds = array<i64: 1, 1>, scalar_prefetch = 0 : i64, scratch_operands = 0 : i64, tpu.core_type = #tpu.core_type<tc>, window_params = [{transform_indices = @transform_0, window_bounds = array<i64: 32, 96>}, {transform_indices = @transform_1, window_bounds = array<i64: 96, 128>}, {transform_indices = @transform_2, window_bounds = array<i64: 1, 128>}, {transform_indices = @transform_3, window_bounds = array<i64: 32, 128>}]} {
    %c0 = arith.constant 0 : index
    %c0_0 = arith.constant 0 : index
    %0 = vector.load %arg2[%c0, %c0_0] : memref<32x96xbf16, #tpu.memory_space<vmem>>, vector<32x96xbf16>
    %c0_1 = arith.constant 0 : index
    %c0_2 = arith.constant 0 : index
    %1 = vector.load %arg3[%c0_1, %c0_2] : memref<96x128xbf16, #tpu.memory_space<vmem>>, vector<96x128xbf16>
    %cst = arith.constant dense<0.000000e+00> : vector<32x128xf32>
    %2 = tpu.matmul %0, %1, %cst {dimension_numbers = #tpu.dot_dimension_numbers<[1], [0], [0], [1], [0, 0, 1, 1], [], []>} : vector<32x96xbf16>, vector<96x128xbf16>, vector<32x128xf32> -> vector<32x128xf32>
    %c0_3 = arith.constant 0 : index
    %c0_4 = arith.constant 0 : index
    %3 = vector.load %arg4[%c0_3, %c0_4] : memref<1x128xf32, #tpu.memory_space<vmem>>, vector<1x128xf32>
    %4 = vector.broadcast %3 : vector<1x128xf32> to vector<32x128xf32>
    %5 = arith.addf %2, %4 : vector<32x128xf32>
    %cst_5 = arith.constant 0.000000e+00 : f32
    %6 = vector.broadcast %cst_5 : f32 to vector<32x128xf32>
    %7 = arith.cmpf ogt, %5, %6 : vector<32x128xf32>
    %cst_6 = arith.constant 1.000000e-01 : f32
    %8 = vector.broadcast %cst_6 : f32 to vector<32x128xf32>
    %9 = arith.mulf %5, %8 : vector<32x128xf32>
    %10 = arith.select %7, %5, %9 : vector<32x128xi1>, vector<32x128xf32>
    %11 = arith.truncf %10 : vector<32x128xf32> to vector<32x128xbf16>
    %c0_7 = arith.constant 0 : index
    %c0_8 = arith.constant 0 : index
    %12 = vector.load %arg5[%c0_7, %c0_8] : memref<32x128xbf16, #tpu.memory_space<vmem>>, vector<32x128xbf16>
    tpu.vector_store %arg5[%c0_7, %c0_8], %11 {strides = array<i32>} : memref<32x128xbf16, #tpu.memory_space<vmem>>, vector<32x128xbf16>,
    return
  }
  func.func @transform_0(%arg0: i32, %arg1: i32) -> (i32, i32) {
    %c0_i32 = arith.constant 0 : i32
    %c0_i32_0 = arith.constant 0 : i32
    return %arg0, %c0_i32 : i32, i32
  }
  func.func @transform_1(%arg0: i32, %arg1: i32) -> (i32, i32) {
    %c0_i32 = arith.constant 0 : i32
    %c0_i32_0 = arith.constant 0 : i32
    return %c0_i32, %arg1 : i32, i32
  }
  func.func @transform_2(%arg0: i32, %arg1: i32) -> (i32, i32) {
    %c0_i32 = arith.constant 0 : i32
    %c0_i32_0 = arith.constant 0 : i32
    return %c0_i32, %arg1 : i32, i32
  }
  func.func @transform_3(%arg0: i32, %arg1: i32) -> (i32, i32) {
    %c0_i32 = arith.constant 0 : i32
    return %arg0, %arg1 : i32, i32
  }
}

module attributes {stable_mosaic.version = 11 : i64} {
  func.func @_gemm_bias_act_kernel(%arg0: i32, %arg1: i32, %arg2: memref<32x32xbf16, #tpu.memory_space<vmem>>, %arg3: memref<32x128xbf16, #tpu.memory_space<vmem>>, %arg4: memref<1x128xf32, #tpu.memory_space<vmem>>, %arg5: memref<32x128xbf16, #tpu.memory_space<vmem>>) attributes {dimension_semantics = [#tpu.dimension_semantics<parallel>, #tpu.dimension_semantics<parallel>], iteration_bounds = array<i64: 1, 1>, scalar_prefetch = 0 : i64, scratch_operands = 0 : i64, tpu.core_type = #tpu.core_type<tc>, window_params = [{transform_indices = @transform_0, window_bounds = array<i64: 32, 32>}, {transform_indices = @transform_1, window_bounds = array<i64: 32, 128>}, {transform_indices = @transform_2, window_bounds = array<i64: 1, 128>}, {transform_indices = @transform_3, window_bounds = array<i64: 32, 128>}]} {
    %c0 = arith.constant 0 : index
    %c0_0 = arith.constant 0 : index
    %0 = vector.load %arg2[%c0, %c0_0] : memref<32x32xbf16, #tpu.memory_space<vmem>>, vector<32x32xbf16>
    %c0_1 = arith.constant 0 : index
    %c0_2 = arith.constant 0 : index
    %1 = vector.load %arg3[%c0_1, %c0_2] : memref<32x128xbf16, #tpu.memory_space<vmem>>, vector<32x128xbf16>
    %cst = arith.constant dense<0.000000e+00> : vector<32x128xf32>
    %2 = tpu.matmul %0, %1, %cst {dimension_numbers = #tpu.dot_dimension_numbers<[1], [0], [0], [1], [0, 0, 1, 1], [], []>} : vector<32x32xbf16>, vector<32x128xbf16>, vector<32x128xf32> -> vector<32x128xf32>
    %c0_3 = arith.constant 0 : index
    %c0_4 = arith.constant 0 : index
    %3 = vector.load %arg4[%c0_3, %c0_4] : memref<1x128xf32, #tpu.memory_space<vmem>>, vector<1x128xf32>
    %4 = vector.broadcast %3 : vector<1x128xf32> to vector<32x128xf32>
    %5 = arith.addf %2, %4 : vector<32x128xf32>
    %cst_5 = arith.constant 0.000000e+00 : f32
    %6 = vector.broadcast %cst_5 : f32 to vector<32x128xf32>
    %7 = arith.cmpf ogt, %5, %6 : vector<32x128xf32>
    %cst_6 = arith.constant 1.000000e-01 : f32
    %8 = vector.broadcast %cst_6 : f32 to vector<32x128xf32>
    %9 = arith.mulf %5, %8 : vector<32x128xf32>
    %10 = arith.select %7, %5, %9 : vector<32x128xi1>, vector<32x128xf32>
    %11 = arith.truncf %10 : vector<32x128xf32> to vector<32x128xbf16>
    %c0_7 = arith.constant 0 : index
    %c0_8 = arith.constant 0 : index
    %12 = vector.load %arg5[%c0_7, %c0_8] : memref<32x128xbf16, #tpu.memory_space<vmem>>, vector<32x128xbf16>
    tpu.vector_store %arg5[%c0_7, %c0_8], %11 {strides = array<i32>} : memref<32x128xbf16, #tpu.memory_space<vmem>>, vector<32x128xbf16>,
    return
  }
  func.func @transform_0(%arg0: i32, %arg1: i32) -> (i32, i32) {
    %c0_i32 = arith.constant 0 : i32
    %c0_i32_0 = arith.constant 0 : i32
    return %arg0, %c0_i32 : i32, i32
  }
  func.func @transform_1(%arg0: i32, %arg1: i32) -> (i32, i32) {
    %c0_i32 = arith.constant 0 : i32
    %c0_i32_0 = arith.constant 0 : i32
    return %c0_i32, %arg1 : i32, i32
  }
  func.func @transform_2(%arg0: i32, %arg1: i32) -> (i32, i32) {
    %c0_i32 = arith.constant 0 : i32
    %c0_i32_0 = arith.constant 0 : i32
    return %c0_i32, %arg1 : i32, i32
  }
  func.func @transform_3(%arg0: i32, %arg1: i32) -> (i32, i32) {
    %c0_i32 = arith.constant 0 : i32
    return %arg0, %arg1 : i32, i32
  }
}

module attributes {stable_mosaic.version = 11 : i64} {
  func.func @_gemm_bias_act_kernel(%arg0: i32, %arg1: i32, %arg2: memref<128x32xbf16, #tpu.memory_space<vmem>>, %arg3: memref<32x128xbf16, #tpu.memory_space<vmem>>, %arg4: memref<1x128xf32, #tpu.memory_space<vmem>>, %arg5: memref<128x128xf32, #tpu.memory_space<vmem>>) attributes {dimension_semantics = [#tpu.dimension_semantics<parallel>, #tpu.dimension_semantics<parallel>], iteration_bounds = array<i64: 1, 1>, scalar_prefetch = 0 : i64, scratch_operands = 0 : i64, tpu.core_type = #tpu.core_type<tc>, window_params = [{transform_indices = @transform_0, window_bounds = array<i64: 128, 32>}, {transform_indices = @transform_1, window_bounds = array<i64: 32, 128>}, {transform_indices = @transform_2, window_bounds = array<i64: 1, 128>}, {transform_indices = @transform_3, window_bounds = array<i64: 128, 128>}]} {
    %c0 = arith.constant 0 : index
    %c0_0 = arith.constant 0 : index
    %0 = vector.load %arg2[%c0, %c0_0] : memref<128x32xbf16, #tpu.memory_space<vmem>>, vector<128x32xbf16>
    %c0_1 = arith.constant 0 : index
    %c0_2 = arith.constant 0 : index
    %1 = vector.load %arg3[%c0_1, %c0_2] : memref<32x128xbf16, #tpu.memory_space<vmem>>, vector<32x128xbf16>
    %cst = arith.constant dense<0.000000e+00> : vector<128x128xf32>
    %2 = tpu.matmul %0, %1, %cst {dimension_numbers = #tpu.dot_dimension_numbers<[1], [0], [0], [1], [0, 0, 1, 1], [], []>} : vector<128x32xbf16>, vector<32x128xbf16>, vector<128x128xf32> -> vector<128x128xf32>
    %c0_3 = arith.constant 0 : index
    %c0_4 = arith.constant 0 : index
    %3 = vector.load %arg4[%c0_3, %c0_4] : memref<1x128xf32, #tpu.memory_space<vmem>>, vector<1x128xf32>
    %4 = vector.broadcast %3 : vector<1x128xf32> to vector<128x128xf32>
    %5 = arith.addf %2, %4 : vector<128x128xf32>
    %c0_5 = arith.constant 0 : index
    %c0_6 = arith.constant 0 : index
    %6 = vector.load %arg5[%c0_5, %c0_6] : memref<128x128xf32, #tpu.memory_space<vmem>>, vector<128x128xf32>
    tpu.vector_store %arg5[%c0_5, %c0_6], %5 {strides = array<i32>} : memref<128x128xf32, #tpu.memory_space<vmem>>, vector<128x128xf32>,
    return
  }
  func.func @transform_0(%arg0: i32, %arg1: i32) -> (i32, i32) {
    %c0_i32 = arith.constant 0 : i32
    %c0_i32_0 = arith.constant 0 : i32
    return %arg0, %c0_i32 : i32, i32
  }
  func.func @transform_1(%arg0: i32, %arg1: i32) -> (i32, i32) {
    %c0_i32 = arith.constant 0 : i32
    %c0_i32_0 = arith.constant 0 : i32
    return %c0_i32, %arg1 : i32, i32
  }
  func.func @transform_2(%arg0: i32, %arg1: i32) -> (i32, i32) {
    %c0_i32 = arith.constant 0 : i32
    %c0_i32_0 = arith.constant 0 : i32
    return %c0_i32, %arg1 : i32, i32
  }
  func.func @transform_3(%arg0: i32, %arg1: i32) -> (i32, i32) {
    %c0_i32 = arith.constant 0 : i32
    return %arg0, %arg1 : i32, i32
  }
}

module attributes {stable_mosaic.version = 11 : i64} {
  func.func @_gemm_bias_act_kernel(%arg0: i32, %arg1: i32, %arg2: memref<128x48xbf16, #tpu.memory_space<vmem>>, %arg3: memref<48x128xbf16, #tpu.memory_space<vmem>>, %arg4: memref<1x128xf32, #tpu.memory_space<vmem>>, %arg5: memref<128x128xbf16, #tpu.memory_space<vmem>>) attributes {dimension_semantics = [#tpu.dimension_semantics<parallel>, #tpu.dimension_semantics<parallel>], iteration_bounds = array<i64: 1, 1>, scalar_prefetch = 0 : i64, scratch_operands = 0 : i64, tpu.core_type = #tpu.core_type<tc>, window_params = [{transform_indices = @transform_0, window_bounds = array<i64: 128, 48>}, {transform_indices = @transform_1, window_bounds = array<i64: 48, 128>}, {transform_indices = @transform_2, window_bounds = array<i64: 1, 128>}, {transform_indices = @transform_3, window_bounds = array<i64: 128, 128>}]} {
    %c0 = arith.constant 0 : index
    %c0_0 = arith.constant 0 : index
    %0 = vector.load %arg2[%c0, %c0_0] : memref<128x48xbf16, #tpu.memory_space<vmem>>, vector<128x48xbf16>
    %c0_1 = arith.constant 0 : index
    %c0_2 = arith.constant 0 : index
    %1 = vector.load %arg3[%c0_1, %c0_2] : memref<48x128xbf16, #tpu.memory_space<vmem>>, vector<48x128xbf16>
    %cst = arith.constant dense<0.000000e+00> : vector<128x128xf32>
    %2 = tpu.matmul %0, %1, %cst {dimension_numbers = #tpu.dot_dimension_numbers<[1], [0], [0], [1], [0, 0, 1, 1], [], []>} : vector<128x48xbf16>, vector<48x128xbf16>, vector<128x128xf32> -> vector<128x128xf32>
    %c0_3 = arith.constant 0 : index
    %c0_4 = arith.constant 0 : index
    %3 = vector.load %arg4[%c0_3, %c0_4] : memref<1x128xf32, #tpu.memory_space<vmem>>, vector<1x128xf32>
    %4 = vector.broadcast %3 : vector<1x128xf32> to vector<128x128xf32>
    %5 = arith.addf %2, %4 : vector<128x128xf32>
    %cst_5 = arith.constant 0.000000e+00 : f32
    %6 = vector.broadcast %cst_5 : f32 to vector<128x128xf32>
    %7 = arith.cmpf ogt, %5, %6 : vector<128x128xf32>
    %cst_6 = arith.constant 1.000000e-01 : f32
    %8 = vector.broadcast %cst_6 : f32 to vector<128x128xf32>
    %9 = arith.mulf %5, %8 : vector<128x128xf32>
    %10 = arith.select %7, %5, %9 : vector<128x128xi1>, vector<128x128xf32>
    %11 = arith.truncf %10 : vector<128x128xf32> to vector<128x128xbf16>
    %c0_7 = arith.constant 0 : index
    %c0_8 = arith.constant 0 : index
    %12 = vector.load %arg5[%c0_7, %c0_8] : memref<128x128xbf16, #tpu.memory_space<vmem>>, vector<128x128xbf16>
    tpu.vector_store %arg5[%c0_7, %c0_8], %11 {strides = array<i32>} : memref<128x128xbf16, #tpu.memory_space<vmem>>, vector<128x128xbf16>,
    return
  }
  func.func @transform_0(%arg0: i32, %arg1: i32) -> (i32, i32) {
    %c0_i32 = arith.constant 0 : i32
    %c0_i32_0 = arith.constant 0 : i32
    return %arg0, %c0_i32 : i32, i32
  }
  func.func @transform_1(%arg0: i32, %arg1: i32) -> (i32, i32) {
    %c0_i32 = arith.constant 0 : i32
    %c0_i32_0 = arith.constant 0 : i32
    return %c0_i32, %arg1 : i32, i32
  }
  func.func @transform_2(%arg0: i32, %arg1: i32) -> (i32, i32) {
    %c0_i32 = arith.constant 0 : i32
    %c0_i32_0 = arith.constant 0 : i32
    return %c0_i32, %arg1 : i32, i32
  }
  func.func @transform_3(%arg0: i32, %arg1: i32) -> (i32, i32) {
    %c0_i32 = arith.constant 0 : i32
    return %arg0, %arg1 : i32, i32
  }
}

module attributes {stable_mosaic.version = 11 : i64} {
  func.func @_decode_kernel(%arg0: memref<24x128xf32, #tpu.memory_space<vmem>>, %arg1: memref<24x128xf32, #tpu.memory_space<vmem>>) attributes {dimension_semantics = [], scalar_prefetch = 0 : i64, scratch_operands = 0 : i64, tpu.core_type = #tpu.core_type<tc>} {
    %c0 = arith.constant 0 : index
    %c0_0 = arith.constant 0 : index
    %0 = vector.load %arg0[%c0, %c0_0] : memref<24x128xf32, #tpu.memory_space<vmem>>, vector<24x128xf32>
    %1 = tpu.iota {dimensions = array<i32: 0>} : vector<24x128xi32>
    %2 = arith.sitofp %1 : vector<24x128xi32> to vector<24x128xf32>
    %3 = tpu.iota {dimensions = array<i32: 1>} : vector<24x128xi32>
    %4 = arith.sitofp %3 : vector<24x128xi32> to vector<24x128xf32>
    %cst = arith.constant 1.280000e+02 : f32
    %5 = vector.broadcast %cst : f32 to vector<24x128xf32>
    %6 = arith.mulf %2, %5 : vector<24x128xf32>
    %7 = arith.addf %6, %4 : vector<24x128xf32>
    %cst_1 = arith.constant 8.000000e+00 : f32
    %8 = vector.broadcast %cst_1 : f32 to vector<24x128xf32>
    %9 = arith.divf %7, %8 : vector<24x128xf32>
    %10 = math.floor %9 : vector<24x128xf32>
    %cst_2 = arith.constant 8.000000e+00 : f32
    %11 = vector.broadcast %cst_2 : f32 to vector<24x128xf32>
    %12 = arith.mulf %10, %11 : vector<24x128xf32>
    %13 = arith.subf %7, %12 : vector<24x128xf32>
    %cst_3 = arith.constant 3.000000e+00 : f32
    %14 = vector.broadcast %cst_3 : f32 to vector<24x128xf32>
    %15 = arith.divf %10, %14 : vector<24x128xf32>
    %16 = math.floor %15 : vector<24x128xf32>
    %cst_4 = arith.constant 3.000000e+00 : f32
    %17 = vector.broadcast %cst_4 : f32 to vector<24x128xf32>
    %18 = arith.mulf %16, %17 : vector<24x128xf32>
    %19 = arith.subf %10, %18 : vector<24x128xf32>
    %cst_5 = arith.constant 8.000000e+00 : f32
    %20 = vector.broadcast %cst_5 : f32 to vector<24x128xf32>
    %21 = arith.divf %16, %20 : vector<24x128xf32>
    %22 = math.floor %21 : vector<24x128xf32>
    %cst_6 = arith.constant 8.000000e+00 : f32
    %23 = vector.broadcast %cst_6 : f32 to vector<24x128xf32>
    %24 = arith.mulf %22, %23 : vector<24x128xf32>
    %25 = arith.subf %16, %24 : vector<24x128xf32>
    %cst_7 = arith.constant 8.000000e+00 : f32
    %26 = vector.broadcast %cst_7 : f32 to vector<24x128xf32>
    %27 = arith.divf %22, %26 : vector<24x128xf32>
    %28 = math.floor %27 : vector<24x128xf32>
    %cst_8 = arith.constant 8.000000e+00 : f32
    %29 = vector.broadcast %cst_8 : f32 to vector<24x128xf32>
    %30 = arith.mulf %28, %29 : vector<24x128xf32>
    %31 = arith.subf %22, %30 : vector<24x128xf32>
    %32 = arith.negf %0 : vector<24x128xf32>
    %33 = math.exp %32 : vector<24x128xf32>
    %cst_9 = arith.constant 1.000000e+00 : f32
    %34 = vector.broadcast %cst_9 : f32 to vector<24x128xf32>
    %35 = arith.addf %34, %33 : vector<24x128xf32>
    %36 = arith.divf %34, %35 : vector<24x128xf32>
    %cst_10 = arith.constant 2.000000e+00 : f32
    %37 = vector.broadcast %cst_10 : f32 to vector<24x128xf32>
    %38 = arith.cmpf oeq, %13, %37 : vector<24x128xf32>
    %cst_11 = arith.constant 3.000000e+00 : f32
    %39 = vector.broadcast %cst_11 : f32 to vector<24x128xf32>
    %40 = arith.cmpf oeq, %13, %39 : vector<24x128xf32>
    %41 = arith.ori %38, %40 : vector<24x128xi1>
    %cst_12 = arith.constant 0.000000e+00 : f32
    %42 = vector.broadcast %cst_12 : f32 to vector<24x128xf32>
    %43 = arith.select %41, %0, %42 : vector<24x128xi1>, vector<24x128xf32>
    %44 = math.exp %43 : vector<24x128xf32>
    %cst_13 = arith.constant 5.07692289 : f32
    %45 = vector.broadcast %cst_13 : f32 to vector<24x128xf32>
    %cst_14 = arith.constant 3.53846145 : f32
    %46 = vector.broadcast %cst_14 : f32 to vector<24x128xf32>
    %cst_15 = arith.constant 1.000000e+00 : f32
    %47 = vector.broadcast %cst_15 : f32 to vector<24x128xf32>
    %48 = arith.cmpf oeq, %19, %47 : vector<24x128xf32>
    %cst_16 = arith.constant 2.46153855 : f32
    %49 = vector.broadcast %cst_16 : f32 to vector<24x128xf32>
    %50 = arith.select %48, %49, %45 : vector<24x128xi1>, vector<24x128xf32>
    %cst_17 = arith.constant 1.000000e+00 : f32
    %51 = vector.broadcast %cst_17 : f32 to vector<24x128xf32>
    %52 = arith.cmpf oeq, %19, %51 : vector<24x128xf32>
    %cst_18 = arith.constant 4.61538458 : f32
    %53 = vector.broadcast %cst_18 : f32 to vector<24x128xf32>
    %54 = arith.select %52, %53, %46 : vector<24x128xi1>, vector<24x128xf32>
    %cst_19 = arith.constant 0.000000e+00 : f32
    %55 = vector.broadcast %cst_19 : f32 to vector<24x128xf32>
    %56 = arith.cmpf oeq, %19, %55 : vector<24x128xf32>
    %cst_20 = arith.constant 1.53846157 : f32
    %57 = vector.broadcast %cst_20 : f32 to vector<24x128xf32>
    %58 = arith.select %56, %57, %50 : vector<24x128xi1>, vector<24x128xf32>
    %cst_21 = arith.constant 0.000000e+00 : f32
    %59 = vector.broadcast %cst_21 : f32 to vector<24x128xf32>
    %60 = arith.cmpf oeq, %19, %59 : vector<24x128xf32>
    %cst_22 = arith.constant 2.000000e+00 : f32
    %61 = vector.broadcast %cst_22 : f32 to vector<24x128xf32>
    %62 = arith.select %60, %61, %54 : vector<24x128xi1>, vector<24x128xf32>
    %cst_23 = arith.constant 0.000000e+00 : f32
    %63 = vector.broadcast %cst_23 : f32 to vector<24x128xf32>
    %64 = arith.cmpf oeq, %13, %63 : vector<24x128xf32>
    %65 = arith.addf %36, %25 : vector<24x128xf32>
    %cst_24 = arith.constant 8.000000e+00 : f32
    %66 = vector.broadcast %cst_24 : f32 to vector<24x128xf32>
    %67 = arith.mulf %65, %66 : vector<24x128xf32>
    %cst_25 = arith.constant 1.000000e+00 : f32
    %68 = vector.broadcast %cst_25 : f32 to vector<24x128xf32>
    %69 = arith.cmpf oeq, %13, %68 : vector<24x128xf32>
    %70 = arith.addf %36, %31 : vector<24x128xf32>
    %cst_26 = arith.constant 8.000000e+00 : f32
    %71 = vector.broadcast %cst_26 : f32 to vector<24x128xf32>
    %72 = arith.mulf %70, %71 : vector<24x128xf32>
    %73 = arith.mulf %44, %58 : vector<24x128xf32>
    %74 = arith.mulf %44, %62 : vector<24x128xf32>
    %75 = arith.select %40, %74, %36 : vector<24x128xi1>, vector<24x128xf32>
    %76 = arith.select %38, %73, %75 : vector<24x128xi1>, vector<24x128xf32>
    %77 = arith.select %69, %72, %76 : vector<24x128xi1>, vector<24x128xf32>
    %78 = arith.select %64, %67, %77 : vector<24x128xi1>, vector<24x128xf32>
    %c0_27 = arith.constant 0 : index
    %c0_28 = arith.constant 0 : index
    %79 = vector.load %arg1[%c0_27, %c0_28] : memref<24x128xf32, #tpu.memory_space<vmem>>, vector<24x128xf32>
    tpu.vector_store %arg1[%c0_27, %c0_28], %78 {strides = array<i32>} : memref<24x128xf32, #tpu.memory_space<vmem>>, vector<24x128xf32>,
    return
  }
}

module attributes {stable_mosaic.version = 11 : i64} {
  func.func @_gemm_bias_act_kernel(%arg0: i32, %arg1: i32, %arg2: memref<32x64xbf16, #tpu.memory_space<vmem>>, %arg3: memref<64x128xbf16, #tpu.memory_space<vmem>>, %arg4: memref<1x128xf32, #tpu.memory_space<vmem>>, %arg5: memref<32x128xf32, #tpu.memory_space<vmem>>) attributes {dimension_semantics = [#tpu.dimension_semantics<parallel>, #tpu.dimension_semantics<parallel>], iteration_bounds = array<i64: 1, 1>, scalar_prefetch = 0 : i64, scratch_operands = 0 : i64, tpu.core_type = #tpu.core_type<tc>, window_params = [{transform_indices = @transform_0, window_bounds = array<i64: 32, 64>}, {transform_indices = @transform_1, window_bounds = array<i64: 64, 128>}, {transform_indices = @transform_2, window_bounds = array<i64: 1, 128>}, {transform_indices = @transform_3, window_bounds = array<i64: 32, 128>}]} {
    %c0 = arith.constant 0 : index
    %c0_0 = arith.constant 0 : index
    %0 = vector.load %arg2[%c0, %c0_0] : memref<32x64xbf16, #tpu.memory_space<vmem>>, vector<32x64xbf16>
    %c0_1 = arith.constant 0 : index
    %c0_2 = arith.constant 0 : index
    %1 = vector.load %arg3[%c0_1, %c0_2] : memref<64x128xbf16, #tpu.memory_space<vmem>>, vector<64x128xbf16>
    %cst = arith.constant dense<0.000000e+00> : vector<32x128xf32>
    %2 = tpu.matmul %0, %1, %cst {dimension_numbers = #tpu.dot_dimension_numbers<[1], [0], [0], [1], [0, 0, 1, 1], [], []>} : vector<32x64xbf16>, vector<64x128xbf16>, vector<32x128xf32> -> vector<32x128xf32>
    %c0_3 = arith.constant 0 : index
    %c0_4 = arith.constant 0 : index
    %3 = vector.load %arg4[%c0_3, %c0_4] : memref<1x128xf32, #tpu.memory_space<vmem>>, vector<1x128xf32>
    %4 = vector.broadcast %3 : vector<1x128xf32> to vector<32x128xf32>
    %5 = arith.addf %2, %4 : vector<32x128xf32>
    %c0_5 = arith.constant 0 : index
    %c0_6 = arith.constant 0 : index
    %6 = vector.load %arg5[%c0_5, %c0_6] : memref<32x128xf32, #tpu.memory_space<vmem>>, vector<32x128xf32>
    tpu.vector_store %arg5[%c0_5, %c0_6], %5 {strides = array<i32>} : memref<32x128xf32, #tpu.memory_space<vmem>>, vector<32x128xf32>,
    return
  }
  func.func @transform_0(%arg0: i32, %arg1: i32) -> (i32, i32) {
    %c0_i32 = arith.constant 0 : i32
    %c0_i32_0 = arith.constant 0 : i32
    return %arg0, %c0_i32 : i32, i32
  }
  func.func @transform_1(%arg0: i32, %arg1: i32) -> (i32, i32) {
    %c0_i32 = arith.constant 0 : i32
    %c0_i32_0 = arith.constant 0 : i32
    return %c0_i32, %arg1 : i32, i32
  }
  func.func @transform_2(%arg0: i32, %arg1: i32) -> (i32, i32) {
    %c0_i32 = arith.constant 0 : i32
    %c0_i32_0 = arith.constant 0 : i32
    return %c0_i32, %arg1 : i32, i32
  }
  func.func @transform_3(%arg0: i32, %arg1: i32) -> (i32, i32) {
    %c0_i32 = arith.constant 0 : i32
    return %arg0, %arg1 : i32, i32
  }
}

module attributes {stable_mosaic.version = 11 : i64} {
  func.func @_decode_kernel(%arg0: memref<6x128xf32, #tpu.memory_space<vmem>>, %arg1: memref<6x128xf32, #tpu.memory_space<vmem>>) attributes {dimension_semantics = [], scalar_prefetch = 0 : i64, scratch_operands = 0 : i64, tpu.core_type = #tpu.core_type<tc>} {
    %c0 = arith.constant 0 : index
    %c0_0 = arith.constant 0 : index
    %0 = vector.load %arg0[%c0, %c0_0] : memref<6x128xf32, #tpu.memory_space<vmem>>, vector<6x128xf32>
    %1 = tpu.iota {dimensions = array<i32: 0>} : vector<6x128xi32>
    %2 = arith.sitofp %1 : vector<6x128xi32> to vector<6x128xf32>
    %3 = tpu.iota {dimensions = array<i32: 1>} : vector<6x128xi32>
    %4 = arith.sitofp %3 : vector<6x128xi32> to vector<6x128xf32>
    %cst = arith.constant 1.280000e+02 : f32
    %5 = vector.broadcast %cst : f32 to vector<6x128xf32>
    %6 = arith.mulf %2, %5 : vector<6x128xf32>
    %7 = arith.addf %6, %4 : vector<6x128xf32>
    %cst_1 = arith.constant 8.000000e+00 : f32
    %8 = vector.broadcast %cst_1 : f32 to vector<6x128xf32>
    %9 = arith.divf %7, %8 : vector<6x128xf32>
    %10 = math.floor %9 : vector<6x128xf32>
    %cst_2 = arith.constant 8.000000e+00 : f32
    %11 = vector.broadcast %cst_2 : f32 to vector<6x128xf32>
    %12 = arith.mulf %10, %11 : vector<6x128xf32>
    %13 = arith.subf %7, %12 : vector<6x128xf32>
    %cst_3 = arith.constant 3.000000e+00 : f32
    %14 = vector.broadcast %cst_3 : f32 to vector<6x128xf32>
    %15 = arith.divf %10, %14 : vector<6x128xf32>
    %16 = math.floor %15 : vector<6x128xf32>
    %cst_4 = arith.constant 3.000000e+00 : f32
    %17 = vector.broadcast %cst_4 : f32 to vector<6x128xf32>
    %18 = arith.mulf %16, %17 : vector<6x128xf32>
    %19 = arith.subf %10, %18 : vector<6x128xf32>
    %cst_5 = arith.constant 4.000000e+00 : f32
    %20 = vector.broadcast %cst_5 : f32 to vector<6x128xf32>
    %21 = arith.divf %16, %20 : vector<6x128xf32>
    %22 = math.floor %21 : vector<6x128xf32>
    %cst_6 = arith.constant 4.000000e+00 : f32
    %23 = vector.broadcast %cst_6 : f32 to vector<6x128xf32>
    %24 = arith.mulf %22, %23 : vector<6x128xf32>
    %25 = arith.subf %16, %24 : vector<6x128xf32>
    %cst_7 = arith.constant 4.000000e+00 : f32
    %26 = vector.broadcast %cst_7 : f32 to vector<6x128xf32>
    %27 = arith.divf %22, %26 : vector<6x128xf32>
    %28 = math.floor %27 : vector<6x128xf32>
    %cst_8 = arith.constant 4.000000e+00 : f32
    %29 = vector.broadcast %cst_8 : f32 to vector<6x128xf32>
    %30 = arith.mulf %28, %29 : vector<6x128xf32>
    %31 = arith.subf %22, %30 : vector<6x128xf32>
    %32 = arith.negf %0 : vector<6x128xf32>
    %33 = math.exp %32 : vector<6x128xf32>
    %cst_9 = arith.constant 1.000000e+00 : f32
    %34 = vector.broadcast %cst_9 : f32 to vector<6x128xf32>
    %35 = arith.addf %34, %33 : vector<6x128xf32>
    %36 = arith.divf %34, %35 : vector<6x128xf32>
    %cst_10 = arith.constant 2.000000e+00 : f32
    %37 = vector.broadcast %cst_10 : f32 to vector<6x128xf32>
    %38 = arith.cmpf oeq, %13, %37 : vector<6x128xf32>
    %cst_11 = arith.constant 3.000000e+00 : f32
    %39 = vector.broadcast %cst_11 : f32 to vector<6x128xf32>
    %40 = arith.cmpf oeq, %13, %39 : vector<6x128xf32>
    %41 = arith.ori %38, %40 : vector<6x128xi1>
    %cst_12 = arith.constant 0.000000e+00 : f32
    %42 = vector.broadcast %cst_12 : f32 to vector<6x128xf32>
    %43 = arith.select %41, %0, %42 : vector<6x128xi1>, vector<6x128xf32>
    %44 = math.exp %43 : vector<6x128xf32>
    %cst_13 = arith.constant 9.07692337 : f32
    %45 = vector.broadcast %cst_13 : f32 to vector<6x128xf32>
    %cst_14 = arith.constant 18.3076916 : f32
    %46 = vector.broadcast %cst_14 : f32 to vector<6x128xf32>
    %cst_15 = arith.constant 1.000000e+00 : f32
    %47 = vector.broadcast %cst_15 : f32 to vector<6x128xf32>
    %48 = arith.cmpf oeq, %19, %47 : vector<6x128xf32>
    %cst_16 = arith.constant 9.53846168 : f32
    %49 = vector.broadcast %cst_16 : f32 to vector<6x128xf32>
    %50 = arith.select %48, %49, %45 : vector<6x128xi1>, vector<6x128xf32>
    %cst_17 = arith.constant 1.000000e+00 : f32
    %51 = vector.broadcast %cst_17 : f32 to vector<6x128xf32>
    %52 = arith.cmpf oeq, %19, %51 : vector<6x128xf32>
    %cst_18 = arith.constant 6.92307711 : f32
    %53 = vector.broadcast %cst_18 : f32 to vector<6x128xf32>
    %54 = arith.select %52, %53, %46 : vector<6x128xi1>, vector<6x128xf32>
    %cst_19 = arith.constant 0.000000e+00 : f32
    %55 = vector.broadcast %cst_19 : f32 to vector<6x128xf32>
    %56 = arith.cmpf oeq, %19, %55 : vector<6x128xf32>
    %cst_20 = arith.constant 4.61538458 : f32
    %57 = vector.broadcast %cst_20 : f32 to vector<6x128xf32>
    %58 = arith.select %56, %57, %50 : vector<6x128xi1>, vector<6x128xf32>
    %cst_21 = arith.constant 0.000000e+00 : f32
    %59 = vector.broadcast %cst_21 : f32 to vector<6x128xf32>
    %60 = arith.cmpf oeq, %19, %59 : vector<6x128xf32>
    %cst_22 = arith.constant 9.38461494 : f32
    %61 = vector.broadcast %cst_22 : f32 to vector<6x128xf32>
    %62 = arith.select %60, %61, %54 : vector<6x128xi1>, vector<6x128xf32>
    %cst_23 = arith.constant 0.000000e+00 : f32
    %63 = vector.broadcast %cst_23 : f32 to vector<6x128xf32>
    %64 = arith.cmpf oeq, %13, %63 : vector<6x128xf32>
    %65 = arith.addf %36, %25 : vector<6x128xf32>
    %cst_24 = arith.constant 1.600000e+01 : f32
    %66 = vector.broadcast %cst_24 : f32 to vector<6x128xf32>
    %67 = arith.mulf %65, %66 : vector<6x128xf32>
    %cst_25 = arith.constant 1.000000e+00 : f32
    %68 = vector.broadcast %cst_25 : f32 to vector<6x128xf32>
    %69 = arith.cmpf oeq, %13, %68 : vector<6x128xf32>
    %70 = arith.addf %36, %31 : vector<6x128xf32>
    %cst_26 = arith.constant 1.600000e+01 : f32
    %71 = vector.broadcast %cst_26 : f32 to vector<6x128xf32>
    %72 = arith.mulf %70, %71 : vector<6x128xf32>
    %73 = arith.mulf %44, %58 : vector<6x128xf32>
    %74 = arith.mulf %44, %62 : vector<6x128xf32>
    %75 = arith.select %40, %74, %36 : vector<6x128xi1>, vector<6x128xf32>
    %76 = arith.select %38, %73, %75 : vector<6x128xi1>, vector<6x128xf32>
    %77 = arith.select %69, %72, %76 : vector<6x128xi1>, vector<6x128xf32>
    %78 = arith.select %64, %67, %77 : vector<6x128xi1>, vector<6x128xf32>
    %c0_27 = arith.constant 0 : index
    %c0_28 = arith.constant 0 : index
    %79 = vector.load %arg1[%c0_27, %c0_28] : memref<6x128xf32, #tpu.memory_space<vmem>>, vector<6x128xf32>
    tpu.vector_store %arg1[%c0_27, %c0_28], %78 {strides = array<i32>} : memref<6x128xf32, #tpu.memory_space<vmem>>, vector<6x128xf32>,
    return
  }
}

module attributes {stable_mosaic.version = 11 : i64} {
  func.func @_gemm_bias_act_kernel(%arg0: i32, %arg1: i32, %arg2: memref<8x576xbf16, #tpu.memory_space<vmem>>, %arg3: memref<576x128xbf16, #tpu.memory_space<vmem>>, %arg4: memref<1x128xf32, #tpu.memory_space<vmem>>, %arg5: memref<8x128xbf16, #tpu.memory_space<vmem>>) attributes {dimension_semantics = [#tpu.dimension_semantics<parallel>, #tpu.dimension_semantics<parallel>], iteration_bounds = array<i64: 1, 1>, scalar_prefetch = 0 : i64, scratch_operands = 0 : i64, tpu.core_type = #tpu.core_type<tc>, window_params = [{transform_indices = @transform_0, window_bounds = array<i64: 8, 576>}, {transform_indices = @transform_1, window_bounds = array<i64: 576, 128>}, {transform_indices = @transform_2, window_bounds = array<i64: 1, 128>}, {transform_indices = @transform_3, window_bounds = array<i64: 8, 128>}]} {
    %c0 = arith.constant 0 : index
    %c0_0 = arith.constant 0 : index
    %0 = vector.load %arg2[%c0, %c0_0] : memref<8x576xbf16, #tpu.memory_space<vmem>>, vector<8x576xbf16>
    %c0_1 = arith.constant 0 : index
    %c0_2 = arith.constant 0 : index
    %1 = vector.load %arg3[%c0_1, %c0_2] : memref<576x128xbf16, #tpu.memory_space<vmem>>, vector<576x128xbf16>
    %cst = arith.constant dense<0.000000e+00> : vector<8x128xf32>
    %2 = tpu.matmul %0, %1, %cst {dimension_numbers = #tpu.dot_dimension_numbers<[1], [0], [0], [1], [0, 0, 1, 1], [], []>} : vector<8x576xbf16>, vector<576x128xbf16>, vector<8x128xf32> -> vector<8x128xf32>
    %c0_3 = arith.constant 0 : index
    %c0_4 = arith.constant 0 : index
    %3 = vector.load %arg4[%c0_3, %c0_4] : memref<1x128xf32, #tpu.memory_space<vmem>>, vector<1x128xf32>
    %4 = vector.broadcast %3 : vector<1x128xf32> to vector<8x128xf32>
    %5 = arith.addf %2, %4 : vector<8x128xf32>
    %cst_5 = arith.constant 0.000000e+00 : f32
    %6 = vector.broadcast %cst_5 : f32 to vector<8x128xf32>
    %7 = arith.cmpf ogt, %5, %6 : vector<8x128xf32>
    %cst_6 = arith.constant 1.000000e-01 : f32
    %8 = vector.broadcast %cst_6 : f32 to vector<8x128xf32>
    %9 = arith.mulf %5, %8 : vector<8x128xf32>
    %10 = arith.select %7, %5, %9 : vector<8x128xi1>, vector<8x128xf32>
    %11 = arith.truncf %10 : vector<8x128xf32> to vector<8x128xbf16>
    %c0_7 = arith.constant 0 : index
    %c0_8 = arith.constant 0 : index
    %12 = vector.load %arg5[%c0_7, %c0_8] : memref<8x128xbf16, #tpu.memory_space<vmem>>, vector<8x128xbf16>
    tpu.vector_store %arg5[%c0_7, %c0_8], %11 {strides = array<i32>} : memref<8x128xbf16, #tpu.memory_space<vmem>>, vector<8x128xbf16>,
    return
  }
  func.func @transform_0(%arg0: i32, %arg1: i32) -> (i32, i32) {
    %c0_i32 = arith.constant 0 : i32
    %c0_i32_0 = arith.constant 0 : i32
    return %arg0, %c0_i32 : i32, i32
  }
  func.func @transform_1(%arg0: i32, %arg1: i32) -> (i32, i32) {
    %c0_i32 = arith.constant 0 : i32
    %c0_i32_0 = arith.constant 0 : i32
    return %c0_i32, %arg1 : i32, i32
  }
  func.func @transform_2(%arg0: i32, %arg1: i32) -> (i32, i32) {
    %c0_i32 = arith.constant 0 : i32
    %c0_i32_0 = arith.constant 0 : i32
    return %c0_i32, %arg1 : i32, i32
  }
  func.func @transform_3(%arg0: i32, %arg1: i32) -> (i32, i32) {
    %c0_i32 = arith.constant 0 : i32
    return %arg0, %arg1 : i32, i32
  }
}

module attributes {stable_mosaic.version = 11 : i64} {
  func.func @_gemm_bias_act_kernel(%arg0: i32, %arg1: i32, %arg2: memref<8x128xbf16, #tpu.memory_space<vmem>>, %arg3: memref<128x128xbf16, #tpu.memory_space<vmem>>, %arg4: memref<1x128xf32, #tpu.memory_space<vmem>>, %arg5: memref<8x128xf32, #tpu.memory_space<vmem>>) attributes {dimension_semantics = [#tpu.dimension_semantics<parallel>, #tpu.dimension_semantics<parallel>], iteration_bounds = array<i64: 1, 1>, scalar_prefetch = 0 : i64, scratch_operands = 0 : i64, tpu.core_type = #tpu.core_type<tc>, window_params = [{transform_indices = @transform_0, window_bounds = array<i64: 8, 128>}, {transform_indices = @transform_1, window_bounds = array<i64: 128, 128>}, {transform_indices = @transform_2, window_bounds = array<i64: 1, 128>}, {transform_indices = @transform_3, window_bounds = array<i64: 8, 128>}]} {
    %c0 = arith.constant 0 : index
    %c0_0 = arith.constant 0 : index
    %0 = vector.load %arg2[%c0, %c0_0] : memref<8x128xbf16, #tpu.memory_space<vmem>>, vector<8x128xbf16>
    %c0_1 = arith.constant 0 : index
    %c0_2 = arith.constant 0 : index
    %1 = vector.load %arg3[%c0_1, %c0_2] : memref<128x128xbf16, #tpu.memory_space<vmem>>, vector<128x128xbf16>
    %cst = arith.constant dense<0.000000e+00> : vector<8x128xf32>
    %2 = tpu.matmul %0, %1, %cst {dimension_numbers = #tpu.dot_dimension_numbers<[1], [0], [0], [1], [0, 0, 1, 1], [], []>} : vector<8x128xbf16>, vector<128x128xbf16>, vector<8x128xf32> -> vector<8x128xf32>
    %c0_3 = arith.constant 0 : index
    %c0_4 = arith.constant 0 : index
    %3 = vector.load %arg4[%c0_3, %c0_4] : memref<1x128xf32, #tpu.memory_space<vmem>>, vector<1x128xf32>
    %4 = vector.broadcast %3 : vector<1x128xf32> to vector<8x128xf32>
    %5 = arith.addf %2, %4 : vector<8x128xf32>
    %c0_5 = arith.constant 0 : index
    %c0_6 = arith.constant 0 : index
    %6 = vector.load %arg5[%c0_5, %c0_6] : memref<8x128xf32, #tpu.memory_space<vmem>>, vector<8x128xf32>
    tpu.vector_store %arg5[%c0_5, %c0_6], %5 {strides = array<i32>} : memref<8x128xf32, #tpu.memory_space<vmem>>, vector<8x128xf32>,
    return
  }
  func.func @transform_0(%arg0: i32, %arg1: i32) -> (i32, i32) {
    %c0_i32 = arith.constant 0 : i32
    %c0_i32_0 = arith.constant 0 : i32
    return %arg0, %c0_i32 : i32, i32
  }
  func.func @transform_1(%arg0: i32, %arg1: i32) -> (i32, i32) {
    %c0_i32 = arith.constant 0 : i32
    %c0_i32_0 = arith.constant 0 : i32
    return %c0_i32, %arg1 : i32, i32
  }
  func.func @transform_2(%arg0: i32, %arg1: i32) -> (i32, i32) {
    %c0_i32 = arith.constant 0 : i32
    %c0_i32_0 = arith.constant 0 : i32
    return %c0_i32, %arg1 : i32, i32
  }
  func.func @transform_3(%arg0: i32, %arg1: i32) -> (i32, i32) {
    %c0_i32 = arith.constant 0 : i32
    return %arg0, %arg1 : i32, i32
  }
}

module attributes {stable_mosaic.version = 11 : i64} {
  func.func @_decode_kernel(%arg0: memref<2x128xf32, #tpu.memory_space<vmem>>, %arg1: memref<2x128xf32, #tpu.memory_space<vmem>>) attributes {dimension_semantics = [], scalar_prefetch = 0 : i64, scratch_operands = 0 : i64, tpu.core_type = #tpu.core_type<tc>} {
    %c0 = arith.constant 0 : index
    %c0_0 = arith.constant 0 : index
    %0 = vector.load %arg0[%c0, %c0_0] : memref<2x128xf32, #tpu.memory_space<vmem>>, vector<2x128xf32>
    %1 = tpu.iota {dimensions = array<i32: 0>} : vector<2x128xi32>
    %2 = arith.sitofp %1 : vector<2x128xi32> to vector<2x128xf32>
    %3 = tpu.iota {dimensions = array<i32: 1>} : vector<2x128xi32>
    %4 = arith.sitofp %3 : vector<2x128xi32> to vector<2x128xf32>
    %cst = arith.constant 1.280000e+02 : f32
    %5 = vector.broadcast %cst : f32 to vector<2x128xf32>
    %6 = arith.mulf %2, %5 : vector<2x128xf32>
    %7 = arith.addf %6, %4 : vector<2x128xf32>
    %cst_1 = arith.constant 8.000000e+00 : f32
    %8 = vector.broadcast %cst_1 : f32 to vector<2x128xf32>
    %9 = arith.divf %7, %8 : vector<2x128xf32>
    %10 = math.floor %9 : vector<2x128xf32>
    %cst_2 = arith.constant 8.000000e+00 : f32
    %11 = vector.broadcast %cst_2 : f32 to vector<2x128xf32>
    %12 = arith.mulf %10, %11 : vector<2x128xf32>
    %13 = arith.subf %7, %12 : vector<2x128xf32>
    %cst_3 = arith.constant 3.000000e+00 : f32
    %14 = vector.broadcast %cst_3 : f32 to vector<2x128xf32>
    %15 = arith.divf %10, %14 : vector<2x128xf32>
    %16 = math.floor %15 : vector<2x128xf32>
    %cst_4 = arith.constant 3.000000e+00 : f32
    %17 = vector.broadcast %cst_4 : f32 to vector<2x128xf32>
    %18 = arith.mulf %16, %17 : vector<2x128xf32>
    %19 = arith.subf %10, %18 : vector<2x128xf32>
    %cst_5 = arith.constant 2.000000e+00 : f32
    %20 = vector.broadcast %cst_5 : f32 to vector<2x128xf32>
    %21 = arith.divf %16, %20 : vector<2x128xf32>
    %22 = math.floor %21 : vector<2x128xf32>
    %cst_6 = arith.constant 2.000000e+00 : f32
    %23 = vector.broadcast %cst_6 : f32 to vector<2x128xf32>
    %24 = arith.mulf %22, %23 : vector<2x128xf32>
    %25 = arith.subf %16, %24 : vector<2x128xf32>
    %cst_7 = arith.constant 2.000000e+00 : f32
    %26 = vector.broadcast %cst_7 : f32 to vector<2x128xf32>
    %27 = arith.divf %22, %26 : vector<2x128xf32>
    %28 = math.floor %27 : vector<2x128xf32>
    %cst_8 = arith.constant 2.000000e+00 : f32
    %29 = vector.broadcast %cst_8 : f32 to vector<2x128xf32>
    %30 = arith.mulf %28, %29 : vector<2x128xf32>
    %31 = arith.subf %22, %30 : vector<2x128xf32>
    %32 = arith.negf %0 : vector<2x128xf32>
    %33 = math.exp %32 : vector<2x128xf32>
    %cst_9 = arith.constant 1.000000e+00 : f32
    %34 = vector.broadcast %cst_9 : f32 to vector<2x128xf32>
    %35 = arith.addf %34, %33 : vector<2x128xf32>
    %36 = arith.divf %34, %35 : vector<2x128xf32>
    %cst_10 = arith.constant 2.000000e+00 : f32
    %37 = vector.broadcast %cst_10 : f32 to vector<2x128xf32>
    %38 = arith.cmpf oeq, %13, %37 : vector<2x128xf32>
    %cst_11 = arith.constant 3.000000e+00 : f32
    %39 = vector.broadcast %cst_11 : f32 to vector<2x128xf32>
    %40 = arith.cmpf oeq, %13, %39 : vector<2x128xf32>
    %41 = arith.ori %38, %40 : vector<2x128xi1>
    %cst_12 = arith.constant 0.000000e+00 : f32
    %42 = vector.broadcast %cst_12 : f32 to vector<2x128xf32>
    %43 = arith.select %41, %0, %42 : vector<2x128xi1>, vector<2x128xf32>
    %44 = math.exp %43 : vector<2x128xf32>
    %cst_13 = arith.constant 57.3846169 : f32
    %45 = vector.broadcast %cst_13 : f32 to vector<2x128xf32>
    %cst_14 = arith.constant 50.1538467 : f32
    %46 = vector.broadcast %cst_14 : f32 to vector<2x128xf32>
    %cst_15 = arith.constant 1.000000e+00 : f32
    %47 = vector.broadcast %cst_15 : f32 to vector<2x128xf32>
    %48 = arith.cmpf oeq, %19, %47 : vector<2x128xf32>
    %cst_16 = arith.constant 2.400000e+01 : f32
    %49 = vector.broadcast %cst_16 : f32 to vector<2x128xf32>
    %50 = arith.select %48, %49, %45 : vector<2x128xi1>, vector<2x128xf32>
    %cst_17 = arith.constant 1.000000e+00 : f32
    %51 = vector.broadcast %cst_17 : f32 to vector<2x128xf32>
    %52 = arith.cmpf oeq, %19, %51 : vector<2x128xf32>
    %cst_18 = arith.constant 30.4615383 : f32
    %53 = vector.broadcast %cst_18 : f32 to vector<2x128xf32>
    %54 = arith.select %52, %53, %46 : vector<2x128xi1>, vector<2x128xf32>
    %cst_19 = arith.constant 0.000000e+00 : f32
    %55 = vector.broadcast %cst_19 : f32 to vector<2x128xf32>
    %56 = arith.cmpf oeq, %19, %55 : vector<2x128xf32>
    %cst_20 = arith.constant 17.8461533 : f32
    %57 = vector.broadcast %cst_20 : f32 to vector<2x128xf32>
    %58 = arith.select %56, %57, %50 : vector<2x128xi1>, vector<2x128xf32>
    %cst_21 = arith.constant 0.000000e+00 : f32
    %59 = vector.broadcast %cst_21 : f32 to vector<2x128xf32>
    %60 = arith.cmpf oeq, %19, %59 : vector<2x128xf32>
    %cst_22 = arith.constant 13.8461542 : f32
    %61 = vector.broadcast %cst_22 : f32 to vector<2x128xf32>
    %62 = arith.select %60, %61, %54 : vector<2x128xi1>, vector<2x128xf32>
    %cst_23 = arith.constant 0.000000e+00 : f32
    %63 = vector.broadcast %cst_23 : f32 to vector<2x128xf32>
    %64 = arith.cmpf oeq, %13, %63 : vector<2x128xf32>
    %65 = arith.addf %36, %25 : vector<2x128xf32>
    %cst_24 = arith.constant 3.200000e+01 : f32
    %66 = vector.broadcast %cst_24 : f32 to vector<2x128xf32>
    %67 = arith.mulf %65, %66 : vector<2x128xf32>
    %cst_25 = arith.constant 1.000000e+00 : f32
    %68 = vector.broadcast %cst_25 : f32 to vector<2x128xf32>
    %69 = arith.cmpf oeq, %13, %68 : vector<2x128xf32>
    %70 = arith.addf %36, %31 : vector<2x128xf32>
    %cst_26 = arith.constant 3.200000e+01 : f32
    %71 = vector.broadcast %cst_26 : f32 to vector<2x128xf32>
    %72 = arith.mulf %70, %71 : vector<2x128xf32>
    %73 = arith.mulf %44, %58 : vector<2x128xf32>
    %74 = arith.mulf %44, %62 : vector<2x128xf32>
    %75 = arith.select %40, %74, %36 : vector<2x128xi1>, vector<2x128xf32>
    %76 = arith.select %38, %73, %75 : vector<2x128xi1>, vector<2x128xf32>
    %77 = arith.select %69, %72, %76 : vector<2x128xi1>, vector<2x128xf32>
    %78 = arith.select %64, %67, %77 : vector<2x128xi1>, vector<2x128xf32>
    %c0_27 = arith.constant 0 : index
    %c0_28 = arith.constant 0 : index
    %79 = vector.load %arg1[%c0_27, %c0_28] : memref<2x128xf32, #tpu.memory_space<vmem>>, vector<2x128xf32>
    tpu.vector_store %arg1[%c0_27, %c0_28], %78 {strides = array<i32>} : memref<2x128xf32, #tpu.memory_space<vmem>>, vector<2x128xf32>,
    return
  }
}

</mosaic_0001>

<llo_original>
// kernel: yolov3_forward.78
$region0: #{yolov3_forward.78}
  #allocation0 [shape = 'u32[]', space=smem, size = 0x4, offset = 0x4, fixed_abs, tag = 'smem constant byte address 0x4 - core index']
  #allocation1 [shape = 'u32[144,128]{1,0:T(1,128)}', space=vmem, size = 0x12000, scoped, tag = 'internal scratch']
  %s0 = inlined_call_operand.vmem [shape: bf16[8192,32], index: 0, kind: input, shape index: {}]
  %s1 = inlined_call_operand.vmem [shape: bf16[32,128], index: 1, kind: input, shape index: {}]
  %s2 = inlined_call_operand.vmem [shape: f32[1,128], index: 2, kind: input, shape index: {}]
  %s3 = inlined_call_operand.vmem [shape: bf16[8192,128], index: 3, kind: output, shape index: {}]
  %s4 = sld [smem:[#allocation0]]
  $region45: #{yolov3_forward.78} parent=0
    _
  %s6 = ssub.s32 1, %s4
  %s7 = scalar_select 0, %s6, %s4
  loop: start=0, step=1, limit=34
  $region2: #{yolov3_forward.78} parent=0 // loop_pre_header
    _
  $region3: #{yolov3_forward.78} parent=0 // loop_header
    %s9 = sphi 0, %s13
    %p10 = scmp.ge.s32.totalorder %s9, 34
    %s16 = sphi 0, %s28
    %s17 = sphi 0, %s24
    %s18 = sphi 0, %s16
    %s19 = sphi 0, %s17
    %s20 = sphi 0, %s18
    %s21 = sphi 0, %s19
    %s31 = sphi 0, %s33
    %s34 = sphi 0, %s31
    %s35 = sphi 0, %s34
    %s51 = sphi 0, %s35
    %s57 = sphi 0, %s59
    %s60 = sphi 0, %s57
    %s61 = sphi 0, %s60
    %s77 = sphi 0, %s61
    %s83 = sphi 0, %s85
    %s86 = sphi 0, %s83
    %s87 = sphi 0, %s86
    %s103 = sphi 0, %s87
    %s111 = sphi 0, %s113
    %s114 = sphi 0, %s111
    %s115 = sphi 0, %s114
    %s131 = sphi 0, %s115
  $region4: #{yolov3_forward.78} parent=0 // loop_header_branch
    %12 = sbr.rel (%p10) target = $region8
  $region5: #{yolov3_forward.78} parent=0 // loop_body
    %s14 = ssub.s32 %s9, 1
    %s15 = ssub.s32 %s9, 2
    %s22 = sadd.s32 1, %s17
    %p23 = scmp.ge.s32.totalorder %s22, 1
    %s24 = scalar_select %p23, 0, %s22
    %s25 = sadd.s32 1, %s16
    %s26 = scalar_select %p23, %s25, %s16
    %p27 = scmp.ge.s32.totalorder %s26, 32
    %s28 = scalar_select %p27, 0, %s26
    %s29 = ssub.s32 %s16, %s28
    %p30 = scmp.eq.s32.totalorder %s29, 0
    %s32 = sadd.s32 %s31, 1
    %s33 = scalar_select %p30, %s31, %s32
    %p36 = pneg %p30
    %p37 = scmp.eq.s32.totalorder %s9, 31
    %p38 = por %p36, %p37
    %p39 = scmp.ne.s32.totalorder %s31, %s34
    %p40 = scmp.eq.s32.totalorder %s9, 0
    %p41 = por %p39, %p40
    %p42 = scmp.ne.s32.totalorder %s31, %s34
    %p43 = scmp.eq.s32.totalorder %s14, 31
    %p44 = por %p42, %p43
    %p45 = scmp.ne.s32.totalorder %s34, %s35
    %p46 = scmp.eq.s32.totalorder %s14, 0
    %p47 = por %p45, %p46
    %p48 = scmp.ne.s32.totalorder %s34, %s35
    %p49 = scmp.eq.s32.totalorder %s15, 31
    %p50 = por %p48, %p49
    %p52 = scmp.ne.s32.totalorder %s35, %s51
    %p53 = scmp.eq.s32.totalorder %s15, 0
    %p54 = por %p52, %p53
    %s55 = ssub.s32 %s17, %s24
    %p56 = scmp.eq.s32.totalorder %s55, 0
    %s58 = sadd.s32 %s57, 1
    %s59 = scalar_select %p56, %s57, %s58
    %p62 = pneg %p56
    %p63 = scmp.eq.s32.totalorder %s9, 31
    %p64 = por %p62, %p63
    %p65 = scmp.ne.s32.totalorder %s57, %s60
    %p66 = scmp.eq.s32.totalorder %s9, 0
    %p67 = por %p65, %p66
    %p68 = scmp.ne.s32.totalorder %s57, %s60
    %p69 = scmp.eq.s32.totalorder %s14, 31
    %p70 = por %p68, %p69
    %p71 = scmp.ne.s32.totalorder %s60, %s61
    %p72 = scmp.eq.s32.totalorder %s14, 0
    %p73 = por %p71, %p72
    %p74 = scmp.ne.s32.totalorder %s60, %s61
    %p75 = scmp.eq.s32.totalorder %s15, 31
    %p76 = por %p74, %p75
    %p78 = scmp.ne.s32.totalorder %s61, %s77
    %p79 = scmp.eq.s32.totalorder %s15, 0
    %p80 = por %p78, %p79
    %s81 = ssub.s32 %s17, %s24
    %p82 = scmp.eq.s32.totalorder %s81, 0
    %s84 = sadd.s32 %s83, 1
    %s85 = scalar_select %p82, %s83, %s84
    %p88 = pneg %p82
    %p89 = scmp.eq.s32.totalorder %s9, 31
    %p90 = por %p88, %p89
    %p91 = scmp.ne.s32.totalorder %s83, %s86
    %p92 = scmp.eq.s32.totalorder %s9, 0
    %p93 = por %p91, %p92
    %p94 = scmp.ne.s32.totalorder %s83, %s86
    %p95 = scmp.eq.s32.totalorder %s14, 31
    %p96 = por %p94, %p95
    %p97 = scmp.ne.s32.totalorder %s86, %s87
    %p98 = scmp.eq.s32.totalorder %s14, 0
    %p99 = por %p97, %p98
    %p100 = scmp.ne.s32.totalorder %s86, %s87
    %p101 = scmp.eq.s32.totalorder %s15, 31
    %p102 = por %p100, %p101
    %p104 = scmp.ne.s32.totalorder %s87, %s103
    %p105 = scmp.eq.s32.totalorder %s15, 0
    %p106 = por %p104, %p105
    %s107 = ssub.s32 %s16, %s28
    %s108 = ssub.s32 %s17, %s24
    %s109 = sor.u32 %s107, %s108
    %p110 = scmp.eq.s32.totalorder %s109, 0
    %s112 = sadd.s32 %s111, 1
    %s113 = scalar_select %p110, %s111, %s112
    %p116 = pneg %p110
    %p117 = scmp.eq.s32.totalorder %s9, 31
    %p118 = por %p116, %p117
    %p119 = scmp.ne.s32.totalorder %s111, %s114
    %p120 = scmp.eq.s32.totalorder %s9, 0
    %p121 = por %p119, %p120
    %p122 = scmp.ne.s32.totalorder %s111, %s114
    %p123 = scmp.eq.s32.totalorder %s14, 31
    %p124 = por %p122, %p123
    %p125 = scmp.ne.s32.totalorder %s114, %s115
    %p126 = scmp.eq.s32.totalorder %s14, 0
    %p127 = por %p125, %p126
    %p128 = scmp.ne.s32.totalorder %s114, %s115
    %p129 = scmp.eq.s32.totalorder %s15, 31
    %p130 = por %p128, %p129
    %p132 = scmp.ne.s32.totalorder %s115, %s131
    %p133 = scmp.eq.s32.totalorder %s15, 0
    %p134 = por %p132, %p133
    %p135 = scmp.le.s32.totalorder 1, %s9
    %p136 = scmp.lt.s32.totalorder %s9, 33
    %p137 = pnand %p135, %p136
    %p138 = pneg %p137
    // Predicated region
    $region9: #{yolov3_forward.78} parent=5 // pred_check
      _
    $region10: #{yolov3_forward.78} parent=5 // pred_check_branch
      %140 = sbr.rel (%p137) target = $region12
    $region11: #{yolov3_forward.78} parent=5 // pred_region
      %s141 = ssub.s32 %s9, 1
      // Predicated region
      $region13: #{yolov3_forward.78} parent=11 // pred_check
        %p142 = pneg %p73
      $region14: #{yolov3_forward.78} parent=11 // pred_check_branch
        %144 = sbr.rel (%p142) target = $region16
      $region15: #{yolov3_forward.78} parent=11 // pred_region
        %p145 = scmp.lt.s32.totalorder %s19, 0
        %s146 = scalar_select %p145, %s19, 0
        %s147 = smul.addr %s146, 4
        %s148 = scalar_lea.vmem %s1, %s147
      $region16: #{yolov3_forward.78} parent=11 // pred_fallthru
        _
      // Predicated region
      $region17: #{yolov3_forward.78} parent=11 // pred_check
        %p149 = pneg %p99
      $region18: #{yolov3_forward.78} parent=11 // pred_check_branch
        %151 = sbr.rel (%p149) target = $region20
      $region19: #{yolov3_forward.78} parent=11 // pred_region
        %p152 = scmp.lt.s32.totalorder %s19, 0
        %s153 = scalar_select %p152, %s19, 0
        %s154 = scalar_lea.vmem %s2, %s153
      $region20: #{yolov3_forward.78} parent=11 // pred_fallthru
        _
    $region12: #{yolov3_forward.78} parent=5 // pred_fallthru
      _
    %p155 = scmp.lt.s32.totalorder %s9, 32
    // Predicated region
    $region21: #{yolov3_forward.78} parent=5 // pred_check
      %p156 = pneg %p155
    $region22: #{yolov3_forward.78} parent=5 // pred_check_branch
      %158 = sbr.rel (%p156) target = $region24
    $region23: #{yolov3_forward.78} parent=5 // pred_region
      // Predicated region
      $region25: #{yolov3_forward.78} parent=23 // pred_check
        %p159 = pneg %p41
      $region26: #{yolov3_forward.78} parent=23 // pred_check_branch
        %161 = sbr.rel (%p159) target = $region28
      $region27: #{yolov3_forward.78} parent=23 // pred_region
        %s162 = smul.u32 32, %s16
        %p163 = scmp.lt.s32.totalorder %s162, 1023
        %s164 = scalar_select %p163, %s162, 1023
        %s165 = smul.addr %s164, 4
        %s166 = scalar_lea.vmem %s0, %s165
        %s167 = smul.u32 32, %s16
      $region28: #{yolov3_forward.78} parent=23 // pred_fallthru
        _
    $region24: #{yolov3_forward.78} parent=5 // pred_fallthru
      _
    %p168 = scmp.le.s32.totalorder 1, %s9
    %p169 = scmp.lt.s32.totalorder %s9, 33
    %p170 = pnand %p168, %p169
    %p171 = pneg %p170
    // Predicated region
    $region29: #{yolov3_forward.78} parent=5 // pred_check
      _
    $region30: #{yolov3_forward.78} parent=5 // pred_check_branch
      %173 = sbr.rel (%p170) target = $region32
    $region31: #{yolov3_forward.78} parent=5 // pred_region
      %s174 = ssub.s32 %s9, 1
      %s175 = smul.u32 32, %s18
      %p176 = scmp.lt.s32.totalorder %s175, 1023
      %s177 = scalar_select %p176, %s175, 1023
      %s178 = smul.addr %s177, 4
      %s179 = scalar_lea.vmem %s0, %s178
      %p180 = pneg %p47
      %p181 = pneg %p44
      %p182 = scmp.lt.s32.totalorder %s19, 0
      %s183 = scalar_select %p182, %s19, 0
      %s184 = smul.addr %s183, 4
      %s185 = scalar_lea.vmem %s1, %s184
      %p186 = pneg %p73
      %p187 = pneg %p70
      %p188 = scmp.lt.s32.totalorder %s19, 0
      %s189 = scalar_select %p188, %s19, 0
      %s190 = scalar_lea.vmem %s2, %s189
      %p191 = pneg %p99
      %p192 = pneg %p96
      %p193 = pneg %p127
      %p194 = pneg %p124
      %s195 = smul.u32 32, %s18
      %p196 = scmp.lt.s32.totalorder %s195, 1023
      %s197 = scalar_select %p196, %s195, 1023
      %p198 = scmp.lt.s32.totalorder %s19, 0
      %s199 = scalar_select %p198, %s19, 0
      %s200 = sadd.s32 %s199, %s197
      %s201 = smul.addr %s200, 4
      %s202 = scalar_lea.vmem %s3, %s201
      %s203 = smul.u32 32, %s18
      %p204 = scmp.lt.s32.totalorder %s203, 1023
      %s205 = scalar_select %p204, %s203, 1023
      %s206 = smul.addr %s205, 4
      %s207 = scalar_lea.vmem %s0, %s206
      %s208 = smul.u32 32, %s18
      %p209 = scmp.lt.s32.totalorder %s19, 0
      %s210 = scalar_select %p209, %s19, 0
      %s211 = smul.addr %s210, 4
      %s212 = scalar_lea.vmem %s1, %s211
      %p213 = scmp.lt.s32.totalorder %s19, 0
      %s214 = scalar_select %p213, %s19, 0
      %s215 = scalar_lea.vmem %s2, %s214
      %s216 = smul.u32 32, %s18
      %p217 = scmp.lt.s32.totalorder %s216, 1023
      %s218 = scalar_select %p217, %s216, 1023
      %p219 = scmp.lt.s32.totalorder %s19, 0
      %s220 = scalar_select %p219, %s19, 0
      %s221 = sadd.s32 %s220, %s218
      %s222 = smul.addr %s221, 4
      %s223 = scalar_lea.vmem %s3, %s222
      %s224 = smul.u32 32, %s18
      %v226 = vld [vmem:[%s207] sm:$0xf]
      %v227 = vld [vmem:[%s207 + $0x4] sm:$0xf]
      %v228 = vld [vmem:[%s207 + $0x8] sm:$0xf]
      %v229 = vld [vmem:[%s207 + $0xc] sm:$0xf]
      %v230 = vld [vmem:[%s207 + $0x10] sm:$0xf]
      %v231 = vld [vmem:[%s207 + $0x14] sm:$0xf]
      %v232 = vld [vmem:[%s207 + $0x18] sm:$0xf]
      %v233 = vld [vmem:[%s207 + $0x1c] sm:$0xf]
      %v234 = vld [vmem:[%s207 + $0x20] sm:$0xf]
      %v235 = vld [vmem:[%s207 + $0x24] sm:$0xf]
      %v236 = vld [vmem:[%s207 + $0x28] sm:$0xf]
      %v237 = vld [vmem:[%s207 + $0x2c] sm:$0xf]
      %v238 = vld [vmem:[%s207 + $0x30] sm:$0xf]
      %v239 = vld [vmem:[%s207 + $0x34] sm:$0xf]
      %v240 = vld [vmem:[%s207 + $0x38] sm:$0xf]
      %v241 = vld [vmem:[%s207 + $0x3c] sm:$0xf]
      %v242 = vld [vmem:[%s207 + $0x40] sm:$0xf]
      %v243 = vld [vmem:[%s207 + $0x44] sm:$0xf]
      %v244 = vld [vmem:[%s207 + $0x48] sm:$0xf]
      %v245 = vld [vmem:[%s207 + $0x4c] sm:$0xf]
      %v246 = vld [vmem:[%s207 + $0x50] sm:$0xf]
      %v247 = vld [vmem:[%s207 + $0x54] sm:$0xf]
      %v248 = vld [vmem:[%s207 + $0x58] sm:$0xf]
      %v249 = vld [vmem:[%s207 + $0x5c] sm:$0xf]
      %v250 = vld [vmem:[%s207 + $0x60] sm:$0xf]
      %v251 = vld [vmem:[%s207 + $0x64] sm:$0xf]
      %v252 = vld [vmem:[%s207 + $0x68] sm:$0xf]
      %v253 = vld [vmem:[%s207 + $0x6c] sm:$0xf]
      %v254 = vld [vmem:[%s207 + $0x70] sm:$0xf]
      %v255 = vld [vmem:[%s207 + $0x74] sm:$0xf]
      %v256 = vld [vmem:[%s207 + $0x78] sm:$0xf]
      %v257 = vld [vmem:[%s207 + $0x7c] sm:$0xf]
      %v258 = vld [vmem:[%s212] sm:$0xf]
      %v259 = vld [vmem:[%s212 + $0x4] sm:$0xf]
      %v260 = vld [vmem:[%s212 + $0x8] sm:$0xf]
      %v261 = vld [vmem:[%s212 + $0xc] sm:$0xf]
      %v262 = vld [vmem:[%s215] sm:$0x1]
      %v264 = vlaneseq
      %v265 = vshrl.u32 %v264, 7
      %v266 = vsub.s32 0, %v265
      %v267 = vrot.slane %v262, %v266
      %v301 = vunpack.c.l.b16 %v226
      %v302 = vunpack.c.l.b16 %v227
      %v303 = vunpack.c.l.b16 %v228
      %v304 = vunpack.c.l.b16 %v229
      %v305 = vunpack.c.l.b16 %v230
      %v306 = vunpack.c.l.b16 %v231
      %v307 = vunpack.c.l.b16 %v232
      %v308 = vunpack.c.l.b16 %v233
      %v309 = vunpack.c.l.b16 %v234
      %v310 = vunpack.c.l.b16 %v235
      %v311 = vunpack.c.l.b16 %v236
      %v312 = vunpack.c.l.b16 %v237
      %v313 = vunpack.c.l.b16 %v238
      %v314 = vunpack.c.l.b16 %v239
      %v315 = vunpack.c.l.b16 %v240
      %v316 = vunpack.c.l.b16 %v241
      %v317 = vunpack.c.l.b16 %v242
      %v318 = vunpack.c.l.b16 %v243
      %v319 = vunpack.c.l.b16 %v244
      %v320 = vunpack.c.l.b16 %v245
      %v321 = vunpack.c.l.b16 %v246
      %v322 = vunpack.c.l.b16 %v247
      %v323 = vunpack.c.l.b16 %v248
      %v324 = vunpack.c.l.b16 %v249
      %v325 = vunpack.c.l.b16 %v250
      %v326 = vunpack.c.l.b16 %v251
      %v327 = vunpack.c.l.b16 %v252
      %v328 = vunpack.c.l.b16 %v253
      %v329 = vunpack.c.l.b16 %v254
      %v330 = vunpack.c.l.b16 %v255
      %v331 = vunpack.c.l.b16 %v256
      %v332 = vunpack.c.l.b16 %v257
      %v333 = vpack.c.b16 %v302, %v301
      %v334 = vpack.c.b16 %v304, %v303
      %v335 = vpack.c.b16 %v306, %v305
      %v336 = vpack.c.b16 %v308, %v307
      %v337 = vpack.c.b16 %v310, %v309
      %v338 = vpack.c.b16 %v312, %v311
      %v339 = vpack.c.b16 %v314, %v313
      %v340 = vpack.c.b16 %v316, %v315
      %v341 = vpack.c.b16 %v318, %v317
      %v342 = vpack.c.b16 %v320, %v319
      %v343 = vpack.c.b16 %v322, %v321
      %v344 = vpack.c.b16 %v324, %v323
      %v345 = vpack.c.b16 %v326, %v325
      %v346 = vpack.c.b16 %v328, %v327
      %v347 = vpack.c.b16 %v330, %v329
      %v348 = vpack.c.b16 %v332, %v331
      %v353 = vunpack.c.l.b16 %v258
      %v354 = vunpack.c.l.b16 %v259
      %v355 = vunpack.c.l.b16 %v260
      %v356 = vunpack.c.l.b16 %v261
      %v357 = vpack.c.b16 %v354, %v353
      %v358 = vpack.c.b16 %v356, %v355
      %vm361 = vcmask 261120
      %v363 = vsel %vm361, %v333, 0
      %v366 = vsel %vm361, %v334, 0
      %v369 = vsel %vm361, %v335, 0
      %v372 = vsel %vm361, %v336, 0
      %v375 = vsel %vm361, %v337, 0
      %v378 = vsel %vm361, %v338, 0
      %v381 = vsel %vm361, %v339, 0
      %v384 = vsel %vm361, %v340, 0
      %v387 = vsel %vm361, %v341, 0
      %v390 = vsel %vm361, %v342, 0
      %v393 = vsel %vm361, %v343, 0
      %v396 = vsel %vm361, %v344, 0
      %v399 = vsel %vm361, %v345, 0
      %v402 = vsel %vm361, %v346, 0
      %v405 = vsel %vm361, %v347, 0
      %v408 = vsel %vm361, %v348, 0
      %410 = vmatprep.subr.bf16.mxu0 0
      %411 = vmatpush1.bf16.msra.mxu0 0
      %412 = vmatprep.subr.bf16.mxu0 0
      %413 = vmatpush1.bf16.msra.mxu0 0
      %414 = vmatprep.subr.bf16.mxu0 0
      %415 = vmatpush1.bf16.msra.mxu0 0
      %416 = vmatprep.subr.bf16.mxu0 0
      %417 = vmatpush1.bf16.msra.mxu0 0
      %418 = vmatprep.subr.bf16.mxu0 0
      %419 = vmatpush1.bf16.msra.mxu0 0
      %420 = vmatprep.subr.bf16.mxu0 0
      %421 = vmatpush1.bf16.msra.mxu0 0
      %422 = vmatprep.subr.bf16.mxu0 0
      %423 = vmatpush1.bf16.msra.mxu0 %v358
      %424 = vmatprep.subr.bf16.mxu0 0
      %425 = vmatpush1.bf16.msra.mxu0 %v357
      %426 = vmatprep.subr.bf16.mxu0 0
      %427 = vmatpush2.bf16.msra.mxu0 0
      %428 = vmatprep.subr.bf16.mxu0 0
      %429 = vmatpush2.bf16.msra.mxu0 0
      %430 = vmatprep.subr.bf16.mxu0 0
      %431 = vmatpush2.bf16.msra.mxu0 0
      %432 = vmatprep.subr.bf16.mxu0 0
      %433 = vmatpush2.bf16.msra.mxu0 0
      %434 = vmatprep.subr.bf16.mxu0 0
      %435 = vmatpush2.bf16.msra.mxu0 0
      %436 = vmatprep.subr.bf16.mxu0 0
      %437 = vmatpush2.bf16.msra.mxu0 0
      %438 = vmatprep.subr.bf16.mxu0 0
      %439 = vmatpush2.bf16.msra.mxu0 0
      %440 = vmatprep.subr.bf16.mxu0 0
      %441 = vmatpush2.bf16.msra.mxu0 0
      %442 = vmatprep.mubr.bf16.mxu0 0
      %443 = vmatmul.mubr.bf16.gmra.mxu0 %v363
      %v444 = vpop.f32.mrf.mxu0
      %v445 = vadd.f32 %v267, %v444
      %v446 = vpop.f32.mrf.mxu0
      %v447 = vpop.f32.mrf.mxu0
      %v448 = vadd.f32 %v267, %v447
      %v449 = vpop.f32.mrf.mxu0
      %450 = vmatprep.mubr.bf16.mxu0 0
      %451 = vmatmul.mubr.bf16.gmra.mxu0 %v366
      %v452 = vpop.f32.mrf.mxu0
      %v453 = vadd.f32 %v267, %v452
      %v454 = vpop.f32.mrf.mxu0
      %v455 = vpop.f32.mrf.mxu0
      %v456 = vadd.f32 %v267, %v455
      %v457 = vpop.f32.mrf.mxu0
      %458 = vmatprep.mubr.bf16.mxu0 0
      %459 = vmatmul.mubr.bf16.gmra.mxu0 %v369
      %v460 = vpop.f32.mrf.mxu0
      %v461 = vadd.f32 %v267, %v460
      %v462 = vpop.f32.mrf.mxu0
      %v463 = vpop.f32.mrf.mxu0
      %v464 = vadd.f32 %v267, %v463
      %v465 = vpop.f32.mrf.mxu0
      %466 = vmatprep.mubr.bf16.mxu0 0
      %467 = vmatmul.mubr.bf16.gmra.mxu0 %v372
      %v468 = vpop.f32.mrf.mxu0
      %v469 = vadd.f32 %v267, %v468
      %v470 = vpop.f32.mrf.mxu0
      %v471 = vpop.f32.mrf.mxu0
      %v472 = vadd.f32 %v267, %v471
      %v473 = vpop.f32.mrf.mxu0
      %474 = vmatprep.mubr.bf16.mxu0 0
      %475 = vmatmul.mubr.bf16.gmra.mxu0 %v375
      %v476 = vpop.f32.mrf.mxu0
      %v477 = vadd.f32 %v267, %v476
      %v478 = vpop.f32.mrf.mxu0
      %v479 = vpop.f32.mrf.mxu0
      %v480 = vadd.f32 %v267, %v479
      %v481 = vpop.f32.mrf.mxu0
      %482 = vmatprep.mubr.bf16.mxu0 0
      %483 = vmatmul.mubr.bf16.gmra.mxu0 %v378
      %v484 = vpop.f32.mrf.mxu0
      %v485 = vadd.f32 %v267, %v484
      %v486 = vpop.f32.mrf.mxu0
      %v487 = vpop.f32.mrf.mxu0
      %v488 = vadd.f32 %v267, %v487
      %v489 = vpop.f32.mrf.mxu0
      %490 = vmatprep.mubr.bf16.mxu0 0
      %491 = vmatmul.mubr.bf16.gmra.mxu0 %v381
      %v492 = vpop.f32.mrf.mxu0
      %v493 = vadd.f32 %v267, %v492
      %v494 = vpop.f32.mrf.mxu0
      %v495 = vpop.f32.mrf.mxu0
      %v496 = vadd.f32 %v267, %v495
      %v497 = vpop.f32.mrf.mxu0
      %498 = vmatprep.mubr.bf16.mxu0 0
      %499 = vmatmul.mubr.bf16.gmra.mxu0 %v384
      %v500 = vpop.f32.mrf.mxu0
      %v501 = vadd.f32 %v267, %v500
      %v502 = vpop.f32.mrf.mxu0
      %v503 = vpop.f32.mrf.mxu0
      %v504 = vadd.f32 %v267, %v503
      %v505 = vpop.f32.mrf.mxu0
      %506 = vmatprep.mubr.bf16.mxu0 0
      %507 = vmatmul.mubr.bf16.gmra.mxu0 %v387
      %v508 = vpop.f32.mrf.mxu0
      %v509 = vadd.f32 %v267, %v508
      %v510 = vpop.f32.mrf.mxu0
      %v511 = vpop.f32.mrf.mxu0
      %v512 = vadd.f32 %v267, %v511
      %v513 = vpop.f32.mrf.mxu0
      %514 = vmatprep.mubr.bf16.mxu0 0
      %515 = vmatmul.mubr.bf16.gmra.mxu0 %v390
      %v516 = vpop.f32.mrf.mxu0
      %v517 = vadd.f32 %v267, %v516
      %v518 = vpop.f32.mrf.mxu0
      %v519 = vpop.f32.mrf.mxu0
      %v520 = vadd.f32 %v267, %v519
      %v521 = vpop.f32.mrf.mxu0
      %522 = vmatprep.mubr.bf16.mxu0 0
      %523 = vmatmul.mubr.bf16.gmra.mxu0 %v393
      %v524 = vpop.f32.mrf.mxu0
      %v525 = vadd.f32 %v267, %v524
      %v526 = vpop.f32.mrf.mxu0
      %v527 = vpop.f32.mrf.mxu0
      %v528 = vadd.f32 %v267, %v527
      %v529 = vpop.f32.mrf.mxu0
      %530 = vmatprep.mubr.bf16.mxu0 0
      %531 = vmatmul.mubr.bf16.gmra.mxu0 %v396
      %v532 = vpop.f32.mrf.mxu0
      %v533 = vadd.f32 %v267, %v532
      %v534 = vpop.f32.mrf.mxu0
      %v535 = vpop.f32.mrf.mxu0
      %v536 = vadd.f32 %v267, %v535
      %v537 = vpop.f32.mrf.mxu0
      %538 = vmatprep.mubr.bf16.mxu0 0
      %539 = vmatmul.mubr.bf16.gmra.mxu0 %v399
      %v540 = vpop.f32.mrf.mxu0
      %v541 = vadd.f32 %v267, %v540
      %v542 = vpop.f32.mrf.mxu0
      %v543 = vpop.f32.mrf.mxu0
      %v544 = vadd.f32 %v267, %v543
      %v545 = vpop.f32.mrf.mxu0
      %546 = vmatprep.mubr.bf16.mxu0 0
      %547 = vmatmul.mubr.bf16.gmra.mxu0 %v402
      %v548 = vpop.f32.mrf.mxu0
      %v549 = vadd.f32 %v267, %v548
      %v550 = vpop.f32.mrf.mxu0
      %v551 = vpop.f32.mrf.mxu0
      %v552 = vadd.f32 %v267, %v551
      %v553 = vpop.f32.mrf.mxu0
      %554 = vmatprep.mubr.bf16.mxu0 0
      %555 = vmatmul.mubr.bf16.gmra.mxu0 %v405
      %v556 = vpop.f32.mrf.mxu0
      %v557 = vadd.f32 %v267, %v556
      %v558 = vpop.f32.mrf.mxu0
      %v559 = vpop.f32.mrf.mxu0
      %v560 = vadd.f32 %v267, %v559
      %v561 = vpop.f32.mrf.mxu0
      %562 = vmatprep.mubr.bf16.mxu0 0
      %563 = vmatmul.mubr.bf16.gmra.mxu0 %v408
      %v564 = vpop.f32.mrf.mxu0
      %v565 = vadd.f32 %v267, %v564
      %v566 = vpop.f32.mrf.mxu0
      %v567 = vpop.f32.mrf.mxu0
      %v568 = vadd.f32 %v267, %v567
      %v569 = vpop.f32.mrf.mxu0
      %570 = vdwg.mxu0
      %vm571 = vcmp.gt.f32.partialorder %v445, 0.0
      %vm572 = vcmp.gt.f32.partialorder %v448, 0.0
      %vm573 = vcmp.gt.f32.partialorder %v453, 0.0
      %vm574 = vcmp.gt.f32.partialorder %v456, 0.0
      %vm575 = vcmp.gt.f32.partialorder %v461, 0.0
      %vm576 = vcmp.gt.f32.partialorder %v464, 0.0
      %vm577 = vcmp.gt.f32.partialorder %v469, 0.0
      %vm578 = vcmp.gt.f32.partialorder %v472, 0.0
      %vm579 = vcmp.gt.f32.partialorder %v477, 0.0
      %vm580 = vcmp.gt.f32.partialorder %v480, 0.0
      %vm581 = vcmp.gt.f32.partialorder %v485, 0.0
      %vm582 = vcmp.gt.f32.partialorder %v488, 0.0
      %vm583 = vcmp.gt.f32.partialorder %v493, 0.0
      %vm584 = vcmp.gt.f32.partialorder %v496, 0.0
      %vm585 = vcmp.gt.f32.partialorder %v501, 0.0
      %vm586 = vcmp.gt.f32.partialorder %v504, 0.0
      %vm587 = vcmp.gt.f32.partialorder %v509, 0.0
      %vm588 = vcmp.gt.f32.partialorder %v512, 0.0
      %vm589 = vcmp.gt.f32.partialorder %v517, 0.0
      %vm590 = vcmp.gt.f32.partialorder %v520, 0.0
      %vm591 = vcmp.gt.f32.partialorder %v525, 0.0
      %vm592 = vcmp.gt.f32.partialorder %v528, 0.0
      %vm593 = vcmp.gt.f32.partialorder %v533, 0.0
      %vm594 = vcmp.gt.f32.partialorder %v536, 0.0
      %vm595 = vcmp.gt.f32.partialorder %v541, 0.0
      %vm596 = vcmp.gt.f32.partialorder %v544, 0.0
      %vm597 = vcmp.gt.f32.partialorder %v549, 0.0
      %vm598 = vcmp.gt.f32.partialorder %v552, 0.0
      %vm599 = vcmp.gt.f32.partialorder %v557, 0.0
      %vm600 = vcmp.gt.f32.partialorder %v560, 0.0
      %vm601 = vcmp.gt.f32.partialorder %v565, 0.0
      %vm602 = vcmp.gt.f32.partialorder %v568, 0.0
      %v603 = vmul.f32 %v445, 0.1
      %v604 = vmul.f32 %v448, 0.1
      %v605 = vmul.f32 %v453, 0.1
      %v606 = vmul.f32 %v456, 0.1
      %v607 = vmul.f32 %v461, 0.1
      %v608 = vmul.f32 %v464, 0.1
      %v609 = vmul.f32 %v469, 0.1
      %v610 = vmul.f32 %v472, 0.1
      %v611 = vmul.f32 %v477, 0.1
      %v612 = vmul.f32 %v480, 0.1
      %v613 = vmul.f32 %v485, 0.1
      %v614 = vmul.f32 %v488, 0.1
      %v615 = vmul.f32 %v493, 0.1
      %v616 = vmul.f32 %v496, 0.1
      %v617 = vmul.f32 %v501, 0.1
      %v618 = vmul.f32 %v504, 0.1
      %v619 = vmul.f32 %v509, 0.1
      %v620 = vmul.f32 %v512, 0.1
      %v621 = vmul.f32 %v517, 0.1
      %v622 = vmul.f32 %v520, 0.1
      %v623 = vmul.f32 %v525, 0.1
      %v624 = vmul.f32 %v528, 0.1
      %v625 = vmul.f32 %v533, 0.1
      %v626 = vmul.f32 %v536, 0.1
      %v627 = vmul.f32 %v541, 0.1
      %v628 = vmul.f32 %v544, 0.1
      %v629 = vmul.f32 %v549, 0.1
      %v630 = vmul.f32 %v552, 0.1
      %v631 = vmul.f32 %v557, 0.1
      %v632 = vmul.f32 %v560, 0.1
      %v633 = vmul.f32 %v565, 0.1
      %v634 = vmul.f32 %v568, 0.1
      %v635 = vsel %vm571, %v445, %v603
      %v636 = vsel %vm572, %v448, %v604
      %v637 = vsel %vm573, %v453, %v605
      %v638 = vsel %vm574, %v456, %v606
      %v639 = vsel %vm575, %v461, %v607
      %v640 = vsel %vm576, %v464, %v608
      %v641 = vsel %vm577, %v469, %v609
      %v642 = vsel %vm578, %v472, %v610
      %v643 = vsel %vm579, %v477, %v611
      %v644 = vsel %vm580, %v480, %v612
      %v645 = vsel %vm581, %v485, %v613
      %v646 = vsel %vm582, %v488, %v614
      %v647 = vsel %vm583, %v493, %v615
      %v648 = vsel %vm584, %v496, %v616
      %v649 = vsel %vm585, %v501, %v617
      %v650 = vsel %vm586, %v504, %v618
      %v651 = vsel %vm587, %v509, %v619
      %v652 = vsel %vm588, %v512, %v620
      %v653 = vsel %vm589, %v517, %v621
      %v654 = vsel %vm590, %v520, %v622
      %v655 = vsel %vm591, %v525, %v623
      %v656 = vsel %vm592, %v528, %v624
      %v657 = vsel %vm593, %v533, %v625
      %v658 = vsel %vm594, %v536, %v626
      %v659 = vsel %vm595, %v541, %v627
      %v660 = vsel %vm596, %v544, %v628
      %v661 = vsel %vm597, %v549, %v629
      %v662 = vsel %vm598, %v552, %v630
      %v663 = vsel %vm599, %v557, %v631
      %v664 = vsel %vm600, %v560, %v632
      %v665 = vsel %vm601, %v565, %v633
      %v666 = vsel %vm602, %v568, %v634
      %v667 = vpack.c.bf16 %v636, %v635
      %v668 = vpack.c.bf16 %v638, %v637
      %v669 = vpack.c.bf16 %v640, %v639
      %v670 = vpack.c.bf16 %v642, %v641
      %v671 = vpack.c.bf16 %v644, %v643
      %v672 = vpack.c.bf16 %v646, %v645
      %v673 = vpack.c.bf16 %v648, %v647
      %v674 = vpack.c.bf16 %v650, %v649
      %v675 = vpack.c.bf16 %v652, %v651
      %v676 = vpack.c.bf16 %v654, %v653
      %v677 = vpack.c.bf16 %v656, %v655
      %v678 = vpack.c.bf16 %v658, %v657
      %v679 = vpack.c.bf16 %v660, %v659
      %v680 = vpack.c.bf16 %v662, %v661
      %v681 = vpack.c.bf16 %v664, %v663
      %v682 = vpack.c.bf16 %v666, %v665
      %v699 = vunpack.c.l.b16 %v667
      %v700 = vunpack.c.h.b16 %v667
      %v701 = vunpack.c.l.b16 %v668
      %v702 = vunpack.c.h.b16 %v668
      %v703 = vunpack.c.l.b16 %v669
      %v704 = vunpack.c.h.b16 %v669
      %v705 = vunpack.c.l.b16 %v670
      %v706 = vunpack.c.h.b16 %v670
      %v707 = vunpack.c.l.b16 %v671
      %v708 = vunpack.c.h.b16 %v671
      %v709 = vunpack.c.l.b16 %v672
      %v710 = vunpack.c.h.b16 %v672
      %v711 = vunpack.c.l.b16 %v673
      %v712 = vunpack.c.h.b16 %v673
      %v713 = vunpack.c.l.b16 %v674
      %v714 = vunpack.c.h.b16 %v674
      %v715 = vunpack.c.l.b16 %v675
      %v716 = vunpack.c.h.b16 %v675
      %v717 = vunpack.c.l.b16 %v676
      %v718 = vunpack.c.h.b16 %v676
      %v719 = vunpack.c.l.b16 %v677
      %v720 = vunpack.c.h.b16 %v677
      %v721 = vunpack.c.l.b16 %v678
      %v722 = vunpack.c.h.b16 %v678
      %v723 = vunpack.c.l.b16 %v679
      %v724 = vunpack.c.h.b16 %v679
      %v725 = vunpack.c.l.b16 %v680
      %v726 = vunpack.c.h.b16 %v680
      %v727 = vunpack.c.l.b16 %v681
      %v728 = vunpack.c.h.b16 %v681
      %v729 = vunpack.c.l.b16 %v682
      %v730 = vunpack.c.h.b16 %v682
      %v731 = vpack.c.b16 %v699, %v699
      %v732 = vpack.c.b16 %v700, %v700
      %v733 = vpack.c.b16 %v701, %v701
      %v734 = vpack.c.b16 %v702, %v702
      %v735 = vpack.c.b16 %v703, %v703
      %v736 = vpack.c.b16 %v704, %v704
      %v737 = vpack.c.b16 %v705, %v705
      %v738 = vpack.c.b16 %v706, %v706
      %v739 = vpack.c.b16 %v707, %v707
      %v740 = vpack.c.b16 %v708, %v708
      %v741 = vpack.c.b16 %v709, %v709
      %v742 = vpack.c.b16 %v710, %v710
      %v743 = vpack.c.b16 %v711, %v711
      %v744 = vpack.c.b16 %v712, %v712
      %v745 = vpack.c.b16 %v713, %v713
      %v746 = vpack.c.b16 %v714, %v714
      %v747 = vpack.c.b16 %v715, %v715
      %v748 = vpack.c.b16 %v716, %v716
      %v749 = vpack.c.b16 %v717, %v717
      %v750 = vpack.c.b16 %v718, %v718
      %v751 = vpack.c.b16 %v719, %v719
      %v752 = vpack.c.b16 %v720, %v720
      %v753 = vpack.c.b16 %v721, %v721
      %v754 = vpack.c.b16 %v722, %v722
      %v755 = vpack.c.b16 %v723, %v723
      %v756 = vpack.c.b16 %v724, %v724
      %v757 = vpack.c.b16 %v725, %v725
      %v758 = vpack.c.b16 %v726, %v726
      %v759 = vpack.c.b16 %v727, %v727
      %v760 = vpack.c.b16 %v728, %v728
      %v761 = vpack.c.b16 %v729, %v729
      %v762 = vpack.c.b16 %v730, %v730
      %795 = vst [vmem:[%s223] sm:$0xf] %v731
      %796 = vst [vmem:[%s223 + $0x4] sm:$0xf] %v732
      %797 = vst [vmem:[%s223 + $0x8] sm:$0xf] %v733
      %798 = vst [vmem:[%s223 + $0xc] sm:$0xf] %v734
      %799 = vst [vmem:[%s223 + $0x10] sm:$0xf] %v735
      %800 = vst [vmem:[%s223 + $0x14] sm:$0xf] %v736
      %801 = vst [vmem:[%s223 + $0x18] sm:$0xf] %v737
      %802 = vst [vmem:[%s223 + $0x1c] sm:$0xf] %v738
      %803 = vst [vmem:[%s223 + $0x20] sm:$0xf] %v739
      %804 = vst [vmem:[%s223 + $0x24] sm:$0xf] %v740
      %805 = vst [vmem:[%s223 + $0x28] sm:$0xf] %v741
      %806 = vst [vmem:[%s223 + $0x2c] sm:$0xf] %v742
      %807 = vst [vmem:[%s223 + $0x30] sm:$0xf] %v743
      %808 = vst [vmem:[%s223 + $0x34] sm:$0xf] %v744
      %809 = vst [vmem:[%s223 + $0x38] sm:$0xf] %v745
      %810 = vst [vmem:[%s223 + $0x3c] sm:$0xf] %v746
      %811 = vst [vmem:[%s223 + $0x40] sm:$0xf] %v747
      %812 = vst [vmem:[%s223 + $0x44] sm:$0xf] %v748
      %813 = vst [vmem:[%s223 + $0x48] sm:$0xf] %v749
      %814 = vst [vmem:[%s223 + $0x4c] sm:$0xf] %v750
      %815 = vst [vmem:[%s223 + $0x50] sm:$0xf] %v751
      %816 = vst [vmem:[%s223 + $0x54] sm:$0xf] %v752
      %817 = vst [vmem:[%s223 + $0x58] sm:$0xf] %v753
      %818 = vst [vmem:[%s223 + $0x5c] sm:$0xf] %v754
      %819 = vst [vmem:[%s223 + $0x60] sm:$0xf] %v755
      %820 = vst [vmem:[%s223 + $0x64] sm:$0xf] %v756
      %821 = vst [vmem:[%s223 + $0x68] sm:$0xf] %v757
      %822 = vst [vmem:[%s223 + $0x6c] sm:$0xf] %v758
      %823 = vst [vmem:[%s223 + $0x70] sm:$0xf] %v759
      %824 = vst [vmem:[%s223 + $0x74] sm:$0xf] %v760
      %825 = vst [vmem:[%s223 + $0x78] sm:$0xf] %v761
      %826 = vst [vmem:[%s223 + $0x7c] sm:$0xf] %v762
      %s827 = smul.u32 32, %s18
      %p828 = scmp.lt.s32.totalorder %s827, 1023
      %s829 = scalar_select %p828, %s827, 1023
      %p830 = scmp.lt.s32.totalorder %s19, 0
      %s831 = scalar_select %p830, %s19, 0
      %s832 = sadd.s32 %s831, %s829
      %s833 = smul.addr %s832, 4
      %s834 = scalar_lea.vmem %s3, %s833
      // Predicated region
      $region33: #{yolov3_forward.78} parent=31 // pred_check
        %p835 = pneg %p124
      $region34: #{yolov3_forward.78} parent=31 // pred_check_branch
        %837 = sbr.rel (%p835) target = $region36
      $region35: #{yolov3_forward.78} parent=31 // pred_region
        %s838 = smul.u32 32, %s18
      $region36: #{yolov3_forward.78} parent=31 // pred_fallthru
        _
    $region32: #{yolov3_forward.78} parent=5 // pred_fallthru
      _
    %p839 = scmp.le.s32.totalorder 2, %s9
    // Predicated region
    $region37: #{yolov3_forward.78} parent=5 // pred_check
      %p840 = pneg %p839
    $region38: #{yolov3_forward.78} parent=5 // pred_check_branch
      %842 = sbr.rel (%p840) target = $region40
    $region39: #{yolov3_forward.78} parent=5 // pred_region
      %s843 = ssub.s32 %s9, 2
      // Predicated region
      $region41: #{yolov3_forward.78} parent=39 // pred_check
        %p844 = pneg %p130
      $region42: #{yolov3_forward.78} parent=39 // pred_check_branch
        %846 = sbr.rel (%p844) target = $region44
      $region43: #{yolov3_forward.78} parent=39 // pred_region
        %s847 = smul.u32 32, %s20
        %p848 = scmp.lt.s32.totalorder %s847, 1023
        %s849 = scalar_select %p848, %s847, 1023
        %p850 = scmp.lt.s32.totalorder %s21, 0
        %s851 = scalar_select %p850, %s21, 0
        %s852 = sadd.s32 %s851, %s849
        %s853 = smul.addr %s852, 4
        %s854 = scalar_lea.vmem %s3, %s853
      $region44: #{yolov3_forward.78} parent=39 // pred_fallthru
        _
    $region40: #{yolov3_forward.78} parent=5 // pred_fallthru
      _
  $region6: #{yolov3_forward.78} parent=0 // loop_footer
    %s13 = sadd.s32 1, %s9
  $region7: #{yolov3_forward.78} parent=0 // loop_footer_branch
    %8 = sbr.rel target = $region3
  $region8: #{yolov3_forward.78} parent=0 // loop_exit
    _

// kernel: yolov3_forward.79
$region0: #{yolov3_forward.79}
  #allocation0 [shape = 'u32[]', space=smem, size = 0x4, offset = 0x4, fixed_abs, tag = 'smem constant byte address 0x4 - core index']
  #allocation1 [shape = 'u32[144,128]{1,0:T(1,128)}', space=vmem, size = 0x12000, scoped, tag = 'internal scratch']
  %s0 = inlined_call_operand.vmem [shape: bf16[2048,48], index: 0, kind: input, shape index: {}]
  %s1 = inlined_call_operand.vmem [shape: bf16[48,128], index: 1, kind: input, shape index: {}]
  %s2 = inlined_call_operand.vmem [shape: f32[1,128], index: 2, kind: input, shape index: {}]
  %s3 = inlined_call_operand.vmem [shape: bf16[2048,128], index: 3, kind: output, shape index: {}]
  %s4 = sld [smem:[#allocation0]]
  $region45: #{yolov3_forward.79} parent=0
    _
  %s6 = ssub.s32 1, %s4
  %s7 = scalar_select 0, %s6, %s4
  loop: start=0, step=1, limit=10
  $region2: #{yolov3_forward.79} parent=0 // loop_pre_header
    _
  $region3: #{yolov3_forward.79} parent=0 // loop_header
    %s9 = sphi 0, %s13
    %p10 = scmp.ge.s32.totalorder %s9, 10
    %s16 = sphi 0, %s28
    %s17 = sphi 0, %s24
    %s18 = sphi 0, %s16
    %s19 = sphi 0, %s17
    %s20 = sphi 0, %s18
    %s21 = sphi 0, %s19
    %s31 = sphi 0, %s33
    %s34 = sphi 0, %s31
    %s35 = sphi 0, %s34
    %s51 = sphi 0, %s35
    %s57 = sphi 0, %s59
    %s60 = sphi 0, %s57
    %s61 = sphi 0, %s60
    %s77 = sphi 0, %s61
    %s83 = sphi 0, %s85
    %s86 = sphi 0, %s83
    %s87 = sphi 0, %s86
    %s103 = sphi 0, %s87
    %s111 = sphi 0, %s113
    %s114 = sphi 0, %s111
    %s115 = sphi 0, %s114
    %s131 = sphi 0, %s115
  $region4: #{yolov3_forward.79} parent=0 // loop_header_branch
    %12 = sbr.rel (%p10) target = $region8
  $region5: #{yolov3_forward.79} parent=0 // loop_body
    %s14 = ssub.s32 %s9, 1
    %s15 = ssub.s32 %s9, 2
    %s22 = sadd.s32 1, %s17
    %p23 = scmp.ge.s32.totalorder %s22, 1
    %s24 = scalar_select %p23, 0, %s22
    %s25 = sadd.s32 1, %s16
    %s26 = scalar_select %p23, %s25, %s16
    %p27 = scmp.ge.s32.totalorder %s26, 8
    %s28 = scalar_select %p27, 0, %s26
    %s29 = ssub.s32 %s16, %s28
    %p30 = scmp.eq.s32.totalorder %s29, 0
    %s32 = sadd.s32 %s31, 1
    %s33 = scalar_select %p30, %s31, %s32
    %p36 = pneg %p30
    %p37 = scmp.eq.s32.totalorder %s9, 7
    %p38 = por %p36, %p37
    %p39 = scmp.ne.s32.totalorder %s31, %s34
    %p40 = scmp.eq.s32.totalorder %s9, 0
    %p41 = por %p39, %p40
    %p42 = scmp.ne.s32.totalorder %s31, %s34
    %p43 = scmp.eq.s32.totalorder %s14, 7
    %p44 = por %p42, %p43
    %p45 = scmp.ne.s32.totalorder %s34, %s35
    %p46 = scmp.eq.s32.totalorder %s14, 0
    %p47 = por %p45, %p46
    %p48 = scmp.ne.s32.totalorder %s34, %s35
    %p49 = scmp.eq.s32.totalorder %s15, 7
    %p50 = por %p48, %p49
    %p52 = scmp.ne.s32.totalorder %s35, %s51
    %p53 = scmp.eq.s32.totalorder %s15, 0
    %p54 = por %p52, %p53
    %s55 = ssub.s32 %s17, %s24
    %p56 = scmp.eq.s32.totalorder %s55, 0
    %s58 = sadd.s32 %s57, 1
    %s59 = scalar_select %p56, %s57, %s58
    %p62 = pneg %p56
    %p63 = scmp.eq.s32.totalorder %s9, 7
    %p64 = por %p62, %p63
    %p65 = scmp.ne.s32.totalorder %s57, %s60
    %p66 = scmp.eq.s32.totalorder %s9, 0
    %p67 = por %p65, %p66
    %p68 = scmp.ne.s32.totalorder %s57, %s60
    %p69 = scmp.eq.s32.totalorder %s14, 7
    %p70 = por %p68, %p69
    %p71 = scmp.ne.s32.totalorder %s60, %s61
    %p72 = scmp.eq.s32.totalorder %s14, 0
    %p73 = por %p71, %p72
    %p74 = scmp.ne.s32.totalorder %s60, %s61
    %p75 = scmp.eq.s32.totalorder %s15, 7
    %p76 = por %p74, %p75
    %p78 = scmp.ne.s32.totalorder %s61, %s77
    %p79 = scmp.eq.s32.totalorder %s15, 0
    %p80 = por %p78, %p79
    %s81 = ssub.s32 %s17, %s24
    %p82 = scmp.eq.s32.totalorder %s81, 0
    %s84 = sadd.s32 %s83, 1
    %s85 = scalar_select %p82, %s83, %s84
    %p88 = pneg %p82
    %p89 = scmp.eq.s32.totalorder %s9, 7
    %p90 = por %p88, %p89
    %p91 = scmp.ne.s32.totalorder %s83, %s86
    %p92 = scmp.eq.s32.totalorder %s9, 0
    %p93 = por %p91, %p92
    %p94 = scmp.ne.s32.totalorder %s83, %s86
    %p95 = scmp.eq.s32.totalorder %s14, 7
    %p96 = por %p94, %p95
    %p97 = scmp.ne.s32.totalorder %s86, %s87
    %p98 = scmp.eq.s32.totalorder %s14, 0
    %p99 = por %p97, %p98
    %p100 = scmp.ne.s32.totalorder %s86, %s87
    %p101 = scmp.eq.s32.totalorder %s15, 7
    %p102 = por %p100, %p101
    %p104 = scmp.ne.s32.totalorder %s87, %s103
    %p105 = scmp.eq.s32.totalorder %s15, 0
    %p106 = por %p104, %p105
    %s107 = ssub.s32 %s16, %s28
    %s108 = ssub.s32 %s17, %s24
    %s109 = sor.u32 %s107, %s108
    %p110 = scmp.eq.s32.totalorder %s109, 0
    %s112 = sadd.s32 %s111, 1
    %s113 = scalar_select %p110, %s111, %s112
    %p116 = pneg %p110
    %p117 = scmp.eq.s32.totalorder %s9, 7
    %p118 = por %p116, %p117
    %p119 = scmp.ne.s32.totalorder %s111, %s114
    %p120 = scmp.eq.s32.totalorder %s9, 0
    %p121 = por %p119, %p120
    %p122 = scmp.ne.s32.totalorder %s111, %s114
    %p123 = scmp.eq.s32.totalorder %s14, 7
    %p124 = por %p122, %p123
    %p125 = scmp.ne.s32.totalorder %s114, %s115
    %p126 = scmp.eq.s32.totalorder %s14, 0
    %p127 = por %p125, %p126
    %p128 = scmp.ne.s32.totalorder %s114, %s115
    %p129 = scmp.eq.s32.totalorder %s15, 7
    %p130 = por %p128, %p129
    %p132 = scmp.ne.s32.totalorder %s115, %s131
    %p133 = scmp.eq.s32.totalorder %s15, 0
    %p134 = por %p132, %p133
    %p135 = scmp.le.s32.totalorder 1, %s9
    %p136 = scmp.lt.s32.totalorder %s9, 9
    %p137 = pnand %p135, %p136
    %p138 = pneg %p137
    // Predicated region
    $region9: #{yolov3_forward.79} parent=5 // pred_check
      _
    $region10: #{yolov3_forward.79} parent=5 // pred_check_branch
      %140 = sbr.rel (%p137) target = $region12
    $region11: #{yolov3_forward.79} parent=5 // pred_region
      %s141 = ssub.s32 %s9, 1
      // Predicated region
      $region13: #{yolov3_forward.79} parent=11 // pred_check
        %p142 = pneg %p73
      $region14: #{yolov3_forward.79} parent=11 // pred_check_branch
        %144 = sbr.rel (%p142) target = $region16
      $region15: #{yolov3_forward.79} parent=11 // pred_region
        %p145 = scmp.lt.s32.totalorder %s19, 0
        %s146 = scalar_select %p145, %s19, 0
        %s147 = smul.addr %s146, 4
        %s148 = scalar_lea.vmem %s1, %s147
      $region16: #{yolov3_forward.79} parent=11 // pred_fallthru
        _
      // Predicated region
      $region17: #{yolov3_forward.79} parent=11 // pred_check
        %p149 = pneg %p99
      $region18: #{yolov3_forward.79} parent=11 // pred_check_branch
        %151 = sbr.rel (%p149) target = $region20
      $region19: #{yolov3_forward.79} parent=11 // pred_region
        %p152 = scmp.lt.s32.totalorder %s19, 0
        %s153 = scalar_select %p152, %s19, 0
        %s154 = scalar_lea.vmem %s2, %s153
      $region20: #{yolov3_forward.79} parent=11 // pred_fallthru
        _
    $region12: #{yolov3_forward.79} parent=5 // pred_fallthru
      _
    %p155 = scmp.lt.s32.totalorder %s9, 8
    // Predicated region
    $region21: #{yolov3_forward.79} parent=5 // pred_check
      %p156 = pneg %p155
    $region22: #{yolov3_forward.79} parent=5 // pred_check_branch
      %158 = sbr.rel (%p156) target = $region24
    $region23: #{yolov3_forward.79} parent=5 // pred_region
      // Predicated region
      $region25: #{yolov3_forward.79} parent=23 // pred_check
        %p159 = pneg %p41
      $region26: #{yolov3_forward.79} parent=23 // pred_check_branch
        %161 = sbr.rel (%p159) target = $region28
      $region27: #{yolov3_forward.79} parent=23 // pred_region
        %s162 = smul.u32 32, %s16
        %p163 = scmp.lt.s32.totalorder %s162, 255
        %s164 = scalar_select %p163, %s162, 255
        %s165 = smul.addr %s164, 4
        %s166 = scalar_lea.vmem %s0, %s165
        %s167 = smul.u32 32, %s16
      $region28: #{yolov3_forward.79} parent=23 // pred_fallthru
        _
    $region24: #{yolov3_forward.79} parent=5 // pred_fallthru
      _
    %p168 = scmp.le.s32.totalorder 1, %s9
    %p169 = scmp.lt.s32.totalorder %s9, 9
    %p170 = pnand %p168, %p169
    %p171 = pneg %p170
    // Predicated region
    $region29: #{yolov3_forward.79} parent=5 // pred_check
      _
    $region30: #{yolov3_forward.79} parent=5 // pred_check_branch
      %173 = sbr.rel (%p170) target = $region32
    $region31: #{yolov3_forward.79} parent=5 // pred_region
      %s174 = ssub.s32 %s9, 1
      %s175 = smul.u32 32, %s18
      %p176 = scmp.lt.s32.totalorder %s175, 255
      %s177 = scalar_select %p176, %s175, 255
      %s178 = smul.addr %s177, 4
      %s179 = scalar_lea.vmem %s0, %s178
      %p180 = pneg %p47
      %p181 = pneg %p44
      %p182 = scmp.lt.s32.totalorder %s19, 0
      %s183 = scalar_select %p182, %s19, 0
      %s184 = smul.addr %s183, 4
      %s185 = scalar_lea.vmem %s1, %s184
      %p186 = pneg %p73
      %p187 = pneg %p70
      %p188 = scmp.lt.s32.totalorder %s19, 0
      %s189 = scalar_select %p188, %s19, 0
      %s190 = scalar_lea.vmem %s2, %s189
      %p191 = pneg %p99
      %p192 = pneg %p96
      %p193 = pneg %p127
      %p194 = pneg %p124
      %s195 = smul.u32 32, %s18
      %p196 = scmp.lt.s32.totalorder %s195, 255
      %s197 = scalar_select %p196, %s195, 255
      %p198 = scmp.lt.s32.totalorder %s19, 0
      %s199 = scalar_select %p198, %s19, 0
      %s200 = sadd.s32 %s199, %s197
      %s201 = smul.addr %s200, 4
      %s202 = scalar_lea.vmem %s3, %s201
      %s203 = smul.u32 32, %s18
      %p204 = scmp.lt.s32.totalorder %s203, 255
      %s205 = scalar_select %p204, %s203, 255
      %s206 = smul.addr %s205, 4
      %s207 = scalar_lea.vmem %s0, %s206
      %s208 = smul.u32 32, %s18
      %p209 = scmp.lt.s32.totalorder %s19, 0
      %s210 = scalar_select %p209, %s19, 0
      %s211 = smul.addr %s210, 4
      %s212 = scalar_lea.vmem %s1, %s211
      %p213 = scmp.lt.s32.totalorder %s19, 0
      %s214 = scalar_select %p213, %s19, 0
      %s215 = scalar_lea.vmem %s2, %s214
      %s216 = smul.u32 32, %s18
      %p217 = scmp.lt.s32.totalorder %s216, 255
      %s218 = scalar_select %p217, %s216, 255
      %p219 = scmp.lt.s32.totalorder %s19, 0
      %s220 = scalar_select %p219, %s19, 0
      %s221 = sadd.s32 %s220, %s218
      %s222 = smul.addr %s221, 4
      %s223 = scalar_lea.vmem %s3, %s222
      %s224 = smul.u32 32, %s18
      %v226 = vld [vmem:[%s207] sm:$0xf]
      %v227 = vld [vmem:[%s207 + $0x4] sm:$0xf]
      %v228 = vld [vmem:[%s207 + $0x8] sm:$0xf]
      %v229 = vld [vmem:[%s207 + $0xc] sm:$0xf]
      %v230 = vld [vmem:[%s207 + $0x10] sm:$0xf]
      %v231 = vld [vmem:[%s207 + $0x14] sm:$0xf]
      %v232 = vld [vmem:[%s207 + $0x18] sm:$0xf]
      %v233 = vld [vmem:[%s207 + $0x1c] sm:$0xf]
      %v234 = vld [vmem:[%s207 + $0x20] sm:$0xf]
      %v235 = vld [vmem:[%s207 + $0x24] sm:$0xf]
      %v236 = vld [vmem:[%s207 + $0x28] sm:$0xf]
      %v237 = vld [vmem:[%s207 + $0x2c] sm:$0xf]
      %v238 = vld [vmem:[%s207 + $0x30] sm:$0xf]
      %v239 = vld [vmem:[%s207 + $0x34] sm:$0xf]
      %v240 = vld [vmem:[%s207 + $0x38] sm:$0xf]
      %v241 = vld [vmem:[%s207 + $0x3c] sm:$0xf]
      %v242 = vld [vmem:[%s207 + $0x40] sm:$0xf]
      %v243 = vld [vmem:[%s207 + $0x44] sm:$0xf]
      %v244 = vld [vmem:[%s207 + $0x48] sm:$0xf]
      %v245 = vld [vmem:[%s207 + $0x4c] sm:$0xf]
      %v246 = vld [vmem:[%s207 + $0x50] sm:$0xf]
      %v247 = vld [vmem:[%s207 + $0x54] sm:$0xf]
      %v248 = vld [vmem:[%s207 + $0x58] sm:$0xf]
      %v249 = vld [vmem:[%s207 + $0x5c] sm:$0xf]
      %v250 = vld [vmem:[%s207 + $0x60] sm:$0xf]
      %v251 = vld [vmem:[%s207 + $0x64] sm:$0xf]
      %v252 = vld [vmem:[%s207 + $0x68] sm:$0xf]
      %v253 = vld [vmem:[%s207 + $0x6c] sm:$0xf]
      %v254 = vld [vmem:[%s207 + $0x70] sm:$0xf]
      %v255 = vld [vmem:[%s207 + $0x74] sm:$0xf]
      %v256 = vld [vmem:[%s207 + $0x78] sm:$0xf]
      %v257 = vld [vmem:[%s207 + $0x7c] sm:$0xf]
      %v258 = vld [vmem:[%s212] sm:$0xf]
      %v259 = vld [vmem:[%s212 + $0x4] sm:$0xf]
      %v260 = vld [vmem:[%s212 + $0x8] sm:$0xf]
      %v261 = vld [vmem:[%s212 + $0xc] sm:$0xf]
      %v262 = vld [vmem:[%s212 + $0x10] sm:$0xf]
      %v263 = vld [vmem:[%s212 + $0x14] sm:$0xf]
      %v264 = vld [vmem:[%s215] sm:$0x1]
      %v266 = vlaneseq
      %v267 = vshrl.u32 %v266, 7
      %v268 = vsub.s32 0, %v267
      %v269 = vrot.slane %v264, %v268
      %v303 = vunpack.c.l.b16 %v226
      %v304 = vunpack.c.l.b16 %v227
      %v305 = vunpack.c.l.b16 %v228
      %v306 = vunpack.c.l.b16 %v229
      %v307 = vunpack.c.l.b16 %v230
      %v308 = vunpack.c.l.b16 %v231
      %v309 = vunpack.c.l.b16 %v232
      %v310 = vunpack.c.l.b16 %v233
      %v311 = vunpack.c.l.b16 %v234
      %v312 = vunpack.c.l.b16 %v235
      %v313 = vunpack.c.l.b16 %v236
      %v314 = vunpack.c.l.b16 %v237
      %v315 = vunpack.c.l.b16 %v238
      %v316 = vunpack.c.l.b16 %v239
      %v317 = vunpack.c.l.b16 %v240
      %v318 = vunpack.c.l.b16 %v241
      %v319 = vunpack.c.l.b16 %v242
      %v320 = vunpack.c.l.b16 %v243
      %v321 = vunpack.c.l.b16 %v244
      %v322 = vunpack.c.l.b16 %v245
      %v323 = vunpack.c.l.b16 %v246
      %v324 = vunpack.c.l.b16 %v247
      %v325 = vunpack.c.l.b16 %v248
      %v326 = vunpack.c.l.b16 %v249
      %v327 = vunpack.c.l.b16 %v250
      %v328 = vunpack.c.l.b16 %v251
      %v329 = vunpack.c.l.b16 %v252
      %v330 = vunpack.c.l.b16 %v253
      %v331 = vunpack.c.l.b16 %v254
      %v332 = vunpack.c.l.b16 %v255
      %v333 = vunpack.c.l.b16 %v256
      %v334 = vunpack.c.l.b16 %v257
      %v335 = vpack.c.b16 %v304, %v303
      %v336 = vpack.c.b16 %v306, %v305
      %v337 = vpack.c.b16 %v308, %v307
      %v338 = vpack.c.b16 %v310, %v309
      %v339 = vpack.c.b16 %v312, %v311
      %v340 = vpack.c.b16 %v314, %v313
      %v341 = vpack.c.b16 %v316, %v315
      %v342 = vpack.c.b16 %v318, %v317
      %v343 = vpack.c.b16 %v320, %v319
      %v344 = vpack.c.b16 %v322, %v321
      %v345 = vpack.c.b16 %v324, %v323
      %v346 = vpack.c.b16 %v326, %v325
      %v347 = vpack.c.b16 %v328, %v327
      %v348 = vpack.c.b16 %v330, %v329
      %v349 = vpack.c.b16 %v332, %v331
      %v350 = vpack.c.b16 %v334, %v333
      %v357 = vunpack.c.l.b16 %v258
      %v358 = vunpack.c.l.b16 %v259
      %v359 = vunpack.c.l.b16 %v260
      %v360 = vunpack.c.l.b16 %v261
      %v361 = vunpack.c.l.b16 %v262
      %v362 = vunpack.c.l.b16 %v263
      %v363 = vpack.c.b16 %v358, %v357
      %v364 = vpack.c.b16 %v360, %v359
      %v365 = vpack.c.b16 %v362, %v361
      %vm369 = vcmask 392192
      %v371 = vsel %vm369, %v335, 0
      %v374 = vsel %vm369, %v336, 0
      %v377 = vsel %vm369, %v337, 0
      %v380 = vsel %vm369, %v338, 0
      %v383 = vsel %vm369, %v339, 0
      %v386 = vsel %vm369, %v340, 0
      %v389 = vsel %vm369, %v341, 0
      %v392 = vsel %vm369, %v342, 0
      %v395 = vsel %vm369, %v343, 0
      %v398 = vsel %vm369, %v344, 0
      %v401 = vsel %vm369, %v345, 0
      %v404 = vsel %vm369, %v346, 0
      %v407 = vsel %vm369, %v347, 0
      %v410 = vsel %vm369, %v348, 0
      %v413 = vsel %vm369, %v349, 0
      %v416 = vsel %vm369, %v350, 0
      %418 = vmatprep.subr.bf16.mxu0 0
      %419 = vmatpush1.bf16.msra.mxu0 0
      %420 = vmatprep.subr.bf16.mxu0 0
      %421 = vmatpush1.bf16.msra.mxu0 0
      %422 = vmatprep.subr.bf16.mxu0 0
      %423 = vmatpush1.bf16.msra.mxu0 0
      %424 = vmatprep.subr.bf16.mxu0 0
      %425 = vmatpush1.bf16.msra.mxu0 0
      %426 = vmatprep.subr.bf16.mxu0 0
      %427 = vmatpush1.bf16.msra.mxu0 0
      %428 = vmatprep.subr.bf16.mxu0 0
      %429 = vmatpush1.bf16.msra.mxu0 %v365
      %430 = vmatprep.subr.bf16.mxu0 0
      %431 = vmatpush1.bf16.msra.mxu0 %v364
      %432 = vmatprep.subr.bf16.mxu0 0
      %433 = vmatpush1.bf16.msra.mxu0 %v363
      %434 = vmatprep.subr.bf16.mxu0 0
      %435 = vmatpush2.bf16.msra.mxu0 0
      %436 = vmatprep.subr.bf16.mxu0 0
      %437 = vmatpush2.bf16.msra.mxu0 0
      %438 = vmatprep.subr.bf16.mxu0 0
      %439 = vmatpush2.bf16.msra.mxu0 0
      %440 = vmatprep.subr.bf16.mxu0 0
      %441 = vmatpush2.bf16.msra.mxu0 0
      %442 = vmatprep.subr.bf16.mxu0 0
      %443 = vmatpush2.bf16.msra.mxu0 0
      %444 = vmatprep.subr.bf16.mxu0 0
      %445 = vmatpush2.bf16.msra.mxu0 0
      %446 = vmatprep.subr.bf16.mxu0 0
      %447 = vmatpush2.bf16.msra.mxu0 0
      %448 = vmatprep.subr.bf16.mxu0 0
      %449 = vmatpush2.bf16.msra.mxu0 0
      %450 = vmatprep.mubr.bf16.mxu0 0
      %451 = vmatmul.mubr.bf16.gmra.mxu0 %v371
      %v452 = vpop.f32.mrf.mxu0
      %v453 = vadd.f32 %v269, %v452
      %v454 = vpop.f32.mrf.mxu0
      %v455 = vpop.f32.mrf.mxu0
      %v456 = vadd.f32 %v269, %v455
      %v457 = vpop.f32.mrf.mxu0
      %458 = vmatprep.mubr.bf16.mxu0 0
      %459 = vmatmul.mubr.bf16.gmra.mxu0 %v374
      %v460 = vpop.f32.mrf.mxu0
      %v461 = vadd.f32 %v269, %v460
      %v462 = vpop.f32.mrf.mxu0
      %v463 = vpop.f32.mrf.mxu0
      %v464 = vadd.f32 %v269, %v463
      %v465 = vpop.f32.mrf.mxu0
      %466 = vmatprep.mubr.bf16.mxu0 0
      %467 = vmatmul.mubr.bf16.gmra.mxu0 %v377
      %v468 = vpop.f32.mrf.mxu0
      %v469 = vadd.f32 %v269, %v468
      %v470 = vpop.f32.mrf.mxu0
      %v471 = vpop.f32.mrf.mxu0
      %v472 = vadd.f32 %v269, %v471
      %v473 = vpop.f32.mrf.mxu0
      %474 = vmatprep.mubr.bf16.mxu0 0
      %475 = vmatmul.mubr.bf16.gmra.mxu0 %v380
      %v476 = vpop.f32.mrf.mxu0
      %v477 = vadd.f32 %v269, %v476
      %v478 = vpop.f32.mrf.mxu0
      %v479 = vpop.f32.mrf.mxu0
      %v480 = vadd.f32 %v269, %v479
      %v481 = vpop.f32.mrf.mxu0
      %482 = vmatprep.mubr.bf16.mxu0 0
      %483 = vmatmul.mubr.bf16.gmra.mxu0 %v383
      %v484 = vpop.f32.mrf.mxu0
      %v485 = vadd.f32 %v269, %v484
      %v486 = vpop.f32.mrf.mxu0
      %v487 = vpop.f32.mrf.mxu0
      %v488 = vadd.f32 %v269, %v487
      %v489 = vpop.f32.mrf.mxu0
      %490 = vmatprep.mubr.bf16.mxu0 0
      %491 = vmatmul.mubr.bf16.gmra.mxu0 %v386
      %v492 = vpop.f32.mrf.mxu0
      %v493 = vadd.f32 %v269, %v492
      %v494 = vpop.f32.mrf.mxu0
      %v495 = vpop.f32.mrf.mxu0
      %v496 = vadd.f32 %v269, %v495
      %v497 = vpop.f32.mrf.mxu0
      %498 = vmatprep.mubr.bf16.mxu0 0
      %499 = vmatmul.mubr.bf16.gmra.mxu0 %v389
      %v500 = vpop.f32.mrf.mxu0
      %v501 = vadd.f32 %v269, %v500
      %v502 = vpop.f32.mrf.mxu0
      %v503 = vpop.f32.mrf.mxu0
      %v504 = vadd.f32 %v269, %v503
      %v505 = vpop.f32.mrf.mxu0
      %506 = vmatprep.mubr.bf16.mxu0 0
      %507 = vmatmul.mubr.bf16.gmra.mxu0 %v392
      %v508 = vpop.f32.mrf.mxu0
      %v509 = vadd.f32 %v269, %v508
      %v510 = vpop.f32.mrf.mxu0
      %v511 = vpop.f32.mrf.mxu0
      %v512 = vadd.f32 %v269, %v511
      %v513 = vpop.f32.mrf.mxu0
      %514 = vmatprep.mubr.bf16.mxu0 0
      %515 = vmatmul.mubr.bf16.gmra.mxu0 %v395
      %v516 = vpop.f32.mrf.mxu0
      %v517 = vadd.f32 %v269, %v516
      %v518 = vpop.f32.mrf.mxu0
      %v519 = vpop.f32.mrf.mxu0
      %v520 = vadd.f32 %v269, %v519
      %v521 = vpop.f32.mrf.mxu0
      %522 = vmatprep.mubr.bf16.mxu0 0
      %523 = vmatmul.mubr.bf16.gmra.mxu0 %v398
      %v524 = vpop.f32.mrf.mxu0
      %v525 = vadd.f32 %v269, %v524
      %v526 = vpop.f32.mrf.mxu0
      %v527 = vpop.f32.mrf.mxu0
      %v528 = vadd.f32 %v269, %v527
      %v529 = vpop.f32.mrf.mxu0
      %530 = vmatprep.mubr.bf16.mxu0 0
      %531 = vmatmul.mubr.bf16.gmra.mxu0 %v401
      %v532 = vpop.f32.mrf.mxu0
      %v533 = vadd.f32 %v269, %v532
      %v534 = vpop.f32.mrf.mxu0
      %v535 = vpop.f32.mrf.mxu0
      %v536 = vadd.f32 %v269, %v535
      %v537 = vpop.f32.mrf.mxu0
      %538 = vmatprep.mubr.bf16.mxu0 0
      %539 = vmatmul.mubr.bf16.gmra.mxu0 %v404
      %v540 = vpop.f32.mrf.mxu0
      %v541 = vadd.f32 %v269, %v540
      %v542 = vpop.f32.mrf.mxu0
      %v543 = vpop.f32.mrf.mxu0
      %v544 = vadd.f32 %v269, %v543
      %v545 = vpop.f32.mrf.mxu0
      %546 = vmatprep.mubr.bf16.mxu0 0
      %547 = vmatmul.mubr.bf16.gmra.mxu0 %v407
      %v548 = vpop.f32.mrf.mxu0
      %v549 = vadd.f32 %v269, %v548
      %v550 = vpop.f32.mrf.mxu0
      %v551 = vpop.f32.mrf.mxu0
      %v552 = vadd.f32 %v269, %v551
      %v553 = vpop.f32.mrf.mxu0
      %554 = vmatprep.mubr.bf16.mxu0 0
      %555 = vmatmul.mubr.bf16.gmra.mxu0 %v410
      %v556 = vpop.f32.mrf.mxu0
      %v557 = vadd.f32 %v269, %v556
      %v558 = vpop.f32.mrf.mxu0
      %v559 = vpop.f32.mrf.mxu0
      %v560 = vadd.f32 %v269, %v559
      %v561 = vpop.f32.mrf.mxu0
      %562 = vmatprep.mubr.bf16.mxu0 0
      %563 = vmatmul.mubr.bf16.gmra.mxu0 %v413
      %v564 = vpop.f32.mrf.mxu0
      %v565 = vadd.f32 %v269, %v564
      %v566 = vpop.f32.mrf.mxu0
      %v567 = vpop.f32.mrf.mxu0
      %v568 = vadd.f32 %v269, %v567
      %v569 = vpop.f32.mrf.mxu0
      %570 = vmatprep.mubr.bf16.mxu0 0
      %571 = vmatmul.mubr.bf16.gmra.mxu0 %v416
      %v572 = vpop.f32.mrf.mxu0
      %v573 = vadd.f32 %v269, %v572
      %v574 = vpop.f32.mrf.mxu0
      %v575 = vpop.f32.mrf.mxu0
      %v576 = vadd.f32 %v269, %v575
      %v577 = vpop.f32.mrf.mxu0
      %578 = vdwg.mxu0
      %vm579 = vcmp.gt.f32.partialorder %v453, 0.0
      %vm580 = vcmp.gt.f32.partialorder %v456, 0.0
      %vm581 = vcmp.gt.f32.partialorder %v461, 0.0
      %vm582 = vcmp.gt.f32.partialorder %v464, 0.0
      %vm583 = vcmp.gt.f32.partialorder %v469, 0.0
      %vm584 = vcmp.gt.f32.partialorder %v472, 0.0
      %vm585 = vcmp.gt.f32.partialorder %v477, 0.0
      %vm586 = vcmp.gt.f32.partialorder %v480, 0.0
      %vm587 = vcmp.gt.f32.partialorder %v485, 0.0
      %vm588 = vcmp.gt.f32.partialorder %v488, 0.0
      %vm589 = vcmp.gt.f32.partialorder %v493, 0.0
      %vm590 = vcmp.gt.f32.partialorder %v496, 0.0
      %vm591 = vcmp.gt.f32.partialorder %v501, 0.0
      %vm592 = vcmp.gt.f32.partialorder %v504, 0.0
      %vm593 = vcmp.gt.f32.partialorder %v509, 0.0
      %vm594 = vcmp.gt.f32.partialorder %v512, 0.0
      %vm595 = vcmp.gt.f32.partialorder %v517, 0.0
      %vm596 = vcmp.gt.f32.partialorder %v520, 0.0
      %vm597 = vcmp.gt.f32.partialorder %v525, 0.0
      %vm598 = vcmp.gt.f32.partialorder %v528, 0.0
      %vm599 = vcmp.gt.f32.partialorder %v533, 0.0
      %vm600 = vcmp.gt.f32.partialorder %v536, 0.0
      %vm601 = vcmp.gt.f32.partialorder %v541, 0.0
      %vm602 = vcmp.gt.f32.partialorder %v544, 0.0
      %vm603 = vcmp.gt.f32.partialorder %v549, 0.0
      %vm604 = vcmp.gt.f32.partialorder %v552, 0.0
      %vm605 = vcmp.gt.f32.partialorder %v557, 0.0
      %vm606 = vcmp.gt.f32.partialorder %v560, 0.0
      %vm607 = vcmp.gt.f32.partialorder %v565, 0.0
      %vm608 = vcmp.gt.f32.partialorder %v568, 0.0
      %vm609 = vcmp.gt.f32.partialorder %v573, 0.0
      %vm610 = vcmp.gt.f32.partialorder %v576, 0.0
      %v611 = vmul.f32 %v453, 0.1
      %v612 = vmul.f32 %v456, 0.1
      %v613 = vmul.f32 %v461, 0.1
      %v614 = vmul.f32 %v464, 0.1
      %v615 = vmul.f32 %v469, 0.1
      %v616 = vmul.f32 %v472, 0.1
      %v617 = vmul.f32 %v477, 0.1
      %v618 = vmul.f32 %v480, 0.1
      %v619 = vmul.f32 %v485, 0.1
      %v620 = vmul.f32 %v488, 0.1
      %v621 = vmul.f32 %v493, 0.1
      %v622 = vmul.f32 %v496, 0.1
      %v623 = vmul.f32 %v501, 0.1
      %v624 = vmul.f32 %v504, 0.1
      %v625 = vmul.f32 %v509, 0.1
      %v626 = vmul.f32 %v512, 0.1
      %v627 = vmul.f32 %v517, 0.1
      %v628 = vmul.f32 %v520, 0.1
      %v629 = vmul.f32 %v525, 0.1
      %v630 = vmul.f32 %v528, 0.1
      %v631 = vmul.f32 %v533, 0.1
      %v632 = vmul.f32 %v536, 0.1
      %v633 = vmul.f32 %v541, 0.1
      %v634 = vmul.f32 %v544, 0.1
      %v635 = vmul.f32 %v549, 0.1
      %v636 = vmul.f32 %v552, 0.1
      %v637 = vmul.f32 %v557, 0.1
      %v638 = vmul.f32 %v560, 0.1
      %v639 = vmul.f32 %v565, 0.1
      %v640 = vmul.f32 %v568, 0.1
      %v641 = vmul.f32 %v573, 0.1
      %v642 = vmul.f32 %v576, 0.1
      %v643 = vsel %vm579, %v453, %v611
      %v644 = vsel %vm580, %v456, %v612
      %v645 = vsel %vm581, %v461, %v613
      %v646 = vsel %vm582, %v464, %v614
      %v647 = vsel %vm583, %v469, %v615
      %v648 = vsel %vm584, %v472, %v616
      %v649 = vsel %vm585, %v477, %v617
      %v650 = vsel %vm586, %v480, %v618
      %v651 = vsel %vm587, %v485, %v619
      %v652 = vsel %vm588, %v488, %v620
      %v653 = vsel %vm589, %v493, %v621
      %v654 = vsel %vm590, %v496, %v622
      %v655 = vsel %vm591, %v501, %v623
      %v656 = vsel %vm592, %v504, %v624
      %v657 = vsel %vm593, %v509, %v625
      %v658 = vsel %vm594, %v512, %v626
      %v659 = vsel %vm595, %v517, %v627
      %v660 = vsel %vm596, %v520, %v628
      %v661 = vsel %vm597, %v525, %v629
      %v662 = vsel %vm598, %v528, %v630
      %v663 = vsel %vm599, %v533, %v631
      %v664 = vsel %vm600, %v536, %v632
      %v665 = vsel %vm601, %v541, %v633
      %v666 = vsel %vm602, %v544, %v634
      %v667 = vsel %vm603, %v549, %v635
      %v668 = vsel %vm604, %v552, %v636
      %v669 = vsel %vm605, %v557, %v637
      %v670 = vsel %vm606, %v560, %v638
      %v671 = vsel %vm607, %v565, %v639
      %v672 = vsel %vm608, %v568, %v640
      %v673 = vsel %vm609, %v573, %v641
      %v674 = vsel %vm610, %v576, %v642
      %v675 = vpack.c.bf16 %v644, %v643
      %v676 = vpack.c.bf16 %v646, %v645
      %v677 = vpack.c.bf16 %v648, %v647
      %v678 = vpack.c.bf16 %v650, %v649
      %v679 = vpack.c.bf16 %v652, %v651
      %v680 = vpack.c.bf16 %v654, %v653
      %v681 = vpack.c.bf16 %v656, %v655
      %v682 = vpack.c.bf16 %v658, %v657
      %v683 = vpack.c.bf16 %v660, %v659
      %v684 = vpack.c.bf16 %v662, %v661
      %v685 = vpack.c.bf16 %v664, %v663
      %v686 = vpack.c.bf16 %v666, %v665
      %v687 = vpack.c.bf16 %v668, %v667
      %v688 = vpack.c.bf16 %v670, %v669
      %v689 = vpack.c.bf16 %v672, %v671
      %v690 = vpack.c.bf16 %v674, %v673
      %v707 = vunpack.c.l.b16 %v675
      %v708 = vunpack.c.h.b16 %v675
      %v709 = vunpack.c.l.b16 %v676
      %v710 = vunpack.c.h.b16 %v676
      %v711 = vunpack.c.l.b16 %v677
      %v712 = vunpack.c.h.b16 %v677
      %v713 = vunpack.c.l.b16 %v678
      %v714 = vunpack.c.h.b16 %v678
      %v715 = vunpack.c.l.b16 %v679
      %v716 = vunpack.c.h.b16 %v679
      %v717 = vunpack.c.l.b16 %v680
      %v718 = vunpack.c.h.b16 %v680
      %v719 = vunpack.c.l.b16 %v681
      %v720 = vunpack.c.h.b16 %v681
      %v721 = vunpack.c.l.b16 %v682
      %v722 = vunpack.c.h.b16 %v682
      %v723 = vunpack.c.l.b16 %v683
      %v724 = vunpack.c.h.b16 %v683
      %v725 = vunpack.c.l.b16 %v684
      %v726 = vunpack.c.h.b16 %v684
      %v727 = vunpack.c.l.b16 %v685
      %v728 = vunpack.c.h.b16 %v685
      %v729 = vunpack.c.l.b16 %v686
      %v730 = vunpack.c.h.b16 %v686
      %v731 = vunpack.c.l.b16 %v687
      %v732 = vunpack.c.h.b16 %v687
      %v733 = vunpack.c.l.b16 %v688
      %v734 = vunpack.c.h.b16 %v688
      %v735 = vunpack.c.l.b16 %v689
      %v736 = vunpack.c.h.b16 %v689
      %v737 = vunpack.c.l.b16 %v690
      %v738 = vunpack.c.h.b16 %v690
      %v739 = vpack.c.b16 %v707, %v707
      %v740 = vpack.c.b16 %v708, %v708
      %v741 = vpack.c.b16 %v709, %v709
      %v742 = vpack.c.b16 %v710, %v710
      %v743 = vpack.c.b16 %v711, %v711
      %v744 = vpack.c.b16 %v712, %v712
      %v745 = vpack.c.b16 %v713, %v713
      %v746 = vpack.c.b16 %v714, %v714
      %v747 = vpack.c.b16 %v715, %v715
      %v748 = vpack.c.b16 %v716, %v716
      %v749 = vpack.c.b16 %v717, %v717
      %v750 = vpack.c.b16 %v718, %v718
      %v751 = vpack.c.b16 %v719, %v719
      %v752 = vpack.c.b16 %v720, %v720
      %v753 = vpack.c.b16 %v721, %v721
      %v754 = vpack.c.b16 %v722, %v722
      %v755 = vpack.c.b16 %v723, %v723
      %v756 = vpack.c.b16 %v724, %v724
      %v757 = vpack.c.b16 %v725, %v725
      %v758 = vpack.c.b16 %v726, %v726
      %v759 = vpack.c.b16 %v727, %v727
      %v760 = vpack.c.b16 %v728, %v728
      %v761 = vpack.c.b16 %v729, %v729
      %v762 = vpack.c.b16 %v730, %v730
      %v763 = vpack.c.b16 %v731, %v731
      %v764 = vpack.c.b16 %v732, %v732
      %v765 = vpack.c.b16 %v733, %v733
      %v766 = vpack.c.b16 %v734, %v734
      %v767 = vpack.c.b16 %v735, %v735
      %v768 = vpack.c.b16 %v736, %v736
      %v769 = vpack.c.b16 %v737, %v737
      %v770 = vpack.c.b16 %v738, %v738
      %803 = vst [vmem:[%s223] sm:$0xf] %v739
      %804 = vst [vmem:[%s223 + $0x4] sm:$0xf] %v740
      %805 = vst [vmem:[%s223 + $0x8] sm:$0xf] %v741
      %806 = vst [vmem:[%s223 + $0xc] sm:$0xf] %v742
      %807 = vst [vmem:[%s223 + $0x10] sm:$0xf] %v743
      %808 = vst [vmem:[%s223 + $0x14] sm:$0xf] %v744
      %809 = vst [vmem:[%s223 + $0x18] sm:$0xf] %v745
      %810 = vst [vmem:[%s223 + $0x1c] sm:$0xf] %v746
      %811 = vst [vmem:[%s223 + $0x20] sm:$0xf] %v747
      %812 = vst [vmem:[%s223 + $0x24] sm:$0xf] %v748
      %813 = vst [vmem:[%s223 + $0x28] sm:$0xf] %v749
      %814 = vst [vmem:[%s223 + $0x2c] sm:$0xf] %v750
      %815 = vst [vmem:[%s223 + $0x30] sm:$0xf] %v751
      %816 = vst [vmem:[%s223 + $0x34] sm:$0xf] %v752
      %817 = vst [vmem:[%s223 + $0x38] sm:$0xf] %v753
      %818 = vst [vmem:[%s223 + $0x3c] sm:$0xf] %v754
      %819 = vst [vmem:[%s223 + $0x40] sm:$0xf] %v755
      %820 = vst [vmem:[%s223 + $0x44] sm:$0xf] %v756
      %821 = vst [vmem:[%s223 + $0x48] sm:$0xf] %v757
      %822 = vst [vmem:[%s223 + $0x4c] sm:$0xf] %v758
      %823 = vst [vmem:[%s223 + $0x50] sm:$0xf] %v759
      %824 = vst [vmem:[%s223 + $0x54] sm:$0xf] %v760
      %825 = vst [vmem:[%s223 + $0x58] sm:$0xf] %v761
      %826 = vst [vmem:[%s223 + $0x5c] sm:$0xf] %v762
      %827 = vst [vmem:[%s223 + $0x60] sm:$0xf] %v763
      %828 = vst [vmem:[%s223 + $0x64] sm:$0xf] %v764
      %829 = vst [vmem:[%s223 + $0x68] sm:$0xf] %v765
      %830 = vst [vmem:[%s223 + $0x6c] sm:$0xf] %v766
      %831 = vst [vmem:[%s223 + $0x70] sm:$0xf] %v767
      %832 = vst [vmem:[%s223 + $0x74] sm:$0xf] %v768
      %833 = vst [vmem:[%s223 + $0x78] sm:$0xf] %v769
      %834 = vst [vmem:[%s223 + $0x7c] sm:$0xf] %v770
      %s835 = smul.u32 32, %s18
      %p836 = scmp.lt.s32.totalorder %s835, 255
      %s837 = scalar_select %p836, %s835, 255
      %p838 = scmp.lt.s32.totalorder %s19, 0
      %s839 = scalar_select %p838, %s19, 0
      %s840 = sadd.s32 %s839, %s837
      %s841 = smul.addr %s840, 4
      %s842 = scalar_lea.vmem %s3, %s841
      // Predicated region
      $region33: #{yolov3_forward.79} parent=31 // pred_check
        %p843 = pneg %p124
      $region34: #{yolov3_forward.79} parent=31 // pred_check_branch
        %845 = sbr.rel (%p843) target = $region36
      $region35: #{yolov3_forward.79} parent=31 // pred_region
        %s846 = smul.u32 32, %s18
      $region36: #{yolov3_forward.79} parent=31 // pred_fallthru
        _
    $region32: #{yolov3_forward.79} parent=5 // pred_fallthru
      _
    %p847 = scmp.le.s32.totalorder 2, %s9
    // Predicated region
    $region37: #{yolov3_forward.79} parent=5 // pred_check
      %p848 = pneg %p847
    $region38: #{yolov3_forward.79} parent=5 // pred_check_branch
      %850 = sbr.rel (%p848) target = $region40
    $region39: #{yolov3_forward.79} parent=5 // pred_region
      %s851 = ssub.s32 %s9, 2
      // Predicated region
      $region41: #{yolov3_forward.79} parent=39 // pred_check
        %p852 = pneg %p130
      $region42: #{yolov3_forward.79} parent=39 // pred_check_branch
        %854 = sbr.rel (%p852) target = $region44
      $region43: #{yolov3_forward.79} parent=39 // pred_region
        %s855 = smul.u32 32, %s20
        %p856 = scmp.lt.s32.totalorder %s855, 255
        %s857 = scalar_select %p856, %s855, 255
        %p858 = scmp.lt.s32.totalorder %s21, 0
        %s859 = scalar_select %p858, %s21, 0
        %s860 = sadd.s32 %s859, %s857
        %s861 = smul.addr %s860, 4
        %s862 = scalar_lea.vmem %s3, %s861
      $region44: #{yolov3_forward.79} parent=39 // pred_fallthru
        _
    $region40: #{yolov3_forward.79} parent=5 // pred_fallthru
      _
  $region6: #{yolov3_forward.79} parent=0 // loop_footer
    %s13 = sadd.s32 1, %s9
  $region7: #{yolov3_forward.79} parent=0 // loop_footer_branch
    %8 = sbr.rel target = $region3
  $region8: #{yolov3_forward.79} parent=0 // loop_exit
    _

// kernel: yolov3_forward.80
$region0: #{yolov3_forward.80}
  #allocation0 [shape = 'u32[]', space=smem, size = 0x4, offset = 0x4, fixed_abs, tag = 'smem constant byte address 0x4 - core index']
  #allocation1 [shape = 'u32[144,128]{1,0:T(1,128)}', space=vmem, size = 0x12000, scoped, tag = 'internal scratch']
  %s0 = inlined_call_operand.vmem [shape: bf16[2048,16], index: 0, kind: input, shape index: {}]
  %s1 = inlined_call_operand.vmem [shape: bf16[16,128], index: 1, kind: input, shape index: {}]
  %s2 = inlined_call_operand.vmem [shape: f32[1,128], index: 2, kind: input, shape index: {}]
  %s3 = inlined_call_operand.vmem [shape: bf16[2048,128], index: 3, kind: output, shape index: {}]
  %s4 = sld [smem:[#allocation0]]
  $region45: #{yolov3_forward.80} parent=0
    _
  %s6 = ssub.s32 1, %s4
  %s7 = scalar_select 0, %s6, %s4
  loop: start=0, step=1, limit=10
  $region2: #{yolov3_forward.80} parent=0 // loop_pre_header
    _
  $region3: #{yolov3_forward.80} parent=0 // loop_header
    %s9 = sphi 0, %s13
    %p10 = scmp.ge.s32.totalorder %s9, 10
    %s16 = sphi 0, %s28
    %s17 = sphi 0, %s24
    %s18 = sphi 0, %s16
    %s19 = sphi 0, %s17
    %s20 = sphi 0, %s18
    %s21 = sphi 0, %s19
    %s31 = sphi 0, %s33
    %s34 = sphi 0, %s31
    %s35 = sphi 0, %s34
    %s51 = sphi 0, %s35
    %s57 = sphi 0, %s59
    %s60 = sphi 0, %s57
    %s61 = sphi 0, %s60
    %s77 = sphi 0, %s61
    %s83 = sphi 0, %s85
    %s86 = sphi 0, %s83
    %s87 = sphi 0, %s86
    %s103 = sphi 0, %s87
    %s111 = sphi 0, %s113
    %s114 = sphi 0, %s111
    %s115 = sphi 0, %s114
    %s131 = sphi 0, %s115
  $region4: #{yolov3_forward.80} parent=0 // loop_header_branch
    %12 = sbr.rel (%p10) target = $region8
  $region5: #{yolov3_forward.80} parent=0 // loop_body
    %s14 = ssub.s32 %s9, 1
    %s15 = ssub.s32 %s9, 2
    %s22 = sadd.s32 1, %s17
    %p23 = scmp.ge.s32.totalorder %s22, 1
    %s24 = scalar_select %p23, 0, %s22
    %s25 = sadd.s32 1, %s16
    %s26 = scalar_select %p23, %s25, %s16
    %p27 = scmp.ge.s32.totalorder %s26, 8
    %s28 = scalar_select %p27, 0, %s26
    %s29 = ssub.s32 %s16, %s28
    %p30 = scmp.eq.s32.totalorder %s29, 0
    %s32 = sadd.s32 %s31, 1
    %s33 = scalar_select %p30, %s31, %s32
    %p36 = pneg %p30
    %p37 = scmp.eq.s32.totalorder %s9, 7
    %p38 = por %p36, %p37
    %p39 = scmp.ne.s32.totalorder %s31, %s34
    %p40 = scmp.eq.s32.totalorder %s9, 0
    %p41 = por %p39, %p40
    %p42 = scmp.ne.s32.totalorder %s31, %s34
    %p43 = scmp.eq.s32.totalorder %s14, 7
    %p44 = por %p42, %p43
    %p45 = scmp.ne.s32.totalorder %s34, %s35
    %p46 = scmp.eq.s32.totalorder %s14, 0
    %p47 = por %p45, %p46
    %p48 = scmp.ne.s32.totalorder %s34, %s35
    %p49 = scmp.eq.s32.totalorder %s15, 7
    %p50 = por %p48, %p49
    %p52 = scmp.ne.s32.totalorder %s35, %s51
    %p53 = scmp.eq.s32.totalorder %s15, 0
    %p54 = por %p52, %p53
    %s55 = ssub.s32 %s17, %s24
    %p56 = scmp.eq.s32.totalorder %s55, 0
    %s58 = sadd.s32 %s57, 1
    %s59 = scalar_select %p56, %s57, %s58
    %p62 = pneg %p56
    %p63 = scmp.eq.s32.totalorder %s9, 7
    %p64 = por %p62, %p63
    %p65 = scmp.ne.s32.totalorder %s57, %s60
    %p66 = scmp.eq.s32.totalorder %s9, 0
    %p67 = por %p65, %p66
    %p68 = scmp.ne.s32.totalorder %s57, %s60
    %p69 = scmp.eq.s32.totalorder %s14, 7
    %p70 = por %p68, %p69
    %p71 = scmp.ne.s32.totalorder %s60, %s61
    %p72 = scmp.eq.s32.totalorder %s14, 0
    %p73 = por %p71, %p72
    %p74 = scmp.ne.s32.totalorder %s60, %s61
    %p75 = scmp.eq.s32.totalorder %s15, 7
    %p76 = por %p74, %p75
    %p78 = scmp.ne.s32.totalorder %s61, %s77
    %p79 = scmp.eq.s32.totalorder %s15, 0
    %p80 = por %p78, %p79
    %s81 = ssub.s32 %s17, %s24
    %p82 = scmp.eq.s32.totalorder %s81, 0
    %s84 = sadd.s32 %s83, 1
    %s85 = scalar_select %p82, %s83, %s84
    %p88 = pneg %p82
    %p89 = scmp.eq.s32.totalorder %s9, 7
    %p90 = por %p88, %p89
    %p91 = scmp.ne.s32.totalorder %s83, %s86
    %p92 = scmp.eq.s32.totalorder %s9, 0
    %p93 = por %p91, %p92
    %p94 = scmp.ne.s32.totalorder %s83, %s86
    %p95 = scmp.eq.s32.totalorder %s14, 7
    %p96 = por %p94, %p95
    %p97 = scmp.ne.s32.totalorder %s86, %s87
    %p98 = scmp.eq.s32.totalorder %s14, 0
    %p99 = por %p97, %p98
    %p100 = scmp.ne.s32.totalorder %s86, %s87
    %p101 = scmp.eq.s32.totalorder %s15, 7
    %p102 = por %p100, %p101
    %p104 = scmp.ne.s32.totalorder %s87, %s103
    %p105 = scmp.eq.s32.totalorder %s15, 0
    %p106 = por %p104, %p105
    %s107 = ssub.s32 %s16, %s28
    %s108 = ssub.s32 %s17, %s24
    %s109 = sor.u32 %s107, %s108
    %p110 = scmp.eq.s32.totalorder %s109, 0
    %s112 = sadd.s32 %s111, 1
    %s113 = scalar_select %p110, %s111, %s112
    %p116 = pneg %p110
    %p117 = scmp.eq.s32.totalorder %s9, 7
    %p118 = por %p116, %p117
    %p119 = scmp.ne.s32.totalorder %s111, %s114
    %p120 = scmp.eq.s32.totalorder %s9, 0
    %p121 = por %p119, %p120
    %p122 = scmp.ne.s32.totalorder %s111, %s114
    %p123 = scmp.eq.s32.totalorder %s14, 7
    %p124 = por %p122, %p123
    %p125 = scmp.ne.s32.totalorder %s114, %s115
    %p126 = scmp.eq.s32.totalorder %s14, 0
    %p127 = por %p125, %p126
    %p128 = scmp.ne.s32.totalorder %s114, %s115
    %p129 = scmp.eq.s32.totalorder %s15, 7
    %p130 = por %p128, %p129
    %p132 = scmp.ne.s32.totalorder %s115, %s131
    %p133 = scmp.eq.s32.totalorder %s15, 0
    %p134 = por %p132, %p133
    %p135 = scmp.le.s32.totalorder 1, %s9
    %p136 = scmp.lt.s32.totalorder %s9, 9
    %p137 = pnand %p135, %p136
    %p138 = pneg %p137
    // Predicated region
    $region9: #{yolov3_forward.80} parent=5 // pred_check
      _
    $region10: #{yolov3_forward.80} parent=5 // pred_check_branch
      %140 = sbr.rel (%p137) target = $region12
    $region11: #{yolov3_forward.80} parent=5 // pred_region
      %s141 = ssub.s32 %s9, 1
      // Predicated region
      $region13: #{yolov3_forward.80} parent=11 // pred_check
        %p142 = pneg %p73
      $region14: #{yolov3_forward.80} parent=11 // pred_check_branch
        %144 = sbr.rel (%p142) target = $region16
      $region15: #{yolov3_forward.80} parent=11 // pred_region
        %p145 = scmp.lt.s32.totalorder %s19, 0
        %s146 = scalar_select %p145, %s19, 0
        %s147 = smul.addr %s146, 4
        %s148 = scalar_lea.vmem %s1, %s147
      $region16: #{yolov3_forward.80} parent=11 // pred_fallthru
        _
      // Predicated region
      $region17: #{yolov3_forward.80} parent=11 // pred_check
        %p149 = pneg %p99
      $region18: #{yolov3_forward.80} parent=11 // pred_check_branch
        %151 = sbr.rel (%p149) target = $region20
      $region19: #{yolov3_forward.80} parent=11 // pred_region
        %p152 = scmp.lt.s32.totalorder %s19, 0
        %s153 = scalar_select %p152, %s19, 0
        %s154 = scalar_lea.vmem %s2, %s153
      $region20: #{yolov3_forward.80} parent=11 // pred_fallthru
        _
    $region12: #{yolov3_forward.80} parent=5 // pred_fallthru
      _
    %p155 = scmp.lt.s32.totalorder %s9, 8
    // Predicated region
    $region21: #{yolov3_forward.80} parent=5 // pred_check
      %p156 = pneg %p155
    $region22: #{yolov3_forward.80} parent=5 // pred_check_branch
      %158 = sbr.rel (%p156) target = $region24
    $region23: #{yolov3_forward.80} parent=5 // pred_region
      // Predicated region
      $region25: #{yolov3_forward.80} parent=23 // pred_check
        %p159 = pneg %p41
      $region26: #{yolov3_forward.80} parent=23 // pred_check_branch
        %161 = sbr.rel (%p159) target = $region28
      $region27: #{yolov3_forward.80} parent=23 // pred_region
        %s162 = smul.u32 32, %s16
        %p163 = scmp.lt.s32.totalorder %s162, 255
        %s164 = scalar_select %p163, %s162, 255
        %s165 = smul.addr %s164, 4
        %s166 = scalar_lea.vmem %s0, %s165
        %s167 = smul.u32 32, %s16
      $region28: #{yolov3_forward.80} parent=23 // pred_fallthru
        _
    $region24: #{yolov3_forward.80} parent=5 // pred_fallthru
      _
    %p168 = scmp.le.s32.totalorder 1, %s9
    %p169 = scmp.lt.s32.totalorder %s9, 9
    %p170 = pnand %p168, %p169
    %p171 = pneg %p170
    // Predicated region
    $region29: #{yolov3_forward.80} parent=5 // pred_check
      _
    $region30: #{yolov3_forward.80} parent=5 // pred_check_branch
      %173 = sbr.rel (%p170) target = $region32
    $region31: #{yolov3_forward.80} parent=5 // pred_region
      %s174 = ssub.s32 %s9, 1
      %s175 = smul.u32 32, %s18
      %p176 = scmp.lt.s32.totalorder %s175, 255
      %s177 = scalar_select %p176, %s175, 255
      %s178 = smul.addr %s177, 4
      %s179 = scalar_lea.vmem %s0, %s178
      %p180 = pneg %p47
      %p181 = pneg %p44
      %p182 = scmp.lt.s32.totalorder %s19, 0
      %s183 = scalar_select %p182, %s19, 0
      %s184 = smul.addr %s183, 4
      %s185 = scalar_lea.vmem %s1, %s184
      %p186 = pneg %p73
      %p187 = pneg %p70
      %p188 = scmp.lt.s32.totalorder %s19, 0
      %s189 = scalar_select %p188, %s19, 0
      %s190 = scalar_lea.vmem %s2, %s189
      %p191 = pneg %p99
      %p192 = pneg %p96
      %p193 = pneg %p127
      %p194 = pneg %p124
      %s195 = smul.u32 32, %s18
      %p196 = scmp.lt.s32.totalorder %s195, 255
      %s197 = scalar_select %p196, %s195, 255
      %p198 = scmp.lt.s32.totalorder %s19, 0
      %s199 = scalar_select %p198, %s19, 0
      %s200 = sadd.s32 %s199, %s197
      %s201 = smul.addr %s200, 4
      %s202 = scalar_lea.vmem %s3, %s201
      %s203 = smul.u32 32, %s18
      %p204 = scmp.lt.s32.totalorder %s203, 255
      %s205 = scalar_select %p204, %s203, 255
      %s206 = smul.addr %s205, 4
      %s207 = scalar_lea.vmem %s0, %s206
      %s208 = smul.u32 32, %s18
      %p209 = scmp.lt.s32.totalorder %s19, 0
      %s210 = scalar_select %p209, %s19, 0
      %s211 = smul.addr %s210, 4
      %s212 = scalar_lea.vmem %s1, %s211
      %p213 = scmp.lt.s32.totalorder %s19, 0
      %s214 = scalar_select %p213, %s19, 0
      %s215 = scalar_lea.vmem %s2, %s214
      %s216 = smul.u32 32, %s18
      %p217 = scmp.lt.s32.totalorder %s216, 255
      %s218 = scalar_select %p217, %s216, 255
      %p219 = scmp.lt.s32.totalorder %s19, 0
      %s220 = scalar_select %p219, %s19, 0
      %s221 = sadd.s32 %s220, %s218
      %s222 = smul.addr %s221, 4
      %s223 = scalar_lea.vmem %s3, %s222
      %s224 = smul.u32 32, %s18
      %v226 = vld [vmem:[%s207] sm:$0xf]
      %v227 = vld [vmem:[%s207 + $0x4] sm:$0xf]
      %v228 = vld [vmem:[%s207 + $0x8] sm:$0xf]
      %v229 = vld [vmem:[%s207 + $0xc] sm:$0xf]
      %v230 = vld [vmem:[%s207 + $0x10] sm:$0xf]
      %v231 = vld [vmem:[%s207 + $0x14] sm:$0xf]
      %v232 = vld [vmem:[%s207 + $0x18] sm:$0xf]
      %v233 = vld [vmem:[%s207 + $0x1c] sm:$0xf]
      %v234 = vld [vmem:[%s207 + $0x20] sm:$0xf]
      %v235 = vld [vmem:[%s207 + $0x24] sm:$0xf]
      %v236 = vld [vmem:[%s207 + $0x28] sm:$0xf]
      %v237 = vld [vmem:[%s207 + $0x2c] sm:$0xf]
      %v238 = vld [vmem:[%s207 + $0x30] sm:$0xf]
      %v239 = vld [vmem:[%s207 + $0x34] sm:$0xf]
      %v240 = vld [vmem:[%s207 + $0x38] sm:$0xf]
      %v241 = vld [vmem:[%s207 + $0x3c] sm:$0xf]
      %v242 = vld [vmem:[%s207 + $0x40] sm:$0xf]
      %v243 = vld [vmem:[%s207 + $0x44] sm:$0xf]
      %v244 = vld [vmem:[%s207 + $0x48] sm:$0xf]
      %v245 = vld [vmem:[%s207 + $0x4c] sm:$0xf]
      %v246 = vld [vmem:[%s207 + $0x50] sm:$0xf]
      %v247 = vld [vmem:[%s207 + $0x54] sm:$0xf]
      %v248 = vld [vmem:[%s207 + $0x58] sm:$0xf]
      %v249 = vld [vmem:[%s207 + $0x5c] sm:$0xf]
      %v250 = vld [vmem:[%s207 + $0x60] sm:$0xf]
      %v251 = vld [vmem:[%s207 + $0x64] sm:$0xf]
      %v252 = vld [vmem:[%s207 + $0x68] sm:$0xf]
      %v253 = vld [vmem:[%s207 + $0x6c] sm:$0xf]
      %v254 = vld [vmem:[%s207 + $0x70] sm:$0xf]
      %v255 = vld [vmem:[%s207 + $0x74] sm:$0xf]
      %v256 = vld [vmem:[%s207 + $0x78] sm:$0xf]
      %v257 = vld [vmem:[%s207 + $0x7c] sm:$0xf]
      %v258 = vld [vmem:[%s212] sm:$0xf]
      %v259 = vld [vmem:[%s212 + $0x4] sm:$0xf]
      %v260 = vld [vmem:[%s215] sm:$0x1]
      %v262 = vlaneseq
      %v263 = vshrl.u32 %v262, 7
      %v264 = vsub.s32 0, %v263
      %v265 = vrot.slane %v260, %v264
      %v299 = vunpack.c.l.b16 %v226
      %v300 = vunpack.c.l.b16 %v227
      %v301 = vunpack.c.l.b16 %v228
      %v302 = vunpack.c.l.b16 %v229
      %v303 = vunpack.c.l.b16 %v230
      %v304 = vunpack.c.l.b16 %v231
      %v305 = vunpack.c.l.b16 %v232
      %v306 = vunpack.c.l.b16 %v233
      %v307 = vunpack.c.l.b16 %v234
      %v308 = vunpack.c.l.b16 %v235
      %v309 = vunpack.c.l.b16 %v236
      %v310 = vunpack.c.l.b16 %v237
      %v311 = vunpack.c.l.b16 %v238
      %v312 = vunpack.c.l.b16 %v239
      %v313 = vunpack.c.l.b16 %v240
      %v314 = vunpack.c.l.b16 %v241
      %v315 = vunpack.c.l.b16 %v242
      %v316 = vunpack.c.l.b16 %v243
      %v317 = vunpack.c.l.b16 %v244
      %v318 = vunpack.c.l.b16 %v245
      %v319 = vunpack.c.l.b16 %v246
      %v320 = vunpack.c.l.b16 %v247
      %v321 = vunpack.c.l.b16 %v248
      %v322 = vunpack.c.l.b16 %v249
      %v323 = vunpack.c.l.b16 %v250
      %v324 = vunpack.c.l.b16 %v251
      %v325 = vunpack.c.l.b16 %v252
      %v326 = vunpack.c.l.b16 %v253
      %v327 = vunpack.c.l.b16 %v254
      %v328 = vunpack.c.l.b16 %v255
      %v329 = vunpack.c.l.b16 %v256
      %v330 = vunpack.c.l.b16 %v257
      %v331 = vpack.c.b16 %v300, %v299
      %v332 = vpack.c.b16 %v302, %v301
      %v333 = vpack.c.b16 %v304, %v303
      %v334 = vpack.c.b16 %v306, %v305
      %v335 = vpack.c.b16 %v308, %v307
      %v336 = vpack.c.b16 %v310, %v309
      %v337 = vpack.c.b16 %v312, %v311
      %v338 = vpack.c.b16 %v314, %v313
      %v339 = vpack.c.b16 %v316, %v315
      %v340 = vpack.c.b16 %v318, %v317
      %v341 = vpack.c.b16 %v320, %v319
      %v342 = vpack.c.b16 %v322, %v321
      %v343 = vpack.c.b16 %v324, %v323
      %v344 = vpack.c.b16 %v326, %v325
      %v345 = vpack.c.b16 %v328, %v327
      %v346 = vpack.c.b16 %v330, %v329
      %v349 = vunpack.c.l.b16 %v258
      %v350 = vunpack.c.l.b16 %v259
      %v351 = vpack.c.b16 %v350, %v349
      %vm353 = vcmask 130048
      %v355 = vsel %vm353, %v331, 0
      %v358 = vsel %vm353, %v332, 0
      %v361 = vsel %vm353, %v333, 0
      %v364 = vsel %vm353, %v334, 0
      %v367 = vsel %vm353, %v335, 0
      %v370 = vsel %vm353, %v336, 0
      %v373 = vsel %vm353, %v337, 0
      %v376 = vsel %vm353, %v338, 0
      %v379 = vsel %vm353, %v339, 0
      %v382 = vsel %vm353, %v340, 0
      %v385 = vsel %vm353, %v341, 0
      %v388 = vsel %vm353, %v342, 0
      %v391 = vsel %vm353, %v343, 0
      %v394 = vsel %vm353, %v344, 0
      %v397 = vsel %vm353, %v345, 0
      %v400 = vsel %vm353, %v346, 0
      %402 = vmatprep.subr.bf16.mxu0 0
      %403 = vmatpush1.bf16.msra.mxu0 0
      %404 = vmatprep.subr.bf16.mxu0 0
      %405 = vmatpush1.bf16.msra.mxu0 0
      %406 = vmatprep.subr.bf16.mxu0 0
      %407 = vmatpush1.bf16.msra.mxu0 0
      %408 = vmatprep.subr.bf16.mxu0 0
      %409 = vmatpush1.bf16.msra.mxu0 0
      %410 = vmatprep.subr.bf16.mxu0 0
      %411 = vmatpush1.bf16.msra.mxu0 0
      %412 = vmatprep.subr.bf16.mxu0 0
      %413 = vmatpush1.bf16.msra.mxu0 0
      %414 = vmatprep.subr.bf16.mxu0 0
      %415 = vmatpush1.bf16.msra.mxu0 0
      %416 = vmatprep.subr.bf16.mxu0 0
      %417 = vmatpush1.bf16.msra.mxu0 %v351
      %418 = vmatprep.subr.bf16.mxu0 0
      %419 = vmatpush2.bf16.msra.mxu0 0
      %420 = vmatprep.subr.bf16.mxu0 0
      %421 = vmatpush2.bf16.msra.mxu0 0
      %422 = vmatprep.subr.bf16.mxu0 0
      %423 = vmatpush2.bf16.msra.mxu0 0
      %424 = vmatprep.subr.bf16.mxu0 0
      %425 = vmatpush2.bf16.msra.mxu0 0
      %426 = vmatprep.subr.bf16.mxu0 0
      %427 = vmatpush2.bf16.msra.mxu0 0
      %428 = vmatprep.subr.bf16.mxu0 0
      %429 = vmatpush2.bf16.msra.mxu0 0
      %430 = vmatprep.subr.bf16.mxu0 0
      %431 = vmatpush2.bf16.msra.mxu0 0
      %432 = vmatprep.subr.bf16.mxu0 0
      %433 = vmatpush2.bf16.msra.mxu0 0
      %434 = vmatprep.mubr.bf16.mxu0 0
      %435 = vmatmul.mubr.bf16.gmra.mxu0 %v355
      %v436 = vpop.f32.mrf.mxu0
      %v437 = vadd.f32 %v265, %v436
      %v438 = vpop.f32.mrf.mxu0
      %v439 = vpop.f32.mrf.mxu0
      %v440 = vadd.f32 %v265, %v439
      %v441 = vpop.f32.mrf.mxu0
      %442 = vmatprep.mubr.bf16.mxu0 0
      %443 = vmatmul.mubr.bf16.gmra.mxu0 %v358
      %v444 = vpop.f32.mrf.mxu0
      %v445 = vadd.f32 %v265, %v444
      %v446 = vpop.f32.mrf.mxu0
      %v447 = vpop.f32.mrf.mxu0
      %v448 = vadd.f32 %v265, %v447
      %v449 = vpop.f32.mrf.mxu0
      %450 = vmatprep.mubr.bf16.mxu0 0
      %451 = vmatmul.mubr.bf16.gmra.mxu0 %v361
      %v452 = vpop.f32.mrf.mxu0
      %v453 = vadd.f32 %v265, %v452
      %v454 = vpop.f32.mrf.mxu0
      %v455 = vpop.f32.mrf.mxu0
      %v456 = vadd.f32 %v265, %v455
      %v457 = vpop.f32.mrf.mxu0
      %458 = vmatprep.mubr.bf16.mxu0 0
      %459 = vmatmul.mubr.bf16.gmra.mxu0 %v364
      %v460 = vpop.f32.mrf.mxu0
      %v461 = vadd.f32 %v265, %v460
      %v462 = vpop.f32.mrf.mxu0
      %v463 = vpop.f32.mrf.mxu0
      %v464 = vadd.f32 %v265, %v463
      %v465 = vpop.f32.mrf.mxu0
      %466 = vmatprep.mubr.bf16.mxu0 0
      %467 = vmatmul.mubr.bf16.gmra.mxu0 %v367
      %v468 = vpop.f32.mrf.mxu0
      %v469 = vadd.f32 %v265, %v468
      %v470 = vpop.f32.mrf.mxu0
      %v471 = vpop.f32.mrf.mxu0
      %v472 = vadd.f32 %v265, %v471
      %v473 = vpop.f32.mrf.mxu0
      %474 = vmatprep.mubr.bf16.mxu0 0
      %475 = vmatmul.mubr.bf16.gmra.mxu0 %v370
      %v476 = vpop.f32.mrf.mxu0
      %v477 = vadd.f32 %v265, %v476
      %v478 = vpop.f32.mrf.mxu0
      %v479 = vpop.f32.mrf.mxu0
      %v480 = vadd.f32 %v265, %v479
      %v481 = vpop.f32.mrf.mxu0
      %482 = vmatprep.mubr.bf16.mxu0 0
      %483 = vmatmul.mubr.bf16.gmra.mxu0 %v373
      %v484 = vpop.f32.mrf.mxu0
      %v485 = vadd.f32 %v265, %v484
      %v486 = vpop.f32.mrf.mxu0
      %v487 = vpop.f32.mrf.mxu0
      %v488 = vadd.f32 %v265, %v487
      %v489 = vpop.f32.mrf.mxu0
      %490 = vmatprep.mubr.bf16.mxu0 0
      %491 = vmatmul.mubr.bf16.gmra.mxu0 %v376
      %v492 = vpop.f32.mrf.mxu0
      %v493 = vadd.f32 %v265, %v492
      %v494 = vpop.f32.mrf.mxu0
      %v495 = vpop.f32.mrf.mxu0
      %v496 = vadd.f32 %v265, %v495
      %v497 = vpop.f32.mrf.mxu0
      %498 = vmatprep.mubr.bf16.mxu0 0
      %499 = vmatmul.mubr.bf16.gmra.mxu0 %v379
      %v500 = vpop.f32.mrf.mxu0
      %v501 = vadd.f32 %v265, %v500
      %v502 = vpop.f32.mrf.mxu0
      %v503 = vpop.f32.mrf.mxu0
      %v504 = vadd.f32 %v265, %v503
      %v505 = vpop.f32.mrf.mxu0
      %506 = vmatprep.mubr.bf16.mxu0 0
      %507 = vmatmul.mubr.bf16.gmra.mxu0 %v382
      %v508 = vpop.f32.mrf.mxu0
      %v509 = vadd.f32 %v265, %v508
      %v510 = vpop.f32.mrf.mxu0
      %v511 = vpop.f32.mrf.mxu0
      %v512 = vadd.f32 %v265, %v511
      %v513 = vpop.f32.mrf.mxu0
      %514 = vmatprep.mubr.bf16.mxu0 0
      %515 = vmatmul.mubr.bf16.gmra.mxu0 %v385
      %v516 = vpop.f32.mrf.mxu0
      %v517 = vadd.f32 %v265, %v516
      %v518 = vpop.f32.mrf.mxu0
      %v519 = vpop.f32.mrf.mxu0
      %v520 = vadd.f32 %v265, %v519
      %v521 = vpop.f32.mrf.mxu0
      %522 = vmatprep.mubr.bf16.mxu0 0
      %523 = vmatmul.mubr.bf16.gmra.mxu0 %v388
      %v524 = vpop.f32.mrf.mxu0
      %v525 = vadd.f32 %v265, %v524
      %v526 = vpop.f32.mrf.mxu0
      %v527 = vpop.f32.mrf.mxu0
      %v528 = vadd.f32 %v265, %v527
      %v529 = vpop.f32.mrf.mxu0
      %530 = vmatprep.mubr.bf16.mxu0 0
      %531 = vmatmul.mubr.bf16.gmra.mxu0 %v391
      %v532 = vpop.f32.mrf.mxu0
      %v533 = vadd.f32 %v265, %v532
      %v534 = vpop.f32.mrf.mxu0
      %v535 = vpop.f32.mrf.mxu0
      %v536 = vadd.f32 %v265, %v535
      %v537 = vpop.f32.mrf.mxu0
      %538 = vmatprep.mubr.bf16.mxu0 0
      %539 = vmatmul.mubr.bf16.gmra.mxu0 %v394
      %v540 = vpop.f32.mrf.mxu0
      %v541 = vadd.f32 %v265, %v540
      %v542 = vpop.f32.mrf.mxu0
      %v543 = vpop.f32.mrf.mxu0
      %v544 = vadd.f32 %v265, %v543
      %v545 = vpop.f32.mrf.mxu0
      %546 = vmatprep.mubr.bf16.mxu0 0
      %547 = vmatmul.mubr.bf16.gmra.mxu0 %v397
      %v548 = vpop.f32.mrf.mxu0
      %v549 = vadd.f32 %v265, %v548
      %v550 = vpop.f32.mrf.mxu0
      %v551 = vpop.f32.mrf.mxu0
      %v552 = vadd.f32 %v265, %v551
      %v553 = vpop.f32.mrf.mxu0
      %554 = vmatprep.mubr.bf16.mxu0 0
      %555 = vmatmul.mubr.bf16.gmra.mxu0 %v400
      %v556 = vpop.f32.mrf.mxu0
      %v557 = vadd.f32 %v265, %v556
      %v558 = vpop.f32.mrf.mxu0
      %v559 = vpop.f32.mrf.mxu0
      %v560 = vadd.f32 %v265, %v559
      %v561 = vpop.f32.mrf.mxu0
      %562 = vdwg.mxu0
      %vm563 = vcmp.gt.f32.partialorder %v437, 0.0
      %vm564 = vcmp.gt.f32.partialorder %v440, 0.0
      %vm565 = vcmp.gt.f32.partialorder %v445, 0.0
      %vm566 = vcmp.gt.f32.partialorder %v448, 0.0
      %vm567 = vcmp.gt.f32.partialorder %v453, 0.0
      %vm568 = vcmp.gt.f32.partialorder %v456, 0.0
      %vm569 = vcmp.gt.f32.partialorder %v461, 0.0
      %vm570 = vcmp.gt.f32.partialorder %v464, 0.0
      %vm571 = vcmp.gt.f32.partialorder %v469, 0.0
      %vm572 = vcmp.gt.f32.partialorder %v472, 0.0
      %vm573 = vcmp.gt.f32.partialorder %v477, 0.0
      %vm574 = vcmp.gt.f32.partialorder %v480, 0.0
      %vm575 = vcmp.gt.f32.partialorder %v485, 0.0
      %vm576 = vcmp.gt.f32.partialorder %v488, 0.0
      %vm577 = vcmp.gt.f32.partialorder %v493, 0.0
      %vm578 = vcmp.gt.f32.partialorder %v496, 0.0
      %vm579 = vcmp.gt.f32.partialorder %v501, 0.0
      %vm580 = vcmp.gt.f32.partialorder %v504, 0.0
      %vm581 = vcmp.gt.f32.partialorder %v509, 0.0
      %vm582 = vcmp.gt.f32.partialorder %v512, 0.0
      %vm583 = vcmp.gt.f32.partialorder %v517, 0.0
      %vm584 = vcmp.gt.f32.partialorder %v520, 0.0
      %vm585 = vcmp.gt.f32.partialorder %v525, 0.0
      %vm586 = vcmp.gt.f32.partialorder %v528, 0.0
      %vm587 = vcmp.gt.f32.partialorder %v533, 0.0
      %vm588 = vcmp.gt.f32.partialorder %v536, 0.0
      %vm589 = vcmp.gt.f32.partialorder %v541, 0.0
      %vm590 = vcmp.gt.f32.partialorder %v544, 0.0
      %vm591 = vcmp.gt.f32.partialorder %v549, 0.0
      %vm592 = vcmp.gt.f32.partialorder %v552, 0.0
      %vm593 = vcmp.gt.f32.partialorder %v557, 0.0
      %vm594 = vcmp.gt.f32.partialorder %v560, 0.0
      %v595 = vmul.f32 %v437, 0.1
      %v596 = vmul.f32 %v440, 0.1
      %v597 = vmul.f32 %v445, 0.1
      %v598 = vmul.f32 %v448, 0.1
      %v599 = vmul.f32 %v453, 0.1
      %v600 = vmul.f32 %v456, 0.1
      %v601 = vmul.f32 %v461, 0.1
      %v602 = vmul.f32 %v464, 0.1
      %v603 = vmul.f32 %v469, 0.1
      %v604 = vmul.f32 %v472, 0.1
      %v605 = vmul.f32 %v477, 0.1
      %v606 = vmul.f32 %v480, 0.1
      %v607 = vmul.f32 %v485, 0.1
      %v608 = vmul.f32 %v488, 0.1
      %v609 = vmul.f32 %v493, 0.1
      %v610 = vmul.f32 %v496, 0.1
      %v611 = vmul.f32 %v501, 0.1
      %v612 = vmul.f32 %v504, 0.1
      %v613 = vmul.f32 %v509, 0.1
      %v614 = vmul.f32 %v512, 0.1
      %v615 = vmul.f32 %v517, 0.1
      %v616 = vmul.f32 %v520, 0.1
      %v617 = vmul.f32 %v525, 0.1
      %v618 = vmul.f32 %v528, 0.1
      %v619 = vmul.f32 %v533, 0.1
      %v620 = vmul.f32 %v536, 0.1
      %v621 = vmul.f32 %v541, 0.1
      %v622 = vmul.f32 %v544, 0.1
      %v623 = vmul.f32 %v549, 0.1
      %v624 = vmul.f32 %v552, 0.1
      %v625 = vmul.f32 %v557, 0.1
      %v626 = vmul.f32 %v560, 0.1
      %v627 = vsel %vm563, %v437, %v595
      %v628 = vsel %vm564, %v440, %v596
      %v629 = vsel %vm565, %v445, %v597
      %v630 = vsel %vm566, %v448, %v598
      %v631 = vsel %vm567, %v453, %v599
      %v632 = vsel %vm568, %v456, %v600
      %v633 = vsel %vm569, %v461, %v601
      %v634 = vsel %vm570, %v464, %v602
      %v635 = vsel %vm571, %v469, %v603
      %v636 = vsel %vm572, %v472, %v604
      %v637 = vsel %vm573, %v477, %v605
      %v638 = vsel %vm574, %v480, %v606
      %v639 = vsel %vm575, %v485, %v607
      %v640 = vsel %vm576, %v488, %v608
      %v641 = vsel %vm577, %v493, %v609
      %v642 = vsel %vm578, %v496, %v610
      %v643 = vsel %vm579, %v501, %v611
      %v644 = vsel %vm580, %v504, %v612
      %v645 = vsel %vm581, %v509, %v613
      %v646 = vsel %vm582, %v512, %v614
      %v647 = vsel %vm583, %v517, %v615
      %v648 = vsel %vm584, %v520, %v616
      %v649 = vsel %vm585, %v525, %v617
      %v650 = vsel %vm586, %v528, %v618
      %v651 = vsel %vm587, %v533, %v619
      %v652 = vsel %vm588, %v536, %v620
      %v653 = vsel %vm589, %v541, %v621
      %v654 = vsel %vm590, %v544, %v622
      %v655 = vsel %vm591, %v549, %v623
      %v656 = vsel %vm592, %v552, %v624
      %v657 = vsel %vm593, %v557, %v625
      %v658 = vsel %vm594, %v560, %v626
      %v659 = vpack.c.bf16 %v628, %v627
      %v660 = vpack.c.bf16 %v630, %v629
      %v661 = vpack.c.bf16 %v632, %v631
      %v662 = vpack.c.bf16 %v634, %v633
      %v663 = vpack.c.bf16 %v636, %v635
      %v664 = vpack.c.bf16 %v638, %v637
      %v665 = vpack.c.bf16 %v640, %v639
      %v666 = vpack.c.bf16 %v642, %v641
      %v667 = vpack.c.bf16 %v644, %v643
      %v668 = vpack.c.bf16 %v646, %v645
      %v669 = vpack.c.bf16 %v648, %v647
      %v670 = vpack.c.bf16 %v650, %v649
      %v671 = vpack.c.bf16 %v652, %v651
      %v672 = vpack.c.bf16 %v654, %v653
      %v673 = vpack.c.bf16 %v656, %v655
      %v674 = vpack.c.bf16 %v658, %v657
      %v691 = vunpack.c.l.b16 %v659
      %v692 = vunpack.c.h.b16 %v659
      %v693 = vunpack.c.l.b16 %v660
      %v694 = vunpack.c.h.b16 %v660
      %v695 = vunpack.c.l.b16 %v661
      %v696 = vunpack.c.h.b16 %v661
      %v697 = vunpack.c.l.b16 %v662
      %v698 = vunpack.c.h.b16 %v662
      %v699 = vunpack.c.l.b16 %v663
      %v700 = vunpack.c.h.b16 %v663
      %v701 = vunpack.c.l.b16 %v664
      %v702 = vunpack.c.h.b16 %v664
      %v703 = vunpack.c.l.b16 %v665
      %v704 = vunpack.c.h.b16 %v665
      %v705 = vunpack.c.l.b16 %v666
      %v706 = vunpack.c.h.b16 %v666
      %v707 = vunpack.c.l.b16 %v667
      %v708 = vunpack.c.h.b16 %v667
      %v709 = vunpack.c.l.b16 %v668
      %v710 = vunpack.c.h.b16 %v668
      %v711 = vunpack.c.l.b16 %v669
      %v712 = vunpack.c.h.b16 %v669
      %v713 = vunpack.c.l.b16 %v670
      %v714 = vunpack.c.h.b16 %v670
      %v715 = vunpack.c.l.b16 %v671
      %v716 = vunpack.c.h.b16 %v671
      %v717 = vunpack.c.l.b16 %v672
      %v718 = vunpack.c.h.b16 %v672
      %v719 = vunpack.c.l.b16 %v673
      %v720 = vunpack.c.h.b16 %v673
      %v721 = vunpack.c.l.b16 %v674
      %v722 = vunpack.c.h.b16 %v674
      %v723 = vpack.c.b16 %v691, %v691
      %v724 = vpack.c.b16 %v692, %v692
      %v725 = vpack.c.b16 %v693, %v693
      %v726 = vpack.c.b16 %v694, %v694
      %v727 = vpack.c.b16 %v695, %v695
      %v728 = vpack.c.b16 %v696, %v696
      %v729 = vpack.c.b16 %v697, %v697
      %v730 = vpack.c.b16 %v698, %v698
      %v731 = vpack.c.b16 %v699, %v699
      %v732 = vpack.c.b16 %v700, %v700
      %v733 = vpack.c.b16 %v701, %v701
      %v734 = vpack.c.b16 %v702, %v702
      %v735 = vpack.c.b16 %v703, %v703
      %v736 = vpack.c.b16 %v704, %v704
      %v737 = vpack.c.b16 %v705, %v705
      %v738 = vpack.c.b16 %v706, %v706
      %v739 = vpack.c.b16 %v707, %v707
      %v740 = vpack.c.b16 %v708, %v708
      %v741 = vpack.c.b16 %v709, %v709
      %v742 = vpack.c.b16 %v710, %v710
      %v743 = vpack.c.b16 %v711, %v711
      %v744 = vpack.c.b16 %v712, %v712
      %v745 = vpack.c.b16 %v713, %v713
      %v746 = vpack.c.b16 %v714, %v714
      %v747 = vpack.c.b16 %v715, %v715
      %v748 = vpack.c.b16 %v716, %v716
      %v749 = vpack.c.b16 %v717, %v717
      %v750 = vpack.c.b16 %v718, %v718
      %v751 = vpack.c.b16 %v719, %v719
      %v752 = vpack.c.b16 %v720, %v720
      %v753 = vpack.c.b16 %v721, %v721
      %v754 = vpack.c.b16 %v722, %v722
      %787 = vst [vmem:[%s223] sm:$0xf] %v723
      %788 = vst [vmem:[%s223 + $0x4] sm:$0xf] %v724
      %789 = vst [vmem:[%s223 + $0x8] sm:$0xf] %v725
      %790 = vst [vmem:[%s223 + $0xc] sm:$0xf] %v726
      %791 = vst [vmem:[%s223 + $0x10] sm:$0xf] %v727
      %792 = vst [vmem:[%s223 + $0x14] sm:$0xf] %v728
      %793 = vst [vmem:[%s223 + $0x18] sm:$0xf] %v729
      %794 = vst [vmem:[%s223 + $0x1c] sm:$0xf] %v730
      %795 = vst [vmem:[%s223 + $0x20] sm:$0xf] %v731
      %796 = vst [vmem:[%s223 + $0x24] sm:$0xf] %v732
      %797 = vst [vmem:[%s223 + $0x28] sm:$0xf] %v733
      %798 = vst [vmem:[%s223 + $0x2c] sm:$0xf] %v734
      %799 = vst [vmem:[%s223 + $0x30] sm:$0xf] %v735
      %800 = vst [vmem:[%s223 + $0x34] sm:$0xf] %v736
      %801 = vst [vmem:[%s223 + $0x38] sm:$0xf] %v737
      %802 = vst [vmem:[%s223 + $0x3c] sm:$0xf] %v738
      %803 = vst [vmem:[%s223 + $0x40] sm:$0xf] %v739
      %804 = vst [vmem:[%s223 + $0x44] sm:$0xf] %v740
      %805 = vst [vmem:[%s223 + $0x48] sm:$0xf] %v741
      %806 = vst [vmem:[%s223 + $0x4c] sm:$0xf] %v742
      %807 = vst [vmem:[%s223 + $0x50] sm:$0xf] %v743
      %808 = vst [vmem:[%s223 + $0x54] sm:$0xf] %v744
      %809 = vst [vmem:[%s223 + $0x58] sm:$0xf] %v745
      %810 = vst [vmem:[%s223 + $0x5c] sm:$0xf] %v746
      %811 = vst [vmem:[%s223 + $0x60] sm:$0xf] %v747
      %812 = vst [vmem:[%s223 + $0x64] sm:$0xf] %v748
      %813 = vst [vmem:[%s223 + $0x68] sm:$0xf] %v749
      %814 = vst [vmem:[%s223 + $0x6c] sm:$0xf] %v750
      %815 = vst [vmem:[%s223 + $0x70] sm:$0xf] %v751
      %816 = vst [vmem:[%s223 + $0x74] sm:$0xf] %v752
      %817 = vst [vmem:[%s223 + $0x78] sm:$0xf] %v753
      %818 = vst [vmem:[%s223 + $0x7c] sm:$0xf] %v754
      %s819 = smul.u32 32, %s18
      %p820 = scmp.lt.s32.totalorder %s819, 255
      %s821 = scalar_select %p820, %s819, 255
      %p822 = scmp.lt.s32.totalorder %s19, 0
      %s823 = scalar_select %p822, %s19, 0
      %s824 = sadd.s32 %s823, %s821
      %s825 = smul.addr %s824, 4
      %s826 = scalar_lea.vmem %s3, %s825
      // Predicated region
      $region33: #{yolov3_forward.80} parent=31 // pred_check
        %p827 = pneg %p124
      $region34: #{yolov3_forward.80} parent=31 // pred_check_branch
        %829 = sbr.rel (%p827) target = $region36
      $region35: #{yolov3_forward.80} parent=31 // pred_region
        %s830 = smul.u32 32, %s18
      $region36: #{yolov3_forward.80} parent=31 // pred_fallthru
        _
    $region32: #{yolov3_forward.80} parent=5 // pred_fallthru
      _
    %p831 = scmp.le.s32.totalorder 2, %s9
    // Predicated region
    $region37: #{yolov3_forward.80} parent=5 // pred_check
      %p832 = pneg %p831
    $region38: #{yolov3_forward.80} parent=5 // pred_check_branch
      %834 = sbr.rel (%p832) target = $region40
    $region39: #{yolov3_forward.80} parent=5 // pred_region
      %s835 = ssub.s32 %s9, 2
      // Predicated region
      $region41: #{yolov3_forward.80} parent=39 // pred_check
        %p836 = pneg %p130
      $region42: #{yolov3_forward.80} parent=39 // pred_check_branch
        %838 = sbr.rel (%p836) target = $region44
      $region43: #{yolov3_forward.80} parent=39 // pred_region
        %s839 = smul.u32 32, %s20
        %p840 = scmp.lt.s32.totalorder %s839, 255
        %s841 = scalar_select %p840, %s839, 255
        %p842 = scmp.lt.s32.totalorder %s21, 0
        %s843 = scalar_select %p842, %s21, 0
        %s844 = sadd.s32 %s843, %s841
        %s845 = smul.addr %s844, 4
        %s846 = scalar_lea.vmem %s3, %s845
      $region44: #{yolov3_forward.80} parent=39 // pred_fallthru
        _
    $region40: #{yolov3_forward.80} parent=5 // pred_fallthru
      _
  $region6: #{yolov3_forward.80} parent=0 // loop_footer
    %s13 = sadd.s32 1, %s9
  $region7: #{yolov3_forward.80} parent=0 // loop_footer_branch
    %8 = sbr.rel target = $region3
  $region8: #{yolov3_forward.80} parent=0 // loop_exit
    _

// kernel: yolov3_forward.82
$region0: #{yolov3_forward.82}
  #allocation0 [shape = 'u32[]', space=smem, size = 0x4, offset = 0x4, fixed_abs, tag = 'smem constant byte address 0x4 - core index']
  #allocation1 [shape = 'u32[144,128]{1,0:T(1,128)}', space=vmem, size = 0x12000, scoped, tag = 'internal scratch']
  %s0 = inlined_call_operand.vmem [shape: bf16[512,80], index: 0, kind: input, shape index: {}]
  %s1 = inlined_call_operand.vmem [shape: bf16[80,128], index: 1, kind: input, shape index: {}]
  %s2 = inlined_call_operand.vmem [shape: f32[1,128], index: 2, kind: input, shape index: {}]
  %s3 = inlined_call_operand.vmem [shape: bf16[512,128], index: 3, kind: output, shape index: {}]
  %s4 = sld [smem:[#allocation0]]
  $region45: #{yolov3_forward.82} parent=0
    _
  %s6 = ssub.s32 1, %s4
  %s7 = scalar_select 0, %s6, %s4
  loop: start=0, step=1, limit=4
  $region2: #{yolov3_forward.82} parent=0 // loop_pre_header
    _
  $region3: #{yolov3_forward.82} parent=0 // loop_header
    %s9 = sphi 0, %s13
    %p10 = scmp.ge.s32.totalorder %s9, 4
    %s16 = sphi 0, %s28
    %s17 = sphi 0, %s24
    %s18 = sphi 0, %s16
    %s19 = sphi 0, %s17
    %s20 = sphi 0, %s18
    %s21 = sphi 0, %s19
    %s31 = sphi 0, %s33
    %s34 = sphi 0, %s31
    %s35 = sphi 0, %s34
    %s51 = sphi 0, %s35
    %s57 = sphi 0, %s59
    %s60 = sphi 0, %s57
    %s61 = sphi 0, %s60
    %s77 = sphi 0, %s61
    %s83 = sphi 0, %s85
    %s86 = sphi 0, %s83
    %s87 = sphi 0, %s86
    %s103 = sphi 0, %s87
    %s111 = sphi 0, %s113
    %s114 = sphi 0, %s111
    %s115 = sphi 0, %s114
    %s131 = sphi 0, %s115
  $region4: #{yolov3_forward.82} parent=0 // loop_header_branch
    %12 = sbr.rel (%p10) target = $region8
  $region5: #{yolov3_forward.82} parent=0 // loop_body
    %s14 = ssub.s32 %s9, 1
    %s15 = ssub.s32 %s9, 2
    %s22 = sadd.s32 1, %s17
    %p23 = scmp.ge.s32.totalorder %s22, 1
    %s24 = scalar_select %p23, 0, %s22
    %s25 = sadd.s32 1, %s16
    %s26 = scalar_select %p23, %s25, %s16
    %p27 = scmp.ge.s32.totalorder %s26, 2
    %s28 = scalar_select %p27, 0, %s26
    %s29 = ssub.s32 %s16, %s28
    %p30 = scmp.eq.s32.totalorder %s29, 0
    %s32 = sadd.s32 %s31, 1
    %s33 = scalar_select %p30, %s31, %s32
    %p36 = pneg %p30
    %p37 = scmp.eq.s32.totalorder %s9, 1
    %p38 = por %p36, %p37
    %p39 = scmp.ne.s32.totalorder %s31, %s34
    %p40 = scmp.eq.s32.totalorder %s9, 0
    %p41 = por %p39, %p40
    %p42 = scmp.ne.s32.totalorder %s31, %s34
    %p43 = scmp.eq.s32.totalorder %s14, 1
    %p44 = por %p42, %p43
    %p45 = scmp.ne.s32.totalorder %s34, %s35
    %p46 = scmp.eq.s32.totalorder %s14, 0
    %p47 = por %p45, %p46
    %p48 = scmp.ne.s32.totalorder %s34, %s35
    %p49 = scmp.eq.s32.totalorder %s15, 1
    %p50 = por %p48, %p49
    %p52 = scmp.ne.s32.totalorder %s35, %s51
    %p53 = scmp.eq.s32.totalorder %s15, 0
    %p54 = por %p52, %p53
    %s55 = ssub.s32 %s17, %s24
    %p56 = scmp.eq.s32.totalorder %s55, 0
    %s58 = sadd.s32 %s57, 1
    %s59 = scalar_select %p56, %s57, %s58
    %p62 = pneg %p56
    %p63 = scmp.eq.s32.totalorder %s9, 1
    %p64 = por %p62, %p63
    %p65 = scmp.ne.s32.totalorder %s57, %s60
    %p66 = scmp.eq.s32.totalorder %s9, 0
    %p67 = por %p65, %p66
    %p68 = scmp.ne.s32.totalorder %s57, %s60
    %p69 = scmp.eq.s32.totalorder %s14, 1
    %p70 = por %p68, %p69
    %p71 = scmp.ne.s32.totalorder %s60, %s61
    %p72 = scmp.eq.s32.totalorder %s14, 0
    %p73 = por %p71, %p72
    %p74 = scmp.ne.s32.totalorder %s60, %s61
    %p75 = scmp.eq.s32.totalorder %s15, 1
    %p76 = por %p74, %p75
    %p78 = scmp.ne.s32.totalorder %s61, %s77
    %p79 = scmp.eq.s32.totalorder %s15, 0
    %p80 = por %p78, %p79
    %s81 = ssub.s32 %s17, %s24
    %p82 = scmp.eq.s32.totalorder %s81, 0
    %s84 = sadd.s32 %s83, 1
    %s85 = scalar_select %p82, %s83, %s84
    %p88 = pneg %p82
    %p89 = scmp.eq.s32.totalorder %s9, 1
    %p90 = por %p88, %p89
    %p91 = scmp.ne.s32.totalorder %s83, %s86
    %p92 = scmp.eq.s32.totalorder %s9, 0
    %p93 = por %p91, %p92
    %p94 = scmp.ne.s32.totalorder %s83, %s86
    %p95 = scmp.eq.s32.totalorder %s14, 1
    %p96 = por %p94, %p95
    %p97 = scmp.ne.s32.totalorder %s86, %s87
    %p98 = scmp.eq.s32.totalorder %s14, 0
    %p99 = por %p97, %p98
    %p100 = scmp.ne.s32.totalorder %s86, %s87
    %p101 = scmp.eq.s32.totalorder %s15, 1
    %p102 = por %p100, %p101
    %p104 = scmp.ne.s32.totalorder %s87, %s103
    %p105 = scmp.eq.s32.totalorder %s15, 0
    %p106 = por %p104, %p105
    %s107 = ssub.s32 %s16, %s28
    %s108 = ssub.s32 %s17, %s24
    %s109 = sor.u32 %s107, %s108
    %p110 = scmp.eq.s32.totalorder %s109, 0
    %s112 = sadd.s32 %s111, 1
    %s113 = scalar_select %p110, %s111, %s112
    %p116 = pneg %p110
    %p117 = scmp.eq.s32.totalorder %s9, 1
    %p118 = por %p116, %p117
    %p119 = scmp.ne.s32.totalorder %s111, %s114
    %p120 = scmp.eq.s32.totalorder %s9, 0
    %p121 = por %p119, %p120
    %p122 = scmp.ne.s32.totalorder %s111, %s114
    %p123 = scmp.eq.s32.totalorder %s14, 1
    %p124 = por %p122, %p123
    %p125 = scmp.ne.s32.totalorder %s114, %s115
    %p126 = scmp.eq.s32.totalorder %s14, 0
    %p127 = por %p125, %p126
    %p128 = scmp.ne.s32.totalorder %s114, %s115
    %p129 = scmp.eq.s32.totalorder %s15, 1
    %p130 = por %p128, %p129
    %p132 = scmp.ne.s32.totalorder %s115, %s131
    %p133 = scmp.eq.s32.totalorder %s15, 0
    %p134 = por %p132, %p133
    %p135 = scmp.le.s32.totalorder 1, %s9
    %p136 = scmp.lt.s32.totalorder %s9, 3
    %p137 = pnand %p135, %p136
    %p138 = pneg %p137
    // Predicated region
    $region9: #{yolov3_forward.82} parent=5 // pred_check
      _
    $region10: #{yolov3_forward.82} parent=5 // pred_check_branch
      %140 = sbr.rel (%p137) target = $region12
    $region11: #{yolov3_forward.82} parent=5 // pred_region
      %s141 = ssub.s32 %s9, 1
      // Predicated region
      $region13: #{yolov3_forward.82} parent=11 // pred_check
        %p142 = pneg %p73
      $region14: #{yolov3_forward.82} parent=11 // pred_check_branch
        %144 = sbr.rel (%p142) target = $region16
      $region15: #{yolov3_forward.82} parent=11 // pred_region
        %p145 = scmp.lt.s32.totalorder %s19, 0
        %s146 = scalar_select %p145, %s19, 0
        %s147 = smul.addr %s146, 4
        %s148 = scalar_lea.vmem %s1, %s147
      $region16: #{yolov3_forward.82} parent=11 // pred_fallthru
        _
      // Predicated region
      $region17: #{yolov3_forward.82} parent=11 // pred_check
        %p149 = pneg %p99
      $region18: #{yolov3_forward.82} parent=11 // pred_check_branch
        %151 = sbr.rel (%p149) target = $region20
      $region19: #{yolov3_forward.82} parent=11 // pred_region
        %p152 = scmp.lt.s32.totalorder %s19, 0
        %s153 = scalar_select %p152, %s19, 0
        %s154 = scalar_lea.vmem %s2, %s153
      $region20: #{yolov3_forward.82} parent=11 // pred_fallthru
        _
    $region12: #{yolov3_forward.82} parent=5 // pred_fallthru
      _
    %p155 = scmp.lt.s32.totalorder %s9, 2
    // Predicated region
    $region21: #{yolov3_forward.82} parent=5 // pred_check
      %p156 = pneg %p155
    $region22: #{yolov3_forward.82} parent=5 // pred_check_branch
      %158 = sbr.rel (%p156) target = $region24
    $region23: #{yolov3_forward.82} parent=5 // pred_region
      // Predicated region
      $region25: #{yolov3_forward.82} parent=23 // pred_check
        %p159 = pneg %p41
      $region26: #{yolov3_forward.82} parent=23 // pred_check_branch
        %161 = sbr.rel (%p159) target = $region28
      $region27: #{yolov3_forward.82} parent=23 // pred_region
        %s162 = smul.u32 32, %s16
        %p163 = scmp.lt.s32.totalorder %s162, 63
        %s164 = scalar_select %p163, %s162, 63
        %s165 = smul.addr %s164, 4
        %s166 = scalar_lea.vmem %s0, %s165
        %s167 = smul.u32 32, %s16
      $region28: #{yolov3_forward.82} parent=23 // pred_fallthru
        _
    $region24: #{yolov3_forward.82} parent=5 // pred_fallthru
      _
    %p168 = scmp.le.s32.totalorder 1, %s9
    %p169 = scmp.lt.s32.totalorder %s9, 3
    %p170 = pnand %p168, %p169
    %p171 = pneg %p170
    // Predicated region
    $region29: #{yolov3_forward.82} parent=5 // pred_check
      _
    $region30: #{yolov3_forward.82} parent=5 // pred_check_branch
      %173 = sbr.rel (%p170) target = $region32
    $region31: #{yolov3_forward.82} parent=5 // pred_region
      %s174 = ssub.s32 %s9, 1
      %s175 = smul.u32 32, %s18
      %p176 = scmp.lt.s32.totalorder %s175, 63
      %s177 = scalar_select %p176, %s175, 63
      %s178 = smul.addr %s177, 4
      %s179 = scalar_lea.vmem %s0, %s178
      %p180 = pneg %p47
      %p181 = pneg %p44
      %p182 = scmp.lt.s32.totalorder %s19, 0
      %s183 = scalar_select %p182, %s19, 0
      %s184 = smul.addr %s183, 4
      %s185 = scalar_lea.vmem %s1, %s184
      %p186 = pneg %p73
      %p187 = pneg %p70
      %p188 = scmp.lt.s32.totalorder %s19, 0
      %s189 = scalar_select %p188, %s19, 0
      %s190 = scalar_lea.vmem %s2, %s189
      %p191 = pneg %p99
      %p192 = pneg %p96
      %p193 = pneg %p127
      %p194 = pneg %p124
      %s195 = smul.u32 32, %s18
      %p196 = scmp.lt.s32.totalorder %s195, 63
      %s197 = scalar_select %p196, %s195, 63
      %p198 = scmp.lt.s32.totalorder %s19, 0
      %s199 = scalar_select %p198, %s19, 0
      %s200 = sadd.s32 %s199, %s197
      %s201 = smul.addr %s200, 4
      %s202 = scalar_lea.vmem %s3, %s201
      %s203 = smul.u32 32, %s18
      %p204 = scmp.lt.s32.totalorder %s203, 63
      %s205 = scalar_select %p204, %s203, 63
      %s206 = smul.addr %s205, 4
      %s207 = scalar_lea.vmem %s0, %s206
      %s208 = smul.u32 32, %s18
      %p209 = scmp.lt.s32.totalorder %s19, 0
      %s210 = scalar_select %p209, %s19, 0
      %s211 = smul.addr %s210, 4
      %s212 = scalar_lea.vmem %s1, %s211
      %p213 = scmp.lt.s32.totalorder %s19, 0
      %s214 = scalar_select %p213, %s19, 0
      %s215 = scalar_lea.vmem %s2, %s214
      %s216 = smul.u32 32, %s18
      %p217 = scmp.lt.s32.totalorder %s216, 63
      %s218 = scalar_select %p217, %s216, 63
      %p219 = scmp.lt.s32.totalorder %s19, 0
      %s220 = scalar_select %p219, %s19, 0
      %s221 = sadd.s32 %s220, %s218
      %s222 = smul.addr %s221, 4
      %s223 = scalar_lea.vmem %s3, %s222
      %s224 = smul.u32 32, %s18
      %v226 = vld [vmem:[%s207] sm:$0xf]
      %v227 = vld [vmem:[%s207 + $0x4] sm:$0xf]
      %v228 = vld [vmem:[%s207 + $0x8] sm:$0xf]
      %v229 = vld [vmem:[%s207 + $0xc] sm:$0xf]
      %v230 = vld [vmem:[%s207 + $0x10] sm:$0xf]
      %v231 = vld [vmem:[%s207 + $0x14] sm:$0xf]
      %v232 = vld [vmem:[%s207 + $0x18] sm:$0xf]
      %v233 = vld [vmem:[%s207 + $0x1c] sm:$0xf]
      %v234 = vld [vmem:[%s207 + $0x20] sm:$0xf]
      %v235 = vld [vmem:[%s207 + $0x24] sm:$0xf]
      %v236 = vld [vmem:[%s207 + $0x28] sm:$0xf]
      %v237 = vld [vmem:[%s207 + $0x2c] sm:$0xf]
      %v238 = vld [vmem:[%s207 + $0x30] sm:$0xf]
      %v239 = vld [vmem:[%s207 + $0x34] sm:$0xf]
      %v240 = vld [vmem:[%s207 + $0x38] sm:$0xf]
      %v241 = vld [vmem:[%s207 + $0x3c] sm:$0xf]
      %v242 = vld [vmem:[%s207 + $0x40] sm:$0xf]
      %v243 = vld [vmem:[%s207 + $0x44] sm:$0xf]
      %v244 = vld [vmem:[%s207 + $0x48] sm:$0xf]
      %v245 = vld [vmem:[%s207 + $0x4c] sm:$0xf]
      %v246 = vld [vmem:[%s207 + $0x50] sm:$0xf]
      %v247 = vld [vmem:[%s207 + $0x54] sm:$0xf]
      %v248 = vld [vmem:[%s207 + $0x58] sm:$0xf]
      %v249 = vld [vmem:[%s207 + $0x5c] sm:$0xf]
      %v250 = vld [vmem:[%s207 + $0x60] sm:$0xf]
      %v251 = vld [vmem:[%s207 + $0x64] sm:$0xf]
      %v252 = vld [vmem:[%s207 + $0x68] sm:$0xf]
      %v253 = vld [vmem:[%s207 + $0x6c] sm:$0xf]
      %v254 = vld [vmem:[%s207 + $0x70] sm:$0xf]
      %v255 = vld [vmem:[%s207 + $0x74] sm:$0xf]
      %v256 = vld [vmem:[%s207 + $0x78] sm:$0xf]
      %v257 = vld [vmem:[%s207 + $0x7c] sm:$0xf]
      %v258 = vld [vmem:[%s212] sm:$0xf]
      %v259 = vld [vmem:[%s212 + $0x4] sm:$0xf]
      %v260 = vld [vmem:[%s212 + $0x8] sm:$0xf]
      %v261 = vld [vmem:[%s212 + $0xc] sm:$0xf]
      %v262 = vld [vmem:[%s212 + $0x10] sm:$0xf]
      %v263 = vld [vmem:[%s212 + $0x14] sm:$0xf]
      %v264 = vld [vmem:[%s212 + $0x18] sm:$0xf]
      %v265 = vld [vmem:[%s212 + $0x1c] sm:$0xf]
      %v266 = vld [vmem:[%s212 + $0x20] sm:$0xf]
      %v267 = vld [vmem:[%s212 + $0x24] sm:$0xf]
      %v268 = vld [vmem:[%s215] sm:$0x1]
      %v270 = vlaneseq
      %v271 = vshrl.u32 %v270, 7
      %v272 = vsub.s32 0, %v271
      %v273 = vrot.slane %v268, %v272
      %v307 = vunpack.c.l.b16 %v226
      %v308 = vunpack.c.l.b16 %v227
      %v309 = vunpack.c.l.b16 %v228
      %v310 = vunpack.c.l.b16 %v229
      %v311 = vunpack.c.l.b16 %v230
      %v312 = vunpack.c.l.b16 %v231
      %v313 = vunpack.c.l.b16 %v232
      %v314 = vunpack.c.l.b16 %v233
      %v315 = vunpack.c.l.b16 %v234
      %v316 = vunpack.c.l.b16 %v235
      %v317 = vunpack.c.l.b16 %v236
      %v318 = vunpack.c.l.b16 %v237
      %v319 = vunpack.c.l.b16 %v238
      %v320 = vunpack.c.l.b16 %v239
      %v321 = vunpack.c.l.b16 %v240
      %v322 = vunpack.c.l.b16 %v241
      %v323 = vunpack.c.l.b16 %v242
      %v324 = vunpack.c.l.b16 %v243
      %v325 = vunpack.c.l.b16 %v244
      %v326 = vunpack.c.l.b16 %v245
      %v327 = vunpack.c.l.b16 %v246
      %v328 = vunpack.c.l.b16 %v247
      %v329 = vunpack.c.l.b16 %v248
      %v330 = vunpack.c.l.b16 %v249
      %v331 = vunpack.c.l.b16 %v250
      %v332 = vunpack.c.l.b16 %v251
      %v333 = vunpack.c.l.b16 %v252
      %v334 = vunpack.c.l.b16 %v253
      %v335 = vunpack.c.l.b16 %v254
      %v336 = vunpack.c.l.b16 %v255
      %v337 = vunpack.c.l.b16 %v256
      %v338 = vunpack.c.l.b16 %v257
      %v339 = vpack.c.b16 %v308, %v307
      %v340 = vpack.c.b16 %v310, %v309
      %v341 = vpack.c.b16 %v312, %v311
      %v342 = vpack.c.b16 %v314, %v313
      %v343 = vpack.c.b16 %v316, %v315
      %v344 = vpack.c.b16 %v318, %v317
      %v345 = vpack.c.b16 %v320, %v319
      %v346 = vpack.c.b16 %v322, %v321
      %v347 = vpack.c.b16 %v324, %v323
      %v348 = vpack.c.b16 %v326, %v325
      %v349 = vpack.c.b16 %v328, %v327
      %v350 = vpack.c.b16 %v330, %v329
      %v351 = vpack.c.b16 %v332, %v331
      %v352 = vpack.c.b16 %v334, %v333
      %v353 = vpack.c.b16 %v336, %v335
      %v354 = vpack.c.b16 %v338, %v337
      %v365 = vunpack.c.l.b16 %v258
      %v366 = vunpack.c.l.b16 %v259
      %v367 = vunpack.c.l.b16 %v260
      %v368 = vunpack.c.l.b16 %v261
      %v369 = vunpack.c.l.b16 %v262
      %v370 = vunpack.c.l.b16 %v263
      %v371 = vunpack.c.l.b16 %v264
      %v372 = vunpack.c.l.b16 %v265
      %v373 = vunpack.c.l.b16 %v266
      %v374 = vunpack.c.l.b16 %v267
      %v375 = vpack.c.b16 %v366, %v365
      %v376 = vpack.c.b16 %v368, %v367
      %v377 = vpack.c.b16 %v370, %v369
      %v378 = vpack.c.b16 %v372, %v371
      %v379 = vpack.c.b16 %v374, %v373
      %vm385 = vcmask 654336
      %v387 = vsel %vm385, %v339, 0
      %v390 = vsel %vm385, %v340, 0
      %v393 = vsel %vm385, %v341, 0
      %v396 = vsel %vm385, %v342, 0
      %v399 = vsel %vm385, %v343, 0
      %v402 = vsel %vm385, %v344, 0
      %v405 = vsel %vm385, %v345, 0
      %v408 = vsel %vm385, %v346, 0
      %v411 = vsel %vm385, %v347, 0
      %v414 = vsel %vm385, %v348, 0
      %v417 = vsel %vm385, %v349, 0
      %v420 = vsel %vm385, %v350, 0
      %v423 = vsel %vm385, %v351, 0
      %v426 = vsel %vm385, %v352, 0
      %v429 = vsel %vm385, %v353, 0
      %v432 = vsel %vm385, %v354, 0
      %434 = vmatprep.subr.bf16.mxu0 0
      %435 = vmatpush1.bf16.msra.mxu0 0
      %436 = vmatprep.subr.bf16.mxu0 0
      %437 = vmatpush1.bf16.msra.mxu0 0
      %438 = vmatprep.subr.bf16.mxu0 0
      %439 = vmatpush1.bf16.msra.mxu0 0
      %440 = vmatprep.subr.bf16.mxu0 0
      %441 = vmatpush1.bf16.msra.mxu0 %v379
      %442 = vmatprep.subr.bf16.mxu0 0
      %443 = vmatpush1.bf16.msra.mxu0 %v378
      %444 = vmatprep.subr.bf16.mxu0 0
      %445 = vmatpush1.bf16.msra.mxu0 %v377
      %446 = vmatprep.subr.bf16.mxu0 0
      %447 = vmatpush1.bf16.msra.mxu0 %v376
      %448 = vmatprep.subr.bf16.mxu0 0
      %449 = vmatpush1.bf16.msra.mxu0 %v375
      %450 = vmatprep.subr.bf16.mxu0 0
      %451 = vmatpush2.bf16.msra.mxu0 0
      %452 = vmatprep.subr.bf16.mxu0 0
      %453 = vmatpush2.bf16.msra.mxu0 0
      %454 = vmatprep.subr.bf16.mxu0 0
      %455 = vmatpush2.bf16.msra.mxu0 0
      %456 = vmatprep.subr.bf16.mxu0 0
      %457 = vmatpush2.bf16.msra.mxu0 0
      %458 = vmatprep.subr.bf16.mxu0 0
      %459 = vmatpush2.bf16.msra.mxu0 0
      %460 = vmatprep.subr.bf16.mxu0 0
      %461 = vmatpush2.bf16.msra.mxu0 0
      %462 = vmatprep.subr.bf16.mxu0 0
      %463 = vmatpush2.bf16.msra.mxu0 0
      %464 = vmatprep.subr.bf16.mxu0 0
      %465 = vmatpush2.bf16.msra.mxu0 0
      %466 = vmatprep.mubr.bf16.mxu0 0
      %467 = vmatmul.mubr.bf16.gmra.mxu0 %v387
      %v468 = vpop.f32.mrf.mxu0
      %v469 = vadd.f32 %v273, %v468
      %v470 = vpop.f32.mrf.mxu0
      %v471 = vpop.f32.mrf.mxu0
      %v472 = vadd.f32 %v273, %v471
      %v473 = vpop.f32.mrf.mxu0
      %474 = vmatprep.mubr.bf16.mxu0 0
      %475 = vmatmul.mubr.bf16.gmra.mxu0 %v390
      %v476 = vpop.f32.mrf.mxu0
      %v477 = vadd.f32 %v273, %v476
      %v478 = vpop.f32.mrf.mxu0
      %v479 = vpop.f32.mrf.mxu0
      %v480 = vadd.f32 %v273, %v479
      %v481 = vpop.f32.mrf.mxu0
      %482 = vmatprep.mubr.bf16.mxu0 0
      %483 = vmatmul.mubr.bf16.gmra.mxu0 %v393
      %v484 = vpop.f32.mrf.mxu0
      %v485 = vadd.f32 %v273, %v484
      %v486 = vpop.f32.mrf.mxu0
      %v487 = vpop.f32.mrf.mxu0
      %v488 = vadd.f32 %v273, %v487
      %v489 = vpop.f32.mrf.mxu0
      %490 = vmatprep.mubr.bf16.mxu0 0
      %491 = vmatmul.mubr.bf16.gmra.mxu0 %v396
      %v492 = vpop.f32.mrf.mxu0
      %v493 = vadd.f32 %v273, %v492
      %v494 = vpop.f32.mrf.mxu0
      %v495 = vpop.f32.mrf.mxu0
      %v496 = vadd.f32 %v273, %v495
      %v497 = vpop.f32.mrf.mxu0
      %498 = vmatprep.mubr.bf16.mxu0 0
      %499 = vmatmul.mubr.bf16.gmra.mxu0 %v399
      %v500 = vpop.f32.mrf.mxu0
      %v501 = vadd.f32 %v273, %v500
      %v502 = vpop.f32.mrf.mxu0
      %v503 = vpop.f32.mrf.mxu0
      %v504 = vadd.f32 %v273, %v503
      %v505 = vpop.f32.mrf.mxu0
      %506 = vmatprep.mubr.bf16.mxu0 0
      %507 = vmatmul.mubr.bf16.gmra.mxu0 %v402
      %v508 = vpop.f32.mrf.mxu0
      %v509 = vadd.f32 %v273, %v508
      %v510 = vpop.f32.mrf.mxu0
      %v511 = vpop.f32.mrf.mxu0
      %v512 = vadd.f32 %v273, %v511
      %v513 = vpop.f32.mrf.mxu0
      %514 = vmatprep.mubr.bf16.mxu0 0
      %515 = vmatmul.mubr.bf16.gmra.mxu0 %v405
      %v516 = vpop.f32.mrf.mxu0
      %v517 = vadd.f32 %v273, %v516
      %v518 = vpop.f32.mrf.mxu0
      %v519 = vpop.f32.mrf.mxu0
      %v520 = vadd.f32 %v273, %v519
      %v521 = vpop.f32.mrf.mxu0
      %522 = vmatprep.mubr.bf16.mxu0 0
      %523 = vmatmul.mubr.bf16.gmra.mxu0 %v408
      %v524 = vpop.f32.mrf.mxu0
      %v525 = vadd.f32 %v273, %v524
      %v526 = vpop.f32.mrf.mxu0
      %v527 = vpop.f32.mrf.mxu0
      %v528 = vadd.f32 %v273, %v527
      %v529 = vpop.f32.mrf.mxu0
      %530 = vmatprep.mubr.bf16.mxu0 0
      %531 = vmatmul.mubr.bf16.gmra.mxu0 %v411
      %v532 = vpop.f32.mrf.mxu0
      %v533 = vadd.f32 %v273, %v532
      %v534 = vpop.f32.mrf.mxu0
      %v535 = vpop.f32.mrf.mxu0
      %v536 = vadd.f32 %v273, %v535
      %v537 = vpop.f32.mrf.mxu0
      %538 = vmatprep.mubr.bf16.mxu0 0
      %539 = vmatmul.mubr.bf16.gmra.mxu0 %v414
      %v540 = vpop.f32.mrf.mxu0
      %v541 = vadd.f32 %v273, %v540
      %v542 = vpop.f32.mrf.mxu0
      %v543 = vpop.f32.mrf.mxu0
      %v544 = vadd.f32 %v273, %v543
      %v545 = vpop.f32.mrf.mxu0
      %546 = vmatprep.mubr.bf16.mxu0 0
      %547 = vmatmul.mubr.bf16.gmra.mxu0 %v417
      %v548 = vpop.f32.mrf.mxu0
      %v549 = vadd.f32 %v273, %v548
      %v550 = vpop.f32.mrf.mxu0
      %v551 = vpop.f32.mrf.mxu0
      %v552 = vadd.f32 %v273, %v551
      %v553 = vpop.f32.mrf.mxu0
      %554 = vmatprep.mubr.bf16.mxu0 0
      %555 = vmatmul.mubr.bf16.gmra.mxu0 %v420
      %v556 = vpop.f32.mrf.mxu0
      %v557 = vadd.f32 %v273, %v556
      %v558 = vpop.f32.mrf.mxu0
      %v559 = vpop.f32.mrf.mxu0
      %v560 = vadd.f32 %v273, %v559
      %v561 = vpop.f32.mrf.mxu0
      %562 = vmatprep.mubr.bf16.mxu0 0
      %563 = vmatmul.mubr.bf16.gmra.mxu0 %v423
      %v564 = vpop.f32.mrf.mxu0
      %v565 = vadd.f32 %v273, %v564
      %v566 = vpop.f32.mrf.mxu0
      %v567 = vpop.f32.mrf.mxu0
      %v568 = vadd.f32 %v273, %v567
      %v569 = vpop.f32.mrf.mxu0
      %570 = vmatprep.mubr.bf16.mxu0 0
      %571 = vmatmul.mubr.bf16.gmra.mxu0 %v426
      %v572 = vpop.f32.mrf.mxu0
      %v573 = vadd.f32 %v273, %v572
      %v574 = vpop.f32.mrf.mxu0
      %v575 = vpop.f32.mrf.mxu0
      %v576 = vadd.f32 %v273, %v575
      %v577 = vpop.f32.mrf.mxu0
      %578 = vmatprep.mubr.bf16.mxu0 0
      %579 = vmatmul.mubr.bf16.gmra.mxu0 %v429
      %v580 = vpop.f32.mrf.mxu0
      %v581 = vadd.f32 %v273, %v580
      %v582 = vpop.f32.mrf.mxu0
      %v583 = vpop.f32.mrf.mxu0
      %v584 = vadd.f32 %v273, %v583
      %v585 = vpop.f32.mrf.mxu0
      %586 = vmatprep.mubr.bf16.mxu0 0
      %587 = vmatmul.mubr.bf16.gmra.mxu0 %v432
      %v588 = vpop.f32.mrf.mxu0
      %v589 = vadd.f32 %v273, %v588
      %v590 = vpop.f32.mrf.mxu0
      %v591 = vpop.f32.mrf.mxu0
      %v592 = vadd.f32 %v273, %v591
      %v593 = vpop.f32.mrf.mxu0
      %594 = vdwg.mxu0
      %vm595 = vcmp.gt.f32.partialorder %v469, 0.0
      %vm596 = vcmp.gt.f32.partialorder %v472, 0.0
      %vm597 = vcmp.gt.f32.partialorder %v477, 0.0
      %vm598 = vcmp.gt.f32.partialorder %v480, 0.0
      %vm599 = vcmp.gt.f32.partialorder %v485, 0.0
      %vm600 = vcmp.gt.f32.partialorder %v488, 0.0
      %vm601 = vcmp.gt.f32.partialorder %v493, 0.0
      %vm602 = vcmp.gt.f32.partialorder %v496, 0.0
      %vm603 = vcmp.gt.f32.partialorder %v501, 0.0
      %vm604 = vcmp.gt.f32.partialorder %v504, 0.0
      %vm605 = vcmp.gt.f32.partialorder %v509, 0.0
      %vm606 = vcmp.gt.f32.partialorder %v512, 0.0
      %vm607 = vcmp.gt.f32.partialorder %v517, 0.0
      %vm608 = vcmp.gt.f32.partialorder %v520, 0.0
      %vm609 = vcmp.gt.f32.partialorder %v525, 0.0
      %vm610 = vcmp.gt.f32.partialorder %v528, 0.0
      %vm611 = vcmp.gt.f32.partialorder %v533, 0.0
      %vm612 = vcmp.gt.f32.partialorder %v536, 0.0
      %vm613 = vcmp.gt.f32.partialorder %v541, 0.0
      %vm614 = vcmp.gt.f32.partialorder %v544, 0.0
      %vm615 = vcmp.gt.f32.partialorder %v549, 0.0
      %vm616 = vcmp.gt.f32.partialorder %v552, 0.0
      %vm617 = vcmp.gt.f32.partialorder %v557, 0.0
      %vm618 = vcmp.gt.f32.partialorder %v560, 0.0
      %vm619 = vcmp.gt.f32.partialorder %v565, 0.0
      %vm620 = vcmp.gt.f32.partialorder %v568, 0.0
      %vm621 = vcmp.gt.f32.partialorder %v573, 0.0
      %vm622 = vcmp.gt.f32.partialorder %v576, 0.0
      %vm623 = vcmp.gt.f32.partialorder %v581, 0.0
      %vm624 = vcmp.gt.f32.partialorder %v584, 0.0
      %vm625 = vcmp.gt.f32.partialorder %v589, 0.0
      %vm626 = vcmp.gt.f32.partialorder %v592, 0.0
      %v627 = vmul.f32 %v469, 0.1
      %v628 = vmul.f32 %v472, 0.1
      %v629 = vmul.f32 %v477, 0.1
      %v630 = vmul.f32 %v480, 0.1
      %v631 = vmul.f32 %v485, 0.1
      %v632 = vmul.f32 %v488, 0.1
      %v633 = vmul.f32 %v493, 0.1
      %v634 = vmul.f32 %v496, 0.1
      %v635 = vmul.f32 %v501, 0.1
      %v636 = vmul.f32 %v504, 0.1
      %v637 = vmul.f32 %v509, 0.1
      %v638 = vmul.f32 %v512, 0.1
      %v639 = vmul.f32 %v517, 0.1
      %v640 = vmul.f32 %v520, 0.1
      %v641 = vmul.f32 %v525, 0.1
      %v642 = vmul.f32 %v528, 0.1
      %v643 = vmul.f32 %v533, 0.1
      %v644 = vmul.f32 %v536, 0.1
      %v645 = vmul.f32 %v541, 0.1
      %v646 = vmul.f32 %v544, 0.1
      %v647 = vmul.f32 %v549, 0.1
      %v648 = vmul.f32 %v552, 0.1
      %v649 = vmul.f32 %v557, 0.1
      %v650 = vmul.f32 %v560, 0.1
      %v651 = vmul.f32 %v565, 0.1
      %v652 = vmul.f32 %v568, 0.1
      %v653 = vmul.f32 %v573, 0.1
      %v654 = vmul.f32 %v576, 0.1
      %v655 = vmul.f32 %v581, 0.1
      %v656 = vmul.f32 %v584, 0.1
      %v657 = vmul.f32 %v589, 0.1
      %v658 = vmul.f32 %v592, 0.1
      %v659 = vsel %vm595, %v469, %v627
      %v660 = vsel %vm596, %v472, %v628
      %v661 = vsel %vm597, %v477, %v629
      %v662 = vsel %vm598, %v480, %v630
      %v663 = vsel %vm599, %v485, %v631
      %v664 = vsel %vm600, %v488, %v632
      %v665 = vsel %vm601, %v493, %v633
      %v666 = vsel %vm602, %v496, %v634
      %v667 = vsel %vm603, %v501, %v635
      %v668 = vsel %vm604, %v504, %v636
      %v669 = vsel %vm605, %v509, %v637
      %v670 = vsel %vm606, %v512, %v638
      %v671 = vsel %vm607, %v517, %v639
      %v672 = vsel %vm608, %v520, %v640
      %v673 = vsel %vm609, %v525, %v641
      %v674 = vsel %vm610, %v528, %v642
      %v675 = vsel %vm611, %v533, %v643
      %v676 = vsel %vm612, %v536, %v644
      %v677 = vsel %vm613, %v541, %v645
      %v678 = vsel %vm614, %v544, %v646
      %v679 = vsel %vm615, %v549, %v647
      %v680 = vsel %vm616, %v552, %v648
      %v681 = vsel %vm617, %v557, %v649
      %v682 = vsel %vm618, %v560, %v650
      %v683 = vsel %vm619, %v565, %v651
      %v684 = vsel %vm620, %v568, %v652
      %v685 = vsel %vm621, %v573, %v653
      %v686 = vsel %vm622, %v576, %v654
      %v687 = vsel %vm623, %v581, %v655
      %v688 = vsel %vm624, %v584, %v656
      %v689 = vsel %vm625, %v589, %v657
      %v690 = vsel %vm626, %v592, %v658
      %v691 = vpack.c.bf16 %v660, %v659
      %v692 = vpack.c.bf16 %v662, %v661
      %v693 = vpack.c.bf16 %v664, %v663
      %v694 = vpack.c.bf16 %v666, %v665
      %v695 = vpack.c.bf16 %v668, %v667
      %v696 = vpack.c.bf16 %v670, %v669
      %v697 = vpack.c.bf16 %v672, %v671
      %v698 = vpack.c.bf16 %v674, %v673
      %v699 = vpack.c.bf16 %v676, %v675
      %v700 = vpack.c.bf16 %v678, %v677
      %v701 = vpack.c.bf16 %v680, %v679
      %v702 = vpack.c.bf16 %v682, %v681
      %v703 = vpack.c.bf16 %v684, %v683
      %v704 = vpack.c.bf16 %v686, %v685
      %v705 = vpack.c.bf16 %v688, %v687
      %v706 = vpack.c.bf16 %v690, %v689
      %v723 = vunpack.c.l.b16 %v691
      %v724 = vunpack.c.h.b16 %v691
      %v725 = vunpack.c.l.b16 %v692
      %v726 = vunpack.c.h.b16 %v692
      %v727 = vunpack.c.l.b16 %v693
      %v728 = vunpack.c.h.b16 %v693
      %v729 = vunpack.c.l.b16 %v694
      %v730 = vunpack.c.h.b16 %v694
      %v731 = vunpack.c.l.b16 %v695
      %v732 = vunpack.c.h.b16 %v695
      %v733 = vunpack.c.l.b16 %v696
      %v734 = vunpack.c.h.b16 %v696
      %v735 = vunpack.c.l.b16 %v697
      %v736 = vunpack.c.h.b16 %v697
      %v737 = vunpack.c.l.b16 %v698
      %v738 = vunpack.c.h.b16 %v698
      %v739 = vunpack.c.l.b16 %v699
      %v740 = vunpack.c.h.b16 %v699
      %v741 = vunpack.c.l.b16 %v700
      %v742 = vunpack.c.h.b16 %v700
      %v743 = vunpack.c.l.b16 %v701
      %v744 = vunpack.c.h.b16 %v701
      %v745 = vunpack.c.l.b16 %v702
      %v746 = vunpack.c.h.b16 %v702
      %v747 = vunpack.c.l.b16 %v703
      %v748 = vunpack.c.h.b16 %v703
      %v749 = vunpack.c.l.b16 %v704
      %v750 = vunpack.c.h.b16 %v704
      %v751 = vunpack.c.l.b16 %v705
      %v752 = vunpack.c.h.b16 %v705
      %v753 = vunpack.c.l.b16 %v706
      %v754 = vunpack.c.h.b16 %v706
      %v755 = vpack.c.b16 %v723, %v723
      %v756 = vpack.c.b16 %v724, %v724
      %v757 = vpack.c.b16 %v725, %v725
      %v758 = vpack.c.b16 %v726, %v726
      %v759 = vpack.c.b16 %v727, %v727
      %v760 = vpack.c.b16 %v728, %v728
      %v761 = vpack.c.b16 %v729, %v729
      %v762 = vpack.c.b16 %v730, %v730
      %v763 = vpack.c.b16 %v731, %v731
      %v764 = vpack.c.b16 %v732, %v732
      %v765 = vpack.c.b16 %v733, %v733
      %v766 = vpack.c.b16 %v734, %v734
      %v767 = vpack.c.b16 %v735, %v735
      %v768 = vpack.c.b16 %v736, %v736
      %v769 = vpack.c.b16 %v737, %v737
      %v770 = vpack.c.b16 %v738, %v738
      %v771 = vpack.c.b16 %v739, %v739
      %v772 = vpack.c.b16 %v740, %v740
      %v773 = vpack.c.b16 %v741, %v741
      %v774 = vpack.c.b16 %v742, %v742
      %v775 = vpack.c.b16 %v743, %v743
      %v776 = vpack.c.b16 %v744, %v744
      %v777 = vpack.c.b16 %v745, %v745
      %v778 = vpack.c.b16 %v746, %v746
      %v779 = vpack.c.b16 %v747, %v747
      %v780 = vpack.c.b16 %v748, %v748
      %v781 = vpack.c.b16 %v749, %v749
      %v782 = vpack.c.b16 %v750, %v750
      %v783 = vpack.c.b16 %v751, %v751
      %v784 = vpack.c.b16 %v752, %v752
      %v785 = vpack.c.b16 %v753, %v753
      %v786 = vpack.c.b16 %v754, %v754
      %819 = vst [vmem:[%s223] sm:$0xf] %v755
      %820 = vst [vmem:[%s223 + $0x4] sm:$0xf] %v756
      %821 = vst [vmem:[%s223 + $0x8] sm:$0xf] %v757
      %822 = vst [vmem:[%s223 + $0xc] sm:$0xf] %v758
      %823 = vst [vmem:[%s223 + $0x10] sm:$0xf] %v759
      %824 = vst [vmem:[%s223 + $0x14] sm:$0xf] %v760
      %825 = vst [vmem:[%s223 + $0x18] sm:$0xf] %v761
      %826 = vst [vmem:[%s223 + $0x1c] sm:$0xf] %v762
      %827 = vst [vmem:[%s223 + $0x20] sm:$0xf] %v763
      %828 = vst [vmem:[%s223 + $0x24] sm:$0xf] %v764
      %829 = vst [vmem:[%s223 + $0x28] sm:$0xf] %v765
      %830 = vst [vmem:[%s223 + $0x2c] sm:$0xf] %v766
      %831 = vst [vmem:[%s223 + $0x30] sm:$0xf] %v767
      %832 = vst [vmem:[%s223 + $0x34] sm:$0xf] %v768
      %833 = vst [vmem:[%s223 + $0x38] sm:$0xf] %v769
      %834 = vst [vmem:[%s223 + $0x3c] sm:$0xf] %v770
      %835 = vst [vmem:[%s223 + $0x40] sm:$0xf] %v771
      %836 = vst [vmem:[%s223 + $0x44] sm:$0xf] %v772
      %837 = vst [vmem:[%s223 + $0x48] sm:$0xf] %v773
      %838 = vst [vmem:[%s223 + $0x4c] sm:$0xf] %v774
      %839 = vst [vmem:[%s223 + $0x50] sm:$0xf] %v775
      %840 = vst [vmem:[%s223 + $0x54] sm:$0xf] %v776
      %841 = vst [vmem:[%s223 + $0x58] sm:$0xf] %v777
      %842 = vst [vmem:[%s223 + $0x5c] sm:$0xf] %v778
      %843 = vst [vmem:[%s223 + $0x60] sm:$0xf] %v779
      %844 = vst [vmem:[%s223 + $0x64] sm:$0xf] %v780
      %845 = vst [vmem:[%s223 + $0x68] sm:$0xf] %v781
      %846 = vst [vmem:[%s223 + $0x6c] sm:$0xf] %v782
      %847 = vst [vmem:[%s223 + $0x70] sm:$0xf] %v783
      %848 = vst [vmem:[%s223 + $0x74] sm:$0xf] %v784
      %849 = vst [vmem:[%s223 + $0x78] sm:$0xf] %v785
      %850 = vst [vmem:[%s223 + $0x7c] sm:$0xf] %v786
      %s851 = smul.u32 32, %s18
      %p852 = scmp.lt.s32.totalorder %s851, 63
      %s853 = scalar_select %p852, %s851, 63
      %p854 = scmp.lt.s32.totalorder %s19, 0
      %s855 = scalar_select %p854, %s19, 0
      %s856 = sadd.s32 %s855, %s853
      %s857 = smul.addr %s856, 4
      %s858 = scalar_lea.vmem %s3, %s857
      // Predicated region
      $region33: #{yolov3_forward.82} parent=31 // pred_check
        %p859 = pneg %p124
      $region34: #{yolov3_forward.82} parent=31 // pred_check_branch
        %861 = sbr.rel (%p859) target = $region36
      $region35: #{yolov3_forward.82} parent=31 // pred_region
        %s862 = smul.u32 32, %s18
      $region36: #{yolov3_forward.82} parent=31 // pred_fallthru
        _
    $region32: #{yolov3_forward.82} parent=5 // pred_fallthru
      _
    %p863 = scmp.le.s32.totalorder 2, %s9
    // Predicated region
    $region37: #{yolov3_forward.82} parent=5 // pred_check
      %p864 = pneg %p863
    $region38: #{yolov3_forward.82} parent=5 // pred_check_branch
      %866 = sbr.rel (%p864) target = $region40
    $region39: #{yolov3_forward.82} parent=5 // pred_region
      %s867 = ssub.s32 %s9, 2
      // Predicated region
      $region41: #{yolov3_forward.82} parent=39 // pred_check
        %p868 = pneg %p130
      $region42: #{yolov3_forward.82} parent=39 // pred_check_branch
        %870 = sbr.rel (%p868) target = $region44
      $region43: #{yolov3_forward.82} parent=39 // pred_region
        %s871 = smul.u32 32, %s20
        %p872 = scmp.lt.s32.totalorder %s871, 63
        %s873 = scalar_select %p872, %s871, 63
        %p874 = scmp.lt.s32.totalorder %s21, 0
        %s875 = scalar_select %p874, %s21, 0
        %s876 = sadd.s32 %s875, %s873
        %s877 = smul.addr %s876, 4
        %s878 = scalar_lea.vmem %s3, %s877
      $region44: #{yolov3_forward.82} parent=39 // pred_fallthru
        _
    $region40: #{yolov3_forward.82} parent=5 // pred_fallthru
      _
  $region6: #{yolov3_forward.82} parent=0 // loop_footer
    %s13 = sadd.s32 1, %s9
  $region7: #{yolov3_forward.82} parent=0 // loop_footer_branch
    %8 = sbr.rel target = $region3
  $region8: #{yolov3_forward.82} parent=0 // loop_exit
    _

// kernel: yolov3_forward.83
$region0: #{yolov3_forward.83}
  #allocation0 [shape = 'u32[]', space=smem, size = 0x4, offset = 0x4, fixed_abs, tag = 'smem constant byte address 0x4 - core index']
  #allocation1 [shape = 'u32[144,128]{1,0:T(1,128)}', space=vmem, size = 0x12000, scoped, tag = 'internal scratch']
  %s0 = inlined_call_operand.vmem [shape: bf16[512,16], index: 0, kind: input, shape index: {}]
  %s1 = inlined_call_operand.vmem [shape: bf16[16,128], index: 1, kind: input, shape index: {}]
  %s2 = inlined_call_operand.vmem [shape: f32[1,128], index: 2, kind: input, shape index: {}]
  %s3 = inlined_call_operand.vmem [shape: bf16[512,128], index: 3, kind: output, shape index: {}]
  %s4 = sld [smem:[#allocation0]]
  $region45: #{yolov3_forward.83} parent=0
    _
  %s6 = ssub.s32 1, %s4
  %s7 = scalar_select 0, %s6, %s4
  loop: start=0, step=1, limit=4
  $region2: #{yolov3_forward.83} parent=0 // loop_pre_header
    _
  $region3: #{yolov3_forward.83} parent=0 // loop_header
    %s9 = sphi 0, %s13
    %p10 = scmp.ge.s32.totalorder %s9, 4
    %s16 = sphi 0, %s28
    %s17 = sphi 0, %s24
    %s18 = sphi 0, %s16
    %s19 = sphi 0, %s17
    %s20 = sphi 0, %s18
    %s21 = sphi 0, %s19
    %s31 = sphi 0, %s33
    %s34 = sphi 0, %s31
    %s35 = sphi 0, %s34
    %s51 = sphi 0, %s35
    %s57 = sphi 0, %s59
    %s60 = sphi 0, %s57
    %s61 = sphi 0, %s60
    %s77 = sphi 0, %s61
    %s83 = sphi 0, %s85
    %s86 = sphi 0, %s83
    %s87 = sphi 0, %s86
    %s103 = sphi 0, %s87
    %s111 = sphi 0, %s113
    %s114 = sphi 0, %s111
    %s115 = sphi 0, %s114
    %s131 = sphi 0, %s115
  $region4: #{yolov3_forward.83} parent=0 // loop_header_branch
    %12 = sbr.rel (%p10) target = $region8
  $region5: #{yolov3_forward.83} parent=0 // loop_body
    %s14 = ssub.s32 %s9, 1
    %s15 = ssub.s32 %s9, 2
    %s22 = sadd.s32 1, %s17
    %p23 = scmp.ge.s32.totalorder %s22, 1
    %s24 = scalar_select %p23, 0, %s22
    %s25 = sadd.s32 1, %s16
    %s26 = scalar_select %p23, %s25, %s16
    %p27 = scmp.ge.s32.totalorder %s26, 2
    %s28 = scalar_select %p27, 0, %s26
    %s29 = ssub.s32 %s16, %s28
    %p30 = scmp.eq.s32.totalorder %s29, 0
    %s32 = sadd.s32 %s31, 1
    %s33 = scalar_select %p30, %s31, %s32
    %p36 = pneg %p30
    %p37 = scmp.eq.s32.totalorder %s9, 1
    %p38 = por %p36, %p37
    %p39 = scmp.ne.s32.totalorder %s31, %s34
    %p40 = scmp.eq.s32.totalorder %s9, 0
    %p41 = por %p39, %p40
    %p42 = scmp.ne.s32.totalorder %s31, %s34
    %p43 = scmp.eq.s32.totalorder %s14, 1
    %p44 = por %p42, %p43
    %p45 = scmp.ne.s32.totalorder %s34, %s35
    %p46 = scmp.eq.s32.totalorder %s14, 0
    %p47 = por %p45, %p46
    %p48 = scmp.ne.s32.totalorder %s34, %s35
    %p49 = scmp.eq.s32.totalorder %s15, 1
    %p50 = por %p48, %p49
    %p52 = scmp.ne.s32.totalorder %s35, %s51
    %p53 = scmp.eq.s32.totalorder %s15, 0
    %p54 = por %p52, %p53
    %s55 = ssub.s32 %s17, %s24
    %p56 = scmp.eq.s32.totalorder %s55, 0
    %s58 = sadd.s32 %s57, 1
    %s59 = scalar_select %p56, %s57, %s58
    %p62 = pneg %p56
    %p63 = scmp.eq.s32.totalorder %s9, 1
    %p64 = por %p62, %p63
    %p65 = scmp.ne.s32.totalorder %s57, %s60
    %p66 = scmp.eq.s32.totalorder %s9, 0
    %p67 = por %p65, %p66
    %p68 = scmp.ne.s32.totalorder %s57, %s60
    %p69 = scmp.eq.s32.totalorder %s14, 1
    %p70 = por %p68, %p69
    %p71 = scmp.ne.s32.totalorder %s60, %s61
    %p72 = scmp.eq.s32.totalorder %s14, 0
    %p73 = por %p71, %p72
    %p74 = scmp.ne.s32.totalorder %s60, %s61
    %p75 = scmp.eq.s32.totalorder %s15, 1
    %p76 = por %p74, %p75
    %p78 = scmp.ne.s32.totalorder %s61, %s77
    %p79 = scmp.eq.s32.totalorder %s15, 0
    %p80 = por %p78, %p79
    %s81 = ssub.s32 %s17, %s24
    %p82 = scmp.eq.s32.totalorder %s81, 0
    %s84 = sadd.s32 %s83, 1
    %s85 = scalar_select %p82, %s83, %s84
    %p88 = pneg %p82
    %p89 = scmp.eq.s32.totalorder %s9, 1
    %p90 = por %p88, %p89
    %p91 = scmp.ne.s32.totalorder %s83, %s86
    %p92 = scmp.eq.s32.totalorder %s9, 0
    %p93 = por %p91, %p92
    %p94 = scmp.ne.s32.totalorder %s83, %s86
    %p95 = scmp.eq.s32.totalorder %s14, 1
    %p96 = por %p94, %p95
    %p97 = scmp.ne.s32.totalorder %s86, %s87
    %p98 = scmp.eq.s32.totalorder %s14, 0
    %p99 = por %p97, %p98
    %p100 = scmp.ne.s32.totalorder %s86, %s87
    %p101 = scmp.eq.s32.totalorder %s15, 1
    %p102 = por %p100, %p101
    %p104 = scmp.ne.s32.totalorder %s87, %s103
    %p105 = scmp.eq.s32.totalorder %s15, 0
    %p106 = por %p104, %p105
    %s107 = ssub.s32 %s16, %s28
    %s108 = ssub.s32 %s17, %s24
    %s109 = sor.u32 %s107, %s108
    %p110 = scmp.eq.s32.totalorder %s109, 0
    %s112 = sadd.s32 %s111, 1
    %s113 = scalar_select %p110, %s111, %s112
    %p116 = pneg %p110
    %p117 = scmp.eq.s32.totalorder %s9, 1
    %p118 = por %p116, %p117
    %p119 = scmp.ne.s32.totalorder %s111, %s114
    %p120 = scmp.eq.s32.totalorder %s9, 0
    %p121 = por %p119, %p120
    %p122 = scmp.ne.s32.totalorder %s111, %s114
    %p123 = scmp.eq.s32.totalorder %s14, 1
    %p124 = por %p122, %p123
    %p125 = scmp.ne.s32.totalorder %s114, %s115
    %p126 = scmp.eq.s32.totalorder %s14, 0
    %p127 = por %p125, %p126
    %p128 = scmp.ne.s32.totalorder %s114, %s115
    %p129 = scmp.eq.s32.totalorder %s15, 1
    %p130 = por %p128, %p129
    %p132 = scmp.ne.s32.totalorder %s115, %s131
    %p133 = scmp.eq.s32.totalorder %s15, 0
    %p134 = por %p132, %p133
    %p135 = scmp.le.s32.totalorder 1, %s9
    %p136 = scmp.lt.s32.totalorder %s9, 3
    %p137 = pnand %p135, %p136
    %p138 = pneg %p137
    // Predicated region
    $region9: #{yolov3_forward.83} parent=5 // pred_check
      _
    $region10: #{yolov3_forward.83} parent=5 // pred_check_branch
      %140 = sbr.rel (%p137) target = $region12
    $region11: #{yolov3_forward.83} parent=5 // pred_region
      %s141 = ssub.s32 %s9, 1
      // Predicated region
      $region13: #{yolov3_forward.83} parent=11 // pred_check
        %p142 = pneg %p73
      $region14: #{yolov3_forward.83} parent=11 // pred_check_branch
        %144 = sbr.rel (%p142) target = $region16
      $region15: #{yolov3_forward.83} parent=11 // pred_region
        %p145 = scmp.lt.s32.totalorder %s19, 0
        %s146 = scalar_select %p145, %s19, 0
        %s147 = smul.addr %s146, 4
        %s148 = scalar_lea.vmem %s1, %s147
      $region16: #{yolov3_forward.83} parent=11 // pred_fallthru
        _
      // Predicated region
      $region17: #{yolov3_forward.83} parent=11 // pred_check
        %p149 = pneg %p99
      $region18: #{yolov3_forward.83} parent=11 // pred_check_branch
        %151 = sbr.rel (%p149) target = $region20
      $region19: #{yolov3_forward.83} parent=11 // pred_region
        %p152 = scmp.lt.s32.totalorder %s19, 0
        %s153 = scalar_select %p152, %s19, 0
        %s154 = scalar_lea.vmem %s2, %s153
      $region20: #{yolov3_forward.83} parent=11 // pred_fallthru
        _
    $region12: #{yolov3_forward.83} parent=5 // pred_fallthru
      _
    %p155 = scmp.lt.s32.totalorder %s9, 2
    // Predicated region
    $region21: #{yolov3_forward.83} parent=5 // pred_check
      %p156 = pneg %p155
    $region22: #{yolov3_forward.83} parent=5 // pred_check_branch
      %158 = sbr.rel (%p156) target = $region24
    $region23: #{yolov3_forward.83} parent=5 // pred_region
      // Predicated region
      $region25: #{yolov3_forward.83} parent=23 // pred_check
        %p159 = pneg %p41
      $region26: #{yolov3_forward.83} parent=23 // pred_check_branch
        %161 = sbr.rel (%p159) target = $region28
      $region27: #{yolov3_forward.83} parent=23 // pred_region
        %s162 = smul.u32 32, %s16
        %p163 = scmp.lt.s32.totalorder %s162, 63
        %s164 = scalar_select %p163, %s162, 63
        %s165 = smul.addr %s164, 4
        %s166 = scalar_lea.vmem %s0, %s165
        %s167 = smul.u32 32, %s16
      $region28: #{yolov3_forward.83} parent=23 // pred_fallthru
        _
    $region24: #{yolov3_forward.83} parent=5 // pred_fallthru
      _
    %p168 = scmp.le.s32.totalorder 1, %s9
    %p169 = scmp.lt.s32.totalorder %s9, 3
    %p170 = pnand %p168, %p169
    %p171 = pneg %p170
    // Predicated region
    $region29: #{yolov3_forward.83} parent=5 // pred_check
      _
    $region30: #{yolov3_forward.83} parent=5 // pred_check_branch
      %173 = sbr.rel (%p170) target = $region32
    $region31: #{yolov3_forward.83} parent=5 // pred_region
      %s174 = ssub.s32 %s9, 1
      %s175 = smul.u32 32, %s18
      %p176 = scmp.lt.s32.totalorder %s175, 63
      %s177 = scalar_select %p176, %s175, 63
      %s178 = smul.addr %s177, 4
      %s179 = scalar_lea.vmem %s0, %s178
      %p180 = pneg %p47
      %p181 = pneg %p44
      %p182 = scmp.lt.s32.totalorder %s19, 0
      %s183 = scalar_select %p182, %s19, 0
      %s184 = smul.addr %s183, 4
      %s185 = scalar_lea.vmem %s1, %s184
      %p186 = pneg %p73
      %p187 = pneg %p70
      %p188 = scmp.lt.s32.totalorder %s19, 0
      %s189 = scalar_select %p188, %s19, 0
      %s190 = scalar_lea.vmem %s2, %s189
      %p191 = pneg %p99
      %p192 = pneg %p96
      %p193 = pneg %p127
      %p194 = pneg %p124
      %s195 = smul.u32 32, %s18
      %p196 = scmp.lt.s32.totalorder %s195, 63
      %s197 = scalar_select %p196, %s195, 63
      %p198 = scmp.lt.s32.totalorder %s19, 0
      %s199 = scalar_select %p198, %s19, 0
      %s200 = sadd.s32 %s199, %s197
      %s201 = smul.addr %s200, 4
      %s202 = scalar_lea.vmem %s3, %s201
      %s203 = smul.u32 32, %s18
      %p204 = scmp.lt.s32.totalorder %s203, 63
      %s205 = scalar_select %p204, %s203, 63
      %s206 = smul.addr %s205, 4
      %s207 = scalar_lea.vmem %s0, %s206
      %s208 = smul.u32 32, %s18
      %p209 = scmp.lt.s32.totalorder %s19, 0
      %s210 = scalar_select %p209, %s19, 0
      %s211 = smul.addr %s210, 4
      %s212 = scalar_lea.vmem %s1, %s211
      %p213 = scmp.lt.s32.totalorder %s19, 0
      %s214 = scalar_select %p213, %s19, 0
      %s215 = scalar_lea.vmem %s2, %s214
      %s216 = smul.u32 32, %s18
      %p217 = scmp.lt.s32.totalorder %s216, 63
      %s218 = scalar_select %p217, %s216, 63
      %p219 = scmp.lt.s32.totalorder %s19, 0
      %s220 = scalar_select %p219, %s19, 0
      %s221 = sadd.s32 %s220, %s218
      %s222 = smul.addr %s221, 4
      %s223 = scalar_lea.vmem %s3, %s222
      %s224 = smul.u32 32, %s18
      %v226 = vld [vmem:[%s207] sm:$0xf]
      %v227 = vld [vmem:[%s207 + $0x4] sm:$0xf]
      %v228 = vld [vmem:[%s207 + $0x8] sm:$0xf]
      %v229 = vld [vmem:[%s207 + $0xc] sm:$0xf]
      %v230 = vld [vmem:[%s207 + $0x10] sm:$0xf]
      %v231 = vld [vmem:[%s207 + $0x14] sm:$0xf]
      %v232 = vld [vmem:[%s207 + $0x18] sm:$0xf]
      %v233 = vld [vmem:[%s207 + $0x1c] sm:$0xf]
      %v234 = vld [vmem:[%s207 + $0x20] sm:$0xf]
      %v235 = vld [vmem:[%s207 + $0x24] sm:$0xf]
      %v236 = vld [vmem:[%s207 + $0x28] sm:$0xf]
      %v237 = vld [vmem:[%s207 + $0x2c] sm:$0xf]
      %v238 = vld [vmem:[%s207 + $0x30] sm:$0xf]
      %v239 = vld [vmem:[%s207 + $0x34] sm:$0xf]
      %v240 = vld [vmem:[%s207 + $0x38] sm:$0xf]
      %v241 = vld [vmem:[%s207 + $0x3c] sm:$0xf]
      %v242 = vld [vmem:[%s207 + $0x40] sm:$0xf]
      %v243 = vld [vmem:[%s207 + $0x44] sm:$0xf]
      %v244 = vld [vmem:[%s207 + $0x48] sm:$0xf]
      %v245 = vld [vmem:[%s207 + $0x4c] sm:$0xf]
      %v246 = vld [vmem:[%s207 + $0x50] sm:$0xf]
      %v247 = vld [vmem:[%s207 + $0x54] sm:$0xf]
      %v248 = vld [vmem:[%s207 + $0x58] sm:$0xf]
      %v249 = vld [vmem:[%s207 + $0x5c] sm:$0xf]
      %v250 = vld [vmem:[%s207 + $0x60] sm:$0xf]
      %v251 = vld [vmem:[%s207 + $0x64] sm:$0xf]
      %v252 = vld [vmem:[%s207 + $0x68] sm:$0xf]
      %v253 = vld [vmem:[%s207 + $0x6c] sm:$0xf]
      %v254 = vld [vmem:[%s207 + $0x70] sm:$0xf]
      %v255 = vld [vmem:[%s207 + $0x74] sm:$0xf]
      %v256 = vld [vmem:[%s207 + $0x78] sm:$0xf]
      %v257 = vld [vmem:[%s207 + $0x7c] sm:$0xf]
      %v258 = vld [vmem:[%s212] sm:$0xf]
      %v259 = vld [vmem:[%s212 + $0x4] sm:$0xf]
      %v260 = vld [vmem:[%s215] sm:$0x1]
      %v262 = vlaneseq
      %v263 = vshrl.u32 %v262, 7
      %v264 = vsub.s32 0, %v263
      %v265 = vrot.slane %v260, %v264
      %v299 = vunpack.c.l.b16 %v226
      %v300 = vunpack.c.l.b16 %v227
      %v301 = vunpack.c.l.b16 %v228
      %v302 = vunpack.c.l.b16 %v229
      %v303 = vunpack.c.l.b16 %v230
      %v304 = vunpack.c.l.b16 %v231
      %v305 = vunpack.c.l.b16 %v232
      %v306 = vunpack.c.l.b16 %v233
      %v307 = vunpack.c.l.b16 %v234
      %v308 = vunpack.c.l.b16 %v235
      %v309 = vunpack.c.l.b16 %v236
      %v310 = vunpack.c.l.b16 %v237
      %v311 = vunpack.c.l.b16 %v238
      %v312 = vunpack.c.l.b16 %v239
      %v313 = vunpack.c.l.b16 %v240
      %v314 = vunpack.c.l.b16 %v241
      %v315 = vunpack.c.l.b16 %v242
      %v316 = vunpack.c.l.b16 %v243
      %v317 = vunpack.c.l.b16 %v244
      %v318 = vunpack.c.l.b16 %v245
      %v319 = vunpack.c.l.b16 %v246
      %v320 = vunpack.c.l.b16 %v247
      %v321 = vunpack.c.l.b16 %v248
      %v322 = vunpack.c.l.b16 %v249
      %v323 = vunpack.c.l.b16 %v250
      %v324 = vunpack.c.l.b16 %v251
      %v325 = vunpack.c.l.b16 %v252
      %v326 = vunpack.c.l.b16 %v253
      %v327 = vunpack.c.l.b16 %v254
      %v328 = vunpack.c.l.b16 %v255
      %v329 = vunpack.c.l.b16 %v256
      %v330 = vunpack.c.l.b16 %v257
      %v331 = vpack.c.b16 %v300, %v299
      %v332 = vpack.c.b16 %v302, %v301
      %v333 = vpack.c.b16 %v304, %v303
      %v334 = vpack.c.b16 %v306, %v305
      %v335 = vpack.c.b16 %v308, %v307
      %v336 = vpack.c.b16 %v310, %v309
      %v337 = vpack.c.b16 %v312, %v311
      %v338 = vpack.c.b16 %v314, %v313
      %v339 = vpack.c.b16 %v316, %v315
      %v340 = vpack.c.b16 %v318, %v317
      %v341 = vpack.c.b16 %v320, %v319
      %v342 = vpack.c.b16 %v322, %v321
      %v343 = vpack.c.b16 %v324, %v323
      %v344 = vpack.c.b16 %v326, %v325
      %v345 = vpack.c.b16 %v328, %v327
      %v346 = vpack.c.b16 %v330, %v329
      %v349 = vunpack.c.l.b16 %v258
      %v350 = vunpack.c.l.b16 %v259
      %v351 = vpack.c.b16 %v350, %v349
      %vm353 = vcmask 130048
      %v355 = vsel %vm353, %v331, 0
      %v358 = vsel %vm353, %v332, 0
      %v361 = vsel %vm353, %v333, 0
      %v364 = vsel %vm353, %v334, 0
      %v367 = vsel %vm353, %v335, 0
      %v370 = vsel %vm353, %v336, 0
      %v373 = vsel %vm353, %v337, 0
      %v376 = vsel %vm353, %v338, 0
      %v379 = vsel %vm353, %v339, 0
      %v382 = vsel %vm353, %v340, 0
      %v385 = vsel %vm353, %v341, 0
      %v388 = vsel %vm353, %v342, 0
      %v391 = vsel %vm353, %v343, 0
      %v394 = vsel %vm353, %v344, 0
      %v397 = vsel %vm353, %v345, 0
      %v400 = vsel %vm353, %v346, 0
      %402 = vmatprep.subr.bf16.mxu0 0
      %403 = vmatpush1.bf16.msra.mxu0 0
      %404 = vmatprep.subr.bf16.mxu0 0
      %405 = vmatpush1.bf16.msra.mxu0 0
      %406 = vmatprep.subr.bf16.mxu0 0
      %407 = vmatpush1.bf16.msra.mxu0 0
      %408 = vmatprep.subr.bf16.mxu0 0
      %409 = vmatpush1.bf16.msra.mxu0 0
      %410 = vmatprep.subr.bf16.mxu0 0
      %411 = vmatpush1.bf16.msra.mxu0 0
      %412 = vmatprep.subr.bf16.mxu0 0
      %413 = vmatpush1.bf16.msra.mxu0 0
      %414 = vmatprep.subr.bf16.mxu0 0
      %415 = vmatpush1.bf16.msra.mxu0 0
      %416 = vmatprep.subr.bf16.mxu0 0
      %417 = vmatpush1.bf16.msra.mxu0 %v351
      %418 = vmatprep.subr.bf16.mxu0 0
      %419 = vmatpush2.bf16.msra.mxu0 0
      %420 = vmatprep.subr.bf16.mxu0 0
      %421 = vmatpush2.bf16.msra.mxu0 0
      %422 = vmatprep.subr.bf16.mxu0 0
      %423 = vmatpush2.bf16.msra.mxu0 0
      %424 = vmatprep.subr.bf16.mxu0 0
      %425 = vmatpush2.bf16.msra.mxu0 0
      %426 = vmatprep.subr.bf16.mxu0 0
      %427 = vmatpush2.bf16.msra.mxu0 0
      %428 = vmatprep.subr.bf16.mxu0 0
      %429 = vmatpush2.bf16.msra.mxu0 0
      %430 = vmatprep.subr.bf16.mxu0 0
      %431 = vmatpush2.bf16.msra.mxu0 0
      %432 = vmatprep.subr.bf16.mxu0 0
      %433 = vmatpush2.bf16.msra.mxu0 0
      %434 = vmatprep.mubr.bf16.mxu0 0
      %435 = vmatmul.mubr.bf16.gmra.mxu0 %v355
      %v436 = vpop.f32.mrf.mxu0
      %v437 = vadd.f32 %v265, %v436
      %v438 = vpop.f32.mrf.mxu0
      %v439 = vpop.f32.mrf.mxu0
      %v440 = vadd.f32 %v265, %v439
      %v441 = vpop.f32.mrf.mxu0
      %442 = vmatprep.mubr.bf16.mxu0 0
      %443 = vmatmul.mubr.bf16.gmra.mxu0 %v358
      %v444 = vpop.f32.mrf.mxu0
      %v445 = vadd.f32 %v265, %v444
      %v446 = vpop.f32.mrf.mxu0
      %v447 = vpop.f32.mrf.mxu0
      %v448 = vadd.f32 %v265, %v447
      %v449 = vpop.f32.mrf.mxu0
      %450 = vmatprep.mubr.bf16.mxu0 0
      %451 = vmatmul.mubr.bf16.gmra.mxu0 %v361
      %v452 = vpop.f32.mrf.mxu0
      %v453 = vadd.f32 %v265, %v452
      %v454 = vpop.f32.mrf.mxu0
      %v455 = vpop.f32.mrf.mxu0
      %v456 = vadd.f32 %v265, %v455
      %v457 = vpop.f32.mrf.mxu0
      %458 = vmatprep.mubr.bf16.mxu0 0
      %459 = vmatmul.mubr.bf16.gmra.mxu0 %v364
      %v460 = vpop.f32.mrf.mxu0
      %v461 = vadd.f32 %v265, %v460
      %v462 = vpop.f32.mrf.mxu0
      %v463 = vpop.f32.mrf.mxu0
      %v464 = vadd.f32 %v265, %v463
      %v465 = vpop.f32.mrf.mxu0
      %466 = vmatprep.mubr.bf16.mxu0 0
      %467 = vmatmul.mubr.bf16.gmra.mxu0 %v367
      %v468 = vpop.f32.mrf.mxu0
      %v469 = vadd.f32 %v265, %v468
      %v470 = vpop.f32.mrf.mxu0
      %v471 = vpop.f32.mrf.mxu0
      %v472 = vadd.f32 %v265, %v471
      %v473 = vpop.f32.mrf.mxu0
      %474 = vmatprep.mubr.bf16.mxu0 0
      %475 = vmatmul.mubr.bf16.gmra.mxu0 %v370
      %v476 = vpop.f32.mrf.mxu0
      %v477 = vadd.f32 %v265, %v476
      %v478 = vpop.f32.mrf.mxu0
      %v479 = vpop.f32.mrf.mxu0
      %v480 = vadd.f32 %v265, %v479
      %v481 = vpop.f32.mrf.mxu0
      %482 = vmatprep.mubr.bf16.mxu0 0
      %483 = vmatmul.mubr.bf16.gmra.mxu0 %v373
      %v484 = vpop.f32.mrf.mxu0
      %v485 = vadd.f32 %v265, %v484
      %v486 = vpop.f32.mrf.mxu0
      %v487 = vpop.f32.mrf.mxu0
      %v488 = vadd.f32 %v265, %v487
      %v489 = vpop.f32.mrf.mxu0
      %490 = vmatprep.mubr.bf16.mxu0 0
      %491 = vmatmul.mubr.bf16.gmra.mxu0 %v376
      %v492 = vpop.f32.mrf.mxu0
      %v493 = vadd.f32 %v265, %v492
      %v494 = vpop.f32.mrf.mxu0
      %v495 = vpop.f32.mrf.mxu0
      %v496 = vadd.f32 %v265, %v495
      %v497 = vpop.f32.mrf.mxu0
      %498 = vmatprep.mubr.bf16.mxu0 0
      %499 = vmatmul.mubr.bf16.gmra.mxu0 %v379
      %v500 = vpop.f32.mrf.mxu0
      %v501 = vadd.f32 %v265, %v500
      %v502 = vpop.f32.mrf.mxu0
      %v503 = vpop.f32.mrf.mxu0
      %v504 = vadd.f32 %v265, %v503
      %v505 = vpop.f32.mrf.mxu0
      %506 = vmatprep.mubr.bf16.mxu0 0
      %507 = vmatmul.mubr.bf16.gmra.mxu0 %v382
      %v508 = vpop.f32.mrf.mxu0
      %v509 = vadd.f32 %v265, %v508
      %v510 = vpop.f32.mrf.mxu0
      %v511 = vpop.f32.mrf.mxu0
      %v512 = vadd.f32 %v265, %v511
      %v513 = vpop.f32.mrf.mxu0
      %514 = vmatprep.mubr.bf16.mxu0 0
      %515 = vmatmul.mubr.bf16.gmra.mxu0 %v385
      %v516 = vpop.f32.mrf.mxu0
      %v517 = vadd.f32 %v265, %v516
      %v518 = vpop.f32.mrf.mxu0
      %v519 = vpop.f32.mrf.mxu0
      %v520 = vadd.f32 %v265, %v519
      %v521 = vpop.f32.mrf.mxu0
      %522 = vmatprep.mubr.bf16.mxu0 0
      %523 = vmatmul.mubr.bf16.gmra.mxu0 %v388
      %v524 = vpop.f32.mrf.mxu0
      %v525 = vadd.f32 %v265, %v524
      %v526 = vpop.f32.mrf.mxu0
      %v527 = vpop.f32.mrf.mxu0
      %v528 = vadd.f32 %v265, %v527
      %v529 = vpop.f32.mrf.mxu0
      %530 = vmatprep.mubr.bf16.mxu0 0
      %531 = vmatmul.mubr.bf16.gmra.mxu0 %v391
      %v532 = vpop.f32.mrf.mxu0
      %v533 = vadd.f32 %v265, %v532
      %v534 = vpop.f32.mrf.mxu0
      %v535 = vpop.f32.mrf.mxu0
      %v536 = vadd.f32 %v265, %v535
      %v537 = vpop.f32.mrf.mxu0
      %538 = vmatprep.mubr.bf16.mxu0 0
      %539 = vmatmul.mubr.bf16.gmra.mxu0 %v394
      %v540 = vpop.f32.mrf.mxu0
      %v541 = vadd.f32 %v265, %v540
      %v542 = vpop.f32.mrf.mxu0
      %v543 = vpop.f32.mrf.mxu0
      %v544 = vadd.f32 %v265, %v543
      %v545 = vpop.f32.mrf.mxu0
      %546 = vmatprep.mubr.bf16.mxu0 0
      %547 = vmatmul.mubr.bf16.gmra.mxu0 %v397
      %v548 = vpop.f32.mrf.mxu0
      %v549 = vadd.f32 %v265, %v548
      %v550 = vpop.f32.mrf.mxu0
      %v551 = vpop.f32.mrf.mxu0
      %v552 = vadd.f32 %v265, %v551
      %v553 = vpop.f32.mrf.mxu0
      %554 = vmatprep.mubr.bf16.mxu0 0
      %555 = vmatmul.mubr.bf16.gmra.mxu0 %v400
      %v556 = vpop.f32.mrf.mxu0
      %v557 = vadd.f32 %v265, %v556
      %v558 = vpop.f32.mrf.mxu0
      %v559 = vpop.f32.mrf.mxu0
      %v560 = vadd.f32 %v265, %v559
      %v561 = vpop.f32.mrf.mxu0
      %562 = vdwg.mxu0
      %vm563 = vcmp.gt.f32.partialorder %v437, 0.0
      %vm564 = vcmp.gt.f32.partialorder %v440, 0.0
      %vm565 = vcmp.gt.f32.partialorder %v445, 0.0
      %vm566 = vcmp.gt.f32.partialorder %v448, 0.0
      %vm567 = vcmp.gt.f32.partialorder %v453, 0.0
      %vm568 = vcmp.gt.f32.partialorder %v456, 0.0
      %vm569 = vcmp.gt.f32.partialorder %v461, 0.0
      %vm570 = vcmp.gt.f32.partialorder %v464, 0.0
      %vm571 = vcmp.gt.f32.partialorder %v469, 0.0
      %vm572 = vcmp.gt.f32.partialorder %v472, 0.0
      %vm573 = vcmp.gt.f32.partialorder %v477, 0.0
      %vm574 = vcmp.gt.f32.partialorder %v480, 0.0
      %vm575 = vcmp.gt.f32.partialorder %v485, 0.0
      %vm576 = vcmp.gt.f32.partialorder %v488, 0.0
      %vm577 = vcmp.gt.f32.partialorder %v493, 0.0
      %vm578 = vcmp.gt.f32.partialorder %v496, 0.0
      %vm579 = vcmp.gt.f32.partialorder %v501, 0.0
      %vm580 = vcmp.gt.f32.partialorder %v504, 0.0
      %vm581 = vcmp.gt.f32.partialorder %v509, 0.0
      %vm582 = vcmp.gt.f32.partialorder %v512, 0.0
      %vm583 = vcmp.gt.f32.partialorder %v517, 0.0
      %vm584 = vcmp.gt.f32.partialorder %v520, 0.0
      %vm585 = vcmp.gt.f32.partialorder %v525, 0.0
      %vm586 = vcmp.gt.f32.partialorder %v528, 0.0
      %vm587 = vcmp.gt.f32.partialorder %v533, 0.0
      %vm588 = vcmp.gt.f32.partialorder %v536, 0.0
      %vm589 = vcmp.gt.f32.partialorder %v541, 0.0
      %vm590 = vcmp.gt.f32.partialorder %v544, 0.0
      %vm591 = vcmp.gt.f32.partialorder %v549, 0.0
      %vm592 = vcmp.gt.f32.partialorder %v552, 0.0
      %vm593 = vcmp.gt.f32.partialorder %v557, 0.0
      %vm594 = vcmp.gt.f32.partialorder %v560, 0.0
      %v595 = vmul.f32 %v437, 0.1
      %v596 = vmul.f32 %v440, 0.1
      %v597 = vmul.f32 %v445, 0.1
      %v598 = vmul.f32 %v448, 0.1
      %v599 = vmul.f32 %v453, 0.1
      %v600 = vmul.f32 %v456, 0.1
      %v601 = vmul.f32 %v461, 0.1
      %v602 = vmul.f32 %v464, 0.1
      %v603 = vmul.f32 %v469, 0.1
      %v604 = vmul.f32 %v472, 0.1
      %v605 = vmul.f32 %v477, 0.1
      %v606 = vmul.f32 %v480, 0.1
      %v607 = vmul.f32 %v485, 0.1
      %v608 = vmul.f32 %v488, 0.1
      %v609 = vmul.f32 %v493, 0.1
      %v610 = vmul.f32 %v496, 0.1
      %v611 = vmul.f32 %v501, 0.1
      %v612 = vmul.f32 %v504, 0.1
      %v613 = vmul.f32 %v509, 0.1
      %v614 = vmul.f32 %v512, 0.1
      %v615 = vmul.f32 %v517, 0.1
      %v616 = vmul.f32 %v520, 0.1
      %v617 = vmul.f32 %v525, 0.1
      %v618 = vmul.f32 %v528, 0.1
      %v619 = vmul.f32 %v533, 0.1
      %v620 = vmul.f32 %v536, 0.1
      %v621 = vmul.f32 %v541, 0.1
      %v622 = vmul.f32 %v544, 0.1
      %v623 = vmul.f32 %v549, 0.1
      %v624 = vmul.f32 %v552, 0.1
      %v625 = vmul.f32 %v557, 0.1
      %v626 = vmul.f32 %v560, 0.1
      %v627 = vsel %vm563, %v437, %v595
      %v628 = vsel %vm564, %v440, %v596
      %v629 = vsel %vm565, %v445, %v597
      %v630 = vsel %vm566, %v448, %v598
      %v631 = vsel %vm567, %v453, %v599
      %v632 = vsel %vm568, %v456, %v600
      %v633 = vsel %vm569, %v461, %v601
      %v634 = vsel %vm570, %v464, %v602
      %v635 = vsel %vm571, %v469, %v603
      %v636 = vsel %vm572, %v472, %v604
      %v637 = vsel %vm573, %v477, %v605
      %v638 = vsel %vm574, %v480, %v606
      %v639 = vsel %vm575, %v485, %v607
      %v640 = vsel %vm576, %v488, %v608
      %v641 = vsel %vm577, %v493, %v609
      %v642 = vsel %vm578, %v496, %v610
      %v643 = vsel %vm579, %v501, %v611
      %v644 = vsel %vm580, %v504, %v612
      %v645 = vsel %vm581, %v509, %v613
      %v646 = vsel %vm582, %v512, %v614
      %v647 = vsel %vm583, %v517, %v615
      %v648 = vsel %vm584, %v520, %v616
      %v649 = vsel %vm585, %v525, %v617
      %v650 = vsel %vm586, %v528, %v618
      %v651 = vsel %vm587, %v533, %v619
      %v652 = vsel %vm588, %v536, %v620
      %v653 = vsel %vm589, %v541, %v621
      %v654 = vsel %vm590, %v544, %v622
      %v655 = vsel %vm591, %v549, %v623
      %v656 = vsel %vm592, %v552, %v624
      %v657 = vsel %vm593, %v557, %v625
      %v658 = vsel %vm594, %v560, %v626
      %v659 = vpack.c.bf16 %v628, %v627
      %v660 = vpack.c.bf16 %v630, %v629
      %v661 = vpack.c.bf16 %v632, %v631
      %v662 = vpack.c.bf16 %v634, %v633
      %v663 = vpack.c.bf16 %v636, %v635
      %v664 = vpack.c.bf16 %v638, %v637
      %v665 = vpack.c.bf16 %v640, %v639
      %v666 = vpack.c.bf16 %v642, %v641
      %v667 = vpack.c.bf16 %v644, %v643
      %v668 = vpack.c.bf16 %v646, %v645
      %v669 = vpack.c.bf16 %v648, %v647
      %v670 = vpack.c.bf16 %v650, %v649
      %v671 = vpack.c.bf16 %v652, %v651
      %v672 = vpack.c.bf16 %v654, %v653
      %v673 = vpack.c.bf16 %v656, %v655
      %v674 = vpack.c.bf16 %v658, %v657
      %v691 = vunpack.c.l.b16 %v659
      %v692 = vunpack.c.h.b16 %v659
      %v693 = vunpack.c.l.b16 %v660
      %v694 = vunpack.c.h.b16 %v660
      %v695 = vunpack.c.l.b16 %v661
      %v696 = vunpack.c.h.b16 %v661
      %v697 = vunpack.c.l.b16 %v662
      %v698 = vunpack.c.h.b16 %v662
      %v699 = vunpack.c.l.b16 %v663
      %v700 = vunpack.c.h.b16 %v663
      %v701 = vunpack.c.l.b16 %v664
      %v702 = vunpack.c.h.b16 %v664
      %v703 = vunpack.c.l.b16 %v665
      %v704 = vunpack.c.h.b16 %v665
      %v705 = vunpack.c.l.b16 %v666
      %v706 = vunpack.c.h.b16 %v666
      %v707 = vunpack.c.l.b16 %v667
      %v708 = vunpack.c.h.b16 %v667
      %v709 = vunpack.c.l.b16 %v668
      %v710 = vunpack.c.h.b16 %v668
      %v711 = vunpack.c.l.b16 %v669
      %v712 = vunpack.c.h.b16 %v669
      %v713 = vunpack.c.l.b16 %v670
      %v714 = vunpack.c.h.b16 %v670
      %v715 = vunpack.c.l.b16 %v671
      %v716 = vunpack.c.h.b16 %v671
      %v717 = vunpack.c.l.b16 %v672
      %v718 = vunpack.c.h.b16 %v672
      %v719 = vunpack.c.l.b16 %v673
      %v720 = vunpack.c.h.b16 %v673
      %v721 = vunpack.c.l.b16 %v674
      %v722 = vunpack.c.h.b16 %v674
      %v723 = vpack.c.b16 %v691, %v691
      %v724 = vpack.c.b16 %v692, %v692
      %v725 = vpack.c.b16 %v693, %v693
      %v726 = vpack.c.b16 %v694, %v694
      %v727 = vpack.c.b16 %v695, %v695
      %v728 = vpack.c.b16 %v696, %v696
      %v729 = vpack.c.b16 %v697, %v697
      %v730 = vpack.c.b16 %v698, %v698
      %v731 = vpack.c.b16 %v699, %v699
      %v732 = vpack.c.b16 %v700, %v700
      %v733 = vpack.c.b16 %v701, %v701
      %v734 = vpack.c.b16 %v702, %v702
      %v735 = vpack.c.b16 %v703, %v703
      %v736 = vpack.c.b16 %v704, %v704
      %v737 = vpack.c.b16 %v705, %v705
      %v738 = vpack.c.b16 %v706, %v706
      %v739 = vpack.c.b16 %v707, %v707
      %v740 = vpack.c.b16 %v708, %v708
      %v741 = vpack.c.b16 %v709, %v709
      %v742 = vpack.c.b16 %v710, %v710
      %v743 = vpack.c.b16 %v711, %v711
      %v744 = vpack.c.b16 %v712, %v712
      %v745 = vpack.c.b16 %v713, %v713
      %v746 = vpack.c.b16 %v714, %v714
      %v747 = vpack.c.b16 %v715, %v715
      %v748 = vpack.c.b16 %v716, %v716
      %v749 = vpack.c.b16 %v717, %v717
      %v750 = vpack.c.b16 %v718, %v718
      %v751 = vpack.c.b16 %v719, %v719
      %v752 = vpack.c.b16 %v720, %v720
      %v753 = vpack.c.b16 %v721, %v721
      %v754 = vpack.c.b16 %v722, %v722
      %787 = vst [vmem:[%s223] sm:$0xf] %v723
      %788 = vst [vmem:[%s223 + $0x4] sm:$0xf] %v724
      %789 = vst [vmem:[%s223 + $0x8] sm:$0xf] %v725
      %790 = vst [vmem:[%s223 + $0xc] sm:$0xf] %v726
      %791 = vst [vmem:[%s223 + $0x10] sm:$0xf] %v727
      %792 = vst [vmem:[%s223 + $0x14] sm:$0xf] %v728
      %793 = vst [vmem:[%s223 + $0x18] sm:$0xf] %v729
      %794 = vst [vmem:[%s223 + $0x1c] sm:$0xf] %v730
      %795 = vst [vmem:[%s223 + $0x20] sm:$0xf] %v731
      %796 = vst [vmem:[%s223 + $0x24] sm:$0xf] %v732
      %797 = vst [vmem:[%s223 + $0x28] sm:$0xf] %v733
      %798 = vst [vmem:[%s223 + $0x2c] sm:$0xf] %v734
      %799 = vst [vmem:[%s223 + $0x30] sm:$0xf] %v735
      %800 = vst [vmem:[%s223 + $0x34] sm:$0xf] %v736
      %801 = vst [vmem:[%s223 + $0x38] sm:$0xf] %v737
      %802 = vst [vmem:[%s223 + $0x3c] sm:$0xf] %v738
      %803 = vst [vmem:[%s223 + $0x40] sm:$0xf] %v739
      %804 = vst [vmem:[%s223 + $0x44] sm:$0xf] %v740
      %805 = vst [vmem:[%s223 + $0x48] sm:$0xf] %v741
      %806 = vst [vmem:[%s223 + $0x4c] sm:$0xf] %v742
      %807 = vst [vmem:[%s223 + $0x50] sm:$0xf] %v743
      %808 = vst [vmem:[%s223 + $0x54] sm:$0xf] %v744
      %809 = vst [vmem:[%s223 + $0x58] sm:$0xf] %v745
      %810 = vst [vmem:[%s223 + $0x5c] sm:$0xf] %v746
      %811 = vst [vmem:[%s223 + $0x60] sm:$0xf] %v747
      %812 = vst [vmem:[%s223 + $0x64] sm:$0xf] %v748
      %813 = vst [vmem:[%s223 + $0x68] sm:$0xf] %v749
      %814 = vst [vmem:[%s223 + $0x6c] sm:$0xf] %v750
      %815 = vst [vmem:[%s223 + $0x70] sm:$0xf] %v751
      %816 = vst [vmem:[%s223 + $0x74] sm:$0xf] %v752
      %817 = vst [vmem:[%s223 + $0x78] sm:$0xf] %v753
      %818 = vst [vmem:[%s223 + $0x7c] sm:$0xf] %v754
      %s819 = smul.u32 32, %s18
      %p820 = scmp.lt.s32.totalorder %s819, 63
      %s821 = scalar_select %p820, %s819, 63
      %p822 = scmp.lt.s32.totalorder %s19, 0
      %s823 = scalar_select %p822, %s19, 0
      %s824 = sadd.s32 %s823, %s821
      %s825 = smul.addr %s824, 4
      %s826 = scalar_lea.vmem %s3, %s825
      // Predicated region
      $region33: #{yolov3_forward.83} parent=31 // pred_check
        %p827 = pneg %p124
      $region34: #{yolov3_forward.83} parent=31 // pred_check_branch
        %829 = sbr.rel (%p827) target = $region36
      $region35: #{yolov3_forward.83} parent=31 // pred_region
        %s830 = smul.u32 32, %s18
      $region36: #{yolov3_forward.83} parent=31 // pred_fallthru
        _
    $region32: #{yolov3_forward.83} parent=5 // pred_fallthru
      _
    %p831 = scmp.le.s32.totalorder 2, %s9
    // Predicated region
    $region37: #{yolov3_forward.83} parent=5 // pred_check
      %p832 = pneg %p831
    $region38: #{yolov3_forward.83} parent=5 // pred_check_branch
      %834 = sbr.rel (%p832) target = $region40
    $region39: #{yolov3_forward.83} parent=5 // pred_region
      %s835 = ssub.s32 %s9, 2
      // Predicated region
      $region41: #{yolov3_forward.83} parent=39 // pred_check
        %p836 = pneg %p130
      $region42: #{yolov3_forward.83} parent=39 // pred_check_branch
        %838 = sbr.rel (%p836) target = $region44
      $region43: #{yolov3_forward.83} parent=39 // pred_region
        %s839 = smul.u32 32, %s20
        %p840 = scmp.lt.s32.totalorder %s839, 63
        %s841 = scalar_select %p840, %s839, 63
        %p842 = scmp.lt.s32.totalorder %s21, 0
        %s843 = scalar_select %p842, %s21, 0
        %s844 = sadd.s32 %s843, %s841
        %s845 = smul.addr %s844, 4
        %s846 = scalar_lea.vmem %s3, %s845
      $region44: #{yolov3_forward.83} parent=39 // pred_fallthru
        _
    $region40: #{yolov3_forward.83} parent=5 // pred_fallthru
      _
  $region6: #{yolov3_forward.83} parent=0 // loop_footer
    %s13 = sadd.s32 1, %s9
  $region7: #{yolov3_forward.83} parent=0 // loop_footer_branch
    %8 = sbr.rel target = $region3
  $region8: #{yolov3_forward.83} parent=0 // loop_exit
    _

// kernel: yolov3_forward.88
$region0: #{yolov3_forward.88}
  #allocation0 [shape = 'u32[]', space=smem, size = 0x4, offset = 0x4, fixed_abs, tag = 'smem constant byte address 0x4 - core index']
  #allocation1 [shape = 'u32[144,128]{1,0:T(1,128)}', space=vmem, size = 0x12000, scoped, tag = 'internal scratch']
  %s0 = inlined_call_operand.vmem [shape: bf16[128,32], index: 0, kind: input, shape index: {}]
  %s1 = inlined_call_operand.vmem [shape: bf16[32,128], index: 1, kind: input, shape index: {}]
  %s2 = inlined_call_operand.vmem [shape: f32[1,128], index: 2, kind: input, shape index: {}]
  %s3 = inlined_call_operand.vmem [shape: bf16[128,128], index: 3, kind: output, shape index: {}]
  %s4 = sld [smem:[#allocation0]]
  $region22: #{yolov3_forward.88} parent=0
    _
  %s6 = ssub.s32 1, %s4
  %s7 = scalar_select 0, %s6, %s4
  // Predicated region
  $region2: #{yolov3_forward.88} parent=0 // pred_check
    _
  $region3: #{yolov3_forward.88} parent=0 // pred_check_branch
    %9 = sbr.rel (0) target = $region5
  $region4: #{yolov3_forward.88} parent=0 // pred_region
    _
  $region5: #{yolov3_forward.88} parent=0 // pred_fallthru
    _
  // Predicated region
  $region6: #{yolov3_forward.88} parent=0 // pred_check
    _
  $region7: #{yolov3_forward.88} parent=0 // pred_check_branch
    %11 = sbr.rel (0) target = $region9
  $region8: #{yolov3_forward.88} parent=0 // pred_region
    _
  $region9: #{yolov3_forward.88} parent=0 // pred_fallthru
    _
  // Predicated region
  $region10: #{yolov3_forward.88} parent=0 // pred_check
    _
  $region11: #{yolov3_forward.88} parent=0 // pred_check_branch
    %13 = sbr.rel (0) target = $region13
  $region12: #{yolov3_forward.88} parent=0 // pred_region
    _
  $region13: #{yolov3_forward.88} parent=0 // pred_fallthru
    _
  %v15 = vld [vmem:[%s0] sm:$0xf]
  %v16 = vld [vmem:[%s0 + $0x4] sm:$0xf]
  %v17 = vld [vmem:[%s0 + $0x8] sm:$0xf]
  %v18 = vld [vmem:[%s0 + $0xc] sm:$0xf]
  %v19 = vld [vmem:[%s0 + $0x10] sm:$0xf]
  %v20 = vld [vmem:[%s0 + $0x14] sm:$0xf]
  %v21 = vld [vmem:[%s0 + $0x18] sm:$0xf]
  %v22 = vld [vmem:[%s0 + $0x1c] sm:$0xf]
  %v23 = vld [vmem:[%s0 + $0x20] sm:$0xf]
  %v24 = vld [vmem:[%s0 + $0x24] sm:$0xf]
  %v25 = vld [vmem:[%s0 + $0x28] sm:$0xf]
  %v26 = vld [vmem:[%s0 + $0x2c] sm:$0xf]
  %v27 = vld [vmem:[%s0 + $0x30] sm:$0xf]
  %v28 = vld [vmem:[%s0 + $0x34] sm:$0xf]
  %v29 = vld [vmem:[%s0 + $0x38] sm:$0xf]
  %v30 = vld [vmem:[%s0 + $0x3c] sm:$0xf]
  %v31 = vld [vmem:[%s1] sm:$0xf]
  %v32 = vld [vmem:[%s1 + $0x4] sm:$0xf]
  %v33 = vld [vmem:[%s1 + $0x8] sm:$0xf]
  %v34 = vld [vmem:[%s1 + $0xc] sm:$0xf]
  %v35 = vld [vmem:[%s2] sm:$0x1]
  %v37 = vlaneseq
  %v38 = vshrl.u32 %v37, 7
  %v39 = vsub.s32 0, %v38
  %v40 = vrot.slane %v35, %v39
  %v58 = vunpack.c.l.b16 %v15
  %v59 = vunpack.c.l.b16 %v16
  %v60 = vunpack.c.l.b16 %v17
  %v61 = vunpack.c.l.b16 %v18
  %v62 = vunpack.c.l.b16 %v19
  %v63 = vunpack.c.l.b16 %v20
  %v64 = vunpack.c.l.b16 %v21
  %v65 = vunpack.c.l.b16 %v22
  %v66 = vunpack.c.l.b16 %v23
  %v67 = vunpack.c.l.b16 %v24
  %v68 = vunpack.c.l.b16 %v25
  %v69 = vunpack.c.l.b16 %v26
  %v70 = vunpack.c.l.b16 %v27
  %v71 = vunpack.c.l.b16 %v28
  %v72 = vunpack.c.l.b16 %v29
  %v73 = vunpack.c.l.b16 %v30
  %v74 = vpack.c.b16 %v59, %v58
  %v75 = vpack.c.b16 %v61, %v60
  %v76 = vpack.c.b16 %v63, %v62
  %v77 = vpack.c.b16 %v65, %v64
  %v78 = vpack.c.b16 %v67, %v66
  %v79 = vpack.c.b16 %v69, %v68
  %v80 = vpack.c.b16 %v71, %v70
  %v81 = vpack.c.b16 %v73, %v72
  %v86 = vunpack.c.l.b16 %v31
  %v87 = vunpack.c.l.b16 %v32
  %v88 = vunpack.c.l.b16 %v33
  %v89 = vunpack.c.l.b16 %v34
  %v90 = vpack.c.b16 %v87, %v86
  %v91 = vpack.c.b16 %v89, %v88
  %vm94 = vcmask 261120
  %v96 = vsel %vm94, %v74, 0
  %v99 = vsel %vm94, %v75, 0
  %v102 = vsel %vm94, %v76, 0
  %v105 = vsel %vm94, %v77, 0
  %v108 = vsel %vm94, %v78, 0
  %v111 = vsel %vm94, %v79, 0
  %v114 = vsel %vm94, %v80, 0
  %v117 = vsel %vm94, %v81, 0
  %119 = vmatprep.subr.bf16.mxu0 0
  %120 = vmatpush1.bf16.msra.mxu0 0
  %121 = vmatprep.subr.bf16.mxu0 0
  %122 = vmatpush1.bf16.msra.mxu0 0
  %123 = vmatprep.subr.bf16.mxu0 0
  %124 = vmatpush1.bf16.msra.mxu0 0
  %125 = vmatprep.subr.bf16.mxu0 0
  %126 = vmatpush1.bf16.msra.mxu0 0
  %127 = vmatprep.subr.bf16.mxu0 0
  %128 = vmatpush1.bf16.msra.mxu0 0
  %129 = vmatprep.subr.bf16.mxu0 0
  %130 = vmatpush1.bf16.msra.mxu0 0
  %131 = vmatprep.subr.bf16.mxu0 0
  %132 = vmatpush1.bf16.msra.mxu0 %v91
  %133 = vmatprep.subr.bf16.mxu0 0
  %134 = vmatpush1.bf16.msra.mxu0 %v90
  %135 = vmatprep.subr.bf16.mxu0 0
  %136 = vmatpush2.bf16.msra.mxu0 0
  %137 = vmatprep.subr.bf16.mxu0 0
  %138 = vmatpush2.bf16.msra.mxu0 0
  %139 = vmatprep.subr.bf16.mxu0 0
  %140 = vmatpush2.bf16.msra.mxu0 0
  %141 = vmatprep.subr.bf16.mxu0 0
  %142 = vmatpush2.bf16.msra.mxu0 0
  %143 = vmatprep.subr.bf16.mxu0 0
  %144 = vmatpush2.bf16.msra.mxu0 0
  %145 = vmatprep.subr.bf16.mxu0 0
  %146 = vmatpush2.bf16.msra.mxu0 0
  %147 = vmatprep.subr.bf16.mxu0 0
  %148 = vmatpush2.bf16.msra.mxu0 0
  %149 = vmatprep.subr.bf16.mxu0 0
  %150 = vmatpush2.bf16.msra.mxu0 0
  %151 = vmatprep.mubr.bf16.mxu0 0
  %152 = vmatmul.mubr.bf16.gmra.mxu0 %v96
  %v153 = vpop.f32.mrf.mxu0
  %v154 = vadd.f32 %v40, %v153
  %v155 = vpop.f32.mrf.mxu0
  %v156 = vpop.f32.mrf.mxu0
  %v157 = vadd.f32 %v40, %v156
  %v158 = vpop.f32.mrf.mxu0
  %159 = vmatprep.mubr.bf16.mxu0 0
  %160 = vmatmul.mubr.bf16.gmra.mxu0 %v99
  %v161 = vpop.f32.mrf.mxu0
  %v162 = vadd.f32 %v40, %v161
  %v163 = vpop.f32.mrf.mxu0
  %v164 = vpop.f32.mrf.mxu0
  %v165 = vadd.f32 %v40, %v164
  %v166 = vpop.f32.mrf.mxu0
  %167 = vmatprep.mubr.bf16.mxu0 0
  %168 = vmatmul.mubr.bf16.gmra.mxu0 %v102
  %v169 = vpop.f32.mrf.mxu0
  %v170 = vadd.f32 %v40, %v169
  %v171 = vpop.f32.mrf.mxu0
  %v172 = vpop.f32.mrf.mxu0
  %v173 = vadd.f32 %v40, %v172
  %v174 = vpop.f32.mrf.mxu0
  %175 = vmatprep.mubr.bf16.mxu0 0
  %176 = vmatmul.mubr.bf16.gmra.mxu0 %v105
  %v177 = vpop.f32.mrf.mxu0
  %v178 = vadd.f32 %v40, %v177
  %v179 = vpop.f32.mrf.mxu0
  %v180 = vpop.f32.mrf.mxu0
  %v181 = vadd.f32 %v40, %v180
  %v182 = vpop.f32.mrf.mxu0
  %183 = vmatprep.mubr.bf16.mxu0 0
  %184 = vmatmul.mubr.bf16.gmra.mxu0 %v108
  %v185 = vpop.f32.mrf.mxu0
  %v186 = vadd.f32 %v40, %v185
  %v187 = vpop.f32.mrf.mxu0
  %v188 = vpop.f32.mrf.mxu0
  %v189 = vadd.f32 %v40, %v188
  %v190 = vpop.f32.mrf.mxu0
  %191 = vmatprep.mubr.bf16.mxu0 0
  %192 = vmatmul.mubr.bf16.gmra.mxu0 %v111
  %v193 = vpop.f32.mrf.mxu0
  %v194 = vadd.f32 %v40, %v193
  %v195 = vpop.f32.mrf.mxu0
  %v196 = vpop.f32.mrf.mxu0
  %v197 = vadd.f32 %v40, %v196
  %v198 = vpop.f32.mrf.mxu0
  %199 = vmatprep.mubr.bf16.mxu0 0
  %200 = vmatmul.mubr.bf16.gmra.mxu0 %v114
  %v201 = vpop.f32.mrf.mxu0
  %v202 = vadd.f32 %v40, %v201
  %v203 = vpop.f32.mrf.mxu0
  %v204 = vpop.f32.mrf.mxu0
  %v205 = vadd.f32 %v40, %v204
  %v206 = vpop.f32.mrf.mxu0
  %207 = vmatprep.mubr.bf16.mxu0 0
  %208 = vmatmul.mubr.bf16.gmra.mxu0 %v117
  %v209 = vpop.f32.mrf.mxu0
  %v210 = vadd.f32 %v40, %v209
  %v211 = vpop.f32.mrf.mxu0
  %v212 = vpop.f32.mrf.mxu0
  %v213 = vadd.f32 %v40, %v212
  %v214 = vpop.f32.mrf.mxu0
  %215 = vdwg.mxu0
  %vm216 = vcmp.gt.f32.partialorder %v154, 0.0
  %vm217 = vcmp.gt.f32.partialorder %v157, 0.0
  %vm218 = vcmp.gt.f32.partialorder %v162, 0.0
  %vm219 = vcmp.gt.f32.partialorder %v165, 0.0
  %vm220 = vcmp.gt.f32.partialorder %v170, 0.0
  %vm221 = vcmp.gt.f32.partialorder %v173, 0.0
  %vm222 = vcmp.gt.f32.partialorder %v178, 0.0
  %vm223 = vcmp.gt.f32.partialorder %v181, 0.0
  %vm224 = vcmp.gt.f32.partialorder %v186, 0.0
  %vm225 = vcmp.gt.f32.partialorder %v189, 0.0
  %vm226 = vcmp.gt.f32.partialorder %v194, 0.0
  %vm227 = vcmp.gt.f32.partialorder %v197, 0.0
  %vm228 = vcmp.gt.f32.partialorder %v202, 0.0
  %vm229 = vcmp.gt.f32.partialorder %v205, 0.0
  %vm230 = vcmp.gt.f32.partialorder %v210, 0.0
  %vm231 = vcmp.gt.f32.partialorder %v213, 0.0
  %v232 = vmul.f32 %v154, 0.1
  %v233 = vmul.f32 %v157, 0.1
  %v234 = vmul.f32 %v162, 0.1
  %v235 = vmul.f32 %v165, 0.1
  %v236 = vmul.f32 %v170, 0.1
  %v237 = vmul.f32 %v173, 0.1
  %v238 = vmul.f32 %v178, 0.1
  %v239 = vmul.f32 %v181, 0.1
  %v240 = vmul.f32 %v186, 0.1
  %v241 = vmul.f32 %v189, 0.1
  %v242 = vmul.f32 %v194, 0.1
  %v243 = vmul.f32 %v197, 0.1
  %v244 = vmul.f32 %v202, 0.1
  %v245 = vmul.f32 %v205, 0.1
  %v246 = vmul.f32 %v210, 0.1
  %v247 = vmul.f32 %v213, 0.1
  %v248 = vsel %vm216, %v154, %v232
  %v249 = vsel %vm217, %v157, %v233
  %v250 = vsel %vm218, %v162, %v234
  %v251 = vsel %vm219, %v165, %v235
  %v252 = vsel %vm220, %v170, %v236
  %v253 = vsel %vm221, %v173, %v237
  %v254 = vsel %vm222, %v178, %v238
  %v255 = vsel %vm223, %v181, %v239
  %v256 = vsel %vm224, %v186, %v240
  %v257 = vsel %vm225, %v189, %v241
  %v258 = vsel %vm226, %v194, %v242
  %v259 = vsel %vm227, %v197, %v243
  %v260 = vsel %vm228, %v202, %v244
  %v261 = vsel %vm229, %v205, %v245
  %v262 = vsel %vm230, %v210, %v246
  %v263 = vsel %vm231, %v213, %v247
  %v264 = vpack.c.bf16 %v249, %v248
  %v265 = vpack.c.bf16 %v251, %v250
  %v266 = vpack.c.bf16 %v253, %v252
  %v267 = vpack.c.bf16 %v255, %v254
  %v268 = vpack.c.bf16 %v257, %v256
  %v269 = vpack.c.bf16 %v259, %v258
  %v270 = vpack.c.bf16 %v261, %v260
  %v271 = vpack.c.bf16 %v263, %v262
  %v280 = vunpack.c.l.b16 %v264
  %v281 = vunpack.c.h.b16 %v264
  %v282 = vunpack.c.l.b16 %v265
  %v283 = vunpack.c.h.b16 %v265
  %v284 = vunpack.c.l.b16 %v266
  %v285 = vunpack.c.h.b16 %v266
  %v286 = vunpack.c.l.b16 %v267
  %v287 = vunpack.c.h.b16 %v267
  %v288 = vunpack.c.l.b16 %v268
  %v289 = vunpack.c.h.b16 %v268
  %v290 = vunpack.c.l.b16 %v269
  %v291 = vunpack.c.h.b16 %v269
  %v292 = vunpack.c.l.b16 %v270
  %v293 = vunpack.c.h.b16 %v270
  %v294 = vunpack.c.l.b16 %v271
  %v295 = vunpack.c.h.b16 %v271
  %v296 = vpack.c.b16 %v280, %v280
  %v297 = vpack.c.b16 %v281, %v281
  %v298 = vpack.c.b16 %v282, %v282
  %v299 = vpack.c.b16 %v283, %v283
  %v300 = vpack.c.b16 %v284, %v284
  %v301 = vpack.c.b16 %v285, %v285
  %v302 = vpack.c.b16 %v286, %v286
  %v303 = vpack.c.b16 %v287, %v287
  %v304 = vpack.c.b16 %v288, %v288
  %v305 = vpack.c.b16 %v289, %v289
  %v306 = vpack.c.b16 %v290, %v290
  %v307 = vpack.c.b16 %v291, %v291
  %v308 = vpack.c.b16 %v292, %v292
  %v309 = vpack.c.b16 %v293, %v293
  %v310 = vpack.c.b16 %v294, %v294
  %v311 = vpack.c.b16 %v295, %v295
  %328 = vst [vmem:[%s3] sm:$0xf] %v296
  %329 = vst [vmem:[%s3 + $0x4] sm:$0xf] %v297
  %330 = vst [vmem:[%s3 + $0x8] sm:$0xf] %v298
  %331 = vst [vmem:[%s3 + $0xc] sm:$0xf] %v299
  %332 = vst [vmem:[%s3 + $0x10] sm:$0xf] %v300
  %333 = vst [vmem:[%s3 + $0x14] sm:$0xf] %v301
  %334 = vst [vmem:[%s3 + $0x18] sm:$0xf] %v302
  %335 = vst [vmem:[%s3 + $0x1c] sm:$0xf] %v303
  %336 = vst [vmem:[%s3 + $0x20] sm:$0xf] %v304
  %337 = vst [vmem:[%s3 + $0x24] sm:$0xf] %v305
  %338 = vst [vmem:[%s3 + $0x28] sm:$0xf] %v306
  %339 = vst [vmem:[%s3 + $0x2c] sm:$0xf] %v307
  %340 = vst [vmem:[%s3 + $0x30] sm:$0xf] %v308
  %341 = vst [vmem:[%s3 + $0x34] sm:$0xf] %v309
  %342 = vst [vmem:[%s3 + $0x38] sm:$0xf] %v310
  %343 = vst [vmem:[%s3 + $0x3c] sm:$0xf] %v311
  // Predicated region
  $region14: #{yolov3_forward.88} parent=0 // pred_check
    _
  $region15: #{yolov3_forward.88} parent=0 // pred_check_branch
    %345 = sbr.rel (0) target = $region17
  $region16: #{yolov3_forward.88} parent=0 // pred_region
    _
  $region17: #{yolov3_forward.88} parent=0 // pred_fallthru
    _
  // Predicated region
  $region18: #{yolov3_forward.88} parent=0 // pred_check
    _
  $region19: #{yolov3_forward.88} parent=0 // pred_check_branch
    %347 = sbr.rel (0) target = $region21
  $region20: #{yolov3_forward.88} parent=0 // pred_region
    _
  $region21: #{yolov3_forward.88} parent=0 // pred_fallthru
    _

// kernel: yolov3_forward.87
$region0: #{yolov3_forward.87}
  #allocation0 [shape = 'u32[]', space=smem, size = 0x4, offset = 0x4, fixed_abs, tag = 'smem constant byte address 0x4 - core index']
  #allocation1 [shape = 'u32[144,128]{1,0:T(1,128)}', space=vmem, size = 0x12000, scoped, tag = 'internal scratch']
  %s0 = inlined_call_operand.vmem [shape: bf16[128,144], index: 0, kind: input, shape index: {}]
  %s1 = inlined_call_operand.vmem [shape: bf16[144,128], index: 1, kind: input, shape index: {}]
  %s2 = inlined_call_operand.vmem [shape: f32[1,128], index: 2, kind: input, shape index: {}]
  %s3 = inlined_call_operand.vmem [shape: bf16[128,128], index: 3, kind: output, shape index: {}]
  %s4 = sld [smem:[#allocation0]]
  $region22: #{yolov3_forward.87} parent=0
    _
  %s6 = ssub.s32 1, %s4
  %s7 = scalar_select 0, %s6, %s4
  // Predicated region
  $region2: #{yolov3_forward.87} parent=0 // pred_check
    _
  $region3: #{yolov3_forward.87} parent=0 // pred_check_branch
    %9 = sbr.rel (0) target = $region5
  $region4: #{yolov3_forward.87} parent=0 // pred_region
    _
  $region5: #{yolov3_forward.87} parent=0 // pred_fallthru
    _
  // Predicated region
  $region6: #{yolov3_forward.87} parent=0 // pred_check
    _
  $region7: #{yolov3_forward.87} parent=0 // pred_check_branch
    %11 = sbr.rel (0) target = $region9
  $region8: #{yolov3_forward.87} parent=0 // pred_region
    _
  $region9: #{yolov3_forward.87} parent=0 // pred_fallthru
    _
  // Predicated region
  $region10: #{yolov3_forward.87} parent=0 // pred_check
    _
  $region11: #{yolov3_forward.87} parent=0 // pred_check_branch
    %13 = sbr.rel (0) target = $region13
  $region12: #{yolov3_forward.87} parent=0 // pred_region
    _
  $region13: #{yolov3_forward.87} parent=0 // pred_fallthru
    _
  %v15 = vld [vmem:[%s0] sm:$0xff]
  %v16 = vld [vmem:[%s0 + $0x8] sm:$0xff]
  %v17 = vld [vmem:[%s0 + $0x10] sm:$0xff]
  %v18 = vld [vmem:[%s0 + $0x18] sm:$0xff]
  %v19 = vld [vmem:[%s0 + $0x20] sm:$0xff]
  %v20 = vld [vmem:[%s0 + $0x28] sm:$0xff]
  %v21 = vld [vmem:[%s0 + $0x30] sm:$0xff]
  %v22 = vld [vmem:[%s0 + $0x38] sm:$0xff]
  %v23 = vld [vmem:[%s0 + $0x40] sm:$0xff]
  %v24 = vld [vmem:[%s0 + $0x48] sm:$0xff]
  %v25 = vld [vmem:[%s0 + $0x50] sm:$0xff]
  %v26 = vld [vmem:[%s0 + $0x58] sm:$0xff]
  %v27 = vld [vmem:[%s0 + $0x60] sm:$0xff]
  %v28 = vld [vmem:[%s0 + $0x68] sm:$0xff]
  %v29 = vld [vmem:[%s0 + $0x70] sm:$0xff]
  %v30 = vld [vmem:[%s0 + $0x78] sm:$0xff]
  %v31 = vld [vmem:[%s1] sm:$0xf]
  %v32 = vld [vmem:[%s1 + $0x4] sm:$0xf]
  %v33 = vld [vmem:[%s1 + $0x8] sm:$0xf]
  %v34 = vld [vmem:[%s1 + $0xc] sm:$0xf]
  %v35 = vld [vmem:[%s1 + $0x10] sm:$0xf]
  %v36 = vld [vmem:[%s1 + $0x14] sm:$0xf]
  %v37 = vld [vmem:[%s1 + $0x18] sm:$0xf]
  %v38 = vld [vmem:[%s1 + $0x1c] sm:$0xf]
  %v39 = vld [vmem:[%s1 + $0x20] sm:$0xf]
  %v40 = vld [vmem:[%s1 + $0x24] sm:$0xf]
  %v41 = vld [vmem:[%s1 + $0x28] sm:$0xf]
  %v42 = vld [vmem:[%s1 + $0x2c] sm:$0xf]
  %v43 = vld [vmem:[%s1 + $0x30] sm:$0xf]
  %v44 = vld [vmem:[%s1 + $0x34] sm:$0xf]
  %v45 = vld [vmem:[%s1 + $0x38] sm:$0xf]
  %v46 = vld [vmem:[%s1 + $0x3c] sm:$0xf]
  %v47 = vld [vmem:[%s1 + $0x40] sm:$0xf]
  %v48 = vld [vmem:[%s1 + $0x44] sm:$0xf]
  %v49 = vld [vmem:[%s2] sm:$0x1]
  %v51 = vlaneseq
  %v52 = vshrl.u32 %v51, 7
  %v53 = vsub.s32 0, %v52
  %v54 = vrot.slane %v49, %v53
  %v72 = vunpack.c.l.b16 %v15
  %v73 = vunpack.c.h.b16 %v15
  %v74 = vunpack.c.l.b16 %v16
  %v75 = vunpack.c.h.b16 %v16
  %v76 = vunpack.c.l.b16 %v17
  %v77 = vunpack.c.h.b16 %v17
  %v78 = vunpack.c.l.b16 %v18
  %v79 = vunpack.c.h.b16 %v18
  %v80 = vunpack.c.l.b16 %v19
  %v81 = vunpack.c.h.b16 %v19
  %v82 = vunpack.c.l.b16 %v20
  %v83 = vunpack.c.h.b16 %v20
  %v84 = vunpack.c.l.b16 %v21
  %v85 = vunpack.c.h.b16 %v21
  %v86 = vunpack.c.l.b16 %v22
  %v87 = vunpack.c.h.b16 %v22
  %v88 = vunpack.c.l.b16 %v23
  %v89 = vunpack.c.h.b16 %v23
  %v90 = vunpack.c.l.b16 %v24
  %v91 = vunpack.c.h.b16 %v24
  %v92 = vunpack.c.l.b16 %v25
  %v93 = vunpack.c.h.b16 %v25
  %v94 = vunpack.c.l.b16 %v26
  %v95 = vunpack.c.h.b16 %v26
  %v96 = vunpack.c.l.b16 %v27
  %v97 = vunpack.c.h.b16 %v27
  %v98 = vunpack.c.l.b16 %v28
  %v99 = vunpack.c.h.b16 %v28
  %v100 = vunpack.c.l.b16 %v29
  %v101 = vunpack.c.h.b16 %v29
  %v102 = vunpack.c.l.b16 %v30
  %v103 = vunpack.c.h.b16 %v30
  %v104 = vpack.c.b16 %v74, %v72
  %v105 = vpack.c.b16 %v75, %v73
  %v106 = vpack.c.b16 %v78, %v76
  %v107 = vpack.c.b16 %v79, %v77
  %v108 = vpack.c.b16 %v82, %v80
  %v109 = vpack.c.b16 %v83, %v81
  %v110 = vpack.c.b16 %v86, %v84
  %v111 = vpack.c.b16 %v87, %v85
  %v112 = vpack.c.b16 %v90, %v88
  %v113 = vpack.c.b16 %v91, %v89
  %v114 = vpack.c.b16 %v94, %v92
  %v115 = vpack.c.b16 %v95, %v93
  %v116 = vpack.c.b16 %v98, %v96
  %v117 = vpack.c.b16 %v99, %v97
  %v118 = vpack.c.b16 %v102, %v100
  %v119 = vpack.c.b16 %v103, %v101
  %v146 = vunpack.c.l.b16 %v31
  %v147 = vunpack.c.l.b16 %v32
  %v148 = vunpack.c.l.b16 %v33
  %v149 = vunpack.c.l.b16 %v34
  %v150 = vunpack.c.l.b16 %v35
  %v151 = vunpack.c.l.b16 %v36
  %v152 = vunpack.c.l.b16 %v37
  %v153 = vunpack.c.l.b16 %v38
  %v154 = vunpack.c.l.b16 %v39
  %v155 = vunpack.c.l.b16 %v40
  %v156 = vunpack.c.l.b16 %v41
  %v157 = vunpack.c.l.b16 %v42
  %v158 = vunpack.c.l.b16 %v43
  %v159 = vunpack.c.l.b16 %v44
  %v160 = vunpack.c.l.b16 %v45
  %v161 = vunpack.c.l.b16 %v46
  %v162 = vunpack.c.l.b16 %v47
  %v163 = vunpack.c.l.b16 %v48
  %v164 = vpack.c.b16 %v147, %v146
  %v165 = vpack.c.b16 %v149, %v148
  %v166 = vpack.c.b16 %v151, %v150
  %v167 = vpack.c.b16 %v153, %v152
  %v168 = vpack.c.b16 %v155, %v154
  %v169 = vpack.c.b16 %v157, %v156
  %v170 = vpack.c.b16 %v159, %v158
  %v171 = vpack.c.b16 %v161, %v160
  %v172 = vpack.c.b16 %v163, %v162
  %vm182 = vcmask 130048
  %v184 = vsel %vm182, %v105, 0
  %v187 = vsel %vm182, %v107, 0
  %v190 = vsel %vm182, %v109, 0
  %v193 = vsel %vm182, %v111, 0
  %v196 = vsel %vm182, %v113, 0
  %v199 = vsel %vm182, %v115, 0
  %v202 = vsel %vm182, %v117, 0
  %v205 = vsel %vm182, %v119, 0
  %207 = vmatprep.subr.bf16.mxu0 0
  %208 = vmatpush1.bf16.msra.mxu0 %v171
  %209 = vmatprep.subr.bf16.mxu0 0
  %210 = vmatpush1.bf16.msra.mxu0 %v170
  %211 = vmatprep.subr.bf16.mxu0 0
  %212 = vmatpush1.bf16.msra.mxu0 %v169
  %213 = vmatprep.subr.bf16.mxu0 0
  %214 = vmatpush1.bf16.msra.mxu0 %v168
  %215 = vmatprep.subr.bf16.mxu0 0
  %216 = vmatpush1.bf16.msra.mxu0 %v167
  %217 = vmatprep.subr.bf16.mxu0 0
  %218 = vmatpush1.bf16.msra.mxu0 %v166
  %219 = vmatprep.subr.bf16.mxu0 0
  %220 = vmatpush1.bf16.msra.mxu0 %v165
  %221 = vmatprep.subr.bf16.mxu0 0
  %222 = vmatpush1.bf16.msra.mxu0 %v164
  %223 = vmatprep.subr.bf16.mxu0 0
  %224 = vmatpush2.bf16.msra.mxu0 0
  %225 = vmatprep.subr.bf16.mxu0 0
  %226 = vmatpush2.bf16.msra.mxu0 0
  %227 = vmatprep.subr.bf16.mxu0 0
  %228 = vmatpush2.bf16.msra.mxu0 0
  %229 = vmatprep.subr.bf16.mxu0 0
  %230 = vmatpush2.bf16.msra.mxu0 0
  %231 = vmatprep.subr.bf16.mxu0 0
  %232 = vmatpush2.bf16.msra.mxu0 0
  %233 = vmatprep.subr.bf16.mxu0 0
  %234 = vmatpush2.bf16.msra.mxu0 0
  %235 = vmatprep.subr.bf16.mxu0 0
  %236 = vmatpush2.bf16.msra.mxu0 0
  %237 = vmatprep.subr.bf16.mxu0 0
  %238 = vmatpush2.bf16.msra.mxu0 %v172
  %239 = vmatprep.mubr.bf16.mxu0 %v184
  %240 = vmatmul.mubr.bf16.gmra.mxu0 %v104
  %v241 = vpop.f32.mrf.mxu0
  %v242 = vadd.f32 %v54, %v241
  %v243 = vpop.f32.mrf.mxu0
  %v244 = vpop.f32.mrf.mxu0
  %v245 = vadd.f32 %v54, %v244
  %v246 = vpop.f32.mrf.mxu0
  %247 = vmatprep.mubr.bf16.mxu0 %v187
  %248 = vmatmul.mubr.bf16.gmra.mxu0 %v106
  %v249 = vpop.f32.mrf.mxu0
  %v250 = vadd.f32 %v54, %v249
  %v251 = vpop.f32.mrf.mxu0
  %v252 = vpop.f32.mrf.mxu0
  %v253 = vadd.f32 %v54, %v252
  %v254 = vpop.f32.mrf.mxu0
  %255 = vmatprep.mubr.bf16.mxu0 %v190
  %256 = vmatmul.mubr.bf16.gmra.mxu0 %v108
  %v257 = vpop.f32.mrf.mxu0
  %v258 = vadd.f32 %v54, %v257
  %v259 = vpop.f32.mrf.mxu0
  %v260 = vpop.f32.mrf.mxu0
  %v261 = vadd.f32 %v54, %v260
  %v262 = vpop.f32.mrf.mxu0
  %263 = vmatprep.mubr.bf16.mxu0 %v193
  %264 = vmatmul.mubr.bf16.gmra.mxu0 %v110
  %v265 = vpop.f32.mrf.mxu0
  %v266 = vadd.f32 %v54, %v265
  %v267 = vpop.f32.mrf.mxu0
  %v268 = vpop.f32.mrf.mxu0
  %v269 = vadd.f32 %v54, %v268
  %v270 = vpop.f32.mrf.mxu0
  %271 = vmatprep.mubr.bf16.mxu0 %v196
  %272 = vmatmul.mubr.bf16.gmra.mxu0 %v112
  %v273 = vpop.f32.mrf.mxu0
  %v274 = vadd.f32 %v54, %v273
  %v275 = vpop.f32.mrf.mxu0
  %v276 = vpop.f32.mrf.mxu0
  %v277 = vadd.f32 %v54, %v276
  %v278 = vpop.f32.mrf.mxu0
  %279 = vmatprep.mubr.bf16.mxu0 %v199
  %280 = vmatmul.mubr.bf16.gmra.mxu0 %v114
  %v281 = vpop.f32.mrf.mxu0
  %v282 = vadd.f32 %v54, %v281
  %v283 = vpop.f32.mrf.mxu0
  %v284 = vpop.f32.mrf.mxu0
  %v285 = vadd.f32 %v54, %v284
  %v286 = vpop.f32.mrf.mxu0
  %287 = vmatprep.mubr.bf16.mxu0 %v202
  %288 = vmatmul.mubr.bf16.gmra.mxu0 %v116
  %v289 = vpop.f32.mrf.mxu0
  %v290 = vadd.f32 %v54, %v289
  %v291 = vpop.f32.mrf.mxu0
  %v292 = vpop.f32.mrf.mxu0
  %v293 = vadd.f32 %v54, %v292
  %v294 = vpop.f32.mrf.mxu0
  %295 = vmatprep.mubr.bf16.mxu0 %v205
  %296 = vmatmul.mubr.bf16.gmra.mxu0 %v118
  %v297 = vpop.f32.mrf.mxu0
  %v298 = vadd.f32 %v54, %v297
  %v299 = vpop.f32.mrf.mxu0
  %v300 = vpop.f32.mrf.mxu0
  %v301 = vadd.f32 %v54, %v300
  %v302 = vpop.f32.mrf.mxu0
  %303 = vdwg.mxu0
  %vm304 = vcmp.gt.f32.partialorder %v242, 0.0
  %vm305 = vcmp.gt.f32.partialorder %v245, 0.0
  %vm306 = vcmp.gt.f32.partialorder %v250, 0.0
  %vm307 = vcmp.gt.f32.partialorder %v253, 0.0
  %vm308 = vcmp.gt.f32.partialorder %v258, 0.0
  %vm309 = vcmp.gt.f32.partialorder %v261, 0.0
  %vm310 = vcmp.gt.f32.partialorder %v266, 0.0
  %vm311 = vcmp.gt.f32.partialorder %v269, 0.0
  %vm312 = vcmp.gt.f32.partialorder %v274, 0.0
  %vm313 = vcmp.gt.f32.partialorder %v277, 0.0
  %vm314 = vcmp.gt.f32.partialorder %v282, 0.0
  %vm315 = vcmp.gt.f32.partialorder %v285, 0.0
  %vm316 = vcmp.gt.f32.partialorder %v290, 0.0
  %vm317 = vcmp.gt.f32.partialorder %v293, 0.0
  %vm318 = vcmp.gt.f32.partialorder %v298, 0.0
  %vm319 = vcmp.gt.f32.partialorder %v301, 0.0
  %v320 = vmul.f32 %v242, 0.1
  %v321 = vmul.f32 %v245, 0.1
  %v322 = vmul.f32 %v250, 0.1
  %v323 = vmul.f32 %v253, 0.1
  %v324 = vmul.f32 %v258, 0.1
  %v325 = vmul.f32 %v261, 0.1
  %v326 = vmul.f32 %v266, 0.1
  %v327 = vmul.f32 %v269, 0.1
  %v328 = vmul.f32 %v274, 0.1
  %v329 = vmul.f32 %v277, 0.1
  %v330 = vmul.f32 %v282, 0.1
  %v331 = vmul.f32 %v285, 0.1
  %v332 = vmul.f32 %v290, 0.1
  %v333 = vmul.f32 %v293, 0.1
  %v334 = vmul.f32 %v298, 0.1
  %v335 = vmul.f32 %v301, 0.1
  %v336 = vsel %vm304, %v242, %v320
  %v337 = vsel %vm305, %v245, %v321
  %v338 = vsel %vm306, %v250, %v322
  %v339 = vsel %vm307, %v253, %v323
  %v340 = vsel %vm308, %v258, %v324
  %v341 = vsel %vm309, %v261, %v325
  %v342 = vsel %vm310, %v266, %v326
  %v343 = vsel %vm311, %v269, %v327
  %v344 = vsel %vm312, %v274, %v328
  %v345 = vsel %vm313, %v277, %v329
  %v346 = vsel %vm314, %v282, %v330
  %v347 = vsel %vm315, %v285, %v331
  %v348 = vsel %vm316, %v290, %v332
  %v349 = vsel %vm317, %v293, %v333
  %v350 = vsel %vm318, %v298, %v334
  %v351 = vsel %vm319, %v301, %v335
  %v352 = vpack.c.bf16 %v337, %v336
  %v353 = vpack.c.bf16 %v339, %v338
  %v354 = vpack.c.bf16 %v341, %v340
  %v355 = vpack.c.bf16 %v343, %v342
  %v356 = vpack.c.bf16 %v345, %v344
  %v357 = vpack.c.bf16 %v347, %v346
  %v358 = vpack.c.bf16 %v349, %v348
  %v359 = vpack.c.bf16 %v351, %v350
  %v368 = vunpack.c.l.b16 %v352
  %v369 = vunpack.c.h.b16 %v352
  %v370 = vunpack.c.l.b16 %v353
  %v371 = vunpack.c.h.b16 %v353
  %v372 = vunpack.c.l.b16 %v354
  %v373 = vunpack.c.h.b16 %v354
  %v374 = vunpack.c.l.b16 %v355
  %v375 = vunpack.c.h.b16 %v355
  %v376 = vunpack.c.l.b16 %v356
  %v377 = vunpack.c.h.b16 %v356
  %v378 = vunpack.c.l.b16 %v357
  %v379 = vunpack.c.h.b16 %v357
  %v380 = vunpack.c.l.b16 %v358
  %v381 = vunpack.c.h.b16 %v358
  %v382 = vunpack.c.l.b16 %v359
  %v383 = vunpack.c.h.b16 %v359
  %v384 = vpack.c.b16 %v368, %v368
  %v385 = vpack.c.b16 %v369, %v369
  %v386 = vpack.c.b16 %v370, %v370
  %v387 = vpack.c.b16 %v371, %v371
  %v388 = vpack.c.b16 %v372, %v372
  %v389 = vpack.c.b16 %v373, %v373
  %v390 = vpack.c.b16 %v374, %v374
  %v391 = vpack.c.b16 %v375, %v375
  %v392 = vpack.c.b16 %v376, %v376
  %v393 = vpack.c.b16 %v377, %v377
  %v394 = vpack.c.b16 %v378, %v378
  %v395 = vpack.c.b16 %v379, %v379
  %v396 = vpack.c.b16 %v380, %v380
  %v397 = vpack.c.b16 %v381, %v381
  %v398 = vpack.c.b16 %v382, %v382
  %v399 = vpack.c.b16 %v383, %v383
  %416 = vst [vmem:[%s3] sm:$0xf] %v384
  %417 = vst [vmem:[%s3 + $0x4] sm:$0xf] %v385
  %418 = vst [vmem:[%s3 + $0x8] sm:$0xf] %v386
  %419 = vst [vmem:[%s3 + $0xc] sm:$0xf] %v387
  %420 = vst [vmem:[%s3 + $0x10] sm:$0xf] %v388
  %421 = vst [vmem:[%s3 + $0x14] sm:$0xf] %v389
  %422 = vst [vmem:[%s3 + $0x18] sm:$0xf] %v390
  %423 = vst [vmem:[%s3 + $0x1c] sm:$0xf] %v391
  %424 = vst [vmem:[%s3 + $0x20] sm:$0xf] %v392
  %425 = vst [vmem:[%s3 + $0x24] sm:$0xf] %v393
  %426 = vst [vmem:[%s3 + $0x28] sm:$0xf] %v394
  %427 = vst [vmem:[%s3 + $0x2c] sm:$0xf] %v395
  %428 = vst [vmem:[%s3 + $0x30] sm:$0xf] %v396
  %429 = vst [vmem:[%s3 + $0x34] sm:$0xf] %v397
  %430 = vst [vmem:[%s3 + $0x38] sm:$0xf] %v398
  %431 = vst [vmem:[%s3 + $0x3c] sm:$0xf] %v399
  // Predicated region
  $region14: #{yolov3_forward.87} parent=0 // pred_check
    _
  $region15: #{yolov3_forward.87} parent=0 // pred_check_branch
    %433 = sbr.rel (0) target = $region17
  $region16: #{yolov3_forward.87} parent=0 // pred_region
    _
  $region17: #{yolov3_forward.87} parent=0 // pred_fallthru
    _
  // Predicated region
  $region18: #{yolov3_forward.87} parent=0 // pred_check
    _
  $region19: #{yolov3_forward.87} parent=0 // pred_check_branch
    %435 = sbr.rel (0) target = $region21
  $region20: #{yolov3_forward.87} parent=0 // pred_region
    _
  $region21: #{yolov3_forward.87} parent=0 // pred_fallthru
    _

// kernel: yolov3_forward.104
$region0: #{yolov3_forward.104}
  #allocation0 [shape = 'u32[]', space=smem, size = 0x4, offset = 0x4, fixed_abs, tag = 'smem constant byte address 0x4 - core index']
  #allocation1 [shape = 'u32[144,128]{1,0:T(1,128)}', space=vmem, size = 0x12000, scoped, tag = 'internal scratch']
  %s0 = inlined_call_operand.vmem [shape: bf16[32,288], index: 0, kind: input, shape index: {}]
  %s1 = inlined_call_operand.vmem [shape: bf16[288,128], index: 1, kind: input, shape index: {}]
  %s2 = inlined_call_operand.vmem [shape: f32[1,128], index: 2, kind: input, shape index: {}]
  %s3 = inlined_call_operand.vmem [shape: bf16[32,128], index: 3, kind: output, shape index: {}]
  %s4 = sld [smem:[#allocation0]]
  $region22: #{yolov3_forward.104} parent=0
    _
  %s6 = ssub.s32 1, %s4
  %s7 = scalar_select 0, %s6, %s4
  // Predicated region
  $region2: #{yolov3_forward.104} parent=0 // pred_check
    _
  $region3: #{yolov3_forward.104} parent=0 // pred_check_branch
    %9 = sbr.rel (0) target = $region5
  $region4: #{yolov3_forward.104} parent=0 // pred_region
    _
  $region5: #{yolov3_forward.104} parent=0 // pred_fallthru
    _
  // Predicated region
  $region6: #{yolov3_forward.104} parent=0 // pred_check
    _
  $region7: #{yolov3_forward.104} parent=0 // pred_check_branch
    %11 = sbr.rel (0) target = $region9
  $region8: #{yolov3_forward.104} parent=0 // pred_region
    _
  $region9: #{yolov3_forward.104} parent=0 // pred_fallthru
    _
  // Predicated region
  $region10: #{yolov3_forward.104} parent=0 // pred_check
    _
  $region11: #{yolov3_forward.104} parent=0 // pred_check_branch
    %13 = sbr.rel (0) target = $region13
  $region12: #{yolov3_forward.104} parent=0 // pred_region
    _
  $region13: #{yolov3_forward.104} parent=0 // pred_fallthru
    _
  %v15 = vld [vmem:[%s0] sm:$0xff]
  %v16 = vld [vmem:[%s0 + $0x8] sm:$0xf]
  %v17 = vld [vmem:[%s0 + $0xc] sm:$0xff]
  %v18 = vld [vmem:[%s0 + $0x14] sm:$0xf]
  %v19 = vld [vmem:[%s0 + $0x18] sm:$0xff]
  %v20 = vld [vmem:[%s0 + $0x20] sm:$0xf]
  %v21 = vld [vmem:[%s0 + $0x24] sm:$0xff]
  %v22 = vld [vmem:[%s0 + $0x2c] sm:$0xf]
  %v23 = vld [vmem:[%s1] sm:$0xf]
  %v24 = vld [vmem:[%s1 + $0x4] sm:$0xf]
  %v25 = vld [vmem:[%s1 + $0x8] sm:$0xf]
  %v26 = vld [vmem:[%s1 + $0xc] sm:$0xf]
  %v27 = vld [vmem:[%s1 + $0x10] sm:$0xf]
  %v28 = vld [vmem:[%s1 + $0x14] sm:$0xf]
  %v29 = vld [vmem:[%s1 + $0x18] sm:$0xf]
  %v30 = vld [vmem:[%s1 + $0x1c] sm:$0xf]
  %v31 = vld [vmem:[%s1 + $0x20] sm:$0xf]
  %v32 = vld [vmem:[%s1 + $0x24] sm:$0xf]
  %v33 = vld [vmem:[%s1 + $0x28] sm:$0xf]
  %v34 = vld [vmem:[%s1 + $0x2c] sm:$0xf]
  %v35 = vld [vmem:[%s1 + $0x30] sm:$0xf]
  %v36 = vld [vmem:[%s1 + $0x34] sm:$0xf]
  %v37 = vld [vmem:[%s1 + $0x38] sm:$0xf]
  %v38 = vld [vmem:[%s1 + $0x3c] sm:$0xf]
  %v39 = vld [vmem:[%s1 + $0x40] sm:$0xf]
  %v40 = vld [vmem:[%s1 + $0x44] sm:$0xf]
  %v41 = vld [vmem:[%s1 + $0x48] sm:$0xf]
  %v42 = vld [vmem:[%s1 + $0x4c] sm:$0xf]
  %v43 = vld [vmem:[%s1 + $0x50] sm:$0xf]
  %v44 = vld [vmem:[%s1 + $0x54] sm:$0xf]
  %v45 = vld [vmem:[%s1 + $0x58] sm:$0xf]
  %v46 = vld [vmem:[%s1 + $0x5c] sm:$0xf]
  %v47 = vld [vmem:[%s1 + $0x60] sm:$0xf]
  %v48 = vld [vmem:[%s1 + $0x64] sm:$0xf]
  %v49 = vld [vmem:[%s1 + $0x68] sm:$0xf]
  %v50 = vld [vmem:[%s1 + $0x6c] sm:$0xf]
  %v51 = vld [vmem:[%s1 + $0x70] sm:$0xf]
  %v52 = vld [vmem:[%s1 + $0x74] sm:$0xf]
  %v53 = vld [vmem:[%s1 + $0x78] sm:$0xf]
  %v54 = vld [vmem:[%s1 + $0x7c] sm:$0xf]
  %v55 = vld [vmem:[%s1 + $0x80] sm:$0xf]
  %v56 = vld [vmem:[%s1 + $0x84] sm:$0xf]
  %v57 = vld [vmem:[%s1 + $0x88] sm:$0xf]
  %v58 = vld [vmem:[%s1 + $0x8c] sm:$0xf]
  %v59 = vld [vmem:[%s2] sm:$0x1]
  %v61 = vlaneseq
  %v62 = vshrl.u32 %v61, 7
  %v63 = vsub.s32 0, %v62
  %v64 = vrot.slane %v59, %v63
  %v74 = vunpack.c.l.b16 %v15
  %v75 = vunpack.c.h.b16 %v15
  %v76 = vunpack.c.l.b16 %v16
  %v77 = vunpack.c.l.b16 %v17
  %v78 = vunpack.c.h.b16 %v17
  %v79 = vunpack.c.l.b16 %v18
  %v80 = vunpack.c.l.b16 %v19
  %v81 = vunpack.c.h.b16 %v19
  %v82 = vunpack.c.l.b16 %v20
  %v83 = vunpack.c.l.b16 %v21
  %v84 = vunpack.c.h.b16 %v21
  %v85 = vunpack.c.l.b16 %v22
  %v86 = vpack.c.b16 %v77, %v74
  %v87 = vpack.c.b16 %v78, %v75
  %v88 = vpack.c.b16 %v79, %v76
  %v89 = vpack.c.b16 %v83, %v80
  %v90 = vpack.c.b16 %v84, %v81
  %v91 = vpack.c.b16 %v85, %v82
  %v132 = vunpack.c.l.b16 %v23
  %v133 = vunpack.c.l.b16 %v24
  %v134 = vunpack.c.l.b16 %v25
  %v135 = vunpack.c.l.b16 %v26
  %v136 = vunpack.c.l.b16 %v27
  %v137 = vunpack.c.l.b16 %v28
  %v138 = vunpack.c.l.b16 %v29
  %v139 = vunpack.c.l.b16 %v30
  %v140 = vunpack.c.l.b16 %v31
  %v141 = vunpack.c.l.b16 %v32
  %v142 = vunpack.c.l.b16 %v33
  %v143 = vunpack.c.l.b16 %v34
  %v144 = vunpack.c.l.b16 %v35
  %v145 = vunpack.c.l.b16 %v36
  %v146 = vunpack.c.l.b16 %v37
  %v147 = vunpack.c.l.b16 %v38
  %v148 = vunpack.c.l.b16 %v39
  %v149 = vunpack.c.l.b16 %v40
  %v150 = vunpack.c.l.b16 %v41
  %v151 = vunpack.c.l.b16 %v42
  %v152 = vunpack.c.l.b16 %v43
  %v153 = vunpack.c.l.b16 %v44
  %v154 = vunpack.c.l.b16 %v45
  %v155 = vunpack.c.l.b16 %v46
  %v156 = vunpack.c.l.b16 %v47
  %v157 = vunpack.c.l.b16 %v48
  %v158 = vunpack.c.l.b16 %v49
  %v159 = vunpack.c.l.b16 %v50
  %v160 = vunpack.c.l.b16 %v51
  %v161 = vunpack.c.l.b16 %v52
  %v162 = vunpack.c.l.b16 %v53
  %v163 = vunpack.c.l.b16 %v54
  %v164 = vunpack.c.l.b16 %v55
  %v165 = vunpack.c.l.b16 %v56
  %v166 = vunpack.c.l.b16 %v57
  %v167 = vunpack.c.l.b16 %v58
  %v168 = vpack.c.b16 %v133, %v132
  %v169 = vpack.c.b16 %v135, %v134
  %v170 = vpack.c.b16 %v137, %v136
  %v171 = vpack.c.b16 %v139, %v138
  %v172 = vpack.c.b16 %v141, %v140
  %v173 = vpack.c.b16 %v143, %v142
  %v174 = vpack.c.b16 %v145, %v144
  %v175 = vpack.c.b16 %v147, %v146
  %v176 = vpack.c.b16 %v149, %v148
  %v177 = vpack.c.b16 %v151, %v150
  %v178 = vpack.c.b16 %v153, %v152
  %v179 = vpack.c.b16 %v155, %v154
  %v180 = vpack.c.b16 %v157, %v156
  %v181 = vpack.c.b16 %v159, %v158
  %v182 = vpack.c.b16 %v161, %v160
  %v183 = vpack.c.b16 %v163, %v162
  %v184 = vpack.c.b16 %v165, %v164
  %v185 = vpack.c.b16 %v167, %v166
  %vm204 = vcmask 261120
  %v206 = vsel %vm204, %v88, 0
  %v209 = vsel %vm204, %v91, 0
  %211 = vmatprep.subr.bf16.mxu0 0
  %212 = vmatpush1.bf16.msra.mxu0 %v175
  %213 = vmatprep.subr.bf16.mxu0 0
  %214 = vmatpush1.bf16.msra.mxu0 %v174
  %215 = vmatprep.subr.bf16.mxu0 0
  %216 = vmatpush1.bf16.msra.mxu0 %v173
  %217 = vmatprep.subr.bf16.mxu0 0
  %218 = vmatpush1.bf16.msra.mxu0 %v172
  %219 = vmatprep.subr.bf16.mxu0 0
  %220 = vmatpush1.bf16.msra.mxu0 %v171
  %221 = vmatprep.subr.bf16.mxu0 0
  %222 = vmatpush1.bf16.msra.mxu0 %v170
  %223 = vmatprep.subr.bf16.mxu0 0
  %224 = vmatpush1.bf16.msra.mxu0 %v169
  %225 = vmatprep.subr.bf16.mxu0 0
  %226 = vmatpush1.bf16.msra.mxu0 %v168
  %227 = vmatprep.subr.bf16.mxu0 0
  %228 = vmatpush2.bf16.msra.mxu0 %v183
  %229 = vmatprep.subr.bf16.mxu0 0
  %230 = vmatpush2.bf16.msra.mxu0 %v182
  %231 = vmatprep.subr.bf16.mxu0 0
  %232 = vmatpush2.bf16.msra.mxu0 %v181
  %233 = vmatprep.subr.bf16.mxu0 0
  %234 = vmatpush2.bf16.msra.mxu0 %v180
  %235 = vmatprep.subr.bf16.mxu0 0
  %236 = vmatpush2.bf16.msra.mxu0 %v179
  %237 = vmatprep.subr.bf16.mxu0 0
  %238 = vmatpush2.bf16.msra.mxu0 %v178
  %239 = vmatprep.subr.bf16.mxu0 0
  %240 = vmatpush2.bf16.msra.mxu0 %v177
  %241 = vmatprep.subr.bf16.mxu0 0
  %242 = vmatpush2.bf16.msra.mxu0 %v176
  %243 = vmatprep.mubr.bf16.mxu0 %v87
  %244 = vmatmul.mubr.bf16.gmra.mxu0 %v86
  %v245 = vpop.f32.mrf.mxu0
  %v246 = vadd.f32 %v64, %v245
  %v247 = vpop.f32.mrf.mxu0
  %v248 = vpop.f32.mrf.mxu0
  %v249 = vadd.f32 %v64, %v248
  %v250 = vpop.f32.mrf.mxu0
  %251 = vmatprep.mubr.bf16.mxu0 %v90
  %252 = vmatmul.mubr.bf16.gmra.mxu0 %v89
  %v253 = vpop.f32.mrf.mxu0
  %v254 = vadd.f32 %v64, %v253
  %v255 = vpop.f32.mrf.mxu0
  %v256 = vpop.f32.mrf.mxu0
  %v257 = vadd.f32 %v64, %v256
  %v258 = vpop.f32.mrf.mxu0
  %259 = vdwg.mxu0
  %260 = vmatprep.subr.bf16.mxu0 0
  %261 = vmatpush1.bf16.msra.mxu0 0
  %262 = vmatprep.subr.bf16.mxu0 0
  %263 = vmatpush1.bf16.msra.mxu0 0
  %264 = vmatprep.subr.bf16.mxu0 0
  %265 = vmatpush1.bf16.msra.mxu0 0
  %266 = vmatprep.subr.bf16.mxu0 0
  %267 = vmatpush1.bf16.msra.mxu0 0
  %268 = vmatprep.subr.bf16.mxu0 0
  %269 = vmatpush1.bf16.msra.mxu0 0
  %270 = vmatprep.subr.bf16.mxu0 0
  %271 = vmatpush1.bf16.msra.mxu0 0
  %272 = vmatprep.subr.bf16.mxu0 0
  %273 = vmatpush1.bf16.msra.mxu0 %v185
  %274 = vmatprep.subr.bf16.mxu0 0
  %275 = vmatpush1.bf16.msra.mxu0 %v184
  %276 = vmatprep.subr.bf16.mxu0 0
  %277 = vmatpush2.bf16.msra.mxu0 0
  %278 = vmatprep.subr.bf16.mxu0 0
  %279 = vmatpush2.bf16.msra.mxu0 0
  %280 = vmatprep.subr.bf16.mxu0 0
  %281 = vmatpush2.bf16.msra.mxu0 0
  %282 = vmatprep.subr.bf16.mxu0 0
  %283 = vmatpush2.bf16.msra.mxu0 0
  %284 = vmatprep.subr.bf16.mxu0 0
  %285 = vmatpush2.bf16.msra.mxu0 0
  %286 = vmatprep.subr.bf16.mxu0 0
  %287 = vmatpush2.bf16.msra.mxu0 0
  %288 = vmatprep.subr.bf16.mxu0 0
  %289 = vmatpush2.bf16.msra.mxu0 0
  %290 = vmatprep.subr.bf16.mxu0 0
  %291 = vmatpush2.bf16.msra.mxu0 0
  %292 = vmatprep.mubr.bf16.mxu0 0
  %293 = vmatmul.mubr.bf16.gmra.mxu0 %v206
  %v294 = vpop.f32.mrf.mxu0
  %v295 = vadd.f32 %v246, %v294
  %v296 = vpop.f32.mrf.mxu0
  %v297 = vpop.f32.mrf.mxu0
  %v298 = vadd.f32 %v249, %v297
  %v299 = vpop.f32.mrf.mxu0
  %300 = vmatprep.mubr.bf16.mxu0 0
  %301 = vmatmul.mubr.bf16.gmra.mxu0 %v209
  %v302 = vpop.f32.mrf.mxu0
  %v303 = vadd.f32 %v254, %v302
  %v304 = vpop.f32.mrf.mxu0
  %v305 = vpop.f32.mrf.mxu0
  %v306 = vadd.f32 %v257, %v305
  %v307 = vpop.f32.mrf.mxu0
  %308 = vdwg.mxu0
  %vm309 = vcmp.gt.f32.partialorder %v295, 0.0
  %vm310 = vcmp.gt.f32.partialorder %v298, 0.0
  %vm311 = vcmp.gt.f32.partialorder %v303, 0.0
  %vm312 = vcmp.gt.f32.partialorder %v306, 0.0
  %v313 = vmul.f32 %v295, 0.1
  %v314 = vmul.f32 %v298, 0.1
  %v315 = vmul.f32 %v303, 0.1
  %v316 = vmul.f32 %v306, 0.1
  %v317 = vsel %vm309, %v295, %v313
  %v318 = vsel %vm310, %v298, %v314
  %v319 = vsel %vm311, %v303, %v315
  %v320 = vsel %vm312, %v306, %v316
  %v321 = vpack.c.bf16 %v318, %v317
  %v322 = vpack.c.bf16 %v320, %v319
  %v325 = vunpack.c.l.b16 %v321
  %v326 = vunpack.c.h.b16 %v321
  %v327 = vunpack.c.l.b16 %v322
  %v328 = vunpack.c.h.b16 %v322
  %v329 = vpack.c.b16 %v325, %v325
  %v330 = vpack.c.b16 %v326, %v326
  %v331 = vpack.c.b16 %v327, %v327
  %v332 = vpack.c.b16 %v328, %v328
  %337 = vst [vmem:[%s3] sm:$0xf] %v329
  %338 = vst [vmem:[%s3 + $0x4] sm:$0xf] %v330
  %339 = vst [vmem:[%s3 + $0x8] sm:$0xf] %v331
  %340 = vst [vmem:[%s3 + $0xc] sm:$0xf] %v332
  // Predicated region
  $region14: #{yolov3_forward.104} parent=0 // pred_check
    _
  $region15: #{yolov3_forward.104} parent=0 // pred_check_branch
    %342 = sbr.rel (0) target = $region17
  $region16: #{yolov3_forward.104} parent=0 // pred_region
    _
  $region17: #{yolov3_forward.104} parent=0 // pred_fallthru
    _
  // Predicated region
  $region18: #{yolov3_forward.104} parent=0 // pred_check
    _
  $region19: #{yolov3_forward.104} parent=0 // pred_check_branch
    %344 = sbr.rel (0) target = $region21
  $region20: #{yolov3_forward.104} parent=0 // pred_region
    _
  $region21: #{yolov3_forward.104} parent=0 // pred_fallthru
    _

// kernel: yolov3_forward.105
$region0: #{yolov3_forward.105}
  #allocation0 [shape = 'u32[]', space=smem, size = 0x4, offset = 0x4, fixed_abs, tag = 'smem constant byte address 0x4 - core index']
  #allocation1 [shape = 'u32[144,128]{1,0:T(1,128)}', space=vmem, size = 0x12000, scoped, tag = 'internal scratch']
  %s0 = inlined_call_operand.vmem [shape: bf16[32,64], index: 0, kind: input, shape index: {}]
  %s1 = inlined_call_operand.vmem [shape: bf16[64,128], index: 1, kind: input, shape index: {}]
  %s2 = inlined_call_operand.vmem [shape: f32[1,128], index: 2, kind: input, shape index: {}]
  %s3 = inlined_call_operand.vmem [shape: bf16[32,128], index: 3, kind: output, shape index: {}]
  %s4 = sld [smem:[#allocation0]]
  $region22: #{yolov3_forward.105} parent=0
    _
  %s6 = ssub.s32 1, %s4
  %s7 = scalar_select 0, %s6, %s4
  // Predicated region
  $region2: #{yolov3_forward.105} parent=0 // pred_check
    _
  $region3: #{yolov3_forward.105} parent=0 // pred_check_branch
    %9 = sbr.rel (0) target = $region5
  $region4: #{yolov3_forward.105} parent=0 // pred_region
    _
  $region5: #{yolov3_forward.105} parent=0 // pred_fallthru
    _
  // Predicated region
  $region6: #{yolov3_forward.105} parent=0 // pred_check
    _
  $region7: #{yolov3_forward.105} parent=0 // pred_check_branch
    %11 = sbr.rel (0) target = $region9
  $region8: #{yolov3_forward.105} parent=0 // pred_region
    _
  $region9: #{yolov3_forward.105} parent=0 // pred_fallthru
    _
  // Predicated region
  $region10: #{yolov3_forward.105} parent=0 // pred_check
    _
  $region11: #{yolov3_forward.105} parent=0 // pred_check_branch
    %13 = sbr.rel (0) target = $region13
  $region12: #{yolov3_forward.105} parent=0 // pred_region
    _
  $region13: #{yolov3_forward.105} parent=0 // pred_fallthru
    _
  %v15 = vld [vmem:[%s0] sm:$0xf]
  %v16 = vld [vmem:[%s0 + $0x4] sm:$0xf]
  %v17 = vld [vmem:[%s0 + $0x8] sm:$0xf]
  %v18 = vld [vmem:[%s0 + $0xc] sm:$0xf]
  %v19 = vld [vmem:[%s1] sm:$0xf]
  %v20 = vld [vmem:[%s1 + $0x4] sm:$0xf]
  %v21 = vld [vmem:[%s1 + $0x8] sm:$0xf]
  %v22 = vld [vmem:[%s1 + $0xc] sm:$0xf]
  %v23 = vld [vmem:[%s1 + $0x10] sm:$0xf]
  %v24 = vld [vmem:[%s1 + $0x14] sm:$0xf]
  %v25 = vld [vmem:[%s1 + $0x18] sm:$0xf]
  %v26 = vld [vmem:[%s1 + $0x1c] sm:$0xf]
  %v27 = vld [vmem:[%s2] sm:$0x1]
  %v29 = vlaneseq
  %v30 = vshrl.u32 %v29, 7
  %v31 = vsub.s32 0, %v30
  %v32 = vrot.slane %v27, %v31
  %v38 = vunpack.c.l.b16 %v15
  %v39 = vunpack.c.l.b16 %v16
  %v40 = vunpack.c.l.b16 %v17
  %v41 = vunpack.c.l.b16 %v18
  %v42 = vpack.c.b16 %v39, %v38
  %v43 = vpack.c.b16 %v41, %v40
  %v52 = vunpack.c.l.b16 %v19
  %v53 = vunpack.c.l.b16 %v20
  %v54 = vunpack.c.l.b16 %v21
  %v55 = vunpack.c.l.b16 %v22
  %v56 = vunpack.c.l.b16 %v23
  %v57 = vunpack.c.l.b16 %v24
  %v58 = vunpack.c.l.b16 %v25
  %v59 = vunpack.c.l.b16 %v26
  %v60 = vpack.c.b16 %v53, %v52
  %v61 = vpack.c.b16 %v55, %v54
  %v62 = vpack.c.b16 %v57, %v56
  %v63 = vpack.c.b16 %v59, %v58
  %vm68 = vcmask 523264
  %v70 = vsel %vm68, %v42, 0
  %v73 = vsel %vm68, %v43, 0
  %75 = vmatprep.subr.bf16.mxu0 0
  %76 = vmatpush1.bf16.msra.mxu0 0
  %77 = vmatprep.subr.bf16.mxu0 0
  %78 = vmatpush1.bf16.msra.mxu0 0
  %79 = vmatprep.subr.bf16.mxu0 0
  %80 = vmatpush1.bf16.msra.mxu0 0
  %81 = vmatprep.subr.bf16.mxu0 0
  %82 = vmatpush1.bf16.msra.mxu0 0
  %83 = vmatprep.subr.bf16.mxu0 0
  %84 = vmatpush1.bf16.msra.mxu0 %v63
  %85 = vmatprep.subr.bf16.mxu0 0
  %86 = vmatpush1.bf16.msra.mxu0 %v62
  %87 = vmatprep.subr.bf16.mxu0 0
  %88 = vmatpush1.bf16.msra.mxu0 %v61
  %89 = vmatprep.subr.bf16.mxu0 0
  %90 = vmatpush1.bf16.msra.mxu0 %v60
  %91 = vmatprep.subr.bf16.mxu0 0
  %92 = vmatpush2.bf16.msra.mxu0 0
  %93 = vmatprep.subr.bf16.mxu0 0
  %94 = vmatpush2.bf16.msra.mxu0 0
  %95 = vmatprep.subr.bf16.mxu0 0
  %96 = vmatpush2.bf16.msra.mxu0 0
  %97 = vmatprep.subr.bf16.mxu0 0
  %98 = vmatpush2.bf16.msra.mxu0 0
  %99 = vmatprep.subr.bf16.mxu0 0
  %100 = vmatpush2.bf16.msra.mxu0 0
  %101 = vmatprep.subr.bf16.mxu0 0
  %102 = vmatpush2.bf16.msra.mxu0 0
  %103 = vmatprep.subr.bf16.mxu0 0
  %104 = vmatpush2.bf16.msra.mxu0 0
  %105 = vmatprep.subr.bf16.mxu0 0
  %106 = vmatpush2.bf16.msra.mxu0 0
  %107 = vmatprep.mubr.bf16.mxu0 0
  %108 = vmatmul.mubr.bf16.gmra.mxu0 %v70
  %v109 = vpop.f32.mrf.mxu0
  %v110 = vadd.f32 %v32, %v109
  %v111 = vpop.f32.mrf.mxu0
  %v112 = vpop.f32.mrf.mxu0
  %v113 = vadd.f32 %v32, %v112
  %v114 = vpop.f32.mrf.mxu0
  %115 = vmatprep.mubr.bf16.mxu0 0
  %116 = vmatmul.mubr.bf16.gmra.mxu0 %v73
  %v117 = vpop.f32.mrf.mxu0
  %v118 = vadd.f32 %v32, %v117
  %v119 = vpop.f32.mrf.mxu0
  %v120 = vpop.f32.mrf.mxu0
  %v121 = vadd.f32 %v32, %v120
  %v122 = vpop.f32.mrf.mxu0
  %123 = vdwg.mxu0
  %vm124 = vcmp.gt.f32.partialorder %v110, 0.0
  %vm125 = vcmp.gt.f32.partialorder %v113, 0.0
  %vm126 = vcmp.gt.f32.partialorder %v118, 0.0
  %vm127 = vcmp.gt.f32.partialorder %v121, 0.0
  %v128 = vmul.f32 %v110, 0.1
  %v129 = vmul.f32 %v113, 0.1
  %v130 = vmul.f32 %v118, 0.1
  %v131 = vmul.f32 %v121, 0.1
  %v132 = vsel %vm124, %v110, %v128
  %v133 = vsel %vm125, %v113, %v129
  %v134 = vsel %vm126, %v118, %v130
  %v135 = vsel %vm127, %v121, %v131
  %v136 = vpack.c.bf16 %v133, %v132
  %v137 = vpack.c.bf16 %v135, %v134
  %v140 = vunpack.c.l.b16 %v136
  %v141 = vunpack.c.h.b16 %v136
  %v142 = vunpack.c.l.b16 %v137
  %v143 = vunpack.c.h.b16 %v137
  %v144 = vpack.c.b16 %v140, %v140
  %v145 = vpack.c.b16 %v141, %v141
  %v146 = vpack.c.b16 %v142, %v142
  %v147 = vpack.c.b16 %v143, %v143
  %152 = vst [vmem:[%s3] sm:$0xf] %v144
  %153 = vst [vmem:[%s3 + $0x4] sm:$0xf] %v145
  %154 = vst [vmem:[%s3 + $0x8] sm:$0xf] %v146
  %155 = vst [vmem:[%s3 + $0xc] sm:$0xf] %v147
  // Predicated region
  $region14: #{yolov3_forward.105} parent=0 // pred_check
    _
  $region15: #{yolov3_forward.105} parent=0 // pred_check_branch
    %157 = sbr.rel (0) target = $region17
  $region16: #{yolov3_forward.105} parent=0 // pred_region
    _
  $region17: #{yolov3_forward.105} parent=0 // pred_fallthru
    _
  // Predicated region
  $region18: #{yolov3_forward.105} parent=0 // pred_check
    _
  $region19: #{yolov3_forward.105} parent=0 // pred_check_branch
    %159 = sbr.rel (0) target = $region21
  $region20: #{yolov3_forward.105} parent=0 // pred_region
    _
  $region21: #{yolov3_forward.105} parent=0 // pred_fallthru
    _

// kernel: yolov3_forward.112
$region0: #{yolov3_forward.112}
  #allocation0 [shape = 'u32[]', space=smem, size = 0x4, offset = 0x4, fixed_abs, tag = 'smem constant byte address 0x4 - core index']
  #allocation1 [shape = 'u32[144,128]{1,0:T(1,128)}', space=vmem, size = 0x12000, scoped, tag = 'internal scratch']
  %s0 = inlined_call_operand.vmem [shape: bf16[32,288], index: 0, kind: input, shape index: {}]
  %s1 = inlined_call_operand.vmem [shape: bf16[288,128], index: 1, kind: input, shape index: {}]
  %s2 = inlined_call_operand.hbm [shape: f32[1,128], index: 2, kind: input, shape index: {}]
  %s3 = inlined_call_operand.vmem [shape: bf16[32,128], index: 3, kind: output, shape index: {}]
  %s4 = sld [smem:[#allocation0]]
  $region26: #{yolov3_forward.112} parent=0
    _
  %s6 = ssub.s32 1, %s4
  %s7 = scalar_select 0, %s6, %s4
  $region1: #{yolov3_forward.112} parent=0
    #allocation2 [shape = 'u8[512]{0}', space=vmem, size = 0x400, scoped, tag = 'input window, operand 2, single buffered']
    #allocation3 [shape = 's32[1]{0}', space=sflag, size = 0x4, scoped, tag = 'scoped memory for yolov3_forward.112']
    %8 = vsyncpa [#allocation3], 0
    // Predicated region
    $region2: #{yolov3_forward.112} parent=1 // pred_check
      _
    $region3: #{yolov3_forward.112} parent=1 // pred_check_branch
      %10 = sbr.rel (0) target = $region5
    $region4: #{yolov3_forward.112} parent=1 // pred_region
      _
    $region5: #{yolov3_forward.112} parent=1 // pred_fallthru
      _
    // Predicated region
    $region6: #{yolov3_forward.112} parent=1 // pred_check
      _
    $region7: #{yolov3_forward.112} parent=1 // pred_check_branch
      %12 = sbr.rel (0) target = $region9
    $region8: #{yolov3_forward.112} parent=1 // pred_region
      _
    $region9: #{yolov3_forward.112} parent=1 // pred_fallthru
      _
    // Predicated region
    $region10: #{yolov3_forward.112} parent=1 // pred_check
      _
    $region11: #{yolov3_forward.112} parent=1 // pred_check_branch
      %14 = sbr.rel (0) target = $region13
    $region12: #{yolov3_forward.112} parent=1 // pred_region
      %s16 = ssub.s32 16, 16
      %17 = vsyncadd [#allocation3], %s16
      %s19 = sshll.u32 [#allocation2], 4
      %s20 = int_to_ptr.vmem [resolvable:$true] %s19
      %22 = dma.hbm_to_vmem [thread:$0]  %s2, 16, %s20, [#allocation3]
    $region13: #{yolov3_forward.112} parent=1 // pred_fallthru
      _
    // Predicated region
    $region14: #{yolov3_forward.112} parent=1 // pred_check
      _
    $region15: #{yolov3_forward.112} parent=1 // pred_check_branch
      %24 = sbr.rel (0) target = $region17
    $region16: #{yolov3_forward.112} parent=1 // pred_region
      %25 = dma.done [#allocation3], 16
    $region17: #{yolov3_forward.112} parent=1 // pred_fallthru
      _
    %v27 = vld [vmem:[%s0] sm:$0xff]
    %v28 = vld [vmem:[%s0 + $0x8] sm:$0xf]
    %v29 = vld [vmem:[%s0 + $0xc] sm:$0xff]
    %v30 = vld [vmem:[%s0 + $0x14] sm:$0xf]
    %v31 = vld [vmem:[%s0 + $0x18] sm:$0xff]
    %v32 = vld [vmem:[%s0 + $0x20] sm:$0xf]
    %v33 = vld [vmem:[%s0 + $0x24] sm:$0xff]
    %v34 = vld [vmem:[%s0 + $0x2c] sm:$0xf]
    %v35 = vld [vmem:[%s1] sm:$0xf]
    %v36 = vld [vmem:[%s1 + $0x4] sm:$0xf]
    %v37 = vld [vmem:[%s1 + $0x8] sm:$0xf]
    %v38 = vld [vmem:[%s1 + $0xc] sm:$0xf]
    %v39 = vld [vmem:[%s1 + $0x10] sm:$0xf]
    %v40 = vld [vmem:[%s1 + $0x14] sm:$0xf]
    %v41 = vld [vmem:[%s1 + $0x18] sm:$0xf]
    %v42 = vld [vmem:[%s1 + $0x1c] sm:$0xf]
    %v43 = vld [vmem:[%s1 + $0x20] sm:$0xf]
    %v44 = vld [vmem:[%s1 + $0x24] sm:$0xf]
    %v45 = vld [vmem:[%s1 + $0x28] sm:$0xf]
    %v46 = vld [vmem:[%s1 + $0x2c] sm:$0xf]
    %v47 = vld [vmem:[%s1 + $0x30] sm:$0xf]
    %v48 = vld [vmem:[%s1 + $0x34] sm:$0xf]
    %v49 = vld [vmem:[%s1 + $0x38] sm:$0xf]
    %v50 = vld [vmem:[%s1 + $0x3c] sm:$0xf]
    %v51 = vld [vmem:[%s1 + $0x40] sm:$0xf]
    %v52 = vld [vmem:[%s1 + $0x44] sm:$0xf]
    %v53 = vld [vmem:[%s1 + $0x48] sm:$0xf]
    %v54 = vld [vmem:[%s1 + $0x4c] sm:$0xf]
    %v55 = vld [vmem:[%s1 + $0x50] sm:$0xf]
    %v56 = vld [vmem:[%s1 + $0x54] sm:$0xf]
    %v57 = vld [vmem:[%s1 + $0x58] sm:$0xf]
    %v58 = vld [vmem:[%s1 + $0x5c] sm:$0xf]
    %v59 = vld [vmem:[%s1 + $0x60] sm:$0xf]
    %v60 = vld [vmem:[%s1 + $0x64] sm:$0xf]
    %v61 = vld [vmem:[%s1 + $0x68] sm:$0xf]
    %v62 = vld [vmem:[%s1 + $0x6c] sm:$0xf]
    %v63 = vld [vmem:[%s1 + $0x70] sm:$0xf]
    %v64 = vld [vmem:[%s1 + $0x74] sm:$0xf]
    %v65 = vld [vmem:[%s1 + $0x78] sm:$0xf]
    %v66 = vld [vmem:[%s1 + $0x7c] sm:$0xf]
    %v67 = vld [vmem:[%s1 + $0x80] sm:$0xf]
    %v68 = vld [vmem:[%s1 + $0x84] sm:$0xf]
    %v69 = vld [vmem:[%s1 + $0x88] sm:$0xf]
    %v70 = vld [vmem:[%s1 + $0x8c] sm:$0xf]
    %v71 = vld [vmem:[#allocation2] sm:$0x1]
    %v73 = vlaneseq
    %v74 = vshrl.u32 %v73, 7
    %v75 = vsub.s32 0, %v74
    %v76 = vrot.slane %v71, %v75
    %v86 = vunpack.c.l.b16 %v27
    %v87 = vunpack.c.h.b16 %v27
    %v88 = vunpack.c.l.b16 %v28
    %v89 = vunpack.c.l.b16 %v29
    %v90 = vunpack.c.h.b16 %v29
    %v91 = vunpack.c.l.b16 %v30
    %v92 = vunpack.c.l.b16 %v31
    %v93 = vunpack.c.h.b16 %v31
    %v94 = vunpack.c.l.b16 %v32
    %v95 = vunpack.c.l.b16 %v33
    %v96 = vunpack.c.h.b16 %v33
    %v97 = vunpack.c.l.b16 %v34
    %v98 = vpack.c.b16 %v89, %v86
    %v99 = vpack.c.b16 %v90, %v87
    %v100 = vpack.c.b16 %v91, %v88
    %v101 = vpack.c.b16 %v95, %v92
    %v102 = vpack.c.b16 %v96, %v93
    %v103 = vpack.c.b16 %v97, %v94
    %v144 = vunpack.c.l.b16 %v35
    %v145 = vunpack.c.l.b16 %v36
    %v146 = vunpack.c.l.b16 %v37
    %v147 = vunpack.c.l.b16 %v38
    %v148 = vunpack.c.l.b16 %v39
    %v149 = vunpack.c.l.b16 %v40
    %v150 = vunpack.c.l.b16 %v41
    %v151 = vunpack.c.l.b16 %v42
    %v152 = vunpack.c.l.b16 %v43
    %v153 = vunpack.c.l.b16 %v44
    %v154 = vunpack.c.l.b16 %v45
    %v155 = vunpack.c.l.b16 %v46
    %v156 = vunpack.c.l.b16 %v47
    %v157 = vunpack.c.l.b16 %v48
    %v158 = vunpack.c.l.b16 %v49
    %v159 = vunpack.c.l.b16 %v50
    %v160 = vunpack.c.l.b16 %v51
    %v161 = vunpack.c.l.b16 %v52
    %v162 = vunpack.c.l.b16 %v53
    %v163 = vunpack.c.l.b16 %v54
    %v164 = vunpack.c.l.b16 %v55
    %v165 = vunpack.c.l.b16 %v56
    %v166 = vunpack.c.l.b16 %v57
    %v167 = vunpack.c.l.b16 %v58
    %v168 = vunpack.c.l.b16 %v59
    %v169 = vunpack.c.l.b16 %v60
    %v170 = vunpack.c.l.b16 %v61
    %v171 = vunpack.c.l.b16 %v62
    %v172 = vunpack.c.l.b16 %v63
    %v173 = vunpack.c.l.b16 %v64
    %v174 = vunpack.c.l.b16 %v65
    %v175 = vunpack.c.l.b16 %v66
    %v176 = vunpack.c.l.b16 %v67
    %v177 = vunpack.c.l.b16 %v68
    %v178 = vunpack.c.l.b16 %v69
    %v179 = vunpack.c.l.b16 %v70
    %v180 = vpack.c.b16 %v145, %v144
    %v181 = vpack.c.b16 %v147, %v146
    %v182 = vpack.c.b16 %v149, %v148
    %v183 = vpack.c.b16 %v151, %v150
    %v184 = vpack.c.b16 %v153, %v152
    %v185 = vpack.c.b16 %v155, %v154
    %v186 = vpack.c.b16 %v157, %v156
    %v187 = vpack.c.b16 %v159, %v158
    %v188 = vpack.c.b16 %v161, %v160
    %v189 = vpack.c.b16 %v163, %v162
    %v190 = vpack.c.b16 %v165, %v164
    %v191 = vpack.c.b16 %v167, %v166
    %v192 = vpack.c.b16 %v169, %v168
    %v193 = vpack.c.b16 %v171, %v170
    %v194 = vpack.c.b16 %v173, %v172
    %v195 = vpack.c.b16 %v175, %v174
    %v196 = vpack.c.b16 %v177, %v176
    %v197 = vpack.c.b16 %v179, %v178
    %vm216 = vcmask 261120
    %v218 = vsel %vm216, %v100, 0
    %v221 = vsel %vm216, %v103, 0
    %223 = vmatprep.subr.bf16.mxu0 0
    %224 = vmatpush1.bf16.msra.mxu0 %v187
    %225 = vmatprep.subr.bf16.mxu0 0
    %226 = vmatpush1.bf16.msra.mxu0 %v186
    %227 = vmatprep.subr.bf16.mxu0 0
    %228 = vmatpush1.bf16.msra.mxu0 %v185
    %229 = vmatprep.subr.bf16.mxu0 0
    %230 = vmatpush1.bf16.msra.mxu0 %v184
    %231 = vmatprep.subr.bf16.mxu0 0
    %232 = vmatpush1.bf16.msra.mxu0 %v183
    %233 = vmatprep.subr.bf16.mxu0 0
    %234 = vmatpush1.bf16.msra.mxu0 %v182
    %235 = vmatprep.subr.bf16.mxu0 0
    %236 = vmatpush1.bf16.msra.mxu0 %v181
    %237 = vmatprep.subr.bf16.mxu0 0
    %238 = vmatpush1.bf16.msra.mxu0 %v180
    %239 = vmatprep.subr.bf16.mxu0 0
    %240 = vmatpush2.bf16.msra.mxu0 %v195
    %241 = vmatprep.subr.bf16.mxu0 0
    %242 = vmatpush2.bf16.msra.mxu0 %v194
    %243 = vmatprep.subr.bf16.mxu0 0
    %244 = vmatpush2.bf16.msra.mxu0 %v193
    %245 = vmatprep.subr.bf16.mxu0 0
    %246 = vmatpush2.bf16.msra.mxu0 %v192
    %247 = vmatprep.subr.bf16.mxu0 0
    %248 = vmatpush2.bf16.msra.mxu0 %v191
    %249 = vmatprep.subr.bf16.mxu0 0
    %250 = vmatpush2.bf16.msra.mxu0 %v190
    %251 = vmatprep.subr.bf16.mxu0 0
    %252 = vmatpush2.bf16.msra.mxu0 %v189
    %253 = vmatprep.subr.bf16.mxu0 0
    %254 = vmatpush2.bf16.msra.mxu0 %v188
    %255 = vmatprep.mubr.bf16.mxu0 %v99
    %256 = vmatmul.mubr.bf16.gmra.mxu0 %v98
    %v257 = vpop.f32.mrf.mxu0
    %v258 = vadd.f32 %v76, %v257
    %v259 = vpop.f32.mrf.mxu0
    %v260 = vpop.f32.mrf.mxu0
    %v261 = vadd.f32 %v76, %v260
    %v262 = vpop.f32.mrf.mxu0
    %263 = vmatprep.mubr.bf16.mxu0 %v102
    %264 = vmatmul.mubr.bf16.gmra.mxu0 %v101
    %v265 = vpop.f32.mrf.mxu0
    %v266 = vadd.f32 %v76, %v265
    %v267 = vpop.f32.mrf.mxu0
    %v268 = vpop.f32.mrf.mxu0
    %v269 = vadd.f32 %v76, %v268
    %v270 = vpop.f32.mrf.mxu0
    %271 = vdwg.mxu0
    %272 = vmatprep.subr.bf16.mxu0 0
    %273 = vmatpush1.bf16.msra.mxu0 0
    %274 = vmatprep.subr.bf16.mxu0 0
    %275 = vmatpush1.bf16.msra.mxu0 0
    %276 = vmatprep.subr.bf16.mxu0 0
    %277 = vmatpush1.bf16.msra.mxu0 0
    %278 = vmatprep.subr.bf16.mxu0 0
    %279 = vmatpush1.bf16.msra.mxu0 0
    %280 = vmatprep.subr.bf16.mxu0 0
    %281 = vmatpush1.bf16.msra.mxu0 0
    %282 = vmatprep.subr.bf16.mxu0 0
    %283 = vmatpush1.bf16.msra.mxu0 0
    %284 = vmatprep.subr.bf16.mxu0 0
    %285 = vmatpush1.bf16.msra.mxu0 %v197
    %286 = vmatprep.subr.bf16.mxu0 0
    %287 = vmatpush1.bf16.msra.mxu0 %v196
    %288 = vmatprep.subr.bf16.mxu0 0
    %289 = vmatpush2.bf16.msra.mxu0 0
    %290 = vmatprep.subr.bf16.mxu0 0
    %291 = vmatpush2.bf16.msra.mxu0 0
    %292 = vmatprep.subr.bf16.mxu0 0
    %293 = vmatpush2.bf16.msra.mxu0 0
    %294 = vmatprep.subr.bf16.mxu0 0
    %295 = vmatpush2.bf16.msra.mxu0 0
    %296 = vmatprep.subr.bf16.mxu0 0
    %297 = vmatpush2.bf16.msra.mxu0 0
    %298 = vmatprep.subr.bf16.mxu0 0
    %299 = vmatpush2.bf16.msra.mxu0 0
    %300 = vmatprep.subr.bf16.mxu0 0
    %301 = vmatpush2.bf16.msra.mxu0 0
    %302 = vmatprep.subr.bf16.mxu0 0
    %303 = vmatpush2.bf16.msra.mxu0 0
    %304 = vmatprep.mubr.bf16.mxu0 0
    %305 = vmatmul.mubr.bf16.gmra.mxu0 %v218
    %v306 = vpop.f32.mrf.mxu0
    %v307 = vadd.f32 %v258, %v306
    %v308 = vpop.f32.mrf.mxu0
    %v309 = vpop.f32.mrf.mxu0
    %v310 = vadd.f32 %v261, %v309
    %v311 = vpop.f32.mrf.mxu0
    %312 = vmatprep.mubr.bf16.mxu0 0
    %313 = vmatmul.mubr.bf16.gmra.mxu0 %v221
    %v314 = vpop.f32.mrf.mxu0
    %v315 = vadd.f32 %v266, %v314
    %v316 = vpop.f32.mrf.mxu0
    %v317 = vpop.f32.mrf.mxu0
    %v318 = vadd.f32 %v269, %v317
    %v319 = vpop.f32.mrf.mxu0
    %320 = vdwg.mxu0
    %vm321 = vcmp.gt.f32.partialorder %v307, 0.0
    %vm322 = vcmp.gt.f32.partialorder %v310, 0.0
    %vm323 = vcmp.gt.f32.partialorder %v315, 0.0
    %vm324 = vcmp.gt.f32.partialorder %v318, 0.0
    %v325 = vmul.f32 %v307, 0.1
    %v326 = vmul.f32 %v310, 0.1
    %v327 = vmul.f32 %v315, 0.1
    %v328 = vmul.f32 %v318, 0.1
    %v329 = vsel %vm321, %v307, %v325
    %v330 = vsel %vm322, %v310, %v326
    %v331 = vsel %vm323, %v315, %v327
    %v332 = vsel %vm324, %v318, %v328
    %v333 = vpack.c.bf16 %v330, %v329
    %v334 = vpack.c.bf16 %v332, %v331
    %v337 = vunpack.c.l.b16 %v333
    %v338 = vunpack.c.h.b16 %v333
    %v339 = vunpack.c.l.b16 %v334
    %v340 = vunpack.c.h.b16 %v334
    %v341 = vpack.c.b16 %v337, %v337
    %v342 = vpack.c.b16 %v338, %v338
    %v343 = vpack.c.b16 %v339, %v339
    %v344 = vpack.c.b16 %v340, %v340
    %349 = vst [vmem:[%s3] sm:$0xf] %v341
    %350 = vst [vmem:[%s3 + $0x4] sm:$0xf] %v342
    %351 = vst [vmem:[%s3 + $0x8] sm:$0xf] %v343
    %352 = vst [vmem:[%s3 + $0xc] sm:$0xf] %v344
    // Predicated region
    $region18: #{yolov3_forward.112} parent=1 // pred_check
      _
    $region19: #{yolov3_forward.112} parent=1 // pred_check_branch
      %354 = sbr.rel (0) target = $region21
    $region20: #{yolov3_forward.112} parent=1 // pred_region
      _
    $region21: #{yolov3_forward.112} parent=1 // pred_fallthru
      _
    // Predicated region
    $region22: #{yolov3_forward.112} parent=1 // pred_check
      _
    $region23: #{yolov3_forward.112} parent=1 // pred_check_branch
      %356 = sbr.rel (0) target = $region25
    $region24: #{yolov3_forward.112} parent=1 // pred_region
      _
    $region25: #{yolov3_forward.112} parent=1 // pred_fallthru
      _
    %357 = vsyncpa [#allocation3], 1

// kernel: yolov3_forward.113
$region0: #{yolov3_forward.113}
  #allocation0 [shape = 'u32[]', space=smem, size = 0x4, offset = 0x4, fixed_abs, tag = 'smem constant byte address 0x4 - core index']
  #allocation1 [shape = 'u32[144,128]{1,0:T(1,128)}', space=vmem, size = 0x12000, scoped, tag = 'internal scratch']
  %s0 = inlined_call_operand.vmem [shape: bf16[32,64], index: 0, kind: input, shape index: {}]
  %s1 = inlined_call_operand.vmem [shape: bf16[64,128], index: 1, kind: input, shape index: {}]
  %s2 = inlined_call_operand.hbm [shape: f32[1,128], index: 2, kind: input, shape index: {}]
  %s3 = inlined_call_operand.vmem [shape: bf16[32,128], index: 3, kind: output, shape index: {}]
  %s4 = sld [smem:[#allocation0]]
  $region26: #{yolov3_forward.113} parent=0
    _
  %s6 = ssub.s32 1, %s4
  %s7 = scalar_select 0, %s6, %s4
  $region1: #{yolov3_forward.113} parent=0
    #allocation2 [shape = 'u8[512]{0}', space=vmem, size = 0x400, scoped, tag = 'input window, operand 2, single buffered']
    #allocation3 [shape = 's32[1]{0}', space=sflag, size = 0x4, scoped, tag = 'scoped memory for yolov3_forward.113']
    %8 = vsyncpa [#allocation3], 0
    // Predicated region
    $region2: #{yolov3_forward.113} parent=1 // pred_check
      _
    $region3: #{yolov3_forward.113} parent=1 // pred_check_branch
      %10 = sbr.rel (0) target = $region5
    $region4: #{yolov3_forward.113} parent=1 // pred_region
      _
    $region5: #{yolov3_forward.113} parent=1 // pred_fallthru
      _
    // Predicated region
    $region6: #{yolov3_forward.113} parent=1 // pred_check
      _
    $region7: #{yolov3_forward.113} parent=1 // pred_check_branch
      %12 = sbr.rel (0) target = $region9
    $region8: #{yolov3_forward.113} parent=1 // pred_region
      _
    $region9: #{yolov3_forward.113} parent=1 // pred_fallthru
      _
    // Predicated region
    $region10: #{yolov3_forward.113} parent=1 // pred_check
      _
    $region11: #{yolov3_forward.113} parent=1 // pred_check_branch
      %14 = sbr.rel (0) target = $region13
    $region12: #{yolov3_forward.113} parent=1 // pred_region
      %s16 = ssub.s32 16, 16
      %17 = vsyncadd [#allocation3], %s16
      %s19 = sshll.u32 [#allocation2], 4
      %s20 = int_to_ptr.vmem [resolvable:$true] %s19
      %22 = dma.hbm_to_vmem [thread:$0]  %s2, 16, %s20, [#allocation3]
    $region13: #{yolov3_forward.113} parent=1 // pred_fallthru
      _
    // Predicated region
    $region14: #{yolov3_forward.113} parent=1 // pred_check
      _
    $region15: #{yolov3_forward.113} parent=1 // pred_check_branch
      %24 = sbr.rel (0) target = $region17
    $region16: #{yolov3_forward.113} parent=1 // pred_region
      %25 = dma.done [#allocation3], 16
    $region17: #{yolov3_forward.113} parent=1 // pred_fallthru
      _
    %v27 = vld [vmem:[%s0] sm:$0xf]
    %v28 = vld [vmem:[%s0 + $0x4] sm:$0xf]
    %v29 = vld [vmem:[%s0 + $0x8] sm:$0xf]
    %v30 = vld [vmem:[%s0 + $0xc] sm:$0xf]
    %v31 = vld [vmem:[%s1] sm:$0xf]
    %v32 = vld [vmem:[%s1 + $0x4] sm:$0xf]
    %v33 = vld [vmem:[%s1 + $0x8] sm:$0xf]
    %v34 = vld [vmem:[%s1 + $0xc] sm:$0xf]
    %v35 = vld [vmem:[%s1 + $0x10] sm:$0xf]
    %v36 = vld [vmem:[%s1 + $0x14] sm:$0xf]
    %v37 = vld [vmem:[%s1 + $0x18] sm:$0xf]
    %v38 = vld [vmem:[%s1 + $0x1c] sm:$0xf]
    %v39 = vld [vmem:[#allocation2] sm:$0x1]
    %v41 = vlaneseq
    %v42 = vshrl.u32 %v41, 7
    %v43 = vsub.s32 0, %v42
    %v44 = vrot.slane %v39, %v43
    %v50 = vunpack.c.l.b16 %v27
    %v51 = vunpack.c.l.b16 %v28
    %v52 = vunpack.c.l.b16 %v29
    %v53 = vunpack.c.l.b16 %v30
    %v54 = vpack.c.b16 %v51, %v50
    %v55 = vpack.c.b16 %v53, %v52
    %v64 = vunpack.c.l.b16 %v31
    %v65 = vunpack.c.l.b16 %v32
    %v66 = vunpack.c.l.b16 %v33
    %v67 = vunpack.c.l.b16 %v34
    %v68 = vunpack.c.l.b16 %v35
    %v69 = vunpack.c.l.b16 %v36
    %v70 = vunpack.c.l.b16 %v37
    %v71 = vunpack.c.l.b16 %v38
    %v72 = vpack.c.b16 %v65, %v64
    %v73 = vpack.c.b16 %v67, %v66
    %v74 = vpack.c.b16 %v69, %v68
    %v75 = vpack.c.b16 %v71, %v70
    %vm80 = vcmask 523264
    %v82 = vsel %vm80, %v54, 0
    %v85 = vsel %vm80, %v55, 0
    %87 = vmatprep.subr.bf16.mxu0 0
    %88 = vmatpush1.bf16.msra.mxu0 0
    %89 = vmatprep.subr.bf16.mxu0 0
    %90 = vmatpush1.bf16.msra.mxu0 0
    %91 = vmatprep.subr.bf16.mxu0 0
    %92 = vmatpush1.bf16.msra.mxu0 0
    %93 = vmatprep.subr.bf16.mxu0 0
    %94 = vmatpush1.bf16.msra.mxu0 0
    %95 = vmatprep.subr.bf16.mxu0 0
    %96 = vmatpush1.bf16.msra.mxu0 %v75
    %97 = vmatprep.subr.bf16.mxu0 0
    %98 = vmatpush1.bf16.msra.mxu0 %v74
    %99 = vmatprep.subr.bf16.mxu0 0
    %100 = vmatpush1.bf16.msra.mxu0 %v73
    %101 = vmatprep.subr.bf16.mxu0 0
    %102 = vmatpush1.bf16.msra.mxu0 %v72
    %103 = vmatprep.subr.bf16.mxu0 0
    %104 = vmatpush2.bf16.msra.mxu0 0
    %105 = vmatprep.subr.bf16.mxu0 0
    %106 = vmatpush2.bf16.msra.mxu0 0
    %107 = vmatprep.subr.bf16.mxu0 0
    %108 = vmatpush2.bf16.msra.mxu0 0
    %109 = vmatprep.subr.bf16.mxu0 0
    %110 = vmatpush2.bf16.msra.mxu0 0
    %111 = vmatprep.subr.bf16.mxu0 0
    %112 = vmatpush2.bf16.msra.mxu0 0
    %113 = vmatprep.subr.bf16.mxu0 0
    %114 = vmatpush2.bf16.msra.mxu0 0
    %115 = vmatprep.subr.bf16.mxu0 0
    %116 = vmatpush2.bf16.msra.mxu0 0
    %117 = vmatprep.subr.bf16.mxu0 0
    %118 = vmatpush2.bf16.msra.mxu0 0
    %119 = vmatprep.mubr.bf16.mxu0 0
    %120 = vmatmul.mubr.bf16.gmra.mxu0 %v82
    %v121 = vpop.f32.mrf.mxu0
    %v122 = vadd.f32 %v44, %v121
    %v123 = vpop.f32.mrf.mxu0
    %v124 = vpop.f32.mrf.mxu0
    %v125 = vadd.f32 %v44, %v124
    %v126 = vpop.f32.mrf.mxu0
    %127 = vmatprep.mubr.bf16.mxu0 0
    %128 = vmatmul.mubr.bf16.gmra.mxu0 %v85
    %v129 = vpop.f32.mrf.mxu0
    %v130 = vadd.f32 %v44, %v129
    %v131 = vpop.f32.mrf.mxu0
    %v132 = vpop.f32.mrf.mxu0
    %v133 = vadd.f32 %v44, %v132
    %v134 = vpop.f32.mrf.mxu0
    %135 = vdwg.mxu0
    %vm136 = vcmp.gt.f32.partialorder %v122, 0.0
    %vm137 = vcmp.gt.f32.partialorder %v125, 0.0
    %vm138 = vcmp.gt.f32.partialorder %v130, 0.0
    %vm139 = vcmp.gt.f32.partialorder %v133, 0.0
    %v140 = vmul.f32 %v122, 0.1
    %v141 = vmul.f32 %v125, 0.1
    %v142 = vmul.f32 %v130, 0.1
    %v143 = vmul.f32 %v133, 0.1
    %v144 = vsel %vm136, %v122, %v140
    %v145 = vsel %vm137, %v125, %v141
    %v146 = vsel %vm138, %v130, %v142
    %v147 = vsel %vm139, %v133, %v143
    %v148 = vpack.c.bf16 %v145, %v144
    %v149 = vpack.c.bf16 %v147, %v146
    %v152 = vunpack.c.l.b16 %v148
    %v153 = vunpack.c.h.b16 %v148
    %v154 = vunpack.c.l.b16 %v149
    %v155 = vunpack.c.h.b16 %v149
    %v156 = vpack.c.b16 %v152, %v152
    %v157 = vpack.c.b16 %v153, %v153
    %v158 = vpack.c.b16 %v154, %v154
    %v159 = vpack.c.b16 %v155, %v155
    %164 = vst [vmem:[%s3] sm:$0xf] %v156
    %165 = vst [vmem:[%s3 + $0x4] sm:$0xf] %v157
    %166 = vst [vmem:[%s3 + $0x8] sm:$0xf] %v158
    %167 = vst [vmem:[%s3 + $0xc] sm:$0xf] %v159
    // Predicated region
    $region18: #{yolov3_forward.113} parent=1 // pred_check
      _
    $region19: #{yolov3_forward.113} parent=1 // pred_check_branch
      %169 = sbr.rel (0) target = $region21
    $region20: #{yolov3_forward.113} parent=1 // pred_region
      _
    $region21: #{yolov3_forward.113} parent=1 // pred_fallthru
      _
    // Predicated region
    $region22: #{yolov3_forward.113} parent=1 // pred_check
      _
    $region23: #{yolov3_forward.113} parent=1 // pred_check_branch
      %171 = sbr.rel (0) target = $region25
    $region24: #{yolov3_forward.113} parent=1 // pred_region
      _
    $region25: #{yolov3_forward.113} parent=1 // pred_fallthru
      _
    %172 = vsyncpa [#allocation3], 1

// kernel: yolov3_forward.122
$region0: #{yolov3_forward.122}
  #allocation0 [shape = 'u32[]', space=smem, size = 0x4, offset = 0x4, fixed_abs, tag = 'smem constant byte address 0x4 - core index']
  #allocation1 [shape = 'u32[144,128]{1,0:T(1,128)}', space=vmem, size = 0x12000, scoped, tag = 'internal scratch']
  %s0 = inlined_call_operand.vmem [shape: bf16[8,128], index: 0, kind: input, shape index: {}]
  %s1 = inlined_call_operand.vmem [shape: bf16[128,128], index: 1, kind: input, shape index: {}]
  %s2 = inlined_call_operand.hbm [shape: f32[1,128], index: 2, kind: input, shape index: {}]
  %s3 = inlined_call_operand.vmem [shape: bf16[8,128], index: 3, kind: output, shape index: {}]
  %s4 = sld [smem:[#allocation0]]
  $region26: #{yolov3_forward.122} parent=0
    _
  %s6 = ssub.s32 1, %s4
  %s7 = scalar_select 0, %s6, %s4
  $region1: #{yolov3_forward.122} parent=0
    #allocation2 [shape = 'u8[512]{0}', space=vmem, size = 0x400, scoped, tag = 'input window, operand 2, single buffered']
    #allocation3 [shape = 's32[1]{0}', space=sflag, size = 0x4, scoped, tag = 'scoped memory for yolov3_forward.122']
    %8 = vsyncpa [#allocation3], 0
    // Predicated region
    $region2: #{yolov3_forward.122} parent=1 // pred_check
      _
    $region3: #{yolov3_forward.122} parent=1 // pred_check_branch
      %10 = sbr.rel (0) target = $region5
    $region4: #{yolov3_forward.122} parent=1 // pred_region
      _
    $region5: #{yolov3_forward.122} parent=1 // pred_fallthru
      _
    // Predicated region
    $region6: #{yolov3_forward.122} parent=1 // pred_check
      _
    $region7: #{yolov3_forward.122} parent=1 // pred_check_branch
      %12 = sbr.rel (0) target = $region9
    $region8: #{yolov3_forward.122} parent=1 // pred_region
      _
    $region9: #{yolov3_forward.122} parent=1 // pred_fallthru
      _
    // Predicated region
    $region10: #{yolov3_forward.122} parent=1 // pred_check
      _
    $region11: #{yolov3_forward.122} parent=1 // pred_check_branch
      %14 = sbr.rel (0) target = $region13
    $region12: #{yolov3_forward.122} parent=1 // pred_region
      %s16 = ssub.s32 16, 16
      %17 = vsyncadd [#allocation3], %s16
      %s19 = sshll.u32 [#allocation2], 4
      %s20 = int_to_ptr.vmem [resolvable:$true] %s19
      %22 = dma.hbm_to_vmem [thread:$0]  %s2, 16, %s20, [#allocation3]
    $region13: #{yolov3_forward.122} parent=1 // pred_fallthru
      _
    // Predicated region
    $region14: #{yolov3_forward.122} parent=1 // pred_check
      _
    $region15: #{yolov3_forward.122} parent=1 // pred_check_branch
      %24 = sbr.rel (0) target = $region17
    $region16: #{yolov3_forward.122} parent=1 // pred_region
      %25 = dma.done [#allocation3], 16
    $region17: #{yolov3_forward.122} parent=1 // pred_fallthru
      _
    %v27 = vld [vmem:[%s0] sm:$0xf]
    %v28 = vld [vmem:[%s1] sm:$0xf]
    %v29 = vld [vmem:[%s1 + $0x4] sm:$0xf]
    %v30 = vld [vmem:[%s1 + $0x8] sm:$0xf]
    %v31 = vld [vmem:[%s1 + $0xc] sm:$0xf]
    %v32 = vld [vmem:[%s1 + $0x10] sm:$0xf]
    %v33 = vld [vmem:[%s1 + $0x14] sm:$0xf]
    %v34 = vld [vmem:[%s1 + $0x18] sm:$0xf]
    %v35 = vld [vmem:[%s1 + $0x1c] sm:$0xf]
    %v36 = vld [vmem:[%s1 + $0x20] sm:$0xf]
    %v37 = vld [vmem:[%s1 + $0x24] sm:$0xf]
    %v38 = vld [vmem:[%s1 + $0x28] sm:$0xf]
    %v39 = vld [vmem:[%s1 + $0x2c] sm:$0xf]
    %v40 = vld [vmem:[%s1 + $0x30] sm:$0xf]
    %v41 = vld [vmem:[%s1 + $0x34] sm:$0xf]
    %v42 = vld [vmem:[%s1 + $0x38] sm:$0xf]
    %v43 = vld [vmem:[%s1 + $0x3c] sm:$0xf]
    %v44 = vld [vmem:[#allocation2] sm:$0x1]
    %v46 = vlaneseq
    %v47 = vshrl.u32 %v46, 7
    %v48 = vsub.s32 0, %v47
    %v49 = vrot.slane %v44, %v48
    %v67 = vunpack.c.l.b16 %v28
    %v68 = vunpack.c.l.b16 %v29
    %v69 = vunpack.c.l.b16 %v30
    %v70 = vunpack.c.l.b16 %v31
    %v71 = vunpack.c.l.b16 %v32
    %v72 = vunpack.c.l.b16 %v33
    %v73 = vunpack.c.l.b16 %v34
    %v74 = vunpack.c.l.b16 %v35
    %v75 = vunpack.c.l.b16 %v36
    %v76 = vunpack.c.l.b16 %v37
    %v77 = vunpack.c.l.b16 %v38
    %v78 = vunpack.c.l.b16 %v39
    %v79 = vunpack.c.l.b16 %v40
    %v80 = vunpack.c.l.b16 %v41
    %v81 = vunpack.c.l.b16 %v42
    %v82 = vunpack.c.l.b16 %v43
    %v83 = vpack.c.b16 %v68, %v67
    %v84 = vpack.c.b16 %v70, %v69
    %v85 = vpack.c.b16 %v72, %v71
    %v86 = vpack.c.b16 %v74, %v73
    %v87 = vpack.c.b16 %v76, %v75
    %v88 = vpack.c.b16 %v78, %v77
    %v89 = vpack.c.b16 %v80, %v79
    %v90 = vpack.c.b16 %v82, %v81
    %99 = vmatprep.subr.bf16.mxu0 0
    %100 = vmatpush1.bf16.msra.mxu0 %v90
    %101 = vmatprep.subr.bf16.mxu0 0
    %102 = vmatpush1.bf16.msra.mxu0 %v89
    %103 = vmatprep.subr.bf16.mxu0 0
    %104 = vmatpush1.bf16.msra.mxu0 %v88
    %105 = vmatprep.subr.bf16.mxu0 0
    %106 = vmatpush1.bf16.msra.mxu0 %v87
    %107 = vmatprep.subr.bf16.mxu0 0
    %108 = vmatpush1.bf16.msra.mxu0 %v86
    %109 = vmatprep.subr.bf16.mxu0 0
    %110 = vmatpush1.bf16.msra.mxu0 %v85
    %111 = vmatprep.subr.bf16.mxu0 0
    %112 = vmatpush1.bf16.msra.mxu0 %v84
    %113 = vmatprep.subr.bf16.mxu0 0
    %114 = vmatpush1.bf16.msra.mxu0 %v83
    %115 = vmatprep.subr.bf16.mxu0 0
    %116 = vmatpush2.bf16.msra.mxu0 0
    %117 = vmatprep.subr.bf16.mxu0 0
    %118 = vmatpush2.bf16.msra.mxu0 0
    %119 = vmatprep.subr.bf16.mxu0 0
    %120 = vmatpush2.bf16.msra.mxu0 0
    %121 = vmatprep.subr.bf16.mxu0 0
    %122 = vmatpush2.bf16.msra.mxu0 0
    %123 = vmatprep.subr.bf16.mxu0 0
    %124 = vmatpush2.bf16.msra.mxu0 0
    %125 = vmatprep.subr.bf16.mxu0 0
    %126 = vmatpush2.bf16.msra.mxu0 0
    %127 = vmatprep.subr.bf16.mxu0 0
    %128 = vmatpush2.bf16.msra.mxu0 0
    %129 = vmatprep.subr.bf16.mxu0 0
    %130 = vmatpush2.bf16.msra.mxu0 0
    %131 = vmatprep.mubr.bf16.mxu0 0
    %132 = vmatmul.mubr.bf16.gmra.mxu0 %v27
    %v133 = vpop.f32.mrf.mxu0
    %v134 = vadd.f32 %v49, %v133
    %v135 = vpop.f32.mrf.mxu0
    %v136 = vpop.f32.mrf.mxu0
    %v137 = vpop.f32.mrf.mxu0
    %138 = vdwg.mxu0
    %vm139 = vcmp.gt.f32.partialorder %v134, 0.0
    %v140 = vmul.f32 %v134, 0.1
    %v141 = vsel %vm139, %v134, %v140
    %v142 = vpack.c.bf16 %v141, %v141
    %143 = vst [vmem:[%s3] sm:$0xf] %v142
    // Predicated region
    $region18: #{yolov3_forward.122} parent=1 // pred_check
      _
    $region19: #{yolov3_forward.122} parent=1 // pred_check_branch
      %145 = sbr.rel (0) target = $region21
    $region20: #{yolov3_forward.122} parent=1 // pred_region
      _
    $region21: #{yolov3_forward.122} parent=1 // pred_fallthru
      _
    // Predicated region
    $region22: #{yolov3_forward.122} parent=1 // pred_check
      _
    $region23: #{yolov3_forward.122} parent=1 // pred_check_branch
      %147 = sbr.rel (0) target = $region25
    $region24: #{yolov3_forward.122} parent=1 // pred_region
      _
    $region25: #{yolov3_forward.122} parent=1 // pred_fallthru
      _
    %148 = vsyncpa [#allocation3], 1

// kernel: yolov3_forward.121
$region0: #{yolov3_forward.121}
  #allocation0 [shape = 'u32[]', space=smem, size = 0x4, offset = 0x4, fixed_abs, tag = 'smem constant byte address 0x4 - core index']
  #allocation1 [shape = 'u32[144,128]{1,0:T(1,128)}', space=vmem, size = 0x12000, scoped, tag = 'internal scratch']
  %s0 = inlined_call_operand.vmem [shape: bf16[8,576], index: 0, kind: input, shape index: {}]
  %s1 = inlined_call_operand.vmem [shape: bf16[576,128], index: 1, kind: input, shape index: {}]
  %s2 = inlined_call_operand.hbm [shape: f32[1,128], index: 2, kind: input, shape index: {}]
  %s3 = inlined_call_operand.vmem [shape: bf16[8,128], index: 3, kind: output, shape index: {}]
  %s4 = sld [smem:[#allocation0]]
  $region26: #{yolov3_forward.121} parent=0
    _
  %s6 = ssub.s32 1, %s4
  %s7 = scalar_select 0, %s6, %s4
  $region1: #{yolov3_forward.121} parent=0
    #allocation2 [shape = 'u8[512]{0}', space=vmem, size = 0x400, scoped, tag = 'input window, operand 2, single buffered']
    #allocation3 [shape = 's32[1]{0}', space=sflag, size = 0x4, scoped, tag = 'scoped memory for yolov3_forward.121']
    %8 = vsyncpa [#allocation3], 0
    // Predicated region
    $region2: #{yolov3_forward.121} parent=1 // pred_check
      _
    $region3: #{yolov3_forward.121} parent=1 // pred_check_branch
      %10 = sbr.rel (0) target = $region5
    $region4: #{yolov3_forward.121} parent=1 // pred_region
      _
    $region5: #{yolov3_forward.121} parent=1 // pred_fallthru
      _
    // Predicated region
    $region6: #{yolov3_forward.121} parent=1 // pred_check
      _
    $region7: #{yolov3_forward.121} parent=1 // pred_check_branch
      %12 = sbr.rel (0) target = $region9
    $region8: #{yolov3_forward.121} parent=1 // pred_region
      _
    $region9: #{yolov3_forward.121} parent=1 // pred_fallthru
      _
    // Predicated region
    $region10: #{yolov3_forward.121} parent=1 // pred_check
      _
    $region11: #{yolov3_forward.121} parent=1 // pred_check_branch
      %14 = sbr.rel (0) target = $region13
    $region12: #{yolov3_forward.121} parent=1 // pred_region
      %s16 = ssub.s32 16, 16
      %17 = vsyncadd [#allocation3], %s16
      %s19 = sshll.u32 [#allocation2], 4
      %s20 = int_to_ptr.vmem [resolvable:$true] %s19
      %22 = dma.hbm_to_vmem [thread:$0]  %s2, 16, %s20, [#allocation3]
    $region13: #{yolov3_forward.121} parent=1 // pred_fallthru
      _
    // Predicated region
    $region14: #{yolov3_forward.121} parent=1 // pred_check
      _
    $region15: #{yolov3_forward.121} parent=1 // pred_check_branch
      %24 = sbr.rel (0) target = $region17
    $region16: #{yolov3_forward.121} parent=1 // pred_region
      %25 = dma.done [#allocation3], 16
    $region17: #{yolov3_forward.121} parent=1 // pred_fallthru
      _
    %v27 = vld [vmem:[%s0] sm:$0xff]
    %v28 = vld [vmem:[%s0 + $0x8] sm:$0xff]
    %v29 = vld [vmem:[%s0 + $0x10] sm:$0xf]
    %v30 = vld [vmem:[%s1] sm:$0xf]
    %v31 = vld [vmem:[%s1 + $0x4] sm:$0xf]
    %v32 = vld [vmem:[%s1 + $0x8] sm:$0xf]
    %v33 = vld [vmem:[%s1 + $0xc] sm:$0xf]
    %v34 = vld [vmem:[%s1 + $0x10] sm:$0xf]
    %v35 = vld [vmem:[%s1 + $0x14] sm:$0xf]
    %v36 = vld [vmem:[%s1 + $0x18] sm:$0xf]
    %v37 = vld [vmem:[%s1 + $0x1c] sm:$0xf]
    %v38 = vld [vmem:[%s1 + $0x20] sm:$0xf]
    %v39 = vld [vmem:[%s1 + $0x24] sm:$0xf]
    %v40 = vld [vmem:[%s1 + $0x28] sm:$0xf]
    %v41 = vld [vmem:[%s1 + $0x2c] sm:$0xf]
    %v42 = vld [vmem:[%s1 + $0x30] sm:$0xf]
    %v43 = vld [vmem:[%s1 + $0x34] sm:$0xf]
    %v44 = vld [vmem:[%s1 + $0x38] sm:$0xf]
    %v45 = vld [vmem:[%s1 + $0x3c] sm:$0xf]
    %v46 = vld [vmem:[%s1 + $0x40] sm:$0xf]
    %v47 = vld [vmem:[%s1 + $0x44] sm:$0xf]
    %v48 = vld [vmem:[%s1 + $0x48] sm:$0xf]
    %v49 = vld [vmem:[%s1 + $0x4c] sm:$0xf]
    %v50 = vld [vmem:[%s1 + $0x50] sm:$0xf]
    %v51 = vld [vmem:[%s1 + $0x54] sm:$0xf]
    %v52 = vld [vmem:[%s1 + $0x58] sm:$0xf]
    %v53 = vld [vmem:[%s1 + $0x5c] sm:$0xf]
    %v54 = vld [vmem:[%s1 + $0x60] sm:$0xf]
    %v55 = vld [vmem:[%s1 + $0x64] sm:$0xf]
    %v56 = vld [vmem:[%s1 + $0x68] sm:$0xf]
    %v57 = vld [vmem:[%s1 + $0x6c] sm:$0xf]
    %v58 = vld [vmem:[%s1 + $0x70] sm:$0xf]
    %v59 = vld [vmem:[%s1 + $0x74] sm:$0xf]
    %v60 = vld [vmem:[%s1 + $0x78] sm:$0xf]
    %v61 = vld [vmem:[%s1 + $0x7c] sm:$0xf]
    %v62 = vld [vmem:[%s1 + $0x80] sm:$0xf]
    %v63 = vld [vmem:[%s1 + $0x84] sm:$0xf]
    %v64 = vld [vmem:[%s1 + $0x88] sm:$0xf]
    %v65 = vld [vmem:[%s1 + $0x8c] sm:$0xf]
    %v66 = vld [vmem:[%s1 + $0x90] sm:$0xf]
    %v67 = vld [vmem:[%s1 + $0x94] sm:$0xf]
    %v68 = vld [vmem:[%s1 + $0x98] sm:$0xf]
    %v69 = vld [vmem:[%s1 + $0x9c] sm:$0xf]
    %v70 = vld [vmem:[%s1 + $0xa0] sm:$0xf]
    %v71 = vld [vmem:[%s1 + $0xa4] sm:$0xf]
    %v72 = vld [vmem:[%s1 + $0xa8] sm:$0xf]
    %v73 = vld [vmem:[%s1 + $0xac] sm:$0xf]
    %v74 = vld [vmem:[%s1 + $0xb0] sm:$0xf]
    %v75 = vld [vmem:[%s1 + $0xb4] sm:$0xf]
    %v76 = vld [vmem:[%s1 + $0xb8] sm:$0xf]
    %v77 = vld [vmem:[%s1 + $0xbc] sm:$0xf]
    %v78 = vld [vmem:[%s1 + $0xc0] sm:$0xf]
    %v79 = vld [vmem:[%s1 + $0xc4] sm:$0xf]
    %v80 = vld [vmem:[%s1 + $0xc8] sm:$0xf]
    %v81 = vld [vmem:[%s1 + $0xcc] sm:$0xf]
    %v82 = vld [vmem:[%s1 + $0xd0] sm:$0xf]
    %v83 = vld [vmem:[%s1 + $0xd4] sm:$0xf]
    %v84 = vld [vmem:[%s1 + $0xd8] sm:$0xf]
    %v85 = vld [vmem:[%s1 + $0xdc] sm:$0xf]
    %v86 = vld [vmem:[%s1 + $0xe0] sm:$0xf]
    %v87 = vld [vmem:[%s1 + $0xe4] sm:$0xf]
    %v88 = vld [vmem:[%s1 + $0xe8] sm:$0xf]
    %v89 = vld [vmem:[%s1 + $0xec] sm:$0xf]
    %v90 = vld [vmem:[%s1 + $0xf0] sm:$0xf]
    %v91 = vld [vmem:[%s1 + $0xf4] sm:$0xf]
    %v92 = vld [vmem:[%s1 + $0xf8] sm:$0xf]
    %v93 = vld [vmem:[%s1 + $0xfc] sm:$0xf]
    %v94 = vld [vmem:[%s1 + $0x100] sm:$0xf]
    %v95 = vld [vmem:[%s1 + $0x104] sm:$0xf]
    %v96 = vld [vmem:[%s1 + $0x108] sm:$0xf]
    %v97 = vld [vmem:[%s1 + $0x10c] sm:$0xf]
    %v98 = vld [vmem:[%s1 + $0x110] sm:$0xf]
    %v99 = vld [vmem:[%s1 + $0x114] sm:$0xf]
    %v100 = vld [vmem:[%s1 + $0x118] sm:$0xf]
    %v101 = vld [vmem:[%s1 + $0x11c] sm:$0xf]
    %v102 = vld [vmem:[#allocation2] sm:$0x1]
    %v104 = vlaneseq
    %v105 = vshrl.u32 %v104, 7
    %v106 = vsub.s32 0, %v105
    %v107 = vrot.slane %v102, %v106
    %v112 = vunpack.c.l.b16 %v27
    %v113 = vunpack.c.h.b16 %v27
    %v114 = vunpack.c.l.b16 %v28
    %v115 = vunpack.c.h.b16 %v28
    %v116 = vunpack.c.l.b16 %v29
    %v117 = vpack.c.b16 %v112, %v112
    %v118 = vpack.c.b16 %v113, %v113
    %v119 = vpack.c.b16 %v114, %v114
    %v120 = vpack.c.b16 %v115, %v115
    %v121 = vpack.c.b16 %v116, %v116
    %v198 = vunpack.c.l.b16 %v30
    %v199 = vunpack.c.l.b16 %v31
    %v200 = vunpack.c.l.b16 %v32
    %v201 = vunpack.c.l.b16 %v33
    %v202 = vunpack.c.l.b16 %v34
    %v203 = vunpack.c.l.b16 %v35
    %v204 = vunpack.c.l.b16 %v36
    %v205 = vunpack.c.l.b16 %v37
    %v206 = vunpack.c.l.b16 %v38
    %v207 = vunpack.c.l.b16 %v39
    %v208 = vunpack.c.l.b16 %v40
    %v209 = vunpack.c.l.b16 %v41
    %v210 = vunpack.c.l.b16 %v42
    %v211 = vunpack.c.l.b16 %v43
    %v212 = vunpack.c.l.b16 %v44
    %v213 = vunpack.c.l.b16 %v45
    %v214 = vunpack.c.l.b16 %v46
    %v215 = vunpack.c.l.b16 %v47
    %v216 = vunpack.c.l.b16 %v48
    %v217 = vunpack.c.l.b16 %v49
    %v218 = vunpack.c.l.b16 %v50
    %v219 = vunpack.c.l.b16 %v51
    %v220 = vunpack.c.l.b16 %v52
    %v221 = vunpack.c.l.b16 %v53
    %v222 = vunpack.c.l.b16 %v54
    %v223 = vunpack.c.l.b16 %v55
    %v224 = vunpack.c.l.b16 %v56
    %v225 = vunpack.c.l.b16 %v57
    %v226 = vunpack.c.l.b16 %v58
    %v227 = vunpack.c.l.b16 %v59
    %v228 = vunpack.c.l.b16 %v60
    %v229 = vunpack.c.l.b16 %v61
    %v230 = vunpack.c.l.b16 %v62
    %v231 = vunpack.c.l.b16 %v63
    %v232 = vunpack.c.l.b16 %v64
    %v233 = vunpack.c.l.b16 %v65
    %v234 = vunpack.c.l.b16 %v66
    %v235 = vunpack.c.l.b16 %v67
    %v236 = vunpack.c.l.b16 %v68
    %v237 = vunpack.c.l.b16 %v69
    %v238 = vunpack.c.l.b16 %v70
    %v239 = vunpack.c.l.b16 %v71
    %v240 = vunpack.c.l.b16 %v72
    %v241 = vunpack.c.l.b16 %v73
    %v242 = vunpack.c.l.b16 %v74
    %v243 = vunpack.c.l.b16 %v75
    %v244 = vunpack.c.l.b16 %v76
    %v245 = vunpack.c.l.b16 %v77
    %v246 = vunpack.c.l.b16 %v78
    %v247 = vunpack.c.l.b16 %v79
    %v248 = vunpack.c.l.b16 %v80
    %v249 = vunpack.c.l.b16 %v81
    %v250 = vunpack.c.l.b16 %v82
    %v251 = vunpack.c.l.b16 %v83
    %v252 = vunpack.c.l.b16 %v84
    %v253 = vunpack.c.l.b16 %v85
    %v254 = vunpack.c.l.b16 %v86
    %v255 = vunpack.c.l.b16 %v87
    %v256 = vunpack.c.l.b16 %v88
    %v257 = vunpack.c.l.b16 %v89
    %v258 = vunpack.c.l.b16 %v90
    %v259 = vunpack.c.l.b16 %v91
    %v260 = vunpack.c.l.b16 %v92
    %v261 = vunpack.c.l.b16 %v93
    %v262 = vunpack.c.l.b16 %v94
    %v263 = vunpack.c.l.b16 %v95
    %v264 = vunpack.c.l.b16 %v96
    %v265 = vunpack.c.l.b16 %v97
    %v266 = vunpack.c.l.b16 %v98
    %v267 = vunpack.c.l.b16 %v99
    %v268 = vunpack.c.l.b16 %v100
    %v269 = vunpack.c.l.b16 %v101
    %v270 = vpack.c.b16 %v199, %v198
    %v271 = vpack.c.b16 %v201, %v200
    %v272 = vpack.c.b16 %v203, %v202
    %v273 = vpack.c.b16 %v205, %v204
    %v274 = vpack.c.b16 %v207, %v206
    %v275 = vpack.c.b16 %v209, %v208
    %v276 = vpack.c.b16 %v211, %v210
    %v277 = vpack.c.b16 %v213, %v212
    %v278 = vpack.c.b16 %v215, %v214
    %v279 = vpack.c.b16 %v217, %v216
    %v280 = vpack.c.b16 %v219, %v218
    %v281 = vpack.c.b16 %v221, %v220
    %v282 = vpack.c.b16 %v223, %v222
    %v283 = vpack.c.b16 %v225, %v224
    %v284 = vpack.c.b16 %v227, %v226
    %v285 = vpack.c.b16 %v229, %v228
    %v286 = vpack.c.b16 %v231, %v230
    %v287 = vpack.c.b16 %v233, %v232
    %v288 = vpack.c.b16 %v235, %v234
    %v289 = vpack.c.b16 %v237, %v236
    %v290 = vpack.c.b16 %v239, %v238
    %v291 = vpack.c.b16 %v241, %v240
    %v292 = vpack.c.b16 %v243, %v242
    %v293 = vpack.c.b16 %v245, %v244
    %v294 = vpack.c.b16 %v247, %v246
    %v295 = vpack.c.b16 %v249, %v248
    %v296 = vpack.c.b16 %v251, %v250
    %v297 = vpack.c.b16 %v253, %v252
    %v298 = vpack.c.b16 %v255, %v254
    %v299 = vpack.c.b16 %v257, %v256
    %v300 = vpack.c.b16 %v259, %v258
    %v301 = vpack.c.b16 %v261, %v260
    %v302 = vpack.c.b16 %v263, %v262
    %v303 = vpack.c.b16 %v265, %v264
    %v304 = vpack.c.b16 %v267, %v266
    %v305 = vpack.c.b16 %v269, %v268
    %vm342 = vcmask 523264
    %v344 = vsel %vm342, %v121, 0
    %346 = vmatprep.subr.bf16.mxu0 0
    %347 = vmatpush1.bf16.msra.mxu0 %v277
    %348 = vmatprep.subr.bf16.mxu0 0
    %349 = vmatpush1.bf16.msra.mxu0 %v276
    %350 = vmatprep.subr.bf16.mxu0 0
    %351 = vmatpush1.bf16.msra.mxu0 %v275
    %352 = vmatprep.subr.bf16.mxu0 0
    %353 = vmatpush1.bf16.msra.mxu0 %v274
    %354 = vmatprep.subr.bf16.mxu0 0
    %355 = vmatpush1.bf16.msra.mxu0 %v273
    %356 = vmatprep.subr.bf16.mxu0 0
    %357 = vmatpush1.bf16.msra.mxu0 %v272
    %358 = vmatprep.subr.bf16.mxu0 0
    %359 = vmatpush1.bf16.msra.mxu0 %v271
    %360 = vmatprep.subr.bf16.mxu0 0
    %361 = vmatpush1.bf16.msra.mxu0 %v270
    %362 = vmatprep.subr.bf16.mxu0 0
    %363 = vmatpush2.bf16.msra.mxu0 %v285
    %364 = vmatprep.subr.bf16.mxu0 0
    %365 = vmatpush2.bf16.msra.mxu0 %v284
    %366 = vmatprep.subr.bf16.mxu0 0
    %367 = vmatpush2.bf16.msra.mxu0 %v283
    %368 = vmatprep.subr.bf16.mxu0 0
    %369 = vmatpush2.bf16.msra.mxu0 %v282
    %370 = vmatprep.subr.bf16.mxu0 0
    %371 = vmatpush2.bf16.msra.mxu0 %v281
    %372 = vmatprep.subr.bf16.mxu0 0
    %373 = vmatpush2.bf16.msra.mxu0 %v280
    %374 = vmatprep.subr.bf16.mxu0 0
    %375 = vmatpush2.bf16.msra.mxu0 %v279
    %376 = vmatprep.subr.bf16.mxu0 0
    %377 = vmatpush2.bf16.msra.mxu0 %v278
    %378 = vmatprep.mubr.bf16.mxu0 %v118
    %379 = vmatmul.mubr.bf16.gmra.mxu0 %v117
    %v380 = vpop.f32.mrf.mxu0
    %v381 = vadd.f32 %v107, %v380
    %v382 = vpop.f32.mrf.mxu0
    %v383 = vpop.f32.mrf.mxu0
    %v384 = vpop.f32.mrf.mxu0
    %385 = vdwg.mxu0
    %386 = vmatprep.subr.bf16.mxu0 0
    %387 = vmatpush1.bf16.msra.mxu0 %v293
    %388 = vmatprep.subr.bf16.mxu0 0
    %389 = vmatpush1.bf16.msra.mxu0 %v292
    %390 = vmatprep.subr.bf16.mxu0 0
    %391 = vmatpush1.bf16.msra.mxu0 %v291
    %392 = vmatprep.subr.bf16.mxu0 0
    %393 = vmatpush1.bf16.msra.mxu0 %v290
    %394 = vmatprep.subr.bf16.mxu0 0
    %395 = vmatpush1.bf16.msra.mxu0 %v289
    %396 = vmatprep.subr.bf16.mxu0 0
    %397 = vmatpush1.bf16.msra.mxu0 %v288
    %398 = vmatprep.subr.bf16.mxu0 0
    %399 = vmatpush1.bf16.msra.mxu0 %v287
    %400 = vmatprep.subr.bf16.mxu0 0
    %401 = vmatpush1.bf16.msra.mxu0 %v286
    %402 = vmatprep.subr.bf16.mxu0 0
    %403 = vmatpush2.bf16.msra.mxu0 %v301
    %404 = vmatprep.subr.bf16.mxu0 0
    %405 = vmatpush2.bf16.msra.mxu0 %v300
    %406 = vmatprep.subr.bf16.mxu0 0
    %407 = vmatpush2.bf16.msra.mxu0 %v299
    %408 = vmatprep.subr.bf16.mxu0 0
    %409 = vmatpush2.bf16.msra.mxu0 %v298
    %410 = vmatprep.subr.bf16.mxu0 0
    %411 = vmatpush2.bf16.msra.mxu0 %v297
    %412 = vmatprep.subr.bf16.mxu0 0
    %413 = vmatpush2.bf16.msra.mxu0 %v296
    %414 = vmatprep.subr.bf16.mxu0 0
    %415 = vmatpush2.bf16.msra.mxu0 %v295
    %416 = vmatprep.subr.bf16.mxu0 0
    %417 = vmatpush2.bf16.msra.mxu0 %v294
    %418 = vmatprep.mubr.bf16.mxu0 %v120
    %419 = vmatmul.mubr.bf16.gmra.mxu0 %v119
    %v420 = vpop.f32.mrf.mxu0
    %v421 = vadd.f32 %v381, %v420
    %v422 = vpop.f32.mrf.mxu0
    %v423 = vpop.f32.mrf.mxu0
    %v424 = vpop.f32.mrf.mxu0
    %425 = vdwg.mxu0
    %426 = vmatprep.subr.bf16.mxu0 0
    %427 = vmatpush1.bf16.msra.mxu0 0
    %428 = vmatprep.subr.bf16.mxu0 0
    %429 = vmatpush1.bf16.msra.mxu0 0
    %430 = vmatprep.subr.bf16.mxu0 0
    %431 = vmatpush1.bf16.msra.mxu0 0
    %432 = vmatprep.subr.bf16.mxu0 0
    %433 = vmatpush1.bf16.msra.mxu0 0
    %434 = vmatprep.subr.bf16.mxu0 0
    %435 = vmatpush1.bf16.msra.mxu0 %v305
    %436 = vmatprep.subr.bf16.mxu0 0
    %437 = vmatpush1.bf16.msra.mxu0 %v304
    %438 = vmatprep.subr.bf16.mxu0 0
    %439 = vmatpush1.bf16.msra.mxu0 %v303
    %440 = vmatprep.subr.bf16.mxu0 0
    %441 = vmatpush1.bf16.msra.mxu0 %v302
    %442 = vmatprep.subr.bf16.mxu0 0
    %443 = vmatpush2.bf16.msra.mxu0 0
    %444 = vmatprep.subr.bf16.mxu0 0
    %445 = vmatpush2.bf16.msra.mxu0 0
    %446 = vmatprep.subr.bf16.mxu0 0
    %447 = vmatpush2.bf16.msra.mxu0 0
    %448 = vmatprep.subr.bf16.mxu0 0
    %449 = vmatpush2.bf16.msra.mxu0 0
    %450 = vmatprep.subr.bf16.mxu0 0
    %451 = vmatpush2.bf16.msra.mxu0 0
    %452 = vmatprep.subr.bf16.mxu0 0
    %453 = vmatpush2.bf16.msra.mxu0 0
    %454 = vmatprep.subr.bf16.mxu0 0
    %455 = vmatpush2.bf16.msra.mxu0 0
    %456 = vmatprep.subr.bf16.mxu0 0
    %457 = vmatpush2.bf16.msra.mxu0 0
    %458 = vmatprep.mubr.bf16.mxu0 0
    %459 = vmatmul.mubr.bf16.gmra.mxu0 %v344
    %v460 = vpop.f32.mrf.mxu0
    %v461 = vadd.f32 %v421, %v460
    %v462 = vpop.f32.mrf.mxu0
    %v463 = vpop.f32.mrf.mxu0
    %v464 = vpop.f32.mrf.mxu0
    %465 = vdwg.mxu0
    %vm466 = vcmp.gt.f32.partialorder %v461, 0.0
    %v467 = vmul.f32 %v461, 0.1
    %v468 = vsel %vm466, %v461, %v467
    %v469 = vpack.c.bf16 %v468, %v468
    %470 = vst [vmem:[%s3] sm:$0xf] %v469
    // Predicated region
    $region18: #{yolov3_forward.121} parent=1 // pred_check
      _
    $region19: #{yolov3_forward.121} parent=1 // pred_check_branch
      %472 = sbr.rel (0) target = $region21
    $region20: #{yolov3_forward.121} parent=1 // pred_region
      _
    $region21: #{yolov3_forward.121} parent=1 // pred_fallthru
      _
    // Predicated region
    $region22: #{yolov3_forward.121} parent=1 // pred_check
      _
    $region23: #{yolov3_forward.121} parent=1 // pred_check_branch
      %474 = sbr.rel (0) target = $region25
    $region24: #{yolov3_forward.121} parent=1 // pred_region
      _
    $region25: #{yolov3_forward.121} parent=1 // pred_fallthru
      _
    %475 = vsyncpa [#allocation3], 1

// kernel: yolov3_forward.126
$region0: #{yolov3_forward.126}
  #allocation0 [shape = 'u32[]', space=smem, size = 0x4, offset = 0x4, fixed_abs, tag = 'smem constant byte address 0x4 - core index']
  #allocation1 [shape = 'u32[144,128]{1,0:T(1,128)}', space=vmem, size = 0x12000, scoped, tag = 'internal scratch']
  %s0 = inlined_call_operand.vmem [shape: bf16[8,128], index: 0, kind: input, shape index: {}]
  %s1 = inlined_call_operand.vmem [shape: bf16[128,128], index: 1, kind: input, shape index: {}]
  %s2 = inlined_call_operand.vmem [shape: f32[1,128], index: 2, kind: input, shape index: {}]
  %s3 = inlined_call_operand.vmem [shape: bf16[8,128], index: 3, kind: output, shape index: {}]
  %s4 = sld [smem:[#allocation0]]
  $region22: #{yolov3_forward.126} parent=0
    _
  %s6 = ssub.s32 1, %s4
  %s7 = scalar_select 0, %s6, %s4
  // Predicated region
  $region2: #{yolov3_forward.126} parent=0 // pred_check
    _
  $region3: #{yolov3_forward.126} parent=0 // pred_check_branch
    %9 = sbr.rel (0) target = $region5
  $region4: #{yolov3_forward.126} parent=0 // pred_region
    _
  $region5: #{yolov3_forward.126} parent=0 // pred_fallthru
    _
  // Predicated region
  $region6: #{yolov3_forward.126} parent=0 // pred_check
    _
  $region7: #{yolov3_forward.126} parent=0 // pred_check_branch
    %11 = sbr.rel (0) target = $region9
  $region8: #{yolov3_forward.126} parent=0 // pred_region
    _
  $region9: #{yolov3_forward.126} parent=0 // pred_fallthru
    _
  // Predicated region
  $region10: #{yolov3_forward.126} parent=0 // pred_check
    _
  $region11: #{yolov3_forward.126} parent=0 // pred_check_branch
    %13 = sbr.rel (0) target = $region13
  $region12: #{yolov3_forward.126} parent=0 // pred_region
    _
  $region13: #{yolov3_forward.126} parent=0 // pred_fallthru
    _
  %v15 = vld [vmem:[%s0] sm:$0xf]
  %v16 = vld [vmem:[%s1] sm:$0xf]
  %v17 = vld [vmem:[%s1 + $0x4] sm:$0xf]
  %v18 = vld [vmem:[%s1 + $0x8] sm:$0xf]
  %v19 = vld [vmem:[%s1 + $0xc] sm:$0xf]
  %v20 = vld [vmem:[%s1 + $0x10] sm:$0xf]
  %v21 = vld [vmem:[%s1 + $0x14] sm:$0xf]
  %v22 = vld [vmem:[%s1 + $0x18] sm:$0xf]
  %v23 = vld [vmem:[%s1 + $0x1c] sm:$0xf]
  %v24 = vld [vmem:[%s1 + $0x20] sm:$0xf]
  %v25 = vld [vmem:[%s1 + $0x24] sm:$0xf]
  %v26 = vld [vmem:[%s1 + $0x28] sm:$0xf]
  %v27 = vld [vmem:[%s1 + $0x2c] sm:$0xf]
  %v28 = vld [vmem:[%s1 + $0x30] sm:$0xf]
  %v29 = vld [vmem:[%s1 + $0x34] sm:$0xf]
  %v30 = vld [vmem:[%s1 + $0x38] sm:$0xf]
  %v31 = vld [vmem:[%s1 + $0x3c] sm:$0xf]
  %v32 = vld [vmem:[%s2] sm:$0x1]
  %v34 = vlaneseq
  %v35 = vshrl.u32 %v34, 7
  %v36 = vsub.s32 0, %v35
  %v37 = vrot.slane %v32, %v36
  %v55 = vunpack.c.l.b16 %v16
  %v56 = vunpack.c.l.b16 %v17
  %v57 = vunpack.c.l.b16 %v18
  %v58 = vunpack.c.l.b16 %v19
  %v59 = vunpack.c.l.b16 %v20
  %v60 = vunpack.c.l.b16 %v21
  %v61 = vunpack.c.l.b16 %v22
  %v62 = vunpack.c.l.b16 %v23
  %v63 = vunpack.c.l.b16 %v24
  %v64 = vunpack.c.l.b16 %v25
  %v65 = vunpack.c.l.b16 %v26
  %v66 = vunpack.c.l.b16 %v27
  %v67 = vunpack.c.l.b16 %v28
  %v68 = vunpack.c.l.b16 %v29
  %v69 = vunpack.c.l.b16 %v30
  %v70 = vunpack.c.l.b16 %v31
  %v71 = vpack.c.b16 %v56, %v55
  %v72 = vpack.c.b16 %v58, %v57
  %v73 = vpack.c.b16 %v60, %v59
  %v74 = vpack.c.b16 %v62, %v61
  %v75 = vpack.c.b16 %v64, %v63
  %v76 = vpack.c.b16 %v66, %v65
  %v77 = vpack.c.b16 %v68, %v67
  %v78 = vpack.c.b16 %v70, %v69
  %87 = vmatprep.subr.bf16.mxu0 0
  %88 = vmatpush1.bf16.msra.mxu0 %v78
  %89 = vmatprep.subr.bf16.mxu0 0
  %90 = vmatpush1.bf16.msra.mxu0 %v77
  %91 = vmatprep.subr.bf16.mxu0 0
  %92 = vmatpush1.bf16.msra.mxu0 %v76
  %93 = vmatprep.subr.bf16.mxu0 0
  %94 = vmatpush1.bf16.msra.mxu0 %v75
  %95 = vmatprep.subr.bf16.mxu0 0
  %96 = vmatpush1.bf16.msra.mxu0 %v74
  %97 = vmatprep.subr.bf16.mxu0 0
  %98 = vmatpush1.bf16.msra.mxu0 %v73
  %99 = vmatprep.subr.bf16.mxu0 0
  %100 = vmatpush1.bf16.msra.mxu0 %v72
  %101 = vmatprep.subr.bf16.mxu0 0
  %102 = vmatpush1.bf16.msra.mxu0 %v71
  %103 = vmatprep.subr.bf16.mxu0 0
  %104 = vmatpush2.bf16.msra.mxu0 0
  %105 = vmatprep.subr.bf16.mxu0 0
  %106 = vmatpush2.bf16.msra.mxu0 0
  %107 = vmatprep.subr.bf16.mxu0 0
  %108 = vmatpush2.bf16.msra.mxu0 0
  %109 = vmatprep.subr.bf16.mxu0 0
  %110 = vmatpush2.bf16.msra.mxu0 0
  %111 = vmatprep.subr.bf16.mxu0 0
  %112 = vmatpush2.bf16.msra.mxu0 0
  %113 = vmatprep.subr.bf16.mxu0 0
  %114 = vmatpush2.bf16.msra.mxu0 0
  %115 = vmatprep.subr.bf16.mxu0 0
  %116 = vmatpush2.bf16.msra.mxu0 0
  %117 = vmatprep.subr.bf16.mxu0 0
  %118 = vmatpush2.bf16.msra.mxu0 0
  %119 = vmatprep.mubr.bf16.mxu0 0
  %120 = vmatmul.mubr.bf16.gmra.mxu0 %v15
  %v121 = vpop.f32.mrf.mxu0
  %v122 = vadd.f32 %v37, %v121
  %v123 = vpop.f32.mrf.mxu0
  %v124 = vpop.f32.mrf.mxu0
  %v125 = vpop.f32.mrf.mxu0
  %126 = vdwg.mxu0
  %vm127 = vcmp.gt.f32.partialorder %v122, 0.0
  %v128 = vmul.f32 %v122, 0.1
  %v129 = vsel %vm127, %v122, %v128
  %v130 = vpack.c.bf16 %v129, %v129
  %131 = vst [vmem:[%s3] sm:$0xf] %v130
  // Predicated region
  $region14: #{yolov3_forward.126} parent=0 // pred_check
    _
  $region15: #{yolov3_forward.126} parent=0 // pred_check_branch
    %133 = sbr.rel (0) target = $region17
  $region16: #{yolov3_forward.126} parent=0 // pred_region
    _
  $region17: #{yolov3_forward.126} parent=0 // pred_fallthru
    _
  // Predicated region
  $region18: #{yolov3_forward.126} parent=0 // pred_check
    _
  $region19: #{yolov3_forward.126} parent=0 // pred_check_branch
    %135 = sbr.rel (0) target = $region21
  $region20: #{yolov3_forward.126} parent=0 // pred_region
    _
  $region21: #{yolov3_forward.126} parent=0 // pred_fallthru
    _

// kernel: yolov3_forward.135
$region0: #{yolov3_forward.135}
  #allocation0 [shape = 'u32[]', space=smem, size = 0x4, offset = 0x4, fixed_abs, tag = 'smem constant byte address 0x4 - core index']
  #allocation1 [shape = 'u32[144,128]{1,0:T(1,128)}', space=vmem, size = 0x12000, scoped, tag = 'internal scratch']
  %s0 = inlined_call_operand.vmem [shape: bf16[8,64], index: 0, kind: input, shape index: {}]
  %s1 = inlined_call_operand.vmem [shape: bf16[64,128], index: 1, kind: input, shape index: {}]
  %s2 = inlined_call_operand.vmem [shape: f32[1,128], index: 2, kind: input, shape index: {}]
  %s3 = inlined_call_operand.vmem [shape: bf16[8,128], index: 3, kind: output, shape index: {}]
  %s4 = sld [smem:[#allocation0]]
  $region22: #{yolov3_forward.135} parent=0
    _
  %s6 = ssub.s32 1, %s4
  %s7 = scalar_select 0, %s6, %s4
  // Predicated region
  $region2: #{yolov3_forward.135} parent=0 // pred_check
    _
  $region3: #{yolov3_forward.135} parent=0 // pred_check_branch
    %9 = sbr.rel (0) target = $region5
  $region4: #{yolov3_forward.135} parent=0 // pred_region
    _
  $region5: #{yolov3_forward.135} parent=0 // pred_fallthru
    _
  // Predicated region
  $region6: #{yolov3_forward.135} parent=0 // pred_check
    _
  $region7: #{yolov3_forward.135} parent=0 // pred_check_branch
    %11 = sbr.rel (0) target = $region9
  $region8: #{yolov3_forward.135} parent=0 // pred_region
    _
  $region9: #{yolov3_forward.135} parent=0 // pred_fallthru
    _
  // Predicated region
  $region10: #{yolov3_forward.135} parent=0 // pred_check
    _
  $region11: #{yolov3_forward.135} parent=0 // pred_check_branch
    %13 = sbr.rel (0) target = $region13
  $region12: #{yolov3_forward.135} parent=0 // pred_region
    _
  $region13: #{yolov3_forward.135} parent=0 // pred_fallthru
    _
  %v15 = vld [vmem:[%s0] sm:$0xf]
  %v16 = vld [vmem:[%s1] sm:$0xf]
  %v17 = vld [vmem:[%s1 + $0x4] sm:$0xf]
  %v18 = vld [vmem:[%s1 + $0x8] sm:$0xf]
  %v19 = vld [vmem:[%s1 + $0xc] sm:$0xf]
  %v20 = vld [vmem:[%s1 + $0x10] sm:$0xf]
  %v21 = vld [vmem:[%s1 + $0x14] sm:$0xf]
  %v22 = vld [vmem:[%s1 + $0x18] sm:$0xf]
  %v23 = vld [vmem:[%s1 + $0x1c] sm:$0xf]
  %v24 = vld [vmem:[%s2] sm:$0x1]
  %v26 = vlaneseq
  %v27 = vshrl.u32 %v26, 7
  %v28 = vsub.s32 0, %v27
  %v29 = vrot.slane %v24, %v28
  %v39 = vunpack.c.l.b16 %v16
  %v40 = vunpack.c.l.b16 %v17
  %v41 = vunpack.c.l.b16 %v18
  %v42 = vunpack.c.l.b16 %v19
  %v43 = vunpack.c.l.b16 %v20
  %v44 = vunpack.c.l.b16 %v21
  %v45 = vunpack.c.l.b16 %v22
  %v46 = vunpack.c.l.b16 %v23
  %v47 = vpack.c.b16 %v40, %v39
  %v48 = vpack.c.b16 %v42, %v41
  %v49 = vpack.c.b16 %v44, %v43
  %v50 = vpack.c.b16 %v46, %v45
  %vm55 = vcmask 523264
  %v57 = vsel %vm55, %v15, 0
  %59 = vmatprep.subr.bf16.mxu0 0
  %60 = vmatpush1.bf16.msra.mxu0 0
  %61 = vmatprep.subr.bf16.mxu0 0
  %62 = vmatpush1.bf16.msra.mxu0 0
  %63 = vmatprep.subr.bf16.mxu0 0
  %64 = vmatpush1.bf16.msra.mxu0 0
  %65 = vmatprep.subr.bf16.mxu0 0
  %66 = vmatpush1.bf16.msra.mxu0 0
  %67 = vmatprep.subr.bf16.mxu0 0
  %68 = vmatpush1.bf16.msra.mxu0 %v50
  %69 = vmatprep.subr.bf16.mxu0 0
  %70 = vmatpush1.bf16.msra.mxu0 %v49
  %71 = vmatprep.subr.bf16.mxu0 0
  %72 = vmatpush1.bf16.msra.mxu0 %v48
  %73 = vmatprep.subr.bf16.mxu0 0
  %74 = vmatpush1.bf16.msra.mxu0 %v47
  %75 = vmatprep.subr.bf16.mxu0 0
  %76 = vmatpush2.bf16.msra.mxu0 0
  %77 = vmatprep.subr.bf16.mxu0 0
  %78 = vmatpush2.bf16.msra.mxu0 0
  %79 = vmatprep.subr.bf16.mxu0 0
  %80 = vmatpush2.bf16.msra.mxu0 0
  %81 = vmatprep.subr.bf16.mxu0 0
  %82 = vmatpush2.bf16.msra.mxu0 0
  %83 = vmatprep.subr.bf16.mxu0 0
  %84 = vmatpush2.bf16.msra.mxu0 0
  %85 = vmatprep.subr.bf16.mxu0 0
  %86 = vmatpush2.bf16.msra.mxu0 0
  %87 = vmatprep.subr.bf16.mxu0 0
  %88 = vmatpush2.bf16.msra.mxu0 0
  %89 = vmatprep.subr.bf16.mxu0 0
  %90 = vmatpush2.bf16.msra.mxu0 0
  %91 = vmatprep.mubr.bf16.mxu0 0
  %92 = vmatmul.mubr.bf16.gmra.mxu0 %v57
  %v93 = vpop.f32.mrf.mxu0
  %v94 = vadd.f32 %v29, %v93
  %v95 = vpop.f32.mrf.mxu0
  %v96 = vpop.f32.mrf.mxu0
  %v97 = vpop.f32.mrf.mxu0
  %98 = vdwg.mxu0
  %vm99 = vcmp.gt.f32.partialorder %v94, 0.0
  %v100 = vmul.f32 %v94, 0.1
  %v101 = vsel %vm99, %v94, %v100
  %v102 = vpack.c.bf16 %v101, %v101
  %103 = vst [vmem:[%s3] sm:$0xf] %v102
  // Predicated region
  $region14: #{yolov3_forward.135} parent=0 // pred_check
    _
  $region15: #{yolov3_forward.135} parent=0 // pred_check_branch
    %105 = sbr.rel (0) target = $region17
  $region16: #{yolov3_forward.135} parent=0 // pred_region
    _
  $region17: #{yolov3_forward.135} parent=0 // pred_fallthru
    _
  // Predicated region
  $region18: #{yolov3_forward.135} parent=0 // pred_check
    _
  $region19: #{yolov3_forward.135} parent=0 // pred_check_branch
    %107 = sbr.rel (0) target = $region21
  $region20: #{yolov3_forward.135} parent=0 // pred_region
    _
  $region21: #{yolov3_forward.135} parent=0 // pred_fallthru
    _

// kernel: yolov3_forward.136
$region0: #{yolov3_forward.136}
  #allocation0 [shape = 'u32[]', space=smem, size = 0x4, offset = 0x4, fixed_abs, tag = 'smem constant byte address 0x4 - core index']
  #allocation1 [shape = 'u32[144,128]{1,0:T(1,128)}', space=vmem, size = 0x12000, scoped, tag = 'internal scratch']
  %s0 = inlined_call_operand.vmem [shape: bf16[32,96], index: 0, kind: input, shape index: {}]
  %s1 = inlined_call_operand.vmem [shape: bf16[96,128], index: 1, kind: input, shape index: {}]
  %s2 = inlined_call_operand.hbm [shape: f32[1,128], index: 2, kind: input, shape index: {}]
  %s3 = inlined_call_operand.vmem [shape: bf16[32,128], index: 3, kind: output, shape index: {}]
  %s4 = sld [smem:[#allocation0]]
  $region26: #{yolov3_forward.136} parent=0
    _
  %s6 = ssub.s32 1, %s4
  %s7 = scalar_select 0, %s6, %s4
  $region1: #{yolov3_forward.136} parent=0
    #allocation2 [shape = 'u8[512]{0}', space=vmem, size = 0x400, scoped, tag = 'input window, operand 2, single buffered']
    #allocation3 [shape = 's32[1]{0}', space=sflag, size = 0x4, scoped, tag = 'scoped memory for yolov3_forward.136']
    %8 = vsyncpa [#allocation3], 0
    // Predicated region
    $region2: #{yolov3_forward.136} parent=1 // pred_check
      _
    $region3: #{yolov3_forward.136} parent=1 // pred_check_branch
      %10 = sbr.rel (0) target = $region5
    $region4: #{yolov3_forward.136} parent=1 // pred_region
      _
    $region5: #{yolov3_forward.136} parent=1 // pred_fallthru
      _
    // Predicated region
    $region6: #{yolov3_forward.136} parent=1 // pred_check
      _
    $region7: #{yolov3_forward.136} parent=1 // pred_check_branch
      %12 = sbr.rel (0) target = $region9
    $region8: #{yolov3_forward.136} parent=1 // pred_region
      _
    $region9: #{yolov3_forward.136} parent=1 // pred_fallthru
      _
    // Predicated region
    $region10: #{yolov3_forward.136} parent=1 // pred_check
      _
    $region11: #{yolov3_forward.136} parent=1 // pred_check_branch
      %14 = sbr.rel (0) target = $region13
    $region12: #{yolov3_forward.136} parent=1 // pred_region
      %s16 = ssub.s32 16, 16
      %17 = vsyncadd [#allocation3], %s16
      %s19 = sshll.u32 [#allocation2], 4
      %s20 = int_to_ptr.vmem [resolvable:$true] %s19
      %22 = dma.hbm_to_vmem [thread:$0]  %s2, 16, %s20, [#allocation3]
    $region13: #{yolov3_forward.136} parent=1 // pred_fallthru
      _
    // Predicated region
    $region14: #{yolov3_forward.136} parent=1 // pred_check
      _
    $region15: #{yolov3_forward.136} parent=1 // pred_check_branch
      %24 = sbr.rel (0) target = $region17
    $region16: #{yolov3_forward.136} parent=1 // pred_region
      %25 = dma.done [#allocation3], 16
    $region17: #{yolov3_forward.136} parent=1 // pred_fallthru
      _
    %v27 = vld [vmem:[%s0] sm:$0xf]
    %v28 = vld [vmem:[%s0 + $0x4] sm:$0xf]
    %v29 = vld [vmem:[%s0 + $0x8] sm:$0xf]
    %v30 = vld [vmem:[%s0 + $0xc] sm:$0xf]
    %v31 = vld [vmem:[%s1] sm:$0xf]
    %v32 = vld [vmem:[%s1 + $0x4] sm:$0xf]
    %v33 = vld [vmem:[%s1 + $0x8] sm:$0xf]
    %v34 = vld [vmem:[%s1 + $0xc] sm:$0xf]
    %v35 = vld [vmem:[%s1 + $0x10] sm:$0xf]
    %v36 = vld [vmem:[%s1 + $0x14] sm:$0xf]
    %v37 = vld [vmem:[%s1 + $0x18] sm:$0xf]
    %v38 = vld [vmem:[%s1 + $0x1c] sm:$0xf]
    %v39 = vld [vmem:[%s1 + $0x20] sm:$0xf]
    %v40 = vld [vmem:[%s1 + $0x24] sm:$0xf]
    %v41 = vld [vmem:[%s1 + $0x28] sm:$0xf]
    %v42 = vld [vmem:[%s1 + $0x2c] sm:$0xf]
    %v43 = vld [vmem:[#allocation2] sm:$0x1]
    %v45 = vlaneseq
    %v46 = vshrl.u32 %v45, 7
    %v47 = vsub.s32 0, %v46
    %v48 = vrot.slane %v43, %v47
    %v54 = vunpack.c.l.b16 %v27
    %v55 = vunpack.c.l.b16 %v28
    %v56 = vunpack.c.l.b16 %v29
    %v57 = vunpack.c.l.b16 %v30
    %v58 = vpack.c.b16 %v55, %v54
    %v59 = vpack.c.b16 %v57, %v56
    %v72 = vunpack.c.l.b16 %v31
    %v73 = vunpack.c.l.b16 %v32
    %v74 = vunpack.c.l.b16 %v33
    %v75 = vunpack.c.l.b16 %v34
    %v76 = vunpack.c.l.b16 %v35
    %v77 = vunpack.c.l.b16 %v36
    %v78 = vunpack.c.l.b16 %v37
    %v79 = vunpack.c.l.b16 %v38
    %v80 = vunpack.c.l.b16 %v39
    %v81 = vunpack.c.l.b16 %v40
    %v82 = vunpack.c.l.b16 %v41
    %v83 = vunpack.c.l.b16 %v42
    %v84 = vpack.c.b16 %v73, %v72
    %v85 = vpack.c.b16 %v75, %v74
    %v86 = vpack.c.b16 %v77, %v76
    %v87 = vpack.c.b16 %v79, %v78
    %v88 = vpack.c.b16 %v81, %v80
    %v89 = vpack.c.b16 %v83, %v82
    %vm96 = vcmask 785408
    %v98 = vsel %vm96, %v58, 0
    %v101 = vsel %vm96, %v59, 0
    %103 = vmatprep.subr.bf16.mxu0 0
    %104 = vmatpush1.bf16.msra.mxu0 0
    %105 = vmatprep.subr.bf16.mxu0 0
    %106 = vmatpush1.bf16.msra.mxu0 0
    %107 = vmatprep.subr.bf16.mxu0 0
    %108 = vmatpush1.bf16.msra.mxu0 %v89
    %109 = vmatprep.subr.bf16.mxu0 0
    %110 = vmatpush1.bf16.msra.mxu0 %v88
    %111 = vmatprep.subr.bf16.mxu0 0
    %112 = vmatpush1.bf16.msra.mxu0 %v87
    %113 = vmatprep.subr.bf16.mxu0 0
    %114 = vmatpush1.bf16.msra.mxu0 %v86
    %115 = vmatprep.subr.bf16.mxu0 0
    %116 = vmatpush1.bf16.msra.mxu0 %v85
    %117 = vmatprep.subr.bf16.mxu0 0
    %118 = vmatpush1.bf16.msra.mxu0 %v84
    %119 = vmatprep.subr.bf16.mxu0 0
    %120 = vmatpush2.bf16.msra.mxu0 0
    %121 = vmatprep.subr.bf16.mxu0 0
    %122 = vmatpush2.bf16.msra.mxu0 0
    %123 = vmatprep.subr.bf16.mxu0 0
    %124 = vmatpush2.bf16.msra.mxu0 0
    %125 = vmatprep.subr.bf16.mxu0 0
    %126 = vmatpush2.bf16.msra.mxu0 0
    %127 = vmatprep.subr.bf16.mxu0 0
    %128 = vmatpush2.bf16.msra.mxu0 0
    %129 = vmatprep.subr.bf16.mxu0 0
    %130 = vmatpush2.bf16.msra.mxu0 0
    %131 = vmatprep.subr.bf16.mxu0 0
    %132 = vmatpush2.bf16.msra.mxu0 0
    %133 = vmatprep.subr.bf16.mxu0 0
    %134 = vmatpush2.bf16.msra.mxu0 0
    %135 = vmatprep.mubr.bf16.mxu0 0
    %136 = vmatmul.mubr.bf16.gmra.mxu0 %v98
    %v137 = vpop.f32.mrf.mxu0
    %v138 = vadd.f32 %v48, %v137
    %v139 = vpop.f32.mrf.mxu0
    %v140 = vpop.f32.mrf.mxu0
    %v141 = vadd.f32 %v48, %v140
    %v142 = vpop.f32.mrf.mxu0
    %143 = vmatprep.mubr.bf16.mxu0 0
    %144 = vmatmul.mubr.bf16.gmra.mxu0 %v101
    %v145 = vpop.f32.mrf.mxu0
    %v146 = vadd.f32 %v48, %v145
    %v147 = vpop.f32.mrf.mxu0
    %v148 = vpop.f32.mrf.mxu0
    %v149 = vadd.f32 %v48, %v148
    %v150 = vpop.f32.mrf.mxu0
    %151 = vdwg.mxu0
    %vm152 = vcmp.gt.f32.partialorder %v138, 0.0
    %vm153 = vcmp.gt.f32.partialorder %v141, 0.0
    %vm154 = vcmp.gt.f32.partialorder %v146, 0.0
    %vm155 = vcmp.gt.f32.partialorder %v149, 0.0
    %v156 = vmul.f32 %v138, 0.1
    %v157 = vmul.f32 %v141, 0.1
    %v158 = vmul.f32 %v146, 0.1
    %v159 = vmul.f32 %v149, 0.1
    %v160 = vsel %vm152, %v138, %v156
    %v161 = vsel %vm153, %v141, %v157
    %v162 = vsel %vm154, %v146, %v158
    %v163 = vsel %vm155, %v149, %v159
    %v164 = vpack.c.bf16 %v161, %v160
    %v165 = vpack.c.bf16 %v163, %v162
    %v168 = vunpack.c.l.b16 %v164
    %v169 = vunpack.c.h.b16 %v164
    %v170 = vunpack.c.l.b16 %v165
    %v171 = vunpack.c.h.b16 %v165
    %v172 = vpack.c.b16 %v168, %v168
    %v173 = vpack.c.b16 %v169, %v169
    %v174 = vpack.c.b16 %v170, %v170
    %v175 = vpack.c.b16 %v171, %v171
    %180 = vst [vmem:[%s3] sm:$0xf] %v172
    %181 = vst [vmem:[%s3 + $0x4] sm:$0xf] %v173
    %182 = vst [vmem:[%s3 + $0x8] sm:$0xf] %v174
    %183 = vst [vmem:[%s3 + $0xc] sm:$0xf] %v175
    // Predicated region
    $region18: #{yolov3_forward.136} parent=1 // pred_check
      _
    $region19: #{yolov3_forward.136} parent=1 // pred_check_branch
      %185 = sbr.rel (0) target = $region21
    $region20: #{yolov3_forward.136} parent=1 // pred_region
      _
    $region21: #{yolov3_forward.136} parent=1 // pred_fallthru
      _
    // Predicated region
    $region22: #{yolov3_forward.136} parent=1 // pred_check
      _
    $region23: #{yolov3_forward.136} parent=1 // pred_check_branch
      %187 = sbr.rel (0) target = $region25
    $region24: #{yolov3_forward.136} parent=1 // pred_region
      _
    $region25: #{yolov3_forward.136} parent=1 // pred_fallthru
      _
    %188 = vsyncpa [#allocation3], 1

// kernel: yolov3_forward.141
$region0: #{yolov3_forward.141}
  #allocation0 [shape = 'u32[]', space=smem, size = 0x4, offset = 0x4, fixed_abs, tag = 'smem constant byte address 0x4 - core index']
  #allocation1 [shape = 'u32[144,128]{1,0:T(1,128)}', space=vmem, size = 0x12000, scoped, tag = 'internal scratch']
  %s0 = inlined_call_operand.vmem [shape: bf16[32,32], index: 0, kind: input, shape index: {}]
  %s1 = inlined_call_operand.vmem [shape: bf16[32,128], index: 1, kind: input, shape index: {}]
  %s2 = inlined_call_operand.vmem [shape: f32[1,128], index: 2, kind: input, shape index: {}]
  %s3 = inlined_call_operand.vmem [shape: bf16[32,128], index: 3, kind: output, shape index: {}]
  %s4 = sld [smem:[#allocation0]]
  $region22: #{yolov3_forward.141} parent=0
    _
  %s6 = ssub.s32 1, %s4
  %s7 = scalar_select 0, %s6, %s4
  // Predicated region
  $region2: #{yolov3_forward.141} parent=0 // pred_check
    _
  $region3: #{yolov3_forward.141} parent=0 // pred_check_branch
    %9 = sbr.rel (0) target = $region5
  $region4: #{yolov3_forward.141} parent=0 // pred_region
    _
  $region5: #{yolov3_forward.141} parent=0 // pred_fallthru
    _
  // Predicated region
  $region6: #{yolov3_forward.141} parent=0 // pred_check
    _
  $region7: #{yolov3_forward.141} parent=0 // pred_check_branch
    %11 = sbr.rel (0) target = $region9
  $region8: #{yolov3_forward.141} parent=0 // pred_region
    _
  $region9: #{yolov3_forward.141} parent=0 // pred_fallthru
    _
  // Predicated region
  $region10: #{yolov3_forward.141} parent=0 // pred_check
    _
  $region11: #{yolov3_forward.141} parent=0 // pred_check_branch
    %13 = sbr.rel (0) target = $region13
  $region12: #{yolov3_forward.141} parent=0 // pred_region
    _
  $region13: #{yolov3_forward.141} parent=0 // pred_fallthru
    _
  %v15 = vld [vmem:[%s0] sm:$0xf]
  %v16 = vld [vmem:[%s0 + $0x4] sm:$0xf]
  %v17 = vld [vmem:[%s0 + $0x8] sm:$0xf]
  %v18 = vld [vmem:[%s0 + $0xc] sm:$0xf]
  %v19 = vld [vmem:[%s1] sm:$0xf]
  %v20 = vld [vmem:[%s1 + $0x4] sm:$0xf]
  %v21 = vld [vmem:[%s1 + $0x8] sm:$0xf]
  %v22 = vld [vmem:[%s1 + $0xc] sm:$0xf]
  %v23 = vld [vmem:[%s2] sm:$0x1]
  %v25 = vlaneseq
  %v26 = vshrl.u32 %v25, 7
  %v27 = vsub.s32 0, %v26
  %v28 = vrot.slane %v23, %v27
  %v34 = vunpack.c.l.b16 %v15
  %v35 = vunpack.c.l.b16 %v16
  %v36 = vunpack.c.l.b16 %v17
  %v37 = vunpack.c.l.b16 %v18
  %v38 = vpack.c.b16 %v35, %v34
  %v39 = vpack.c.b16 %v37, %v36
  %v44 = vunpack.c.l.b16 %v19
  %v45 = vunpack.c.l.b16 %v20
  %v46 = vunpack.c.l.b16 %v21
  %v47 = vunpack.c.l.b16 %v22
  %v48 = vpack.c.b16 %v45, %v44
  %v49 = vpack.c.b16 %v47, %v46
  %vm52 = vcmask 261120
  %v54 = vsel %vm52, %v38, 0
  %v57 = vsel %vm52, %v39, 0
  %59 = vmatprep.subr.bf16.mxu0 0
  %60 = vmatpush1.bf16.msra.mxu0 0
  %61 = vmatprep.subr.bf16.mxu0 0
  %62 = vmatpush1.bf16.msra.mxu0 0
  %63 = vmatprep.subr.bf16.mxu0 0
  %64 = vmatpush1.bf16.msra.mxu0 0
  %65 = vmatprep.subr.bf16.mxu0 0
  %66 = vmatpush1.bf16.msra.mxu0 0
  %67 = vmatprep.subr.bf16.mxu0 0
  %68 = vmatpush1.bf16.msra.mxu0 0
  %69 = vmatprep.subr.bf16.mxu0 0
  %70 = vmatpush1.bf16.msra.mxu0 0
  %71 = vmatprep.subr.bf16.mxu0 0
  %72 = vmatpush1.bf16.msra.mxu0 %v49
  %73 = vmatprep.subr.bf16.mxu0 0
  %74 = vmatpush1.bf16.msra.mxu0 %v48
  %75 = vmatprep.subr.bf16.mxu0 0
  %76 = vmatpush2.bf16.msra.mxu0 0
  %77 = vmatprep.subr.bf16.mxu0 0
  %78 = vmatpush2.bf16.msra.mxu0 0
  %79 = vmatprep.subr.bf16.mxu0 0
  %80 = vmatpush2.bf16.msra.mxu0 0
  %81 = vmatprep.subr.bf16.mxu0 0
  %82 = vmatpush2.bf16.msra.mxu0 0
  %83 = vmatprep.subr.bf16.mxu0 0
  %84 = vmatpush2.bf16.msra.mxu0 0
  %85 = vmatprep.subr.bf16.mxu0 0
  %86 = vmatpush2.bf16.msra.mxu0 0
  %87 = vmatprep.subr.bf16.mxu0 0
  %88 = vmatpush2.bf16.msra.mxu0 0
  %89 = vmatprep.subr.bf16.mxu0 0
  %90 = vmatpush2.bf16.msra.mxu0 0
  %91 = vmatprep.mubr.bf16.mxu0 0
  %92 = vmatmul.mubr.bf16.gmra.mxu0 %v54
  %v93 = vpop.f32.mrf.mxu0
  %v94 = vadd.f32 %v28, %v93
  %v95 = vpop.f32.mrf.mxu0
  %v96 = vpop.f32.mrf.mxu0
  %v97 = vadd.f32 %v28, %v96
  %v98 = vpop.f32.mrf.mxu0
  %99 = vmatprep.mubr.bf16.mxu0 0
  %100 = vmatmul.mubr.bf16.gmra.mxu0 %v57
  %v101 = vpop.f32.mrf.mxu0
  %v102 = vadd.f32 %v28, %v101
  %v103 = vpop.f32.mrf.mxu0
  %v104 = vpop.f32.mrf.mxu0
  %v105 = vadd.f32 %v28, %v104
  %v106 = vpop.f32.mrf.mxu0
  %107 = vdwg.mxu0
  %vm108 = vcmp.gt.f32.partialorder %v94, 0.0
  %vm109 = vcmp.gt.f32.partialorder %v97, 0.0
  %vm110 = vcmp.gt.f32.partialorder %v102, 0.0
  %vm111 = vcmp.gt.f32.partialorder %v105, 0.0
  %v112 = vmul.f32 %v94, 0.1
  %v113 = vmul.f32 %v97, 0.1
  %v114 = vmul.f32 %v102, 0.1
  %v115 = vmul.f32 %v105, 0.1
  %v116 = vsel %vm108, %v94, %v112
  %v117 = vsel %vm109, %v97, %v113
  %v118 = vsel %vm110, %v102, %v114
  %v119 = vsel %vm111, %v105, %v115
  %v120 = vpack.c.bf16 %v117, %v116
  %v121 = vpack.c.bf16 %v119, %v118
  %v124 = vunpack.c.l.b16 %v120
  %v125 = vunpack.c.h.b16 %v120
  %v126 = vunpack.c.l.b16 %v121
  %v127 = vunpack.c.h.b16 %v121
  %v128 = vpack.c.b16 %v124, %v124
  %v129 = vpack.c.b16 %v125, %v125
  %v130 = vpack.c.b16 %v126, %v126
  %v131 = vpack.c.b16 %v127, %v127
  %136 = vst [vmem:[%s3] sm:$0xf] %v128
  %137 = vst [vmem:[%s3 + $0x4] sm:$0xf] %v129
  %138 = vst [vmem:[%s3 + $0x8] sm:$0xf] %v130
  %139 = vst [vmem:[%s3 + $0xc] sm:$0xf] %v131
  // Predicated region
  $region14: #{yolov3_forward.141} parent=0 // pred_check
    _
  $region15: #{yolov3_forward.141} parent=0 // pred_check_branch
    %141 = sbr.rel (0) target = $region17
  $region16: #{yolov3_forward.141} parent=0 // pred_region
    _
  $region17: #{yolov3_forward.141} parent=0 // pred_fallthru
    _
  // Predicated region
  $region18: #{yolov3_forward.141} parent=0 // pred_check
    _
  $region19: #{yolov3_forward.141} parent=0 // pred_check_branch
    %143 = sbr.rel (0) target = $region21
  $region20: #{yolov3_forward.141} parent=0 // pred_region
    _
  $region21: #{yolov3_forward.141} parent=0 // pred_fallthru
    _

// kernel: yolov3_forward.148
$region0: #{yolov3_forward.148}
  #allocation0 [shape = 'u32[]', space=smem, size = 0x4, offset = 0x4, fixed_abs, tag = 'smem constant byte address 0x4 - core index']
  #allocation1 [shape = 'u32[144,128]{1,0:T(1,128)}', space=vmem, size = 0x12000, scoped, tag = 'internal scratch']
  %s0 = inlined_call_operand.vmem [shape: bf16[128,32], index: 0, kind: input, shape index: {}]
  %s1 = inlined_call_operand.vmem [shape: bf16[32,128], index: 1, kind: input, shape index: {}]
  %s2 = inlined_call_operand.vmem [shape: f32[1,128], index: 2, kind: input, shape index: {}]
  %s3 = inlined_call_operand.vmem [shape: f32[128,128], index: 3, kind: output, shape index: {}]
  %s4 = sld [smem:[#allocation0]]
  $region22: #{yolov3_forward.148} parent=0
    _
  %s6 = ssub.s32 1, %s4
  %s7 = scalar_select 0, %s6, %s4
  // Predicated region
  $region2: #{yolov3_forward.148} parent=0 // pred_check
    _
  $region3: #{yolov3_forward.148} parent=0 // pred_check_branch
    %9 = sbr.rel (0) target = $region5
  $region4: #{yolov3_forward.148} parent=0 // pred_region
    _
  $region5: #{yolov3_forward.148} parent=0 // pred_fallthru
    _
  // Predicated region
  $region6: #{yolov3_forward.148} parent=0 // pred_check
    _
  $region7: #{yolov3_forward.148} parent=0 // pred_check_branch
    %11 = sbr.rel (0) target = $region9
  $region8: #{yolov3_forward.148} parent=0 // pred_region
    _
  $region9: #{yolov3_forward.148} parent=0 // pred_fallthru
    _
  // Predicated region
  $region10: #{yolov3_forward.148} parent=0 // pred_check
    _
  $region11: #{yolov3_forward.148} parent=0 // pred_check_branch
    %13 = sbr.rel (0) target = $region13
  $region12: #{yolov3_forward.148} parent=0 // pred_region
    _
  $region13: #{yolov3_forward.148} parent=0 // pred_fallthru
    _
  %v15 = vld [vmem:[%s0] sm:$0xf]
  %v16 = vld [vmem:[%s0 + $0x4] sm:$0xf]
  %v17 = vld [vmem:[%s0 + $0x8] sm:$0xf]
  %v18 = vld [vmem:[%s0 + $0xc] sm:$0xf]
  %v19 = vld [vmem:[%s0 + $0x10] sm:$0xf]
  %v20 = vld [vmem:[%s0 + $0x14] sm:$0xf]
  %v21 = vld [vmem:[%s0 + $0x18] sm:$0xf]
  %v22 = vld [vmem:[%s0 + $0x1c] sm:$0xf]
  %v23 = vld [vmem:[%s0 + $0x20] sm:$0xf]
  %v24 = vld [vmem:[%s0 + $0x24] sm:$0xf]
  %v25 = vld [vmem:[%s0 + $0x28] sm:$0xf]
  %v26 = vld [vmem:[%s0 + $0x2c] sm:$0xf]
  %v27 = vld [vmem:[%s0 + $0x30] sm:$0xf]
  %v28 = vld [vmem:[%s0 + $0x34] sm:$0xf]
  %v29 = vld [vmem:[%s0 + $0x38] sm:$0xf]
  %v30 = vld [vmem:[%s0 + $0x3c] sm:$0xf]
  %v31 = vld [vmem:[%s1] sm:$0xf]
  %v32 = vld [vmem:[%s1 + $0x4] sm:$0xf]
  %v33 = vld [vmem:[%s1 + $0x8] sm:$0xf]
  %v34 = vld [vmem:[%s1 + $0xc] sm:$0xf]
  %v35 = vld [vmem:[%s2] sm:$0x1]
  %v37 = vlaneseq
  %v38 = vshrl.u32 %v37, 7
  %v39 = vsub.s32 0, %v38
  %v40 = vrot.slane %v35, %v39
  %v58 = vunpack.c.l.b16 %v15
  %v59 = vunpack.c.l.b16 %v16
  %v60 = vunpack.c.l.b16 %v17
  %v61 = vunpack.c.l.b16 %v18
  %v62 = vunpack.c.l.b16 %v19
  %v63 = vunpack.c.l.b16 %v20
  %v64 = vunpack.c.l.b16 %v21
  %v65 = vunpack.c.l.b16 %v22
  %v66 = vunpack.c.l.b16 %v23
  %v67 = vunpack.c.l.b16 %v24
  %v68 = vunpack.c.l.b16 %v25
  %v69 = vunpack.c.l.b16 %v26
  %v70 = vunpack.c.l.b16 %v27
  %v71 = vunpack.c.l.b16 %v28
  %v72 = vunpack.c.l.b16 %v29
  %v73 = vunpack.c.l.b16 %v30
  %v74 = vpack.c.b16 %v59, %v58
  %v75 = vpack.c.b16 %v61, %v60
  %v76 = vpack.c.b16 %v63, %v62
  %v77 = vpack.c.b16 %v65, %v64
  %v78 = vpack.c.b16 %v67, %v66
  %v79 = vpack.c.b16 %v69, %v68
  %v80 = vpack.c.b16 %v71, %v70
  %v81 = vpack.c.b16 %v73, %v72
  %v86 = vunpack.c.l.b16 %v31
  %v87 = vunpack.c.l.b16 %v32
  %v88 = vunpack.c.l.b16 %v33
  %v89 = vunpack.c.l.b16 %v34
  %v90 = vpack.c.b16 %v87, %v86
  %v91 = vpack.c.b16 %v89, %v88
  %vm94 = vcmask 261120
  %v96 = vsel %vm94, %v74, 0
  %v99 = vsel %vm94, %v75, 0
  %v102 = vsel %vm94, %v76, 0
  %v105 = vsel %vm94, %v77, 0
  %v108 = vsel %vm94, %v78, 0
  %v111 = vsel %vm94, %v79, 0
  %v114 = vsel %vm94, %v80, 0
  %v117 = vsel %vm94, %v81, 0
  %119 = vmatprep.subr.bf16.mxu0 0
  %120 = vmatpush1.bf16.msra.mxu0 0
  %121 = vmatprep.subr.bf16.mxu0 0
  %122 = vmatpush1.bf16.msra.mxu0 0
  %123 = vmatprep.subr.bf16.mxu0 0
  %124 = vmatpush1.bf16.msra.mxu0 0
  %125 = vmatprep.subr.bf16.mxu0 0
  %126 = vmatpush1.bf16.msra.mxu0 0
  %127 = vmatprep.subr.bf16.mxu0 0
  %128 = vmatpush1.bf16.msra.mxu0 0
  %129 = vmatprep.subr.bf16.mxu0 0
  %130 = vmatpush1.bf16.msra.mxu0 0
  %131 = vmatprep.subr.bf16.mxu0 0
  %132 = vmatpush1.bf16.msra.mxu0 %v91
  %133 = vmatprep.subr.bf16.mxu0 0
  %134 = vmatpush1.bf16.msra.mxu0 %v90
  %135 = vmatprep.subr.bf16.mxu0 0
  %136 = vmatpush2.bf16.msra.mxu0 0
  %137 = vmatprep.subr.bf16.mxu0 0
  %138 = vmatpush2.bf16.msra.mxu0 0
  %139 = vmatprep.subr.bf16.mxu0 0
  %140 = vmatpush2.bf16.msra.mxu0 0
  %141 = vmatprep.subr.bf16.mxu0 0
  %142 = vmatpush2.bf16.msra.mxu0 0
  %143 = vmatprep.subr.bf16.mxu0 0
  %144 = vmatpush2.bf16.msra.mxu0 0
  %145 = vmatprep.subr.bf16.mxu0 0
  %146 = vmatpush2.bf16.msra.mxu0 0
  %147 = vmatprep.subr.bf16.mxu0 0
  %148 = vmatpush2.bf16.msra.mxu0 0
  %149 = vmatprep.subr.bf16.mxu0 0
  %150 = vmatpush2.bf16.msra.mxu0 0
  %151 = vmatprep.mubr.bf16.mxu0 0
  %152 = vmatmul.mubr.bf16.gmra.mxu0 %v96
  %v153 = vpop.f32.mrf.mxu0
  %v154 = vadd.f32 %v40, %v153
  %v155 = vpop.f32.mrf.mxu0
  %v156 = vpop.f32.mrf.mxu0
  %v157 = vadd.f32 %v40, %v156
  %v158 = vpop.f32.mrf.mxu0
  %159 = vmatprep.mubr.bf16.mxu0 0
  %160 = vmatmul.mubr.bf16.gmra.mxu0 %v99
  %v161 = vpop.f32.mrf.mxu0
  %v162 = vadd.f32 %v40, %v161
  %v163 = vpop.f32.mrf.mxu0
  %v164 = vpop.f32.mrf.mxu0
  %v165 = vadd.f32 %v40, %v164
  %v166 = vpop.f32.mrf.mxu0
  %167 = vmatprep.mubr.bf16.mxu0 0
  %168 = vmatmul.mubr.bf16.gmra.mxu0 %v102
  %v169 = vpop.f32.mrf.mxu0
  %v170 = vadd.f32 %v40, %v169
  %v171 = vpop.f32.mrf.mxu0
  %v172 = vpop.f32.mrf.mxu0
  %v173 = vadd.f32 %v40, %v172
  %v174 = vpop.f32.mrf.mxu0
  %175 = vmatprep.mubr.bf16.mxu0 0
  %176 = vmatmul.mubr.bf16.gmra.mxu0 %v105
  %v177 = vpop.f32.mrf.mxu0
  %v178 = vadd.f32 %v40, %v177
  %v179 = vpop.f32.mrf.mxu0
  %v180 = vpop.f32.mrf.mxu0
  %v181 = vadd.f32 %v40, %v180
  %v182 = vpop.f32.mrf.mxu0
  %183 = vmatprep.mubr.bf16.mxu0 0
  %184 = vmatmul.mubr.bf16.gmra.mxu0 %v108
  %v185 = vpop.f32.mrf.mxu0
  %v186 = vadd.f32 %v40, %v185
  %v187 = vpop.f32.mrf.mxu0
  %v188 = vpop.f32.mrf.mxu0
  %v189 = vadd.f32 %v40, %v188
  %v190 = vpop.f32.mrf.mxu0
  %191 = vmatprep.mubr.bf16.mxu0 0
  %192 = vmatmul.mubr.bf16.gmra.mxu0 %v111
  %v193 = vpop.f32.mrf.mxu0
  %v194 = vadd.f32 %v40, %v193
  %v195 = vpop.f32.mrf.mxu0
  %v196 = vpop.f32.mrf.mxu0
  %v197 = vadd.f32 %v40, %v196
  %v198 = vpop.f32.mrf.mxu0
  %199 = vmatprep.mubr.bf16.mxu0 0
  %200 = vmatmul.mubr.bf16.gmra.mxu0 %v114
  %v201 = vpop.f32.mrf.mxu0
  %v202 = vadd.f32 %v40, %v201
  %v203 = vpop.f32.mrf.mxu0
  %v204 = vpop.f32.mrf.mxu0
  %v205 = vadd.f32 %v40, %v204
  %v206 = vpop.f32.mrf.mxu0
  %207 = vmatprep.mubr.bf16.mxu0 0
  %208 = vmatmul.mubr.bf16.gmra.mxu0 %v117
  %v209 = vpop.f32.mrf.mxu0
  %v210 = vadd.f32 %v40, %v209
  %v211 = vpop.f32.mrf.mxu0
  %v212 = vpop.f32.mrf.mxu0
  %v213 = vadd.f32 %v40, %v212
  %v214 = vpop.f32.mrf.mxu0
  %215 = vdwg.mxu0
  %216 = vst [vmem:[%s3] sm:$0xff] %v154
  %217 = vst [vmem:[%s3 + $0x8] sm:$0xff] %v157
  %218 = vst [vmem:[%s3 + $0x10] sm:$0xff] %v162
  %219 = vst [vmem:[%s3 + $0x18] sm:$0xff] %v165
  %220 = vst [vmem:[%s3 + $0x20] sm:$0xff] %v170
  %221 = vst [vmem:[%s3 + $0x28] sm:$0xff] %v173
  %222 = vst [vmem:[%s3 + $0x30] sm:$0xff] %v178
  %223 = vst [vmem:[%s3 + $0x38] sm:$0xff] %v181
  %224 = vst [vmem:[%s3 + $0x40] sm:$0xff] %v186
  %225 = vst [vmem:[%s3 + $0x48] sm:$0xff] %v189
  %226 = vst [vmem:[%s3 + $0x50] sm:$0xff] %v194
  %227 = vst [vmem:[%s3 + $0x58] sm:$0xff] %v197
  %228 = vst [vmem:[%s3 + $0x60] sm:$0xff] %v202
  %229 = vst [vmem:[%s3 + $0x68] sm:$0xff] %v205
  %230 = vst [vmem:[%s3 + $0x70] sm:$0xff] %v210
  %231 = vst [vmem:[%s3 + $0x78] sm:$0xff] %v213
  // Predicated region
  $region14: #{yolov3_forward.148} parent=0 // pred_check
    _
  $region15: #{yolov3_forward.148} parent=0 // pred_check_branch
    %233 = sbr.rel (0) target = $region17
  $region16: #{yolov3_forward.148} parent=0 // pred_region
    _
  $region17: #{yolov3_forward.148} parent=0 // pred_fallthru
    _
  // Predicated region
  $region18: #{yolov3_forward.148} parent=0 // pred_check
    _
  $region19: #{yolov3_forward.148} parent=0 // pred_check_branch
    %235 = sbr.rel (0) target = $region21
  $region20: #{yolov3_forward.148} parent=0 // pred_region
    _
  $region21: #{yolov3_forward.148} parent=0 // pred_fallthru
    _

// kernel: yolov3_forward.142
$region0: #{yolov3_forward.142}
  #allocation0 [shape = 'u32[]', space=smem, size = 0x4, offset = 0x4, fixed_abs, tag = 'smem constant byte address 0x4 - core index']
  #allocation1 [shape = 'u32[144,128]{1,0:T(1,128)}', space=vmem, size = 0x12000, scoped, tag = 'internal scratch']
  %s0 = inlined_call_operand.vmem [shape: bf16[128,48], index: 0, kind: input, shape index: {}]
  %s1 = inlined_call_operand.vmem [shape: bf16[48,128], index: 1, kind: input, shape index: {}]
  %s2 = inlined_call_operand.vmem [shape: f32[1,128], index: 2, kind: input, shape index: {}]
  %s3 = inlined_call_operand.vmem [shape: bf16[128,128], index: 3, kind: output, shape index: {}]
  %s4 = sld [smem:[#allocation0]]
  $region22: #{yolov3_forward.142} parent=0
    _
  %s6 = ssub.s32 1, %s4
  %s7 = scalar_select 0, %s6, %s4
  // Predicated region
  $region2: #{yolov3_forward.142} parent=0 // pred_check
    _
  $region3: #{yolov3_forward.142} parent=0 // pred_check_branch
    %9 = sbr.rel (0) target = $region5
  $region4: #{yolov3_forward.142} parent=0 // pred_region
    _
  $region5: #{yolov3_forward.142} parent=0 // pred_fallthru
    _
  // Predicated region
  $region6: #{yolov3_forward.142} parent=0 // pred_check
    _
  $region7: #{yolov3_forward.142} parent=0 // pred_check_branch
    %11 = sbr.rel (0) target = $region9
  $region8: #{yolov3_forward.142} parent=0 // pred_region
    _
  $region9: #{yolov3_forward.142} parent=0 // pred_fallthru
    _
  // Predicated region
  $region10: #{yolov3_forward.142} parent=0 // pred_check
    _
  $region11: #{yolov3_forward.142} parent=0 // pred_check_branch
    %13 = sbr.rel (0) target = $region13
  $region12: #{yolov3_forward.142} parent=0 // pred_region
    _
  $region13: #{yolov3_forward.142} parent=0 // pred_fallthru
    _
  %v15 = vld [vmem:[%s0] sm:$0xf]
  %v16 = vld [vmem:[%s0 + $0x4] sm:$0xf]
  %v17 = vld [vmem:[%s0 + $0x8] sm:$0xf]
  %v18 = vld [vmem:[%s0 + $0xc] sm:$0xf]
  %v19 = vld [vmem:[%s0 + $0x10] sm:$0xf]
  %v20 = vld [vmem:[%s0 + $0x14] sm:$0xf]
  %v21 = vld [vmem:[%s0 + $0x18] sm:$0xf]
  %v22 = vld [vmem:[%s0 + $0x1c] sm:$0xf]
  %v23 = vld [vmem:[%s0 + $0x20] sm:$0xf]
  %v24 = vld [vmem:[%s0 + $0x24] sm:$0xf]
  %v25 = vld [vmem:[%s0 + $0x28] sm:$0xf]
  %v26 = vld [vmem:[%s0 + $0x2c] sm:$0xf]
  %v27 = vld [vmem:[%s0 + $0x30] sm:$0xf]
  %v28 = vld [vmem:[%s0 + $0x34] sm:$0xf]
  %v29 = vld [vmem:[%s0 + $0x38] sm:$0xf]
  %v30 = vld [vmem:[%s0 + $0x3c] sm:$0xf]
  %v31 = vld [vmem:[%s1] sm:$0xf]
  %v32 = vld [vmem:[%s1 + $0x4] sm:$0xf]
  %v33 = vld [vmem:[%s1 + $0x8] sm:$0xf]
  %v34 = vld [vmem:[%s1 + $0xc] sm:$0xf]
  %v35 = vld [vmem:[%s1 + $0x10] sm:$0xf]
  %v36 = vld [vmem:[%s1 + $0x14] sm:$0xf]
  %v37 = vld [vmem:[%s2] sm:$0x1]
  %v39 = vlaneseq
  %v40 = vshrl.u32 %v39, 7
  %v41 = vsub.s32 0, %v40
  %v42 = vrot.slane %v37, %v41
  %v60 = vunpack.c.l.b16 %v15
  %v61 = vunpack.c.l.b16 %v16
  %v62 = vunpack.c.l.b16 %v17
  %v63 = vunpack.c.l.b16 %v18
  %v64 = vunpack.c.l.b16 %v19
  %v65 = vunpack.c.l.b16 %v20
  %v66 = vunpack.c.l.b16 %v21
  %v67 = vunpack.c.l.b16 %v22
  %v68 = vunpack.c.l.b16 %v23
  %v69 = vunpack.c.l.b16 %v24
  %v70 = vunpack.c.l.b16 %v25
  %v71 = vunpack.c.l.b16 %v26
  %v72 = vunpack.c.l.b16 %v27
  %v73 = vunpack.c.l.b16 %v28
  %v74 = vunpack.c.l.b16 %v29
  %v75 = vunpack.c.l.b16 %v30
  %v76 = vpack.c.b16 %v61, %v60
  %v77 = vpack.c.b16 %v63, %v62
  %v78 = vpack.c.b16 %v65, %v64
  %v79 = vpack.c.b16 %v67, %v66
  %v80 = vpack.c.b16 %v69, %v68
  %v81 = vpack.c.b16 %v71, %v70
  %v82 = vpack.c.b16 %v73, %v72
  %v83 = vpack.c.b16 %v75, %v74
  %v90 = vunpack.c.l.b16 %v31
  %v91 = vunpack.c.l.b16 %v32
  %v92 = vunpack.c.l.b16 %v33
  %v93 = vunpack.c.l.b16 %v34
  %v94 = vunpack.c.l.b16 %v35
  %v95 = vunpack.c.l.b16 %v36
  %v96 = vpack.c.b16 %v91, %v90
  %v97 = vpack.c.b16 %v93, %v92
  %v98 = vpack.c.b16 %v95, %v94
  %vm102 = vcmask 392192
  %v104 = vsel %vm102, %v76, 0
  %v107 = vsel %vm102, %v77, 0
  %v110 = vsel %vm102, %v78, 0
  %v113 = vsel %vm102, %v79, 0
  %v116 = vsel %vm102, %v80, 0
  %v119 = vsel %vm102, %v81, 0
  %v122 = vsel %vm102, %v82, 0
  %v125 = vsel %vm102, %v83, 0
  %127 = vmatprep.subr.bf16.mxu0 0
  %128 = vmatpush1.bf16.msra.mxu0 0
  %129 = vmatprep.subr.bf16.mxu0 0
  %130 = vmatpush1.bf16.msra.mxu0 0
  %131 = vmatprep.subr.bf16.mxu0 0
  %132 = vmatpush1.bf16.msra.mxu0 0
  %133 = vmatprep.subr.bf16.mxu0 0
  %134 = vmatpush1.bf16.msra.mxu0 0
  %135 = vmatprep.subr.bf16.mxu0 0
  %136 = vmatpush1.bf16.msra.mxu0 0
  %137 = vmatprep.subr.bf16.mxu0 0
  %138 = vmatpush1.bf16.msra.mxu0 %v98
  %139 = vmatprep.subr.bf16.mxu0 0
  %140 = vmatpush1.bf16.msra.mxu0 %v97
  %141 = vmatprep.subr.bf16.mxu0 0
  %142 = vmatpush1.bf16.msra.mxu0 %v96
  %143 = vmatprep.subr.bf16.mxu0 0
  %144 = vmatpush2.bf16.msra.mxu0 0
  %145 = vmatprep.subr.bf16.mxu0 0
  %146 = vmatpush2.bf16.msra.mxu0 0
  %147 = vmatprep.subr.bf16.mxu0 0
  %148 = vmatpush2.bf16.msra.mxu0 0
  %149 = vmatprep.subr.bf16.mxu0 0
  %150 = vmatpush2.bf16.msra.mxu0 0
  %151 = vmatprep.subr.bf16.mxu0 0
  %152 = vmatpush2.bf16.msra.mxu0 0
  %153 = vmatprep.subr.bf16.mxu0 0
  %154 = vmatpush2.bf16.msra.mxu0 0
  %155 = vmatprep.subr.bf16.mxu0 0
  %156 = vmatpush2.bf16.msra.mxu0 0
  %157 = vmatprep.subr.bf16.mxu0 0
  %158 = vmatpush2.bf16.msra.mxu0 0
  %159 = vmatprep.mubr.bf16.mxu0 0
  %160 = vmatmul.mubr.bf16.gmra.mxu0 %v104
  %v161 = vpop.f32.mrf.mxu0
  %v162 = vadd.f32 %v42, %v161
  %v163 = vpop.f32.mrf.mxu0
  %v164 = vpop.f32.mrf.mxu0
  %v165 = vadd.f32 %v42, %v164
  %v166 = vpop.f32.mrf.mxu0
  %167 = vmatprep.mubr.bf16.mxu0 0
  %168 = vmatmul.mubr.bf16.gmra.mxu0 %v107
  %v169 = vpop.f32.mrf.mxu0
  %v170 = vadd.f32 %v42, %v169
  %v171 = vpop.f32.mrf.mxu0
  %v172 = vpop.f32.mrf.mxu0
  %v173 = vadd.f32 %v42, %v172
  %v174 = vpop.f32.mrf.mxu0
  %175 = vmatprep.mubr.bf16.mxu0 0
  %176 = vmatmul.mubr.bf16.gmra.mxu0 %v110
  %v177 = vpop.f32.mrf.mxu0
  %v178 = vadd.f32 %v42, %v177
  %v179 = vpop.f32.mrf.mxu0
  %v180 = vpop.f32.mrf.mxu0
  %v181 = vadd.f32 %v42, %v180
  %v182 = vpop.f32.mrf.mxu0
  %183 = vmatprep.mubr.bf16.mxu0 0
  %184 = vmatmul.mubr.bf16.gmra.mxu0 %v113
  %v185 = vpop.f32.mrf.mxu0
  %v186 = vadd.f32 %v42, %v185
  %v187 = vpop.f32.mrf.mxu0
  %v188 = vpop.f32.mrf.mxu0
  %v189 = vadd.f32 %v42, %v188
  %v190 = vpop.f32.mrf.mxu0
  %191 = vmatprep.mubr.bf16.mxu0 0
  %192 = vmatmul.mubr.bf16.gmra.mxu0 %v116
  %v193 = vpop.f32.mrf.mxu0
  %v194 = vadd.f32 %v42, %v193
  %v195 = vpop.f32.mrf.mxu0
  %v196 = vpop.f32.mrf.mxu0
  %v197 = vadd.f32 %v42, %v196
  %v198 = vpop.f32.mrf.mxu0
  %199 = vmatprep.mubr.bf16.mxu0 0
  %200 = vmatmul.mubr.bf16.gmra.mxu0 %v119
  %v201 = vpop.f32.mrf.mxu0
  %v202 = vadd.f32 %v42, %v201
  %v203 = vpop.f32.mrf.mxu0
  %v204 = vpop.f32.mrf.mxu0
  %v205 = vadd.f32 %v42, %v204
  %v206 = vpop.f32.mrf.mxu0
  %207 = vmatprep.mubr.bf16.mxu0 0
  %208 = vmatmul.mubr.bf16.gmra.mxu0 %v122
  %v209 = vpop.f32.mrf.mxu0
  %v210 = vadd.f32 %v42, %v209
  %v211 = vpop.f32.mrf.mxu0
  %v212 = vpop.f32.mrf.mxu0
  %v213 = vadd.f32 %v42, %v212
  %v214 = vpop.f32.mrf.mxu0
  %215 = vmatprep.mubr.bf16.mxu0 0
  %216 = vmatmul.mubr.bf16.gmra.mxu0 %v125
  %v217 = vpop.f32.mrf.mxu0
  %v218 = vadd.f32 %v42, %v217
  %v219 = vpop.f32.mrf.mxu0
  %v220 = vpop.f32.mrf.mxu0
  %v221 = vadd.f32 %v42, %v220
  %v222 = vpop.f32.mrf.mxu0
  %223 = vdwg.mxu0
  %vm224 = vcmp.gt.f32.partialorder %v162, 0.0
  %vm225 = vcmp.gt.f32.partialorder %v165, 0.0
  %vm226 = vcmp.gt.f32.partialorder %v170, 0.0
  %vm227 = vcmp.gt.f32.partialorder %v173, 0.0
  %vm228 = vcmp.gt.f32.partialorder %v178, 0.0
  %vm229 = vcmp.gt.f32.partialorder %v181, 0.0
  %vm230 = vcmp.gt.f32.partialorder %v186, 0.0
  %vm231 = vcmp.gt.f32.partialorder %v189, 0.0
  %vm232 = vcmp.gt.f32.partialorder %v194, 0.0
  %vm233 = vcmp.gt.f32.partialorder %v197, 0.0
  %vm234 = vcmp.gt.f32.partialorder %v202, 0.0
  %vm235 = vcmp.gt.f32.partialorder %v205, 0.0
  %vm236 = vcmp.gt.f32.partialorder %v210, 0.0
  %vm237 = vcmp.gt.f32.partialorder %v213, 0.0
  %vm238 = vcmp.gt.f32.partialorder %v218, 0.0
  %vm239 = vcmp.gt.f32.partialorder %v221, 0.0
  %v240 = vmul.f32 %v162, 0.1
  %v241 = vmul.f32 %v165, 0.1
  %v242 = vmul.f32 %v170, 0.1
  %v243 = vmul.f32 %v173, 0.1
  %v244 = vmul.f32 %v178, 0.1
  %v245 = vmul.f32 %v181, 0.1
  %v246 = vmul.f32 %v186, 0.1
  %v247 = vmul.f32 %v189, 0.1
  %v248 = vmul.f32 %v194, 0.1
  %v249 = vmul.f32 %v197, 0.1
  %v250 = vmul.f32 %v202, 0.1
  %v251 = vmul.f32 %v205, 0.1
  %v252 = vmul.f32 %v210, 0.1
  %v253 = vmul.f32 %v213, 0.1
  %v254 = vmul.f32 %v218, 0.1
  %v255 = vmul.f32 %v221, 0.1
  %v256 = vsel %vm224, %v162, %v240
  %v257 = vsel %vm225, %v165, %v241
  %v258 = vsel %vm226, %v170, %v242
  %v259 = vsel %vm227, %v173, %v243
  %v260 = vsel %vm228, %v178, %v244
  %v261 = vsel %vm229, %v181, %v245
  %v262 = vsel %vm230, %v186, %v246
  %v263 = vsel %vm231, %v189, %v247
  %v264 = vsel %vm232, %v194, %v248
  %v265 = vsel %vm233, %v197, %v249
  %v266 = vsel %vm234, %v202, %v250
  %v267 = vsel %vm235, %v205, %v251
  %v268 = vsel %vm236, %v210, %v252
  %v269 = vsel %vm237, %v213, %v253
  %v270 = vsel %vm238, %v218, %v254
  %v271 = vsel %vm239, %v221, %v255
  %v272 = vpack.c.bf16 %v257, %v256
  %v273 = vpack.c.bf16 %v259, %v258
  %v274 = vpack.c.bf16 %v261, %v260
  %v275 = vpack.c.bf16 %v263, %v262
  %v276 = vpack.c.bf16 %v265, %v264
  %v277 = vpack.c.bf16 %v267, %v266
  %v278 = vpack.c.bf16 %v269, %v268
  %v279 = vpack.c.bf16 %v271, %v270
  %v288 = vunpack.c.l.b16 %v272
  %v289 = vunpack.c.h.b16 %v272
  %v290 = vunpack.c.l.b16 %v273
  %v291 = vunpack.c.h.b16 %v273
  %v292 = vunpack.c.l.b16 %v274
  %v293 = vunpack.c.h.b16 %v274
  %v294 = vunpack.c.l.b16 %v275
  %v295 = vunpack.c.h.b16 %v275
  %v296 = vunpack.c.l.b16 %v276
  %v297 = vunpack.c.h.b16 %v276
  %v298 = vunpack.c.l.b16 %v277
  %v299 = vunpack.c.h.b16 %v277
  %v300 = vunpack.c.l.b16 %v278
  %v301 = vunpack.c.h.b16 %v278
  %v302 = vunpack.c.l.b16 %v279
  %v303 = vunpack.c.h.b16 %v279
  %v304 = vpack.c.b16 %v288, %v288
  %v305 = vpack.c.b16 %v289, %v289
  %v306 = vpack.c.b16 %v290, %v290
  %v307 = vpack.c.b16 %v291, %v291
  %v308 = vpack.c.b16 %v292, %v292
  %v309 = vpack.c.b16 %v293, %v293
  %v310 = vpack.c.b16 %v294, %v294
  %v311 = vpack.c.b16 %v295, %v295
  %v312 = vpack.c.b16 %v296, %v296
  %v313 = vpack.c.b16 %v297, %v297
  %v314 = vpack.c.b16 %v298, %v298
  %v315 = vpack.c.b16 %v299, %v299
  %v316 = vpack.c.b16 %v300, %v300
  %v317 = vpack.c.b16 %v301, %v301
  %v318 = vpack.c.b16 %v302, %v302
  %v319 = vpack.c.b16 %v303, %v303
  %336 = vst [vmem:[%s3] sm:$0xf] %v304
  %337 = vst [vmem:[%s3 + $0x4] sm:$0xf] %v305
  %338 = vst [vmem:[%s3 + $0x8] sm:$0xf] %v306
  %339 = vst [vmem:[%s3 + $0xc] sm:$0xf] %v307
  %340 = vst [vmem:[%s3 + $0x10] sm:$0xf] %v308
  %341 = vst [vmem:[%s3 + $0x14] sm:$0xf] %v309
  %342 = vst [vmem:[%s3 + $0x18] sm:$0xf] %v310
  %343 = vst [vmem:[%s3 + $0x1c] sm:$0xf] %v311
  %344 = vst [vmem:[%s3 + $0x20] sm:$0xf] %v312
  %345 = vst [vmem:[%s3 + $0x24] sm:$0xf] %v313
  %346 = vst [vmem:[%s3 + $0x28] sm:$0xf] %v314
  %347 = vst [vmem:[%s3 + $0x2c] sm:$0xf] %v315
  %348 = vst [vmem:[%s3 + $0x30] sm:$0xf] %v316
  %349 = vst [vmem:[%s3 + $0x34] sm:$0xf] %v317
  %350 = vst [vmem:[%s3 + $0x38] sm:$0xf] %v318
  %351 = vst [vmem:[%s3 + $0x3c] sm:$0xf] %v319
  // Predicated region
  $region14: #{yolov3_forward.142} parent=0 // pred_check
    _
  $region15: #{yolov3_forward.142} parent=0 // pred_check_branch
    %353 = sbr.rel (0) target = $region17
  $region16: #{yolov3_forward.142} parent=0 // pred_region
    _
  $region17: #{yolov3_forward.142} parent=0 // pred_fallthru
    _
  // Predicated region
  $region18: #{yolov3_forward.142} parent=0 // pred_check
    _
  $region19: #{yolov3_forward.142} parent=0 // pred_check_branch
    %355 = sbr.rel (0) target = $region21
  $region20: #{yolov3_forward.142} parent=0 // pred_region
    _
  $region21: #{yolov3_forward.142} parent=0 // pred_fallthru
    _

// kernel: yolov3_forward.149
$region0: #{yolov3_forward.149}
  #allocation0 [shape = 'u32[]', space=smem, size = 0x4, offset = 0x4, fixed_abs, tag = 'smem constant byte address 0x4 - core index']
  #allocation1 [shape = 'u32[144,128]{1,0:T(1,128)}', space=vmem, size = 0x12000, scoped, tag = 'internal scratch']
  %s0 = inlined_call_operand.vmem [shape: f32[24,128], index: 0, kind: input, shape index: {}]
  %s1 = inlined_call_operand.vmem [shape: f32[24,128], index: 1, kind: output, shape index: {}]
  %s2 = sld [smem:[#allocation0]]
  $region14: #{yolov3_forward.149} parent=0
    _
  %s4 = ssub.s32 1, %s2
  %s5 = scalar_select 0, %s4, %s2
  // Predicated region
  $region2: #{yolov3_forward.149} parent=0 // pred_check
    _
  $region3: #{yolov3_forward.149} parent=0 // pred_check_branch
    %7 = sbr.rel (0) target = $region5
  $region4: #{yolov3_forward.149} parent=0 // pred_region
    _
  $region5: #{yolov3_forward.149} parent=0 // pred_fallthru
    _
  %v8 = vld [vmem:[%s0] sm:$0xff]
  %v9 = vld [vmem:[%s0 + $0x8] sm:$0xff]
  %v10 = vld [vmem:[%s0 + $0x10] sm:$0xff]
  %v11 = vlaneseq
  %v12 = vshrl.u32 %v11, 7
  %v13 = vadd.s32 %v12, 8
  %v14 = vadd.s32 %v12, 16
  %v15 = vcvt.s32.f32 %v12
  %v16 = vcvt.s32.f32 %v13
  %v17 = vcvt.s32.f32 %v14
  %v18 = vlaneseq
  %v19 = vand.u32 %v18, 127
  %v20 = vcvt.s32.f32 %v19
  %v21 = vmul.f32 %v15, 128.0
  %v22 = vmul.f32 %v16, 128.0
  %v23 = vmul.f32 %v17, 128.0
  %v24 = vadd.f32 %v21, %v20
  %v25 = vadd.f32 %v22, %v20
  %v26 = vadd.f32 %v23, %v20
  %v27 = vrcp.pop 8.0
  %v28 = vmul.f32 %v24, %v27
  %v29 = vmul.f32 %v25, %v27
  %v30 = vmul.f32 %v26, %v27
  %v31 = vfloor.f32 %v28
  %v32 = vfloor.f32 %v29
  %v33 = vfloor.f32 %v30
  %v34 = vmul.f32 %v31, 8.0
  %v35 = vmul.f32 %v32, 8.0
  %v36 = vmul.f32 %v33, 8.0
  %v37 = vsub.f32 %v24, %v34
  %v38 = vsub.f32 %v25, %v35
  %v39 = vsub.f32 %v26, %v36
  %v40 = vrcp.pop 3.0
  %v41 = vmul.f32 %v31, %v40
  %v42 = vmul.f32 %v32, %v40
  %v43 = vmul.f32 %v33, %v40
  %v44 = vfloor.f32 %v41
  %v45 = vfloor.f32 %v42
  %v46 = vfloor.f32 %v43
  %v47 = vmul.f32 %v44, 3.0
  %v48 = vmul.f32 %v45, 3.0
  %v49 = vmul.f32 %v46, 3.0
  %v50 = vsub.f32 %v31, %v47
  %v51 = vsub.f32 %v32, %v48
  %v52 = vsub.f32 %v33, %v49
  %v53 = vmul.f32 %v44, %v27
  %v54 = vmul.f32 %v45, %v27
  %v55 = vmul.f32 %v46, %v27
  %v56 = vfloor.f32 %v53
  %v57 = vfloor.f32 %v54
  %v58 = vfloor.f32 %v55
  %v59 = vmul.f32 %v56, 8.0
  %v60 = vmul.f32 %v57, 8.0
  %v61 = vmul.f32 %v58, 8.0
  %v62 = vsub.f32 %v44, %v59
  %v63 = vsub.f32 %v45, %v60
  %v64 = vsub.f32 %v46, %v61
  %v65 = vmul.f32 %v56, %v27
  %v66 = vmul.f32 %v57, %v27
  %v67 = vmul.f32 %v58, %v27
  %v68 = vfloor.f32 %v65
  %v69 = vfloor.f32 %v66
  %v70 = vfloor.f32 %v67
  %v71 = vmul.f32 %v68, 8.0
  %v72 = vmul.f32 %v69, 8.0
  %v73 = vmul.f32 %v70, 8.0
  %v74 = vsub.f32 %v56, %v71
  %v75 = vsub.f32 %v57, %v72
  %v76 = vsub.f32 %v58, %v73
  %v77 = vxor.u32 %v8, 2147483648
  %v78 = vxor.u32 %v9, 2147483648
  %v79 = vxor.u32 %v10, 2147483648
  %v80 = vmul.f32 %v77, 1.442695
  %v81 = vpow.pop %v80
  %v82 = vmul.f32 %v78, 1.442695
  %v83 = vpow.pop %v82
  %v84 = vmul.f32 %v79, 1.442695
  %v85 = vpow.pop %v84
  %v86 = vadd.f32 %v81, 1.0
  %v87 = vadd.f32 %v83, 1.0
  %v88 = vadd.f32 %v85, 1.0
  %v89 = vrcp.pop %v86
  %v90 = vmul.f32 1.0, %v89
  %v91 = vrcp.pop %v87
  %v92 = vmul.f32 1.0, %v91
  %v93 = vrcp.pop %v88
  %v94 = vmul.f32 1.0, %v93
  %vm95 = vcmp.eq.f32.partialorder %v37, 2.0
  %vm96 = vcmp.eq.f32.partialorder %v38, 2.0
  %vm97 = vcmp.eq.f32.partialorder %v39, 2.0
  %vm98 = vcmp.eq.f32.partialorder %v37, 3.0
  %vm99 = vcmp.eq.f32.partialorder %v38, 3.0
  %vm100 = vcmp.eq.f32.partialorder %v39, 3.0
  %vm101 = vmor %vm95, %vm98
  %vm102 = vmor %vm96, %vm99
  %vm103 = vmor %vm97, %vm100
  %v104 = vsel %vm101, %v8, 0.0
  %v105 = vsel %vm102, %v9, 0.0
  %v106 = vsel %vm103, %v10, 0.0
  %v107 = vmul.f32 %v104, 1.442695
  %v108 = vpow.pop %v107
  %v109 = vmul.f32 %v105, 1.442695
  %v110 = vpow.pop %v109
  %v111 = vmul.f32 %v106, 1.442695
  %v112 = vpow.pop %v111
  %vm113 = vcmp.eq.f32.partialorder %v50, 1.0
  %vm114 = vcmp.eq.f32.partialorder %v51, 1.0
  %vm115 = vcmp.eq.f32.partialorder %v52, 1.0
  %v116 = vsel %vm113, 2.4615386, 5.076923
  %v117 = vsel %vm114, 2.4615386, 5.076923
  %v118 = vsel %vm115, 2.4615386, 5.076923
  %v119 = vsel %vm113, 4.6153846, 3.5384614
  %v120 = vsel %vm114, 4.6153846, 3.5384614
  %v121 = vsel %vm115, 4.6153846, 3.5384614
  %vm122 = vcmp.eq.f32.partialorder %v50, 0.0
  %vm123 = vcmp.eq.f32.partialorder %v51, 0.0
  %vm124 = vcmp.eq.f32.partialorder %v52, 0.0
  %v125 = vsel %vm122, 1.5384616, %v116
  %v126 = vsel %vm123, 1.5384616, %v117
  %v127 = vsel %vm124, 1.5384616, %v118
  %v128 = vsel %vm122, 2.0, %v119
  %v129 = vsel %vm123, 2.0, %v120
  %v130 = vsel %vm124, 2.0, %v121
  %vm131 = vcmp.eq.f32.partialorder %v37, 0.0
  %vm132 = vcmp.eq.f32.partialorder %v38, 0.0
  %vm133 = vcmp.eq.f32.partialorder %v39, 0.0
  %v134 = vadd.f32 %v90, %v62
  %v135 = vadd.f32 %v92, %v63
  %v136 = vadd.f32 %v94, %v64
  %v137 = vmul.f32 %v134, 8.0
  %v138 = vmul.f32 %v135, 8.0
  %v139 = vmul.f32 %v136, 8.0
  %vm140 = vcmp.eq.f32.partialorder %v37, 1.0
  %vm141 = vcmp.eq.f32.partialorder %v38, 1.0
  %vm142 = vcmp.eq.f32.partialorder %v39, 1.0
  %v143 = vadd.f32 %v90, %v74
  %v144 = vadd.f32 %v92, %v75
  %v145 = vadd.f32 %v94, %v76
  %v146 = vmul.f32 %v143, 8.0
  %v147 = vmul.f32 %v144, 8.0
  %v148 = vmul.f32 %v145, 8.0
  %v149 = vmul.f32 %v108, %v125
  %v150 = vmul.f32 %v110, %v126
  %v151 = vmul.f32 %v112, %v127
  %v152 = vmul.f32 %v108, %v128
  %v153 = vmul.f32 %v110, %v129
  %v154 = vmul.f32 %v112, %v130
  %v155 = vsel %vm98, %v152, %v90
  %v156 = vsel %vm99, %v153, %v92
  %v157 = vsel %vm100, %v154, %v94
  %v158 = vsel %vm95, %v149, %v155
  %v159 = vsel %vm96, %v150, %v156
  %v160 = vsel %vm97, %v151, %v157
  %v161 = vsel %vm140, %v146, %v158
  %v162 = vsel %vm141, %v147, %v159
  %v163 = vsel %vm142, %v148, %v160
  %v164 = vsel %vm131, %v137, %v161
  %v165 = vsel %vm132, %v138, %v162
  %v166 = vsel %vm133, %v139, %v163
  %167 = vst [vmem:[%s1] sm:$0xff] %v164
  %168 = vst [vmem:[%s1 + $0x8] sm:$0xff] %v165
  %169 = vst [vmem:[%s1 + $0x10] sm:$0xff] %v166
  // Predicated region
  $region6: #{yolov3_forward.149} parent=0 // pred_check
    _
  $region7: #{yolov3_forward.149} parent=0 // pred_check_branch
    %171 = sbr.rel (0) target = $region9
  $region8: #{yolov3_forward.149} parent=0 // pred_region
    _
  $region9: #{yolov3_forward.149} parent=0 // pred_fallthru
    _
  // Predicated region
  $region10: #{yolov3_forward.149} parent=0 // pred_check
    _
  $region11: #{yolov3_forward.149} parent=0 // pred_check_branch
    %173 = sbr.rel (0) target = $region13
  $region12: #{yolov3_forward.149} parent=0 // pred_region
    _
  $region13: #{yolov3_forward.149} parent=0 // pred_fallthru
    _

// kernel: yolov3_forward.151
$region0: #{yolov3_forward.151}
  #allocation0 [shape = 'u32[]', space=smem, size = 0x4, offset = 0x4, fixed_abs, tag = 'smem constant byte address 0x4 - core index']
  #allocation1 [shape = 'u32[144,128]{1,0:T(1,128)}', space=vmem, size = 0x12000, scoped, tag = 'internal scratch']
  %s0 = inlined_call_operand.vmem [shape: bf16[32,64], index: 0, kind: input, shape index: {}]
  %s1 = inlined_call_operand.vmem [shape: bf16[64,128], index: 1, kind: input, shape index: {}]
  %s2 = inlined_call_operand.vmem [shape: f32[1,128], index: 2, kind: input, shape index: {}]
  %s3 = inlined_call_operand.vmem [shape: f32[32,128], index: 3, kind: output, shape index: {}]
  %s4 = sld [smem:[#allocation0]]
  $region22: #{yolov3_forward.151} parent=0
    _
  %s6 = ssub.s32 1, %s4
  %s7 = scalar_select 0, %s6, %s4
  // Predicated region
  $region2: #{yolov3_forward.151} parent=0 // pred_check
    _
  $region3: #{yolov3_forward.151} parent=0 // pred_check_branch
    %9 = sbr.rel (0) target = $region5
  $region4: #{yolov3_forward.151} parent=0 // pred_region
    _
  $region5: #{yolov3_forward.151} parent=0 // pred_fallthru
    _
  // Predicated region
  $region6: #{yolov3_forward.151} parent=0 // pred_check
    _
  $region7: #{yolov3_forward.151} parent=0 // pred_check_branch
    %11 = sbr.rel (0) target = $region9
  $region8: #{yolov3_forward.151} parent=0 // pred_region
    _
  $region9: #{yolov3_forward.151} parent=0 // pred_fallthru
    _
  // Predicated region
  $region10: #{yolov3_forward.151} parent=0 // pred_check
    _
  $region11: #{yolov3_forward.151} parent=0 // pred_check_branch
    %13 = sbr.rel (0) target = $region13
  $region12: #{yolov3_forward.151} parent=0 // pred_region
    _
  $region13: #{yolov3_forward.151} parent=0 // pred_fallthru
    _
  %v15 = vld [vmem:[%s0] sm:$0xf]
  %v16 = vld [vmem:[%s0 + $0x4] sm:$0xf]
  %v17 = vld [vmem:[%s0 + $0x8] sm:$0xf]
  %v18 = vld [vmem:[%s0 + $0xc] sm:$0xf]
  %v19 = vld [vmem:[%s1] sm:$0xf]
  %v20 = vld [vmem:[%s1 + $0x4] sm:$0xf]
  %v21 = vld [vmem:[%s1 + $0x8] sm:$0xf]
  %v22 = vld [vmem:[%s1 + $0xc] sm:$0xf]
  %v23 = vld [vmem:[%s1 + $0x10] sm:$0xf]
  %v24 = vld [vmem:[%s1 + $0x14] sm:$0xf]
  %v25 = vld [vmem:[%s1 + $0x18] sm:$0xf]
  %v26 = vld [vmem:[%s1 + $0x1c] sm:$0xf]
  %v27 = vld [vmem:[%s2] sm:$0x1]
  %v29 = vlaneseq
  %v30 = vshrl.u32 %v29, 7
  %v31 = vsub.s32 0, %v30
  %v32 = vrot.slane %v27, %v31
  %v38 = vunpack.c.l.b16 %v15
  %v39 = vunpack.c.l.b16 %v16
  %v40 = vunpack.c.l.b16 %v17
  %v41 = vunpack.c.l.b16 %v18
  %v42 = vpack.c.b16 %v39, %v38
  %v43 = vpack.c.b16 %v41, %v40
  %v52 = vunpack.c.l.b16 %v19
  %v53 = vunpack.c.l.b16 %v20
  %v54 = vunpack.c.l.b16 %v21
  %v55 = vunpack.c.l.b16 %v22
  %v56 = vunpack.c.l.b16 %v23
  %v57 = vunpack.c.l.b16 %v24
  %v58 = vunpack.c.l.b16 %v25
  %v59 = vunpack.c.l.b16 %v26
  %v60 = vpack.c.b16 %v53, %v52
  %v61 = vpack.c.b16 %v55, %v54
  %v62 = vpack.c.b16 %v57, %v56
  %v63 = vpack.c.b16 %v59, %v58
  %vm68 = vcmask 523264
  %v70 = vsel %vm68, %v42, 0
  %v73 = vsel %vm68, %v43, 0
  %75 = vmatprep.subr.bf16.mxu0 0
  %76 = vmatpush1.bf16.msra.mxu0 0
  %77 = vmatprep.subr.bf16.mxu0 0
  %78 = vmatpush1.bf16.msra.mxu0 0
  %79 = vmatprep.subr.bf16.mxu0 0
  %80 = vmatpush1.bf16.msra.mxu0 0
  %81 = vmatprep.subr.bf16.mxu0 0
  %82 = vmatpush1.bf16.msra.mxu0 0
  %83 = vmatprep.subr.bf16.mxu0 0
  %84 = vmatpush1.bf16.msra.mxu0 %v63
  %85 = vmatprep.subr.bf16.mxu0 0
  %86 = vmatpush1.bf16.msra.mxu0 %v62
  %87 = vmatprep.subr.bf16.mxu0 0
  %88 = vmatpush1.bf16.msra.mxu0 %v61
  %89 = vmatprep.subr.bf16.mxu0 0
  %90 = vmatpush1.bf16.msra.mxu0 %v60
  %91 = vmatprep.subr.bf16.mxu0 0
  %92 = vmatpush2.bf16.msra.mxu0 0
  %93 = vmatprep.subr.bf16.mxu0 0
  %94 = vmatpush2.bf16.msra.mxu0 0
  %95 = vmatprep.subr.bf16.mxu0 0
  %96 = vmatpush2.bf16.msra.mxu0 0
  %97 = vmatprep.subr.bf16.mxu0 0
  %98 = vmatpush2.bf16.msra.mxu0 0
  %99 = vmatprep.subr.bf16.mxu0 0
  %100 = vmatpush2.bf16.msra.mxu0 0
  %101 = vmatprep.subr.bf16.mxu0 0
  %102 = vmatpush2.bf16.msra.mxu0 0
  %103 = vmatprep.subr.bf16.mxu0 0
  %104 = vmatpush2.bf16.msra.mxu0 0
  %105 = vmatprep.subr.bf16.mxu0 0
  %106 = vmatpush2.bf16.msra.mxu0 0
  %107 = vmatprep.mubr.bf16.mxu0 0
  %108 = vmatmul.mubr.bf16.gmra.mxu0 %v70
  %v109 = vpop.f32.mrf.mxu0
  %v110 = vadd.f32 %v32, %v109
  %v111 = vpop.f32.mrf.mxu0
  %v112 = vpop.f32.mrf.mxu0
  %v113 = vadd.f32 %v32, %v112
  %v114 = vpop.f32.mrf.mxu0
  %115 = vmatprep.mubr.bf16.mxu0 0
  %116 = vmatmul.mubr.bf16.gmra.mxu0 %v73
  %v117 = vpop.f32.mrf.mxu0
  %v118 = vadd.f32 %v32, %v117
  %v119 = vpop.f32.mrf.mxu0
  %v120 = vpop.f32.mrf.mxu0
  %v121 = vadd.f32 %v32, %v120
  %v122 = vpop.f32.mrf.mxu0
  %123 = vdwg.mxu0
  %124 = vst [vmem:[%s3] sm:$0xff] %v110
  %125 = vst [vmem:[%s3 + $0x8] sm:$0xff] %v113
  %126 = vst [vmem:[%s3 + $0x10] sm:$0xff] %v118
  %127 = vst [vmem:[%s3 + $0x18] sm:$0xff] %v121
  // Predicated region
  $region14: #{yolov3_forward.151} parent=0 // pred_check
    _
  $region15: #{yolov3_forward.151} parent=0 // pred_check_branch
    %129 = sbr.rel (0) target = $region17
  $region16: #{yolov3_forward.151} parent=0 // pred_region
    _
  $region17: #{yolov3_forward.151} parent=0 // pred_fallthru
    _
  // Predicated region
  $region18: #{yolov3_forward.151} parent=0 // pred_check
    _
  $region19: #{yolov3_forward.151} parent=0 // pred_check_branch
    %131 = sbr.rel (0) target = $region21
  $region20: #{yolov3_forward.151} parent=0 // pred_region
    _
  $region21: #{yolov3_forward.151} parent=0 // pred_fallthru
    _

// kernel: yolov3_forward.152
$region0: #{yolov3_forward.152}
  #allocation0 [shape = 'u32[]', space=smem, size = 0x4, offset = 0x4, fixed_abs, tag = 'smem constant byte address 0x4 - core index']
  #allocation1 [shape = 'u32[144,128]{1,0:T(1,128)}', space=vmem, size = 0x12000, scoped, tag = 'internal scratch']
  %s0 = inlined_call_operand.vmem [shape: f32[6,128], index: 0, kind: input, shape index: {}]
  %s1 = inlined_call_operand.vmem [shape: f32[6,128], index: 1, kind: output, shape index: {}]
  %s2 = sld [smem:[#allocation0]]
  $region14: #{yolov3_forward.152} parent=0
    _
  %s4 = ssub.s32 1, %s2
  %s5 = scalar_select 0, %s4, %s2
  // Predicated region
  $region2: #{yolov3_forward.152} parent=0 // pred_check
    _
  $region3: #{yolov3_forward.152} parent=0 // pred_check_branch
    %7 = sbr.rel (0) target = $region5
  $region4: #{yolov3_forward.152} parent=0 // pred_region
    _
  $region5: #{yolov3_forward.152} parent=0 // pred_fallthru
    _
  %v8 = vld [vmem:[%s0] sm:$0x3f]
  %v9 = vlaneseq
  %v10 = vshrl.u32 %v9, 7
  %v11 = vcvt.s32.f32 %v10
  %v12 = vlaneseq
  %v13 = vand.u32 %v12, 127
  %v14 = vcvt.s32.f32 %v13
  %v15 = vmul.f32 %v11, 128.0
  %v16 = vadd.f32 %v15, %v14
  %v17 = vrcp.pop 8.0
  %v18 = vmul.f32 %v16, %v17
  %v19 = vfloor.f32 %v18
  %v20 = vmul.f32 %v19, 8.0
  %v21 = vsub.f32 %v16, %v20
  %v22 = vrcp.pop 3.0
  %v23 = vmul.f32 %v19, %v22
  %v24 = vfloor.f32 %v23
  %v25 = vmul.f32 %v24, 3.0
  %v26 = vsub.f32 %v19, %v25
  %v27 = vrcp.pop 4.0
  %v28 = vmul.f32 %v24, %v27
  %v29 = vfloor.f32 %v28
  %v30 = vmul.f32 %v29, 4.0
  %v31 = vsub.f32 %v24, %v30
  %v32 = vmul.f32 %v29, %v27
  %v33 = vfloor.f32 %v32
  %v34 = vmul.f32 %v33, 4.0
  %v35 = vsub.f32 %v29, %v34
  %v36 = vxor.u32 %v8, 2147483648
  %v37 = vmul.f32 %v36, 1.442695
  %v38 = vpow.pop %v37
  %v39 = vadd.f32 %v38, 1.0
  %v40 = vrcp.pop %v39
  %v41 = vmul.f32 1.0, %v40
  %vm42 = vcmp.eq.f32.partialorder %v21, 2.0
  %vm43 = vcmp.eq.f32.partialorder %v21, 3.0
  %vm44 = vmor %vm42, %vm43
  %v45 = vsel %vm44, %v8, 0.0
  %v46 = vmul.f32 %v45, 1.442695
  %v47 = vpow.pop %v46
  %vm48 = vcmp.eq.f32.partialorder %v26, 1.0
  %v49 = vsel %vm48, 9.538462, 9.076923
  %v50 = vsel %vm48, 6.923077, 18.307692
  %vm51 = vcmp.eq.f32.partialorder %v26, 0.0
  %v52 = vsel %vm51, 4.6153846, %v49
  %v53 = vsel %vm51, 9.384615, %v50
  %vm54 = vcmp.eq.f32.partialorder %v21, 0.0
  %v55 = vadd.f32 %v41, %v31
  %v56 = vmul.f32 %v55, 16.0
  %vm57 = vcmp.eq.f32.partialorder %v21, 1.0
  %v58 = vadd.f32 %v41, %v35
  %v59 = vmul.f32 %v58, 16.0
  %v60 = vmul.f32 %v47, %v52
  %v61 = vmul.f32 %v47, %v53
  %v62 = vsel %vm43, %v61, %v41
  %v63 = vsel %vm42, %v60, %v62
  %v64 = vsel %vm57, %v59, %v63
  %v65 = vsel %vm54, %v56, %v64
  %66 = vst [vmem:[%s1] sm:$0x3f] %v65
  // Predicated region
  $region6: #{yolov3_forward.152} parent=0 // pred_check
    _
  $region7: #{yolov3_forward.152} parent=0 // pred_check_branch
    %68 = sbr.rel (0) target = $region9
  $region8: #{yolov3_forward.152} parent=0 // pred_region
    _
  $region9: #{yolov3_forward.152} parent=0 // pred_fallthru
    _
  // Predicated region
  $region10: #{yolov3_forward.152} parent=0 // pred_check
    _
  $region11: #{yolov3_forward.152} parent=0 // pred_check_branch
    %70 = sbr.rel (0) target = $region13
  $region12: #{yolov3_forward.152} parent=0 // pred_region
    _
  $region13: #{yolov3_forward.152} parent=0 // pred_fallthru
    _

// kernel: yolov3_forward.154
$region0: #{yolov3_forward.154}
  #allocation0 [shape = 'u32[]', space=smem, size = 0x4, offset = 0x4, fixed_abs, tag = 'smem constant byte address 0x4 - core index']
  #allocation1 [shape = 'u32[144,128]{1,0:T(1,128)}', space=vmem, size = 0x12000, scoped, tag = 'internal scratch']
  %s0 = inlined_call_operand.vmem [shape: bf16[8,128], index: 0, kind: input, shape index: {}]
  %s1 = inlined_call_operand.vmem [shape: bf16[128,128], index: 1, kind: input, shape index: {}]
  %s2 = inlined_call_operand.vmem [shape: f32[1,128], index: 2, kind: input, shape index: {}]
  %s3 = inlined_call_operand.vmem [shape: f32[8,128], index: 3, kind: output, shape index: {}]
  %s4 = sld [smem:[#allocation0]]
  $region22: #{yolov3_forward.154} parent=0
    _
  %s6 = ssub.s32 1, %s4
  %s7 = scalar_select 0, %s6, %s4
  // Predicated region
  $region2: #{yolov3_forward.154} parent=0 // pred_check
    _
  $region3: #{yolov3_forward.154} parent=0 // pred_check_branch
    %9 = sbr.rel (0) target = $region5
  $region4: #{yolov3_forward.154} parent=0 // pred_region
    _
  $region5: #{yolov3_forward.154} parent=0 // pred_fallthru
    _
  // Predicated region
  $region6: #{yolov3_forward.154} parent=0 // pred_check
    _
  $region7: #{yolov3_forward.154} parent=0 // pred_check_branch
    %11 = sbr.rel (0) target = $region9
  $region8: #{yolov3_forward.154} parent=0 // pred_region
    _
  $region9: #{yolov3_forward.154} parent=0 // pred_fallthru
    _
  // Predicated region
  $region10: #{yolov3_forward.154} parent=0 // pred_check
    _
  $region11: #{yolov3_forward.154} parent=0 // pred_check_branch
    %13 = sbr.rel (0) target = $region13
  $region12: #{yolov3_forward.154} parent=0 // pred_region
    _
  $region13: #{yolov3_forward.154} parent=0 // pred_fallthru
    _
  %v15 = vld [vmem:[%s0] sm:$0xf]
  %v16 = vld [vmem:[%s1] sm:$0xf]
  %v17 = vld [vmem:[%s1 + $0x4] sm:$0xf]
  %v18 = vld [vmem:[%s1 + $0x8] sm:$0xf]
  %v19 = vld [vmem:[%s1 + $0xc] sm:$0xf]
  %v20 = vld [vmem:[%s1 + $0x10] sm:$0xf]
  %v21 = vld [vmem:[%s1 + $0x14] sm:$0xf]
  %v22 = vld [vmem:[%s1 + $0x18] sm:$0xf]
  %v23 = vld [vmem:[%s1 + $0x1c] sm:$0xf]
  %v24 = vld [vmem:[%s1 + $0x20] sm:$0xf]
  %v25 = vld [vmem:[%s1 + $0x24] sm:$0xf]
  %v26 = vld [vmem:[%s1 + $0x28] sm:$0xf]
  %v27 = vld [vmem:[%s1 + $0x2c] sm:$0xf]
  %v28 = vld [vmem:[%s1 + $0x30] sm:$0xf]
  %v29 = vld [vmem:[%s1 + $0x34] sm:$0xf]
  %v30 = vld [vmem:[%s1 + $0x38] sm:$0xf]
  %v31 = vld [vmem:[%s1 + $0x3c] sm:$0xf]
  %v32 = vld [vmem:[%s2] sm:$0x1]
  %v34 = vlaneseq
  %v35 = vshrl.u32 %v34, 7
  %v36 = vsub.s32 0, %v35
  %v37 = vrot.slane %v32, %v36
  %v55 = vunpack.c.l.b16 %v16
  %v56 = vunpack.c.l.b16 %v17
  %v57 = vunpack.c.l.b16 %v18
  %v58 = vunpack.c.l.b16 %v19
  %v59 = vunpack.c.l.b16 %v20
  %v60 = vunpack.c.l.b16 %v21
  %v61 = vunpack.c.l.b16 %v22
  %v62 = vunpack.c.l.b16 %v23
  %v63 = vunpack.c.l.b16 %v24
  %v64 = vunpack.c.l.b16 %v25
  %v65 = vunpack.c.l.b16 %v26
  %v66 = vunpack.c.l.b16 %v27
  %v67 = vunpack.c.l.b16 %v28
  %v68 = vunpack.c.l.b16 %v29
  %v69 = vunpack.c.l.b16 %v30
  %v70 = vunpack.c.l.b16 %v31
  %v71 = vpack.c.b16 %v56, %v55
  %v72 = vpack.c.b16 %v58, %v57
  %v73 = vpack.c.b16 %v60, %v59
  %v74 = vpack.c.b16 %v62, %v61
  %v75 = vpack.c.b16 %v64, %v63
  %v76 = vpack.c.b16 %v66, %v65
  %v77 = vpack.c.b16 %v68, %v67
  %v78 = vpack.c.b16 %v70, %v69
  %87 = vmatprep.subr.bf16.mxu0 0
  %88 = vmatpush1.bf16.msra.mxu0 %v78
  %89 = vmatprep.subr.bf16.mxu0 0
  %90 = vmatpush1.bf16.msra.mxu0 %v77
  %91 = vmatprep.subr.bf16.mxu0 0
  %92 = vmatpush1.bf16.msra.mxu0 %v76
  %93 = vmatprep.subr.bf16.mxu0 0
  %94 = vmatpush1.bf16.msra.mxu0 %v75
  %95 = vmatprep.subr.bf16.mxu0 0
  %96 = vmatpush1.bf16.msra.mxu0 %v74
  %97 = vmatprep.subr.bf16.mxu0 0
  %98 = vmatpush1.bf16.msra.mxu0 %v73
  %99 = vmatprep.subr.bf16.mxu0 0
  %100 = vmatpush1.bf16.msra.mxu0 %v72
  %101 = vmatprep.subr.bf16.mxu0 0
  %102 = vmatpush1.bf16.msra.mxu0 %v71
  %103 = vmatprep.subr.bf16.mxu0 0
  %104 = vmatpush2.bf16.msra.mxu0 0
  %105 = vmatprep.subr.bf16.mxu0 0
  %106 = vmatpush2.bf16.msra.mxu0 0
  %107 = vmatprep.subr.bf16.mxu0 0
  %108 = vmatpush2.bf16.msra.mxu0 0
  %109 = vmatprep.subr.bf16.mxu0 0
  %110 = vmatpush2.bf16.msra.mxu0 0
  %111 = vmatprep.subr.bf16.mxu0 0
  %112 = vmatpush2.bf16.msra.mxu0 0
  %113 = vmatprep.subr.bf16.mxu0 0
  %114 = vmatpush2.bf16.msra.mxu0 0
  %115 = vmatprep.subr.bf16.mxu0 0
  %116 = vmatpush2.bf16.msra.mxu0 0
  %117 = vmatprep.subr.bf16.mxu0 0
  %118 = vmatpush2.bf16.msra.mxu0 0
  %119 = vmatprep.mubr.bf16.mxu0 0
  %120 = vmatmul.mubr.bf16.gmra.mxu0 %v15
  %v121 = vpop.f32.mrf.mxu0
  %v122 = vadd.f32 %v37, %v121
  %v123 = vpop.f32.mrf.mxu0
  %v124 = vpop.f32.mrf.mxu0
  %v125 = vpop.f32.mrf.mxu0
  %126 = vdwg.mxu0
  %127 = vst [vmem:[%s3] sm:$0xff] %v122
  // Predicated region
  $region14: #{yolov3_forward.154} parent=0 // pred_check
    _
  $region15: #{yolov3_forward.154} parent=0 // pred_check_branch
    %129 = sbr.rel (0) target = $region17
  $region16: #{yolov3_forward.154} parent=0 // pred_region
    _
  $region17: #{yolov3_forward.154} parent=0 // pred_fallthru
    _
  // Predicated region
  $region18: #{yolov3_forward.154} parent=0 // pred_check
    _
  $region19: #{yolov3_forward.154} parent=0 // pred_check_branch
    %131 = sbr.rel (0) target = $region21
  $region20: #{yolov3_forward.154} parent=0 // pred_region
    _
  $region21: #{yolov3_forward.154} parent=0 // pred_fallthru
    _

// kernel: yolov3_forward.153
$region0: #{yolov3_forward.153}
  #allocation0 [shape = 'u32[]', space=smem, size = 0x4, offset = 0x4, fixed_abs, tag = 'smem constant byte address 0x4 - core index']
  #allocation1 [shape = 'u32[144,128]{1,0:T(1,128)}', space=vmem, size = 0x12000, scoped, tag = 'internal scratch']
  %s0 = inlined_call_operand.vmem [shape: bf16[8,576], index: 0, kind: input, shape index: {}]
  %s1 = inlined_call_operand.vmem [shape: bf16[576,128], index: 1, kind: input, shape index: {}]
  %s2 = inlined_call_operand.vmem [shape: f32[1,128], index: 2, kind: input, shape index: {}]
  %s3 = inlined_call_operand.vmem [shape: bf16[8,128], index: 3, kind: output, shape index: {}]
  %s4 = sld [smem:[#allocation0]]
  $region22: #{yolov3_forward.153} parent=0
    _
  %s6 = ssub.s32 1, %s4
  %s7 = scalar_select 0, %s6, %s4
  // Predicated region
  $region2: #{yolov3_forward.153} parent=0 // pred_check
    _
  $region3: #{yolov3_forward.153} parent=0 // pred_check_branch
    %9 = sbr.rel (0) target = $region5
  $region4: #{yolov3_forward.153} parent=0 // pred_region
    _
  $region5: #{yolov3_forward.153} parent=0 // pred_fallthru
    _
  // Predicated region
  $region6: #{yolov3_forward.153} parent=0 // pred_check
    _
  $region7: #{yolov3_forward.153} parent=0 // pred_check_branch
    %11 = sbr.rel (0) target = $region9
  $region8: #{yolov3_forward.153} parent=0 // pred_region
    _
  $region9: #{yolov3_forward.153} parent=0 // pred_fallthru
    _
  // Predicated region
  $region10: #{yolov3_forward.153} parent=0 // pred_check
    _
  $region11: #{yolov3_forward.153} parent=0 // pred_check_branch
    %13 = sbr.rel (0) target = $region13
  $region12: #{yolov3_forward.153} parent=0 // pred_region
    _
  $region13: #{yolov3_forward.153} parent=0 // pred_fallthru
    _
  %v15 = vld [vmem:[%s0] sm:$0xff]
  %v16 = vld [vmem:[%s0 + $0x8] sm:$0xff]
  %v17 = vld [vmem:[%s0 + $0x10] sm:$0xf]
  %v18 = vld [vmem:[%s1] sm:$0xf]
  %v19 = vld [vmem:[%s1 + $0x4] sm:$0xf]
  %v20 = vld [vmem:[%s1 + $0x8] sm:$0xf]
  %v21 = vld [vmem:[%s1 + $0xc] sm:$0xf]
  %v22 = vld [vmem:[%s1 + $0x10] sm:$0xf]
  %v23 = vld [vmem:[%s1 + $0x14] sm:$0xf]
  %v24 = vld [vmem:[%s1 + $0x18] sm:$0xf]
  %v25 = vld [vmem:[%s1 + $0x1c] sm:$0xf]
  %v26 = vld [vmem:[%s1 + $0x20] sm:$0xf]
  %v27 = vld [vmem:[%s1 + $0x24] sm:$0xf]
  %v28 = vld [vmem:[%s1 + $0x28] sm:$0xf]
  %v29 = vld [vmem:[%s1 + $0x2c] sm:$0xf]
  %v30 = vld [vmem:[%s1 + $0x30] sm:$0xf]
  %v31 = vld [vmem:[%s1 + $0x34] sm:$0xf]
  %v32 = vld [vmem:[%s1 + $0x38] sm:$0xf]
  %v33 = vld [vmem:[%s1 + $0x3c] sm:$0xf]
  %v34 = vld [vmem:[%s1 + $0x40] sm:$0xf]
  %v35 = vld [vmem:[%s1 + $0x44] sm:$0xf]
  %v36 = vld [vmem:[%s1 + $0x48] sm:$0xf]
  %v37 = vld [vmem:[%s1 + $0x4c] sm:$0xf]
  %v38 = vld [vmem:[%s1 + $0x50] sm:$0xf]
  %v39 = vld [vmem:[%s1 + $0x54] sm:$0xf]
  %v40 = vld [vmem:[%s1 + $0x58] sm:$0xf]
  %v41 = vld [vmem:[%s1 + $0x5c] sm:$0xf]
  %v42 = vld [vmem:[%s1 + $0x60] sm:$0xf]
  %v43 = vld [vmem:[%s1 + $0x64] sm:$0xf]
  %v44 = vld [vmem:[%s1 + $0x68] sm:$0xf]
  %v45 = vld [vmem:[%s1 + $0x6c] sm:$0xf]
  %v46 = vld [vmem:[%s1 + $0x70] sm:$0xf]
  %v47 = vld [vmem:[%s1 + $0x74] sm:$0xf]
  %v48 = vld [vmem:[%s1 + $0x78] sm:$0xf]
  %v49 = vld [vmem:[%s1 + $0x7c] sm:$0xf]
  %v50 = vld [vmem:[%s1 + $0x80] sm:$0xf]
  %v51 = vld [vmem:[%s1 + $0x84] sm:$0xf]
  %v52 = vld [vmem:[%s1 + $0x88] sm:$0xf]
  %v53 = vld [vmem:[%s1 + $0x8c] sm:$0xf]
  %v54 = vld [vmem:[%s1 + $0x90] sm:$0xf]
  %v55 = vld [vmem:[%s1 + $0x94] sm:$0xf]
  %v56 = vld [vmem:[%s1 + $0x98] sm:$0xf]
  %v57 = vld [vmem:[%s1 + $0x9c] sm:$0xf]
  %v58 = vld [vmem:[%s1 + $0xa0] sm:$0xf]
  %v59 = vld [vmem:[%s1 + $0xa4] sm:$0xf]
  %v60 = vld [vmem:[%s1 + $0xa8] sm:$0xf]
  %v61 = vld [vmem:[%s1 + $0xac] sm:$0xf]
  %v62 = vld [vmem:[%s1 + $0xb0] sm:$0xf]
  %v63 = vld [vmem:[%s1 + $0xb4] sm:$0xf]
  %v64 = vld [vmem:[%s1 + $0xb8] sm:$0xf]
  %v65 = vld [vmem:[%s1 + $0xbc] sm:$0xf]
  %v66 = vld [vmem:[%s1 + $0xc0] sm:$0xf]
  %v67 = vld [vmem:[%s1 + $0xc4] sm:$0xf]
  %v68 = vld [vmem:[%s1 + $0xc8] sm:$0xf]
  %v69 = vld [vmem:[%s1 + $0xcc] sm:$0xf]
  %v70 = vld [vmem:[%s1 + $0xd0] sm:$0xf]
  %v71 = vld [vmem:[%s1 + $0xd4] sm:$0xf]
  %v72 = vld [vmem:[%s1 + $0xd8] sm:$0xf]
  %v73 = vld [vmem:[%s1 + $0xdc] sm:$0xf]
  %v74 = vld [vmem:[%s1 + $0xe0] sm:$0xf]
  %v75 = vld [vmem:[%s1 + $0xe4] sm:$0xf]
  %v76 = vld [vmem:[%s1 + $0xe8] sm:$0xf]
  %v77 = vld [vmem:[%s1 + $0xec] sm:$0xf]
  %v78 = vld [vmem:[%s1 + $0xf0] sm:$0xf]
  %v79 = vld [vmem:[%s1 + $0xf4] sm:$0xf]
  %v80 = vld [vmem:[%s1 + $0xf8] sm:$0xf]
  %v81 = vld [vmem:[%s1 + $0xfc] sm:$0xf]
  %v82 = vld [vmem:[%s1 + $0x100] sm:$0xf]
  %v83 = vld [vmem:[%s1 + $0x104] sm:$0xf]
  %v84 = vld [vmem:[%s1 + $0x108] sm:$0xf]
  %v85 = vld [vmem:[%s1 + $0x10c] sm:$0xf]
  %v86 = vld [vmem:[%s1 + $0x110] sm:$0xf]
  %v87 = vld [vmem:[%s1 + $0x114] sm:$0xf]
  %v88 = vld [vmem:[%s1 + $0x118] sm:$0xf]
  %v89 = vld [vmem:[%s1 + $0x11c] sm:$0xf]
  %v90 = vld [vmem:[%s2] sm:$0x1]
  %v92 = vlaneseq
  %v93 = vshrl.u32 %v92, 7
  %v94 = vsub.s32 0, %v93
  %v95 = vrot.slane %v90, %v94
  %v100 = vunpack.c.l.b16 %v15
  %v101 = vunpack.c.h.b16 %v15
  %v102 = vunpack.c.l.b16 %v16
  %v103 = vunpack.c.h.b16 %v16
  %v104 = vunpack.c.l.b16 %v17
  %v105 = vpack.c.b16 %v100, %v100
  %v106 = vpack.c.b16 %v101, %v101
  %v107 = vpack.c.b16 %v102, %v102
  %v108 = vpack.c.b16 %v103, %v103
  %v109 = vpack.c.b16 %v104, %v104
  %v186 = vunpack.c.l.b16 %v18
  %v187 = vunpack.c.l.b16 %v19
  %v188 = vunpack.c.l.b16 %v20
  %v189 = vunpack.c.l.b16 %v21
  %v190 = vunpack.c.l.b16 %v22
  %v191 = vunpack.c.l.b16 %v23
  %v192 = vunpack.c.l.b16 %v24
  %v193 = vunpack.c.l.b16 %v25
  %v194 = vunpack.c.l.b16 %v26
  %v195 = vunpack.c.l.b16 %v27
  %v196 = vunpack.c.l.b16 %v28
  %v197 = vunpack.c.l.b16 %v29
  %v198 = vunpack.c.l.b16 %v30
  %v199 = vunpack.c.l.b16 %v31
  %v200 = vunpack.c.l.b16 %v32
  %v201 = vunpack.c.l.b16 %v33
  %v202 = vunpack.c.l.b16 %v34
  %v203 = vunpack.c.l.b16 %v35
  %v204 = vunpack.c.l.b16 %v36
  %v205 = vunpack.c.l.b16 %v37
  %v206 = vunpack.c.l.b16 %v38
  %v207 = vunpack.c.l.b16 %v39
  %v208 = vunpack.c.l.b16 %v40
  %v209 = vunpack.c.l.b16 %v41
  %v210 = vunpack.c.l.b16 %v42
  %v211 = vunpack.c.l.b16 %v43
  %v212 = vunpack.c.l.b16 %v44
  %v213 = vunpack.c.l.b16 %v45
  %v214 = vunpack.c.l.b16 %v46
  %v215 = vunpack.c.l.b16 %v47
  %v216 = vunpack.c.l.b16 %v48
  %v217 = vunpack.c.l.b16 %v49
  %v218 = vunpack.c.l.b16 %v50
  %v219 = vunpack.c.l.b16 %v51
  %v220 = vunpack.c.l.b16 %v52
  %v221 = vunpack.c.l.b16 %v53
  %v222 = vunpack.c.l.b16 %v54
  %v223 = vunpack.c.l.b16 %v55
  %v224 = vunpack.c.l.b16 %v56
  %v225 = vunpack.c.l.b16 %v57
  %v226 = vunpack.c.l.b16 %v58
  %v227 = vunpack.c.l.b16 %v59
  %v228 = vunpack.c.l.b16 %v60
  %v229 = vunpack.c.l.b16 %v61
  %v230 = vunpack.c.l.b16 %v62
  %v231 = vunpack.c.l.b16 %v63
  %v232 = vunpack.c.l.b16 %v64
  %v233 = vunpack.c.l.b16 %v65
  %v234 = vunpack.c.l.b16 %v66
  %v235 = vunpack.c.l.b16 %v67
  %v236 = vunpack.c.l.b16 %v68
  %v237 = vunpack.c.l.b16 %v69
  %v238 = vunpack.c.l.b16 %v70
  %v239 = vunpack.c.l.b16 %v71
  %v240 = vunpack.c.l.b16 %v72
  %v241 = vunpack.c.l.b16 %v73
  %v242 = vunpack.c.l.b16 %v74
  %v243 = vunpack.c.l.b16 %v75
  %v244 = vunpack.c.l.b16 %v76
  %v245 = vunpack.c.l.b16 %v77
  %v246 = vunpack.c.l.b16 %v78
  %v247 = vunpack.c.l.b16 %v79
  %v248 = vunpack.c.l.b16 %v80
  %v249 = vunpack.c.l.b16 %v81
  %v250 = vunpack.c.l.b16 %v82
  %v251 = vunpack.c.l.b16 %v83
  %v252 = vunpack.c.l.b16 %v84
  %v253 = vunpack.c.l.b16 %v85
  %v254 = vunpack.c.l.b16 %v86
  %v255 = vunpack.c.l.b16 %v87
  %v256 = vunpack.c.l.b16 %v88
  %v257 = vunpack.c.l.b16 %v89
  %v258 = vpack.c.b16 %v187, %v186
  %v259 = vpack.c.b16 %v189, %v188
  %v260 = vpack.c.b16 %v191, %v190
  %v261 = vpack.c.b16 %v193, %v192
  %v262 = vpack.c.b16 %v195, %v194
  %v263 = vpack.c.b16 %v197, %v196
  %v264 = vpack.c.b16 %v199, %v198
  %v265 = vpack.c.b16 %v201, %v200
  %v266 = vpack.c.b16 %v203, %v202
  %v267 = vpack.c.b16 %v205, %v204
  %v268 = vpack.c.b16 %v207, %v206
  %v269 = vpack.c.b16 %v209, %v208
  %v270 = vpack.c.b16 %v211, %v210
  %v271 = vpack.c.b16 %v213, %v212
  %v272 = vpack.c.b16 %v215, %v214
  %v273 = vpack.c.b16 %v217, %v216
  %v274 = vpack.c.b16 %v219, %v218
  %v275 = vpack.c.b16 %v221, %v220
  %v276 = vpack.c.b16 %v223, %v222
  %v277 = vpack.c.b16 %v225, %v224
  %v278 = vpack.c.b16 %v227, %v226
  %v279 = vpack.c.b16 %v229, %v228
  %v280 = vpack.c.b16 %v231, %v230
  %v281 = vpack.c.b16 %v233, %v232
  %v282 = vpack.c.b16 %v235, %v234
  %v283 = vpack.c.b16 %v237, %v236
  %v284 = vpack.c.b16 %v239, %v238
  %v285 = vpack.c.b16 %v241, %v240
  %v286 = vpack.c.b16 %v243, %v242
  %v287 = vpack.c.b16 %v245, %v244
  %v288 = vpack.c.b16 %v247, %v246
  %v289 = vpack.c.b16 %v249, %v248
  %v290 = vpack.c.b16 %v251, %v250
  %v291 = vpack.c.b16 %v253, %v252
  %v292 = vpack.c.b16 %v255, %v254
  %v293 = vpack.c.b16 %v257, %v256
  %vm330 = vcmask 523264
  %v332 = vsel %vm330, %v109, 0
  %334 = vmatprep.subr.bf16.mxu0 0
  %335 = vmatpush1.bf16.msra.mxu0 %v265
  %336 = vmatprep.subr.bf16.mxu0 0
  %337 = vmatpush1.bf16.msra.mxu0 %v264
  %338 = vmatprep.subr.bf16.mxu0 0
  %339 = vmatpush1.bf16.msra.mxu0 %v263
  %340 = vmatprep.subr.bf16.mxu0 0
  %341 = vmatpush1.bf16.msra.mxu0 %v262
  %342 = vmatprep.subr.bf16.mxu0 0
  %343 = vmatpush1.bf16.msra.mxu0 %v261
  %344 = vmatprep.subr.bf16.mxu0 0
  %345 = vmatpush1.bf16.msra.mxu0 %v260
  %346 = vmatprep.subr.bf16.mxu0 0
  %347 = vmatpush1.bf16.msra.mxu0 %v259
  %348 = vmatprep.subr.bf16.mxu0 0
  %349 = vmatpush1.bf16.msra.mxu0 %v258
  %350 = vmatprep.subr.bf16.mxu0 0
  %351 = vmatpush2.bf16.msra.mxu0 %v273
  %352 = vmatprep.subr.bf16.mxu0 0
  %353 = vmatpush2.bf16.msra.mxu0 %v272
  %354 = vmatprep.subr.bf16.mxu0 0
  %355 = vmatpush2.bf16.msra.mxu0 %v271
  %356 = vmatprep.subr.bf16.mxu0 0
  %357 = vmatpush2.bf16.msra.mxu0 %v270
  %358 = vmatprep.subr.bf16.mxu0 0
  %359 = vmatpush2.bf16.msra.mxu0 %v269
  %360 = vmatprep.subr.bf16.mxu0 0
  %361 = vmatpush2.bf16.msra.mxu0 %v268
  %362 = vmatprep.subr.bf16.mxu0 0
  %363 = vmatpush2.bf16.msra.mxu0 %v267
  %364 = vmatprep.subr.bf16.mxu0 0
  %365 = vmatpush2.bf16.msra.mxu0 %v266
  %366 = vmatprep.mubr.bf16.mxu0 %v106
  %367 = vmatmul.mubr.bf16.gmra.mxu0 %v105
  %v368 = vpop.f32.mrf.mxu0
  %v369 = vadd.f32 %v95, %v368
  %v370 = vpop.f32.mrf.mxu0
  %v371 = vpop.f32.mrf.mxu0
  %v372 = vpop.f32.mrf.mxu0
  %373 = vdwg.mxu0
  %374 = vmatprep.subr.bf16.mxu0 0
  %375 = vmatpush1.bf16.msra.mxu0 %v281
  %376 = vmatprep.subr.bf16.mxu0 0
  %377 = vmatpush1.bf16.msra.mxu0 %v280
  %378 = vmatprep.subr.bf16.mxu0 0
  %379 = vmatpush1.bf16.msra.mxu0 %v279
  %380 = vmatprep.subr.bf16.mxu0 0
  %381 = vmatpush1.bf16.msra.mxu0 %v278
  %382 = vmatprep.subr.bf16.mxu0 0
  %383 = vmatpush1.bf16.msra.mxu0 %v277
  %384 = vmatprep.subr.bf16.mxu0 0
  %385 = vmatpush1.bf16.msra.mxu0 %v276
  %386 = vmatprep.subr.bf16.mxu0 0
  %387 = vmatpush1.bf16.msra.mxu0 %v275
  %388 = vmatprep.subr.bf16.mxu0 0
  %389 = vmatpush1.bf16.msra.mxu0 %v274
  %390 = vmatprep.subr.bf16.mxu0 0
  %391 = vmatpush2.bf16.msra.mxu0 %v289
  %392 = vmatprep.subr.bf16.mxu0 0
  %393 = vmatpush2.bf16.msra.mxu0 %v288
  %394 = vmatprep.subr.bf16.mxu0 0
  %395 = vmatpush2.bf16.msra.mxu0 %v287
  %396 = vmatprep.subr.bf16.mxu0 0
  %397 = vmatpush2.bf16.msra.mxu0 %v286
  %398 = vmatprep.subr.bf16.mxu0 0
  %399 = vmatpush2.bf16.msra.mxu0 %v285
  %400 = vmatprep.subr.bf16.mxu0 0
  %401 = vmatpush2.bf16.msra.mxu0 %v284
  %402 = vmatprep.subr.bf16.mxu0 0
  %403 = vmatpush2.bf16.msra.mxu0 %v283
  %404 = vmatprep.subr.bf16.mxu0 0
  %405 = vmatpush2.bf16.msra.mxu0 %v282
  %406 = vmatprep.mubr.bf16.mxu0 %v108
  %407 = vmatmul.mubr.bf16.gmra.mxu0 %v107
  %v408 = vpop.f32.mrf.mxu0
  %v409 = vadd.f32 %v369, %v408
  %v410 = vpop.f32.mrf.mxu0
  %v411 = vpop.f32.mrf.mxu0
  %v412 = vpop.f32.mrf.mxu0
  %413 = vdwg.mxu0
  %414 = vmatprep.subr.bf16.mxu0 0
  %415 = vmatpush1.bf16.msra.mxu0 0
  %416 = vmatprep.subr.bf16.mxu0 0
  %417 = vmatpush1.bf16.msra.mxu0 0
  %418 = vmatprep.subr.bf16.mxu0 0
  %419 = vmatpush1.bf16.msra.mxu0 0
  %420 = vmatprep.subr.bf16.mxu0 0
  %421 = vmatpush1.bf16.msra.mxu0 0
  %422 = vmatprep.subr.bf16.mxu0 0
  %423 = vmatpush1.bf16.msra.mxu0 %v293
  %424 = vmatprep.subr.bf16.mxu0 0
  %425 = vmatpush1.bf16.msra.mxu0 %v292
  %426 = vmatprep.subr.bf16.mxu0 0
  %427 = vmatpush1.bf16.msra.mxu0 %v291
  %428 = vmatprep.subr.bf16.mxu0 0
  %429 = vmatpush1.bf16.msra.mxu0 %v290
  %430 = vmatprep.subr.bf16.mxu0 0
  %431 = vmatpush2.bf16.msra.mxu0 0
  %432 = vmatprep.subr.bf16.mxu0 0
  %433 = vmatpush2.bf16.msra.mxu0 0
  %434 = vmatprep.subr.bf16.mxu0 0
  %435 = vmatpush2.bf16.msra.mxu0 0
  %436 = vmatprep.subr.bf16.mxu0 0
  %437 = vmatpush2.bf16.msra.mxu0 0
  %438 = vmatprep.subr.bf16.mxu0 0
  %439 = vmatpush2.bf16.msra.mxu0 0
  %440 = vmatprep.subr.bf16.mxu0 0
  %441 = vmatpush2.bf16.msra.mxu0 0
  %442 = vmatprep.subr.bf16.mxu0 0
  %443 = vmatpush2.bf16.msra.mxu0 0
  %444 = vmatprep.subr.bf16.mxu0 0
  %445 = vmatpush2.bf16.msra.mxu0 0
  %446 = vmatprep.mubr.bf16.mxu0 0
  %447 = vmatmul.mubr.bf16.gmra.mxu0 %v332
  %v448 = vpop.f32.mrf.mxu0
  %v449 = vadd.f32 %v409, %v448
  %v450 = vpop.f32.mrf.mxu0
  %v451 = vpop.f32.mrf.mxu0
  %v452 = vpop.f32.mrf.mxu0
  %453 = vdwg.mxu0
  %vm454 = vcmp.gt.f32.partialorder %v449, 0.0
  %v455 = vmul.f32 %v449, 0.1
  %v456 = vsel %vm454, %v449, %v455
  %v457 = vpack.c.bf16 %v456, %v456
  %458 = vst [vmem:[%s3] sm:$0xf] %v457
  // Predicated region
  $region14: #{yolov3_forward.153} parent=0 // pred_check
    _
  $region15: #{yolov3_forward.153} parent=0 // pred_check_branch
    %460 = sbr.rel (0) target = $region17
  $region16: #{yolov3_forward.153} parent=0 // pred_region
    _
  $region17: #{yolov3_forward.153} parent=0 // pred_fallthru
    _
  // Predicated region
  $region18: #{yolov3_forward.153} parent=0 // pred_check
    _
  $region19: #{yolov3_forward.153} parent=0 // pred_check_branch
    %462 = sbr.rel (0) target = $region21
  $region20: #{yolov3_forward.153} parent=0 // pred_region
    _
  $region21: #{yolov3_forward.153} parent=0 // pred_fallthru
    _

// kernel: yolov3_forward.155
$region0: #{yolov3_forward.155}
  #allocation0 [shape = 'u32[]', space=smem, size = 0x4, offset = 0x4, fixed_abs, tag = 'smem constant byte address 0x4 - core index']
  #allocation1 [shape = 'u32[144,128]{1,0:T(1,128)}', space=vmem, size = 0x12000, scoped, tag = 'internal scratch']
  %s0 = inlined_call_operand.vmem [shape: f32[2,128], index: 0, kind: input, shape index: {}]
  %s1 = inlined_call_operand.vmem [shape: f32[2,128], index: 1, kind: output, shape index: {}]
  %s2 = sld [smem:[#allocation0]]
  $region14: #{yolov3_forward.155} parent=0
    _
  %s4 = ssub.s32 1, %s2
  %s5 = scalar_select 0, %s4, %s2
  // Predicated region
  $region2: #{yolov3_forward.155} parent=0 // pred_check
    _
  $region3: #{yolov3_forward.155} parent=0 // pred_check_branch
    %7 = sbr.rel (0) target = $region5
  $region4: #{yolov3_forward.155} parent=0 // pred_region
    _
  $region5: #{yolov3_forward.155} parent=0 // pred_fallthru
    _
  %v8 = vld [vmem:[%s0] sm:$0x3]
  %v9 = vlaneseq
  %v10 = vshrl.u32 %v9, 7
  %v11 = vcvt.s32.f32 %v10
  %v12 = vlaneseq
  %v13 = vand.u32 %v12, 127
  %v14 = vcvt.s32.f32 %v13
  %v15 = vmul.f32 %v11, 128.0
  %v16 = vadd.f32 %v15, %v14
  %v17 = vrcp.pop 8.0
  %v18 = vmul.f32 %v16, %v17
  %v19 = vfloor.f32 %v18
  %v20 = vmul.f32 %v19, 8.0
  %v21 = vsub.f32 %v16, %v20
  %v22 = vrcp.pop 3.0
  %v23 = vmul.f32 %v19, %v22
  %v24 = vfloor.f32 %v23
  %v25 = vmul.f32 %v24, 3.0
  %v26 = vsub.f32 %v19, %v25
  %v27 = vrcp.pop 2.0
  %v28 = vmul.f32 %v24, %v27
  %v29 = vfloor.f32 %v28
  %v30 = vmul.f32 %v29, 2.0
  %v31 = vsub.f32 %v24, %v30
  %v32 = vmul.f32 %v29, %v27
  %v33 = vfloor.f32 %v32
  %v34 = vmul.f32 %v33, 2.0
  %v35 = vsub.f32 %v29, %v34
  %v36 = vxor.u32 %v8, 2147483648
  %v37 = vmul.f32 %v36, 1.442695
  %v38 = vpow.pop %v37
  %v39 = vadd.f32 %v38, 1.0
  %v40 = vrcp.pop %v39
  %v41 = vmul.f32 1.0, %v40
  %vm42 = vcmp.eq.f32.partialorder %v21, 2.0
  %vm43 = vcmp.eq.f32.partialorder %v21, 3.0
  %vm44 = vmor %vm42, %vm43
  %v45 = vsel %vm44, %v8, 0.0
  %v46 = vmul.f32 %v45, 1.442695
  %v47 = vpow.pop %v46
  %vm48 = vcmp.eq.f32.partialorder %v26, 1.0
  %v49 = vsel %vm48, 24.0, 57.384617
  %v50 = vsel %vm48, 30.461538, 50.153847
  %vm51 = vcmp.eq.f32.partialorder %v26, 0.0
  %v52 = vsel %vm51, 17.846153, %v49
  %v53 = vsel %vm51, 13.846154, %v50
  %vm54 = vcmp.eq.f32.partialorder %v21, 0.0
  %v55 = vadd.f32 %v41, %v31
  %v56 = vmul.f32 %v55, 32.0
  %vm57 = vcmp.eq.f32.partialorder %v21, 1.0
  %v58 = vadd.f32 %v41, %v35
  %v59 = vmul.f32 %v58, 32.0
  %v60 = vmul.f32 %v47, %v52
  %v61 = vmul.f32 %v47, %v53
  %v62 = vsel %vm43, %v61, %v41
  %v63 = vsel %vm42, %v60, %v62
  %v64 = vsel %vm57, %v59, %v63
  %v65 = vsel %vm54, %v56, %v64
  %66 = vst [vmem:[%s1] sm:$0x3] %v65
  // Predicated region
  $region6: #{yolov3_forward.155} parent=0 // pred_check
    _
  $region7: #{yolov3_forward.155} parent=0 // pred_check_branch
    %68 = sbr.rel (0) target = $region9
  $region8: #{yolov3_forward.155} parent=0 // pred_region
    _
  $region9: #{yolov3_forward.155} parent=0 // pred_fallthru
    _
  // Predicated region
  $region10: #{yolov3_forward.155} parent=0 // pred_check
    _
  $region11: #{yolov3_forward.155} parent=0 // pred_check_branch
    %70 = sbr.rel (0) target = $region13
  $region12: #{yolov3_forward.155} parent=0 // pred_region
    _
  $region13: #{yolov3_forward.155} parent=0 // pred_fallthru
    _

</llo_original>
